<compile_context>
chip_gen: v5e
topology: v5e:2x2
jax: 0.10.0
libtpu: 0.0.40
codegen_flags: <defaults>
</compile_context>

<pallas_src>
import functools

import jax
import jax.numpy as jnp
from jax.experimental import pallas as pl
from jax.experimental.pallas import tpu as pltpu

BITS = [4, 2]
BN_EPS = 1e-5
LANE = 128
SUBLANE = 8


def _ru(x, m):
    return (x + m - 1) // m * m


# --------------------------------- kernel -----------------------------------
def _block_kernel(x_ref, w1_ref, w2_ref, s1_ref, b1_ref, s2_ref, b2_ref,
                  o_ref, pad_ref, col_ref, acc_ref, *,
                  Bt, H, W, Cin, Cout, Kin, Kpad, half_preact):
    """One batch-tile of Bt images per grid step (NHWC, real channel widths).

    x_ref  : (Bt, H, W, Cin)        input tile (any float dtype)
    w*_ref : (Kpad, Cw)             bf16 im2col weight slab, row=(kh*3+kw)*Cin+cin
    s*/b*  : (1, C)                 f32 folded BN scale / bias (selected bit)
    o_ref  : (Bt, H, W, Cout)       output tile
    pad_ref: (Bt, H+2, W+2, Cin)    bf16 zero-padded activation (reused, both convs)
    col_ref: (Bt*H*W, Kpad)         bf16 im2col buffer (reused by both convs)
    acc_ref: (Bt*H*W, Cw)           f32 conv accumulator (reused by both convs)
    """
    M = Bt * H * W
    f32 = jnp.float32

    # Zero only the 1-pixel border; the interior is fully overwritten below.
    # Re-done per step (cheap, O(border)) so each TensorCore's private scratch
    # is valid when the "parallel" batch axis is sharded across cores.
    zrow = jnp.zeros((Bt, 1, W + 2, Cin), pad_ref.dtype)
    zcol = jnp.zeros((Bt, H + 2, 1, Cin), pad_ref.dtype)
    pad_ref[:, 0:1, :, :] = zrow
    pad_ref[:, H + 1:H + 2, :, :] = zrow
    pad_ref[:, :, 0:1, :] = zcol
    pad_ref[:, :, W + 1:W + 2, :] = zcol

    # Zero the padded tail of the im2col K axis so uninitialised scratch
    # (possibly NaN) never reaches the MXU (weight rows there are zero too).
    if Kpad > Kin:
        col_ref[:, Kin:] = jnp.zeros((M, Kpad - Kin), col_ref.dtype)

    x = x_ref[...].astype(f32)

    # --- BN1 + ReLU ----------------------------------------------------------
    h1 = jnp.maximum(x * s1_ref[0] + b1_ref[0], 0.0)
    pad_ref[:, 1:H + 1, 1:W + 1, :] = h1.astype(pad_ref.dtype)

    def im2col():
        for k in range(9):
            dh, dw = k // 3, k % 3
            col_ref[:, k * Cin:(k + 1) * Cin] = (
                pad_ref[:, dh:dh + H, dw:dw + W, :].reshape(M, Cin))

    # --- conv1: one im2col matmul, K = round_up(9*Cin,128), f32 acc on MXU ---
    im2col()
    acc_ref[...] = jnp.dot(col_ref[...], w1_ref[...],
                           preferred_element_type=f32)

    # --- BN2 + ReLU -----------------------------------------------------------
    c1 = acc_ref[:, :Cout]
    h2 = jnp.maximum(c1 * s2_ref[0] + b2_ref[0], 0.0)
    pad_ref[:, 1:H + 1, 1:W + 1, :] = (
        h2.reshape(Bt, H, W, Cout).astype(pad_ref.dtype))

    # --- conv2 ----------------------------------------------------------------
    im2col()
    acc_ref[...] = jnp.dot(col_ref[...], w2_ref[...],
                           preferred_element_type=f32)

    # --- residual: read / recompute late (nothing held live across the convs) -
    if half_preact:
        residual = jnp.maximum(x_ref[...].astype(f32) * s1_ref[0] + b1_ref[0], 0.0)
    else:
        residual = x_ref[...].astype(f32)
    out = acc_ref[:, :Cout].reshape(Bt, H, W, Cout) + residual
    o_ref[...] = out.astype(o_ref.dtype)


# ------------------------------ host-side helpers ---------------------------
def _fold_bn(params, bit_id):
    """Fold eval-mode BN into per-channel f32 scale/bias (real channel width)."""
    gamma, beta, mean, var = (jnp.asarray(p)[bit_id].astype(jnp.float32)
                              for p in params)
    scale = gamma / jnp.sqrt(var + BN_EPS)
    bias = beta - mean * scale
    return scale.reshape(1, -1), bias.reshape(1, -1)


def _pack_weight(w_hwio, Kpad, Cw):
    """(3,3,Cin,Cout) HWIO -> zero-padded (Kpad, Cw) bf16 im2col weight slab."""
    kh, kw, cin, cout = w_hwio.shape
    w = w_hwio.reshape(kh * kw * cin, cout)
    w = jnp.pad(w, ((0, Kpad - kh * kw * cin), (0, Cw - cout)))
    return w.astype(jnp.bfloat16)


def _vmem_capacity_bytes():
    try:
        info = pltpu.get_tpu_info()
        cap = int(getattr(info, "vmem_capacity_bytes", 0) or 0)
        if cap > 0:
            return cap
    except Exception:
        pass
    return 64 << 20  # conservative (v7x per-core VMEM)


def _vmem_estimate(Bt, H, W, Cin, Cout, Kpad, io_itemsize):
    """Conservative in-VMEM footprint (lane/sublane padded widths)."""
    Cx = _ru(Cin, LANE)            # lane-padded width activations occupy in VMEM
    Cw = _ru(Cout, LANE)
    M = Bt * H * W
    io_bytes = (2 * Bt * H * _ru(W, SUBLANE) * Cx * io_itemsize      # dbuf'd in
                + 2 * Bt * H * _ru(W, SUBLANE) * Cw * io_itemsize)   # dbuf'd out
    pad_bytes = Bt * (H + 2) * _ru(W + 2, 16) * Cx * 2               # bf16 pad scratch
    col_bytes = _ru(M, 16) * Kpad * 2                                # bf16 im2col
    acc_bytes = _ru(M, SUBLANE) * Cw * 4                             # f32 accumulator
    wgt_bytes = 2 * 2 * _ru(Kpad, 16) * Cw * 2                       # dbuf'd w1 + w2
    bn_bytes = 4 * 2 * SUBLANE * LANE * 4
    # headroom for compiler-materialised temporaries (h1/h2/residual + relayouts)
    tmp_bytes = 4 * Bt * H * _ru(W, SUBLANE) * max(Cx, Cw) * 4 + (2 << 20)
    return (io_bytes + pad_bytes + col_bytes + acc_bytes + wgt_bytes
            + bn_bytes + tmp_bytes)


# --------------------------------- wrapper -----------------------------------
def meta_qpre_basic_block_nhwc(x_nhwc, w1, w2, bn1_params, bn2_params, bit_id,
                               block_type='both_preact', batch_tile=None):
    """x_nhwc: (N,H,W,Cin).  w1/w2: (3,3,Cin,Cout) HWIO.  Output: (N,H,W,Cout)."""
    N, H, W, Cin = x_nhwc.shape
    Cout = w1.shape[-1]
    assert Cin == Cout and w2.shape[-2] == Cout, \
        "stride=1 / no-downsample block requires Cin == Cout"
    # TODO(synk): stride>1 / downsample path not implemented.

    Kin = 9 * Cin
    Kpad = _ru(Kin, LANE)          # pad only total K (not Cin) to the lane width
    Cw = _ru(Cout, LANE)
    io_itemsize = jnp.dtype(x_nhwc.dtype).itemsize

    cap = _vmem_capacity_bytes()
    budget = int(cap * 0.80)       # ~102 MiB on 128 MiB chips, ~51 MiB on v7x

    if batch_tile is None:
        min_steps = min(N, 4)      # keep the grid deep enough to pipeline and
        Bt = 1                     # to feed both v7x TensorCores
        for d in range(1, N + 1):
            if (N % d == 0 and N // d >= min_steps
                    and _vmem_estimate(d, H, W, Cin, Cout, Kpad,
                                       io_itemsize) <= budget):
                Bt = d
    else:
        Bt = int(batch_tile)
        assert N % Bt == 0

    est = _vmem_estimate(Bt, H, W, Cin, Cout, Kpad, io_itemsize)
    vmem_limit = int(min(cap - (8 << 20), max(budget, est + (4 << 20))))

    s1, b1 = _fold_bn(bn1_params, bit_id)
    s2, b2 = _fold_bn(bn2_params, bit_id)
    w1p = _pack_weight(w1, Kpad, Cw)
    w2p = _pack_weight(w2, Kpad, Cw)

    kernel = functools.partial(
        _block_kernel, Bt=Bt, H=H, W=W, Cin=Cin, Cout=Cout,
        Kin=Kin, Kpad=Kpad, half_preact=(block_type == 'half_preact'))

    # Real work / real HBM traffic (not lane-padded) for XLA's scheduler.
    flops = 2 * 2 * N * H * W * 9 * Cin * Cout
    bytes_accessed = int(N * H * W * (Cin + Cout) * io_itemsize
                         + 2 * Kpad * Cw * 2
                         + 4 * max(Cin, Cout) * 4)

    M = Bt * H * W
    out = pl.pallas_call(
        kernel,
        out_shape=jax.ShapeDtypeStruct((N, H, W, Cout), x_nhwc.dtype),
        grid_spec=pltpu.PrefetchScalarGridSpec(
            num_scalar_prefetch=0,
            grid=(N // Bt,),
            in_specs=[
                pl.BlockSpec((Bt, H, W, Cin), lambda n: (n, 0, 0, 0)),
                pl.BlockSpec((Kpad, Cw), lambda n: (0, 0)),
                pl.BlockSpec((Kpad, Cw), lambda n: (0, 0)),
                pl.BlockSpec((1, Cin), lambda n: (0, 0)),
                pl.BlockSpec((1, Cin), lambda n: (0, 0)),
                pl.BlockSpec((1, Cout), lambda n: (0, 0)),
                pl.BlockSpec((1, Cout), lambda n: (0, 0)),
            ],
            out_specs=pl.BlockSpec((Bt, H, W, Cout), lambda n: (n, 0, 0, 0)),
            scratch_shapes=[
                pltpu.VMEM((Bt, H + 2, W + 2, Cin), jnp.bfloat16),
                pltpu.VMEM((M, Kpad), jnp.bfloat16),
                pltpu.VMEM((M, Cw), jnp.float32),
            ],
        ),
        compiler_params=pltpu.CompilerParams(
            dimension_semantics=("parallel",),
            vmem_limit_bytes=vmem_limit),
        cost_estimate=pl.CostEstimate(
            flops=flops, transcendentals=0, bytes_accessed=bytes_accessed),
    )(x_nhwc, w1p, w2p, s1, b1, s2, b2)
    return out


def meta_qpre_basic_block(x_nchw, w1_oihw, w2_oihw, bn1_params, bn2_params,
                          bit_id, block_type='both_preact', batch_tile=None):
    """PyTorch-style entry point (NCHW activations, OIHW conv weights).

    For multi-block networks prefer meta_qpre_basic_block_nhwc and keep
    activations NHWC end-to-end; the transposes here are a per-call HBM cost.
    """
    x_nhwc = jnp.transpose(x_nchw, (0, 2, 3, 1))
    w1 = jnp.transpose(w1_oihw, (2, 3, 1, 0))   # OIHW -> HWIO
    w2 = jnp.transpose(w2_oihw, (2, 3, 1, 0))
    out_nhwc = meta_qpre_basic_block_nhwc(
        x_nhwc, w1, w2, bn1_params, bn2_params, bit_id, block_type, batch_tile)
    return jnp.transpose(out_nhwc, (0, 3, 1, 2))


# ----------------------------- reference (plain JAX) -------------------------
def _reference_nhwc(x_nhwc, w1, w2, bn1_params, bn2_params, bit_id, block_type):
    def bn(x, params, b):
        gamma, beta, mean, var = (p[b] for p in params)
        return (x - mean) / jnp.sqrt(var + BN_EPS) * gamma + beta

    def conv(x, w):
        # Matches the kernel's bf16 operands / f32 accumulation.
        return jax.lax.conv_general_dilated(
            x.astype(jnp.bfloat16), w.astype(jnp.bfloat16),
            window_strides=(1, 1), padding='SAME',
            dimension_numbers=('NHWC', 'HWIO', 'NHWC'),
            preferred_element_type=jnp.float32)

    h = jax.nn.relu(bn(x_nhwc, bn1_params, bit_id))
    residual = h if block_type == 'half_preact' else x_nhwc
    h = conv(h, w1)
    h = jax.nn.relu(bn(h, bn2_params, bit_id))
    h = conv(h, w2)
    return h + residual


if __name__ == "__main__":
    key = jax.random.PRNGKey(0)
    N, Cch, Hs, Ws = 2, 8, 16, 16          # in_plane == out_plane, stride=1
    n_bits = len(BITS)

    ks = jax.random.split(key, 12)
    x_nchw = jax.random.normal(ks[0], (N, Cch, Hs, Ws), jnp.float32)

    # Conv weights, PyTorch OIHW layout.
    fan = Cch * 3 * 3
    w1_oihw = jax.random.normal(ks[1], (Cch, Cch, 3, 3), jnp.float32) / jnp.sqrt(fan)
    w2_oihw = jax.random.normal(ks[2], (Cch, Cch, 3, 3), jnp.float32) / jnp.sqrt(fan)

    # BatchNorm parameters per bit-width branch: (gamma, beta, mean, var).
    def make_bn(kset, chans):
        gamma = 0.5 + jax.random.uniform(kset[0], (n_bits, chans))
        beta = 0.1 * jax.random.normal(kset[1], (n_bits, chans))
        mean = 0.1 * jax.random.normal(kset[2], (n_bits, chans))
        var = 0.5 + jax.random.uniform(kset[3], (n_bits, chans))
        return (gamma, beta, mean, var)

    bn1_params = make_bn(ks[3:7], Cch)
    bn2_params = make_bn(ks[7:11], Cch)

    x_nhwc = jnp.transpose(x_nchw, (0, 2, 3, 1))
    w1_hwio = jnp.transpose(w1_oihw, (2, 3, 1, 0))
    w2_hwio = jnp.transpose(w2_oihw, (2, 3, 1, 0))

    for block_type, bit_id in (('both_preact', 0), ('half_preact', 1)):
        out_nchw = meta_qpre_basic_block(
            x_nchw, w1_oihw, w2_oihw, bn1_params, bn2_params, bit_id, block_type)
        out_nchw = jax.block_until_ready(out_nchw)
        assert out_nchw.shape == (N, Cch, Hs, Ws)

        ref_nhwc = _reference_nhwc(x_nhwc, w1_hwio, w2_hwio,
                                   bn1_params, bn2_params, bit_id, block_type)
        ref_nchw = jnp.transpose(ref_nhwc, (0, 3, 1, 2))
        max_err = float(jnp.max(jnp.abs(out_nchw - ref_nchw)))
        assert jnp.allclose(out_nchw, ref_nchw, atol=2e-2, rtol=2e-2), \
            (block_type, bit_id, max_err)

    print("KERNEL_OK")
</pallas_src>

<mosaic_0001>
module attributes {stable_mosaic.version = 11 : i64} {
  func.func @_block_kernel(%arg0: i32, %arg1: memref<1x16x16x8xf32, #tpu.memory_space<vmem>>, %arg2: memref<128x128xbf16, #tpu.memory_space<vmem>>, %arg3: memref<128x128xbf16, #tpu.memory_space<vmem>>, %arg4: memref<1x8xf32, #tpu.memory_space<vmem>>, %arg5: memref<1x8xf32, #tpu.memory_space<vmem>>, %arg6: memref<1x8xf32, #tpu.memory_space<vmem>>, %arg7: memref<1x8xf32, #tpu.memory_space<vmem>>, %arg8: memref<1x16x16x8xf32, #tpu.memory_space<vmem>>, %arg9: memref<1x18x18x8xbf16, #tpu.memory_space<vmem>>, %arg10: memref<256x128xbf16, #tpu.memory_space<vmem>>, %arg11: memref<256x128xf32, #tpu.memory_space<vmem>>) attributes {dimension_semantics = [#tpu.dimension_semantics<parallel>], iteration_bounds = array<i64: 2>, scalar_prefetch = 0 : i64, scratch_operands = 3 : i64, tpu.core_type = #tpu.core_type<tc>, window_params = [{transform_indices = @transform_0, window_bounds = array<i64: 1, 16, 16, 8>}, {pipeline_mode = #tpu.pipeline_mode<synchronous>, transform_indices = @transform_1, window_bounds = array<i64: 128, 128>}, {pipeline_mode = #tpu.pipeline_mode<synchronous>, transform_indices = @transform_2, window_bounds = array<i64: 128, 128>}, {pipeline_mode = #tpu.pipeline_mode<synchronous>, transform_indices = @transform_3, window_bounds = array<i64: 1, 8>}, {pipeline_mode = #tpu.pipeline_mode<synchronous>, transform_indices = @transform_4, window_bounds = array<i64: 1, 8>}, {pipeline_mode = #tpu.pipeline_mode<synchronous>, transform_indices = @transform_5, window_bounds = array<i64: 1, 8>}, {pipeline_mode = #tpu.pipeline_mode<synchronous>, transform_indices = @transform_6, window_bounds = array<i64: 1, 8>}, {transform_indices = @transform_7, window_bounds = array<i64: 1, 16, 16, 8>}]} {
    %cst = arith.constant 0.000000e+00 : bf16
    %0 = vector.broadcast %cst : bf16 to vector<1x1x18x8xbf16>
    %cst_0 = arith.constant 0.000000e+00 : bf16
    %1 = vector.broadcast %cst_0 : bf16 to vector<1x18x1x8xbf16>
    %c0 = arith.constant 0 : index
    %c0_1 = arith.constant 0 : index
    %c0_2 = arith.constant 0 : index
    %c0_3 = arith.constant 0 : index
    %2 = vector.load %arg9[%c0, %c0_1, %c0_2, %c0_3] : memref<1x18x18x8xbf16, #tpu.memory_space<vmem>>, vector<1x1x18x8xbf16>
    tpu.vector_store %arg9[%c0, %c0_1, %c0_2, %c0_3], %0 {strides = array<i32>} : memref<1x18x18x8xbf16, #tpu.memory_space<vmem>>, vector<1x1x18x8xbf16>,
    %c0_4 = arith.constant 0 : index
    %c17 = arith.constant 17 : index
    %c0_5 = arith.constant 0 : index
    %c0_6 = arith.constant 0 : index
    %3 = vector.load %arg9[%c0_4, %c17, %c0_5, %c0_6] : memref<1x18x18x8xbf16, #tpu.memory_space<vmem>>, vector<1x1x18x8xbf16>
    tpu.vector_store %arg9[%c0_4, %c17, %c0_5, %c0_6], %0 {strides = array<i32>} : memref<1x18x18x8xbf16, #tpu.memory_space<vmem>>, vector<1x1x18x8xbf16>,
    %c0_7 = arith.constant 0 : index
    %c0_8 = arith.constant 0 : index
    %c0_9 = arith.constant 0 : index
    %c0_10 = arith.constant 0 : index
    %4 = vector.load %arg9[%c0_7, %c0_8, %c0_9, %c0_10] : memref<1x18x18x8xbf16, #tpu.memory_space<vmem>>, vector<1x18x1x8xbf16>
    tpu.vector_store %arg9[%c0_7, %c0_8, %c0_9, %c0_10], %1 {strides = array<i32>} : memref<1x18x18x8xbf16, #tpu.memory_space<vmem>>, vector<1x18x1x8xbf16>,
    %c0_11 = arith.constant 0 : index
    %c0_12 = arith.constant 0 : index
    %c17_13 = arith.constant 17 : index
    %c0_14 = arith.constant 0 : index
    %5 = vector.load %arg9[%c0_11, %c0_12, %c17_13, %c0_14] : memref<1x18x18x8xbf16, #tpu.memory_space<vmem>>, vector<1x18x1x8xbf16>
    tpu.vector_store %arg9[%c0_11, %c0_12, %c17_13, %c0_14], %1 {strides = array<i32>} : memref<1x18x18x8xbf16, #tpu.memory_space<vmem>>, vector<1x18x1x8xbf16>,
    %cst_15 = arith.constant 0.000000e+00 : bf16
    %6 = vector.broadcast %cst_15 : bf16 to vector<256x56xbf16>
    %c0_16 = arith.constant 0 : index
    %c72 = arith.constant 72 : index
    %7 = vector.load %arg10[%c0_16, %c72] : memref<256x128xbf16, #tpu.memory_space<vmem>>, vector<256x56xbf16>
    tpu.vector_store %arg10[%c0_16, %c72], %6 {strides = array<i32>} : memref<256x128xbf16, #tpu.memory_space<vmem>>, vector<256x56xbf16>,
    %c0_17 = arith.constant 0 : index
    %c0_18 = arith.constant 0 : index
    %c0_19 = arith.constant 0 : index
    %c0_20 = arith.constant 0 : index
    %8 = vector.load %arg1[%c0_17, %c0_18, %c0_19, %c0_20] : memref<1x16x16x8xf32, #tpu.memory_space<vmem>>, vector<1x16x16x8xf32>
    %c0_21 = arith.constant 0 : index
    %c0_22 = arith.constant 0 : index
    %9 = vector.load %arg4[%c0_21, %c0_22] : memref<1x8xf32, #tpu.memory_space<vmem>>, vector<1x8xf32>
    %10 = vector.shape_cast %9 : vector<1x8xf32> to vector<8xf32>
    %11 = vector.shape_cast %10 : vector<8xf32> to vector<1x1x1x8xf32>
    %12 = vector.broadcast %11 : vector<1x1x1x8xf32> to vector<1x16x16x8xf32>
    %13 = arith.mulf %8, %12 : vector<1x16x16x8xf32>
    %c0_23 = arith.constant 0 : index
    %c0_24 = arith.constant 0 : index
    %14 = vector.load %arg5[%c0_23, %c0_24] : memref<1x8xf32, #tpu.memory_space<vmem>>, vector<1x8xf32>
    %15 = vector.shape_cast %14 : vector<1x8xf32> to vector<8xf32>
    %16 = vector.shape_cast %15 : vector<8xf32> to vector<1x1x1x8xf32>
    %17 = vector.broadcast %16 : vector<1x1x1x8xf32> to vector<1x16x16x8xf32>
    %18 = arith.addf %13, %17 : vector<1x16x16x8xf32>
    %cst_25 = arith.constant 0.000000e+00 : f32
    %19 = vector.broadcast %cst_25 : f32 to vector<1x16x16x8xf32>
    %20 = arith.maximumf %18, %19 : vector<1x16x16x8xf32>
    %21 = arith.truncf %20 : vector<1x16x16x8xf32> to vector<1x16x16x8xbf16>
    %c0_26 = arith.constant 0 : index
    %c1 = arith.constant 1 : index
    %c1_27 = arith.constant 1 : index
    %c0_28 = arith.constant 0 : index
    %22 = vector.load %arg9[%c0_26, %c1, %c1_27, %c0_28] : memref<1x18x18x8xbf16, #tpu.memory_space<vmem>>, vector<1x16x16x8xbf16>
    tpu.vector_store %arg9[%c0_26, %c1, %c1_27, %c0_28], %21 {strides = array<i32>} : memref<1x18x18x8xbf16, #tpu.memory_space<vmem>>, vector<1x16x16x8xbf16>,
    %c0_29 = arith.constant 0 : index
    %c0_30 = arith.constant 0 : index
    %c0_31 = arith.constant 0 : index
    %c0_32 = arith.constant 0 : index
    %23 = vector.load %arg9[%c0_29, %c0_30, %c0_31, %c0_32] : memref<1x18x18x8xbf16, #tpu.memory_space<vmem>>, vector<1x16x16x8xbf16>
    %24 = vector.shape_cast %23 : vector<1x16x16x8xbf16> to vector<256x8xbf16>
    %c0_33 = arith.constant 0 : index
    %c0_34 = arith.constant 0 : index
    %25 = vector.load %arg10[%c0_33, %c0_34] : memref<256x128xbf16, #tpu.memory_space<vmem>>, vector<256x8xbf16>
    tpu.vector_store %arg10[%c0_33, %c0_34], %24 {strides = array<i32>} : memref<256x128xbf16, #tpu.memory_space<vmem>>, vector<256x8xbf16>,
    %c0_35 = arith.constant 0 : index
    %c0_36 = arith.constant 0 : index
    %c1_37 = arith.constant 1 : index
    %c0_38 = arith.constant 0 : index
    %26 = vector.load %arg9[%c0_35, %c0_36, %c1_37, %c0_38] : memref<1x18x18x8xbf16, #tpu.memory_space<vmem>>, vector<1x16x16x8xbf16>
    %27 = vector.shape_cast %26 : vector<1x16x16x8xbf16> to vector<256x8xbf16>
    %c0_39 = arith.constant 0 : index
    %c8 = arith.constant 8 : index
    %28 = vector.load %arg10[%c0_39, %c8] : memref<256x128xbf16, #tpu.memory_space<vmem>>, vector<256x8xbf16>
    tpu.vector_store %arg10[%c0_39, %c8], %27 {strides = array<i32>} : memref<256x128xbf16, #tpu.memory_space<vmem>>, vector<256x8xbf16>,
    %c0_40 = arith.constant 0 : index
    %c0_41 = arith.constant 0 : index
    %c2 = arith.constant 2 : index
    %c0_42 = arith.constant 0 : index
    %29 = vector.load %arg9[%c0_40, %c0_41, %c2, %c0_42] : memref<1x18x18x8xbf16, #tpu.memory_space<vmem>>, vector<1x16x16x8xbf16>
    %30 = vector.shape_cast %29 : vector<1x16x16x8xbf16> to vector<256x8xbf16>
    %c0_43 = arith.constant 0 : index
    %c16 = arith.constant 16 : index
    %31 = vector.load %arg10[%c0_43, %c16] : memref<256x128xbf16, #tpu.memory_space<vmem>>, vector<256x8xbf16>
    tpu.vector_store %arg10[%c0_43, %c16], %30 {strides = array<i32>} : memref<256x128xbf16, #tpu.memory_space<vmem>>, vector<256x8xbf16>,
    %c0_44 = arith.constant 0 : index
    %c1_45 = arith.constant 1 : index
    %c0_46 = arith.constant 0 : index
    %c0_47 = arith.constant 0 : index
    %32 = vector.load %arg9[%c0_44, %c1_45, %c0_46, %c0_47] : memref<1x18x18x8xbf16, #tpu.memory_space<vmem>>, vector<1x16x16x8xbf16>
    %33 = vector.shape_cast %32 : vector<1x16x16x8xbf16> to vector<256x8xbf16>
    %c0_48 = arith.constant 0 : index
    %c24 = arith.constant 24 : index
    %34 = vector.load %arg10[%c0_48, %c24] : memref<256x128xbf16, #tpu.memory_space<vmem>>, vector<256x8xbf16>
    tpu.vector_store %arg10[%c0_48, %c24], %33 {strides = array<i32>} : memref<256x128xbf16, #tpu.memory_space<vmem>>, vector<256x8xbf16>,
    %c0_49 = arith.constant 0 : index
    %c1_50 = arith.constant 1 : index
    %c1_51 = arith.constant 1 : index
    %c0_52 = arith.constant 0 : index
    %35 = vector.load %arg9[%c0_49, %c1_50, %c1_51, %c0_52] : memref<1x18x18x8xbf16, #tpu.memory_space<vmem>>, vector<1x16x16x8xbf16>
    %36 = vector.shape_cast %35 : vector<1x16x16x8xbf16> to vector<256x8xbf16>
    %c0_53 = arith.constant 0 : index
    %c32 = arith.constant 32 : index
    %37 = vector.load %arg10[%c0_53, %c32] : memref<256x128xbf16, #tpu.memory_space<vmem>>, vector<256x8xbf16>
    tpu.vector_store %arg10[%c0_53, %c32], %36 {strides = array<i32>} : memref<256x128xbf16, #tpu.memory_space<vmem>>, vector<256x8xbf16>,
    %c0_54 = arith.constant 0 : index
    %c1_55 = arith.constant 1 : index
    %c2_56 = arith.constant 2 : index
    %c0_57 = arith.constant 0 : index
    %38 = vector.load %arg9[%c0_54, %c1_55, %c2_56, %c0_57] : memref<1x18x18x8xbf16, #tpu.memory_space<vmem>>, vector<1x16x16x8xbf16>
    %39 = vector.shape_cast %38 : vector<1x16x16x8xbf16> to vector<256x8xbf16>
    %c0_58 = arith.constant 0 : index
    %c40 = arith.constant 40 : index
    %40 = vector.load %arg10[%c0_58, %c40] : memref<256x128xbf16, #tpu.memory_space<vmem>>, vector<256x8xbf16>
    tpu.vector_store %arg10[%c0_58, %c40], %39 {strides = array<i32>} : memref<256x128xbf16, #tpu.memory_space<vmem>>, vector<256x8xbf16>,
    %c0_59 = arith.constant 0 : index
    %c2_60 = arith.constant 2 : index
    %c0_61 = arith.constant 0 : index
    %c0_62 = arith.constant 0 : index
    %41 = vector.load %arg9[%c0_59, %c2_60, %c0_61, %c0_62] : memref<1x18x18x8xbf16, #tpu.memory_space<vmem>>, vector<1x16x16x8xbf16>
    %42 = vector.shape_cast %41 : vector<1x16x16x8xbf16> to vector<256x8xbf16>
    %c0_63 = arith.constant 0 : index
    %c48 = arith.constant 48 : index
    %43 = vector.load %arg10[%c0_63, %c48] : memref<256x128xbf16, #tpu.memory_space<vmem>>, vector<256x8xbf16>
    tpu.vector_store %arg10[%c0_63, %c48], %42 {strides = array<i32>} : memref<256x128xbf16, #tpu.memory_space<vmem>>, vector<256x8xbf16>,
    %c0_64 = arith.constant 0 : index
    %c2_65 = arith.constant 2 : index
    %c1_66 = arith.constant 1 : index
    %c0_67 = arith.constant 0 : index
    %44 = vector.load %arg9[%c0_64, %c2_65, %c1_66, %c0_67] : memref<1x18x18x8xbf16, #tpu.memory_space<vmem>>, vector<1x16x16x8xbf16>
    %45 = vector.shape_cast %44 : vector<1x16x16x8xbf16> to vector<256x8xbf16>
    %c0_68 = arith.constant 0 : index
    %c56 = arith.constant 56 : index
    %46 = vector.load %arg10[%c0_68, %c56] : memref<256x128xbf16, #tpu.memory_space<vmem>>, vector<256x8xbf16>
    tpu.vector_store %arg10[%c0_68, %c56], %45 {strides = array<i32>} : memref<256x128xbf16, #tpu.memory_space<vmem>>, vector<256x8xbf16>,
    %c0_69 = arith.constant 0 : index
    %c2_70 = arith.constant 2 : index
    %c2_71 = arith.constant 2 : index
    %c0_72 = arith.constant 0 : index
    %47 = vector.load %arg9[%c0_69, %c2_70, %c2_71, %c0_72] : memref<1x18x18x8xbf16, #tpu.memory_space<vmem>>, vector<1x16x16x8xbf16>
    %48 = vector.shape_cast %47 : vector<1x16x16x8xbf16> to vector<256x8xbf16>
    %c0_73 = arith.constant 0 : index
    %c64 = arith.constant 64 : index
    %49 = vector.load %arg10[%c0_73, %c64] : memref<256x128xbf16, #tpu.memory_space<vmem>>, vector<256x8xbf16>
    tpu.vector_store %arg10[%c0_73, %c64], %48 {strides = array<i32>} : memref<256x128xbf16, #tpu.memory_space<vmem>>, vector<256x8xbf16>,
    %c0_74 = arith.constant 0 : index
    %c0_75 = arith.constant 0 : index
    %50 = vector.load %arg10[%c0_74, %c0_75] : memref<256x128xbf16, #tpu.memory_space<vmem>>, vector<256x128xbf16>
    %c0_76 = arith.constant 0 : index
    %c0_77 = arith.constant 0 : index
    %51 = vector.load %arg2[%c0_76, %c0_77] : memref<128x128xbf16, #tpu.memory_space<vmem>>, vector<128x128xbf16>
    %cst_78 = arith.constant dense<0.000000e+00> : vector<256x128xf32>
    %52 = tpu.matmul %50, %51, %cst_78 {dimension_numbers = #tpu.dot_dimension_numbers<[1], [0], [0], [1], [0, 0, 1, 1], [], []>} : vector<256x128xbf16>, vector<128x128xbf16>, vector<256x128xf32> -> vector<256x128xf32>
    %c0_79 = arith.constant 0 : index
    %c0_80 = arith.constant 0 : index
    %53 = vector.load %arg11[%c0_79, %c0_80] : memref<256x128xf32, #tpu.memory_space<vmem>>, vector<256x128xf32>
    tpu.vector_store %arg11[%c0_79, %c0_80], %52 {strides = array<i32>} : memref<256x128xf32, #tpu.memory_space<vmem>>, vector<256x128xf32>,
    %c0_81 = arith.constant 0 : index
    %c0_82 = arith.constant 0 : index
    %54 = vector.load %arg11[%c0_81, %c0_82] : memref<256x128xf32, #tpu.memory_space<vmem>>, vector<256x8xf32>
    %c0_83 = arith.constant 0 : index
    %c0_84 = arith.constant 0 : index
    %55 = vector.load %arg6[%c0_83, %c0_84] : memref<1x8xf32, #tpu.memory_space<vmem>>, vector<1x8xf32>
    %56 = vector.shape_cast %55 : vector<1x8xf32> to vector<8xf32>
    %57 = vector.shape_cast %56 : vector<8xf32> to vector<1x8xf32>
    %58 = vector.broadcast %57 : vector<1x8xf32> to vector<256x8xf32>
    %59 = arith.mulf %54, %58 : vector<256x8xf32>
    %c0_85 = arith.constant 0 : index
    %c0_86 = arith.constant 0 : index
    %60 = vector.load %arg7[%c0_85, %c0_86] : memref<1x8xf32, #tpu.memory_space<vmem>>, vector<1x8xf32>
    %61 = vector.shape_cast %60 : vector<1x8xf32> to vector<8xf32>
    %62 = vector.shape_cast %61 : vector<8xf32> to vector<1x8xf32>
    %63 = vector.broadcast %62 : vector<1x8xf32> to vector<256x8xf32>
    %64 = arith.addf %59, %63 : vector<256x8xf32>
    %cst_87 = arith.constant 0.000000e+00 : f32
    %65 = vector.broadcast %cst_87 : f32 to vector<256x8xf32>
    %66 = arith.maximumf %64, %65 : vector<256x8xf32>
    %67 = vector.shape_cast %66 : vector<256x8xf32> to vector<1x16x16x8xf32>
    %68 = arith.truncf %67 : vector<1x16x16x8xf32> to vector<1x16x16x8xbf16>
    %c0_88 = arith.constant 0 : index
    %c1_89 = arith.constant 1 : index
    %c1_90 = arith.constant 1 : index
    %c0_91 = arith.constant 0 : index
    %69 = vector.load %arg9[%c0_88, %c1_89, %c1_90, %c0_91] : memref<1x18x18x8xbf16, #tpu.memory_space<vmem>>, vector<1x16x16x8xbf16>
    tpu.vector_store %arg9[%c0_88, %c1_89, %c1_90, %c0_91], %68 {strides = array<i32>} : memref<1x18x18x8xbf16, #tpu.memory_space<vmem>>, vector<1x16x16x8xbf16>,
    %c0_92 = arith.constant 0 : index
    %c0_93 = arith.constant 0 : index
    %c0_94 = arith.constant 0 : index
    %c0_95 = arith.constant 0 : index
    %70 = vector.load %arg9[%c0_92, %c0_93, %c0_94, %c0_95] : memref<1x18x18x8xbf16, #tpu.memory_space<vmem>>, vector<1x16x16x8xbf16>
    %71 = vector.shape_cast %70 : vector<1x16x16x8xbf16> to vector<256x8xbf16>
    %c0_96 = arith.constant 0 : index
    %c0_97 = arith.constant 0 : index
    %72 = vector.load %arg10[%c0_96, %c0_97] : memref<256x128xbf16, #tpu.memory_space<vmem>>, vector<256x8xbf16>
    tpu.vector_store %arg10[%c0_96, %c0_97], %71 {strides = array<i32>} : memref<256x128xbf16, #tpu.memory_space<vmem>>, vector<256x8xbf16>,
    %c0_98 = arith.constant 0 : index
    %c0_99 = arith.constant 0 : index
    %c1_100 = arith.constant 1 : index
    %c0_101 = arith.constant 0 : index
    %73 = vector.load %arg9[%c0_98, %c0_99, %c1_100, %c0_101] : memref<1x18x18x8xbf16, #tpu.memory_space<vmem>>, vector<1x16x16x8xbf16>
    %74 = vector.shape_cast %73 : vector<1x16x16x8xbf16> to vector<256x8xbf16>
    %c0_102 = arith.constant 0 : index
    %c8_103 = arith.constant 8 : index
    %75 = vector.load %arg10[%c0_102, %c8_103] : memref<256x128xbf16, #tpu.memory_space<vmem>>, vector<256x8xbf16>
    tpu.vector_store %arg10[%c0_102, %c8_103], %74 {strides = array<i32>} : memref<256x128xbf16, #tpu.memory_space<vmem>>, vector<256x8xbf16>,
    %c0_104 = arith.constant 0 : index
    %c0_105 = arith.constant 0 : index
    %c2_106 = arith.constant 2 : index
    %c0_107 = arith.constant 0 : index
    %76 = vector.load %arg9[%c0_104, %c0_105, %c2_106, %c0_107] : memref<1x18x18x8xbf16, #tpu.memory_space<vmem>>, vector<1x16x16x8xbf16>
    %77 = vector.shape_cast %76 : vector<1x16x16x8xbf16> to vector<256x8xbf16>
    %c0_108 = arith.constant 0 : index
    %c16_109 = arith.constant 16 : index
    %78 = vector.load %arg10[%c0_108, %c16_109] : memref<256x128xbf16, #tpu.memory_space<vmem>>, vector<256x8xbf16>
    tpu.vector_store %arg10[%c0_108, %c16_109], %77 {strides = array<i32>} : memref<256x128xbf16, #tpu.memory_space<vmem>>, vector<256x8xbf16>,
    %c0_110 = arith.constant 0 : index
    %c1_111 = arith.constant 1 : index
    %c0_112 = arith.constant 0 : index
    %c0_113 = arith.constant 0 : index
    %79 = vector.load %arg9[%c0_110, %c1_111, %c0_112, %c0_113] : memref<1x18x18x8xbf16, #tpu.memory_space<vmem>>, vector<1x16x16x8xbf16>
    %80 = vector.shape_cast %79 : vector<1x16x16x8xbf16> to vector<256x8xbf16>
    %c0_114 = arith.constant 0 : index
    %c24_115 = arith.constant 24 : index
    %81 = vector.load %arg10[%c0_114, %c24_115] : memref<256x128xbf16, #tpu.memory_space<vmem>>, vector<256x8xbf16>
    tpu.vector_store %arg10[%c0_114, %c24_115], %80 {strides = array<i32>} : memref<256x128xbf16, #tpu.memory_space<vmem>>, vector<256x8xbf16>,
    %c0_116 = arith.constant 0 : index
    %c1_117 = arith.constant 1 : index
    %c1_118 = arith.constant 1 : index
    %c0_119 = arith.constant 0 : index
    %82 = vector.load %arg9[%c0_116, %c1_117, %c1_118, %c0_119] : memref<1x18x18x8xbf16, #tpu.memory_space<vmem>>, vector<1x16x16x8xbf16>
    %83 = vector.shape_cast %82 : vector<1x16x16x8xbf16> to vector<256x8xbf16>
    %c0_120 = arith.constant 0 : index
    %c32_121 = arith.constant 32 : index
    %84 = vector.load %arg10[%c0_120, %c32_121] : memref<256x128xbf16, #tpu.memory_space<vmem>>, vector<256x8xbf16>
    tpu.vector_store %arg10[%c0_120, %c32_121], %83 {strides = array<i32>} : memref<256x128xbf16, #tpu.memory_space<vmem>>, vector<256x8xbf16>,
    %c0_122 = arith.constant 0 : index
    %c1_123 = arith.constant 1 : index
    %c2_124 = arith.constant 2 : index
    %c0_125 = arith.constant 0 : index
    %85 = vector.load %arg9[%c0_122, %c1_123, %c2_124, %c0_125] : memref<1x18x18x8xbf16, #tpu.memory_space<vmem>>, vector<1x16x16x8xbf16>
    %86 = vector.shape_cast %85 : vector<1x16x16x8xbf16> to vector<256x8xbf16>
    %c0_126 = arith.constant 0 : index
    %c40_127 = arith.constant 40 : index
    %87 = vector.load %arg10[%c0_126, %c40_127] : memref<256x128xbf16, #tpu.memory_space<vmem>>, vector<256x8xbf16>
    tpu.vector_store %arg10[%c0_126, %c40_127], %86 {strides = array<i32>} : memref<256x128xbf16, #tpu.memory_space<vmem>>, vector<256x8xbf16>,
    %c0_128 = arith.constant 0 : index
    %c2_129 = arith.constant 2 : index
    %c0_130 = arith.constant 0 : index
    %c0_131 = arith.constant 0 : index
    %88 = vector.load %arg9[%c0_128, %c2_129, %c0_130, %c0_131] : memref<1x18x18x8xbf16, #tpu.memory_space<vmem>>, vector<1x16x16x8xbf16>
    %89 = vector.shape_cast %88 : vector<1x16x16x8xbf16> to vector<256x8xbf16>
    %c0_132 = arith.constant 0 : index
    %c48_133 = arith.constant 48 : index
    %90 = vector.load %arg10[%c0_132, %c48_133] : memref<256x128xbf16, #tpu.memory_space<vmem>>, vector<256x8xbf16>
    tpu.vector_store %arg10[%c0_132, %c48_133], %89 {strides = array<i32>} : memref<256x128xbf16, #tpu.memory_space<vmem>>, vector<256x8xbf16>,
    %c0_134 = arith.constant 0 : index
    %c2_135 = arith.constant 2 : index
    %c1_136 = arith.constant 1 : index
    %c0_137 = arith.constant 0 : index
    %91 = vector.load %arg9[%c0_134, %c2_135, %c1_136, %c0_137] : memref<1x18x18x8xbf16, #tpu.memory_space<vmem>>, vector<1x16x16x8xbf16>
    %92 = vector.shape_cast %91 : vector<1x16x16x8xbf16> to vector<256x8xbf16>
    %c0_138 = arith.constant 0 : index
    %c56_139 = arith.constant 56 : index
    %93 = vector.load %arg10[%c0_138, %c56_139] : memref<256x128xbf16, #tpu.memory_space<vmem>>, vector<256x8xbf16>
    tpu.vector_store %arg10[%c0_138, %c56_139], %92 {strides = array<i32>} : memref<256x128xbf16, #tpu.memory_space<vmem>>, vector<256x8xbf16>,
    %c0_140 = arith.constant 0 : index
    %c2_141 = arith.constant 2 : index
    %c2_142 = arith.constant 2 : index
    %c0_143 = arith.constant 0 : index
    %94 = vector.load %arg9[%c0_140, %c2_141, %c2_142, %c0_143] : memref<1x18x18x8xbf16, #tpu.memory_space<vmem>>, vector<1x16x16x8xbf16>
    %95 = vector.shape_cast %94 : vector<1x16x16x8xbf16> to vector<256x8xbf16>
    %c0_144 = arith.constant 0 : index
    %c64_145 = arith.constant 64 : index
    %96 = vector.load %arg10[%c0_144, %c64_145] : memref<256x128xbf16, #tpu.memory_space<vmem>>, vector<256x8xbf16>
    tpu.vector_store %arg10[%c0_144, %c64_145], %95 {strides = array<i32>} : memref<256x128xbf16, #tpu.memory_space<vmem>>, vector<256x8xbf16>,
    %c0_146 = arith.constant 0 : index
    %c0_147 = arith.constant 0 : index
    %97 = vector.load %arg10[%c0_146, %c0_147] : memref<256x128xbf16, #tpu.memory_space<vmem>>, vector<256x128xbf16>
    %c0_148 = arith.constant 0 : index
    %c0_149 = arith.constant 0 : index
    %98 = vector.load %arg3[%c0_148, %c0_149] : memref<128x128xbf16, #tpu.memory_space<vmem>>, vector<128x128xbf16>
    %cst_150 = arith.constant dense<0.000000e+00> : vector<256x128xf32>
    %99 = tpu.matmul %97, %98, %cst_150 {dimension_numbers = #tpu.dot_dimension_numbers<[1], [0], [0], [1], [0, 0, 1, 1], [], []>} : vector<256x128xbf16>, vector<128x128xbf16>, vector<256x128xf32> -> vector<256x128xf32>
    %c0_151 = arith.constant 0 : index
    %c0_152 = arith.constant 0 : index
    %100 = vector.load %arg11[%c0_151, %c0_152] : memref<256x128xf32, #tpu.memory_space<vmem>>, vector<256x128xf32>
    tpu.vector_store %arg11[%c0_151, %c0_152], %99 {strides = array<i32>} : memref<256x128xf32, #tpu.memory_space<vmem>>, vector<256x128xf32>,
    %c0_153 = arith.constant 0 : index
    %c0_154 = arith.constant 0 : index
    %c0_155 = arith.constant 0 : index
    %c0_156 = arith.constant 0 : index
    %101 = vector.load %arg1[%c0_153, %c0_154, %c0_155, %c0_156] : memref<1x16x16x8xf32, #tpu.memory_space<vmem>>, vector<1x16x16x8xf32>
    %c0_157 = arith.constant 0 : index
    %c0_158 = arith.constant 0 : index
    %102 = vector.load %arg11[%c0_157, %c0_158] : memref<256x128xf32, #tpu.memory_space<vmem>>, vector<256x8xf32>
    %103 = vector.shape_cast %102 : vector<256x8xf32> to vector<1x16x16x8xf32>
    %104 = arith.addf %103, %101 : vector<1x16x16x8xf32>
    %c0_159 = arith.constant 0 : index
    %c0_160 = arith.constant 0 : index
    %c0_161 = arith.constant 0 : index
    %c0_162 = arith.constant 0 : index
    %105 = vector.load %arg8[%c0_159, %c0_160, %c0_161, %c0_162] : memref<1x16x16x8xf32, #tpu.memory_space<vmem>>, vector<1x16x16x8xf32>
    tpu.vector_store %arg8[%c0_159, %c0_160, %c0_161, %c0_162], %104 {strides = array<i32>} : memref<1x16x16x8xf32, #tpu.memory_space<vmem>>, vector<1x16x16x8xf32>,
    return
  }
  func.func @transform_0(%arg0: i32) -> (i32, i32, i32, i32) {
    %c0_i32 = arith.constant 0 : i32
    %c0_i32_0 = arith.constant 0 : i32
    %c0_i32_1 = arith.constant 0 : i32
    %c0_i32_2 = arith.constant 0 : i32
    return %arg0, %c0_i32, %c0_i32_0, %c0_i32_1 : i32, i32, i32, i32
  }
  func.func @transform_1(%arg0: i32) -> (i32, i32) {
    %c0_i32 = arith.constant 0 : i32
    %c0_i32_0 = arith.constant 0 : i32
    %c0_i32_1 = arith.constant 0 : i32
    return %c0_i32, %c0_i32_0 : i32, i32
  }
  func.func @transform_2(%arg0: i32) -> (i32, i32) {
    %c0_i32 = arith.constant 0 : i32
    %c0_i32_0 = arith.constant 0 : i32
    %c0_i32_1 = arith.constant 0 : i32
    return %c0_i32, %c0_i32_0 : i32, i32
  }
  func.func @transform_3(%arg0: i32) -> (i32, i32) {
    %c0_i32 = arith.constant 0 : i32
    %c0_i32_0 = arith.constant 0 : i32
    %c0_i32_1 = arith.constant 0 : i32
    return %c0_i32, %c0_i32_0 : i32, i32
  }
  func.func @transform_4(%arg0: i32) -> (i32, i32) {
    %c0_i32 = arith.constant 0 : i32
    %c0_i32_0 = arith.constant 0 : i32
    %c0_i32_1 = arith.constant 0 : i32
    return %c0_i32, %c0_i32_0 : i32, i32
  }
  func.func @transform_5(%arg0: i32) -> (i32, i32) {
    %c0_i32 = arith.constant 0 : i32
    %c0_i32_0 = arith.constant 0 : i32
    %c0_i32_1 = arith.constant 0 : i32
    return %c0_i32, %c0_i32_0 : i32, i32
  }
  func.func @transform_6(%arg0: i32) -> (i32, i32) {
    %c0_i32 = arith.constant 0 : i32
    %c0_i32_0 = arith.constant 0 : i32
    %c0_i32_1 = arith.constant 0 : i32
    return %c0_i32, %c0_i32_0 : i32, i32
  }
  func.func @transform_7(%arg0: i32) -> (i32, i32, i32, i32) {
    %c0_i32 = arith.constant 0 : i32
    %c0_i32_0 = arith.constant 0 : i32
    %c0_i32_1 = arith.constant 0 : i32
    %c0_i32_2 = arith.constant 0 : i32
    return %arg0, %c0_i32, %c0_i32_0, %c0_i32_1 : i32, i32, i32, i32
  }
}

</mosaic_0001>

<llo_original>
// kernel: tpu_custom_call.1
$region0: #{tpu_custom_call.1}
  #allocation0 [shape = 'u32[]', space=smem, size = 0x4, offset = 0x4, fixed_abs, tag = 'smem constant byte address 0x4 - core index']
  #allocation1 [shape = 'u32[72,128]{1,0:T(1,128)}', space=vmem, size = 0x9000, scoped, tag = 'internal scratch']
  #allocation2 [shape = 'bf16[1,18,18,8]{3,2,1,0:T(8,128)(2,1)}', space=vmem, size = 0x1b000, scoped, tag = 'scratch operand']
  #allocation3 [shape = 'bf16[256,128]{1,0:T(8,128)(2,1)}', space=vmem, size = 0x10000, scoped, tag = 'scratch operand']
  #allocation4 [shape = 'f32[256,128]{1,0:T(8,128)}', space=vmem, size = 0x20000, scoped, tag = 'scratch operand']
  %s0 = inlined_call_operand.vmem [shape: f32[2,16,16,8], index: 0, kind: input, shape index: {}]
  %s1 = inlined_call_operand.vmem [shape: bf16[128,128], index: 1, kind: input, shape index: {}]
  %s2 = inlined_call_operand.vmem [shape: bf16[128,128], index: 2, kind: input, shape index: {}]
  %s3 = inlined_call_operand.vmem [shape: f32[1,8], index: 3, kind: input, shape index: {}]
  %s4 = inlined_call_operand.vmem [shape: f32[1,8], index: 4, kind: input, shape index: {}]
  %s5 = inlined_call_operand.vmem [shape: f32[1,8], index: 5, kind: input, shape index: {}]
  %s6 = inlined_call_operand.vmem [shape: f32[1,8], index: 6, kind: input, shape index: {}]
  %s7 = inlined_call_operand.vmem [shape: f32[2,16,16,8], index: 7, kind: output, shape index: {}]
  %s8 = sld [smem:[#allocation0]]
  $region61: #{tpu_custom_call.1} parent=0
    _
  %s10 = ssub.s32 1, %s8
  %s11 = scalar_select 0, %s10, %s8
  loop: start=0, step=1, limit=4
  $region2: #{tpu_custom_call.1} parent=0 // loop_pre_header
    _
  $region3: #{tpu_custom_call.1} parent=0 // loop_header
    %s13 = sphi 0, %s17
    %p14 = scmp.ge.s32.totalorder %s13, 4
    %s23 = sphi 0, %s25
    %s26 = sphi 0, %s23
    %s27 = sphi 0, %s26
    %s43 = sphi 0, %s27
    %s47 = sphi 0, %s47
    %s49 = sphi 0, %s47
    %s50 = sphi 0, %s49
    %s64 = sphi 0, %s50
    %s68 = sphi 0, %s68
    %s70 = sphi 0, %s68
    %s71 = sphi 0, %s70
    %s85 = sphi 0, %s71
    %s89 = sphi 0, %s89
    %s91 = sphi 0, %s89
    %s92 = sphi 0, %s91
    %s106 = sphi 0, %s92
    %s110 = sphi 0, %s110
    %s112 = sphi 0, %s110
    %s113 = sphi 0, %s112
    %s127 = sphi 0, %s113
    %s131 = sphi 0, %s131
    %s133 = sphi 0, %s131
    %s134 = sphi 0, %s133
    %s148 = sphi 0, %s134
    %s152 = sphi 0, %s152
    %s154 = sphi 0, %s152
    %s155 = sphi 0, %s154
    %s169 = sphi 0, %s155
    %s175 = sphi 0, %s177
    %s178 = sphi 0, %s175
    %s179 = sphi 0, %s178
    %s195 = sphi 0, %s179
  $region4: #{tpu_custom_call.1} parent=0 // loop_header_branch
    %16 = sbr.rel (%p14) target = $region8
  $region5: #{tpu_custom_call.1} parent=0 // loop_body
    %s18 = ssub.s32 %s13, 1
    %s19 = ssub.s32 %s13, 2
    %s20 = sadd.s32 %s13, 1
    %s21 = ssub.s32 %s13, %s20
    %p22 = scmp.eq.s32.totalorder %s21, 0
    %s24 = sadd.s32 %s23, 1
    %s25 = scalar_select %p22, %s23, %s24
    %p28 = pneg %p22
    %p29 = scmp.eq.s32.totalorder %s13, 1
    %p30 = por %p28, %p29
    %p31 = scmp.ne.s32.totalorder %s23, %s26
    %p32 = scmp.eq.s32.totalorder %s13, 0
    %p33 = por %p31, %p32
    %p34 = scmp.ne.s32.totalorder %s23, %s26
    %p35 = scmp.eq.s32.totalorder %s18, 1
    %p36 = por %p34, %p35
    %p37 = scmp.ne.s32.totalorder %s26, %s27
    %p38 = scmp.eq.s32.totalorder %s18, 0
    %p39 = por %p37, %p38
    %p40 = scmp.ne.s32.totalorder %s26, %s27
    %p41 = scmp.eq.s32.totalorder %s19, 1
    %p42 = por %p40, %p41
    %p44 = scmp.ne.s32.totalorder %s27, %s43
    %p45 = scmp.eq.s32.totalorder %s19, 0
    %p46 = por %p44, %p45
    %s48 = sadd.s32 %s47, 1
    %p51 = scmp.eq.s32.totalorder %s13, 1
    %p52 = scmp.ne.s32.totalorder %s47, %s49
    %p53 = scmp.eq.s32.totalorder %s13, 0
    %p54 = por %p52, %p53
    %p55 = scmp.ne.s32.totalorder %s47, %s49
    %p56 = scmp.eq.s32.totalorder %s18, 1
    %p57 = por %p55, %p56
    %p58 = scmp.ne.s32.totalorder %s49, %s50
    %p59 = scmp.eq.s32.totalorder %s18, 0
    %p60 = por %p58, %p59
    %p61 = scmp.ne.s32.totalorder %s49, %s50
    %p62 = scmp.eq.s32.totalorder %s19, 1
    %p63 = por %p61, %p62
    %p65 = scmp.ne.s32.totalorder %s50, %s64
    %p66 = scmp.eq.s32.totalorder %s19, 0
    %p67 = por %p65, %p66
    %s69 = sadd.s32 %s68, 1
    %p72 = scmp.eq.s32.totalorder %s13, 1
    %p73 = scmp.ne.s32.totalorder %s68, %s70
    %p74 = scmp.eq.s32.totalorder %s13, 0
    %p75 = por %p73, %p74
    %p76 = scmp.ne.s32.totalorder %s68, %s70
    %p77 = scmp.eq.s32.totalorder %s18, 1
    %p78 = por %p76, %p77
    %p79 = scmp.ne.s32.totalorder %s70, %s71
    %p80 = scmp.eq.s32.totalorder %s18, 0
    %p81 = por %p79, %p80
    %p82 = scmp.ne.s32.totalorder %s70, %s71
    %p83 = scmp.eq.s32.totalorder %s19, 1
    %p84 = por %p82, %p83
    %p86 = scmp.ne.s32.totalorder %s71, %s85
    %p87 = scmp.eq.s32.totalorder %s19, 0
    %p88 = por %p86, %p87
    %s90 = sadd.s32 %s89, 1
    %p93 = scmp.eq.s32.totalorder %s13, 1
    %p94 = scmp.ne.s32.totalorder %s89, %s91
    %p95 = scmp.eq.s32.totalorder %s13, 0
    %p96 = por %p94, %p95
    %p97 = scmp.ne.s32.totalorder %s89, %s91
    %p98 = scmp.eq.s32.totalorder %s18, 1
    %p99 = por %p97, %p98
    %p100 = scmp.ne.s32.totalorder %s91, %s92
    %p101 = scmp.eq.s32.totalorder %s18, 0
    %p102 = por %p100, %p101
    %p103 = scmp.ne.s32.totalorder %s91, %s92
    %p104 = scmp.eq.s32.totalorder %s19, 1
    %p105 = por %p103, %p104
    %p107 = scmp.ne.s32.totalorder %s92, %s106
    %p108 = scmp.eq.s32.totalorder %s19, 0
    %p109 = por %p107, %p108
    %s111 = sadd.s32 %s110, 1
    %p114 = scmp.eq.s32.totalorder %s13, 1
    %p115 = scmp.ne.s32.totalorder %s110, %s112
    %p116 = scmp.eq.s32.totalorder %s13, 0
    %p117 = por %p115, %p116
    %p118 = scmp.ne.s32.totalorder %s110, %s112
    %p119 = scmp.eq.s32.totalorder %s18, 1
    %p120 = por %p118, %p119
    %p121 = scmp.ne.s32.totalorder %s112, %s113
    %p122 = scmp.eq.s32.totalorder %s18, 0
    %p123 = por %p121, %p122
    %p124 = scmp.ne.s32.totalorder %s112, %s113
    %p125 = scmp.eq.s32.totalorder %s19, 1
    %p126 = por %p124, %p125
    %p128 = scmp.ne.s32.totalorder %s113, %s127
    %p129 = scmp.eq.s32.totalorder %s19, 0
    %p130 = por %p128, %p129
    %s132 = sadd.s32 %s131, 1
    %p135 = scmp.eq.s32.totalorder %s13, 1
    %p136 = scmp.ne.s32.totalorder %s131, %s133
    %p137 = scmp.eq.s32.totalorder %s13, 0
    %p138 = por %p136, %p137
    %p139 = scmp.ne.s32.totalorder %s131, %s133
    %p140 = scmp.eq.s32.totalorder %s18, 1
    %p141 = por %p139, %p140
    %p142 = scmp.ne.s32.totalorder %s133, %s134
    %p143 = scmp.eq.s32.totalorder %s18, 0
    %p144 = por %p142, %p143
    %p145 = scmp.ne.s32.totalorder %s133, %s134
    %p146 = scmp.eq.s32.totalorder %s19, 1
    %p147 = por %p145, %p146
    %p149 = scmp.ne.s32.totalorder %s134, %s148
    %p150 = scmp.eq.s32.totalorder %s19, 0
    %p151 = por %p149, %p150
    %s153 = sadd.s32 %s152, 1
    %p156 = scmp.eq.s32.totalorder %s13, 1
    %p157 = scmp.ne.s32.totalorder %s152, %s154
    %p158 = scmp.eq.s32.totalorder %s13, 0
    %p159 = por %p157, %p158
    %p160 = scmp.ne.s32.totalorder %s152, %s154
    %p161 = scmp.eq.s32.totalorder %s18, 1
    %p162 = por %p160, %p161
    %p163 = scmp.ne.s32.totalorder %s154, %s155
    %p164 = scmp.eq.s32.totalorder %s18, 0
    %p165 = por %p163, %p164
    %p166 = scmp.ne.s32.totalorder %s154, %s155
    %p167 = scmp.eq.s32.totalorder %s19, 1
    %p168 = por %p166, %p167
    %p170 = scmp.ne.s32.totalorder %s155, %s169
    %p171 = scmp.eq.s32.totalorder %s19, 0
    %p172 = por %p170, %p171
    %s173 = ssub.s32 %s13, %s20
    %p174 = scmp.eq.s32.totalorder %s173, 0
    %s176 = sadd.s32 %s175, 1
    %s177 = scalar_select %p174, %s175, %s176
    %p180 = pneg %p174
    %p181 = scmp.eq.s32.totalorder %s13, 1
    %p182 = por %p180, %p181
    %p183 = scmp.ne.s32.totalorder %s175, %s178
    %p184 = scmp.eq.s32.totalorder %s13, 0
    %p185 = por %p183, %p184
    %p186 = scmp.ne.s32.totalorder %s175, %s178
    %p187 = scmp.eq.s32.totalorder %s18, 1
    %p188 = por %p186, %p187
    %p189 = scmp.ne.s32.totalorder %s178, %s179
    %p190 = scmp.eq.s32.totalorder %s18, 0
    %p191 = por %p189, %p190
    %p192 = scmp.ne.s32.totalorder %s178, %s179
    %p193 = scmp.eq.s32.totalorder %s19, 1
    %p194 = por %p192, %p193
    %p196 = scmp.ne.s32.totalorder %s179, %s195
    %p197 = scmp.eq.s32.totalorder %s19, 0
    %p198 = por %p196, %p197
    %p199 = scmp.le.s32.totalorder 1, %s13
    %p200 = scmp.lt.s32.totalorder %s13, 3
    %p201 = pnand %p199, %p200
    %p202 = pneg %p201
    // Predicated region
    $region9: #{tpu_custom_call.1} parent=5 // pred_check
      _
    $region10: #{tpu_custom_call.1} parent=5 // pred_check_branch
      %204 = sbr.rel (%p201) target = $region12
    $region11: #{tpu_custom_call.1} parent=5 // pred_region
      %s205 = ssub.s32 %s13, 1
      // Predicated region
      $region13: #{tpu_custom_call.1} parent=11 // pred_check
        %p206 = pneg %p60
      $region14: #{tpu_custom_call.1} parent=11 // pred_check_branch
        %208 = sbr.rel (%p206) target = $region16
      $region15: #{tpu_custom_call.1} parent=11 // pred_region
        _
      $region16: #{tpu_custom_call.1} parent=11 // pred_fallthru
        _
      // Predicated region
      $region17: #{tpu_custom_call.1} parent=11 // pred_check
        %p209 = pneg %p81
      $region18: #{tpu_custom_call.1} parent=11 // pred_check_branch
        %211 = sbr.rel (%p209) target = $region20
      $region19: #{tpu_custom_call.1} parent=11 // pred_region
        _
      $region20: #{tpu_custom_call.1} parent=11 // pred_fallthru
        _
      // Predicated region
      $region21: #{tpu_custom_call.1} parent=11 // pred_check
        %p212 = pneg %p102
      $region22: #{tpu_custom_call.1} parent=11 // pred_check_branch
        %214 = sbr.rel (%p212) target = $region24
      $region23: #{tpu_custom_call.1} parent=11 // pred_region
        _
      $region24: #{tpu_custom_call.1} parent=11 // pred_fallthru
        _
      // Predicated region
      $region25: #{tpu_custom_call.1} parent=11 // pred_check
        %p215 = pneg %p123
      $region26: #{tpu_custom_call.1} parent=11 // pred_check_branch
        %217 = sbr.rel (%p215) target = $region28
      $region27: #{tpu_custom_call.1} parent=11 // pred_region
        _
      $region28: #{tpu_custom_call.1} parent=11 // pred_fallthru
        _
      // Predicated region
      $region29: #{tpu_custom_call.1} parent=11 // pred_check
        %p218 = pneg %p144
      $region30: #{tpu_custom_call.1} parent=11 // pred_check_branch
        %220 = sbr.rel (%p218) target = $region32
      $region31: #{tpu_custom_call.1} parent=11 // pred_region
        _
      $region32: #{tpu_custom_call.1} parent=11 // pred_fallthru
        _
      // Predicated region
      $region33: #{tpu_custom_call.1} parent=11 // pred_check
        %p221 = pneg %p165
      $region34: #{tpu_custom_call.1} parent=11 // pred_check_branch
        %223 = sbr.rel (%p221) target = $region36
      $region35: #{tpu_custom_call.1} parent=11 // pred_region
        _
      $region36: #{tpu_custom_call.1} parent=11 // pred_fallthru
        _
    $region12: #{tpu_custom_call.1} parent=5 // pred_fallthru
      _
    %p224 = scmp.lt.s32.totalorder %s13, 2
    // Predicated region
    $region37: #{tpu_custom_call.1} parent=5 // pred_check
      %p225 = pneg %p224
    $region38: #{tpu_custom_call.1} parent=5 // pred_check_branch
      %227 = sbr.rel (%p225) target = $region40
    $region39: #{tpu_custom_call.1} parent=5 // pred_region
      // Predicated region
      $region41: #{tpu_custom_call.1} parent=39 // pred_check
        %p228 = pneg %p33
      $region42: #{tpu_custom_call.1} parent=39 // pred_check_branch
        %230 = sbr.rel (%p228) target = $region44
      $region43: #{tpu_custom_call.1} parent=39 // pred_region
        %p231 = scmp.lt.s32.totalorder %s13, 1
        %s232 = scalar_select %p231, %s13, 1
        %s233 = smul.addr %s232, 32
        %s234 = smul.addr %s233, 8
        %s235 = scalar_lea.vmem %s0, %s234
      $region44: #{tpu_custom_call.1} parent=39 // pred_fallthru
        _
    $region40: #{tpu_custom_call.1} parent=5 // pred_fallthru
      _
    %p236 = scmp.le.s32.totalorder 1, %s13
    %p237 = scmp.lt.s32.totalorder %s13, 3
    %p238 = pnand %p236, %p237
    %p239 = pneg %p238
    // Predicated region
    $region45: #{tpu_custom_call.1} parent=5 // pred_check
      _
    $region46: #{tpu_custom_call.1} parent=5 // pred_check_branch
      %241 = sbr.rel (%p238) target = $region48
    $region47: #{tpu_custom_call.1} parent=5 // pred_region
      %s242 = ssub.s32 %s13, 1
      %p243 = scmp.lt.s32.totalorder %s18, 1
      %s244 = scalar_select %p243, %s18, 1
      %s245 = smul.addr %s244, 32
      %s246 = smul.addr %s245, 8
      %s247 = scalar_lea.vmem %s0, %s246
      %p248 = pneg %p39
      %p249 = pneg %p36
      %p250 = pneg %p60
      %p251 = pneg %p57
      %p252 = pneg %p81
      %p253 = pneg %p78
      %p254 = pneg %p102
      %p255 = pneg %p99
      %p256 = pneg %p123
      %p257 = pneg %p120
      %p258 = pneg %p144
      %p259 = pneg %p141
      %p260 = pneg %p165
      %p261 = pneg %p162
      %p262 = pneg %p191
      %p263 = pneg %p188
      %p264 = scmp.lt.s32.totalorder %s18, 1
      %s265 = scalar_select %p264, %s18, 1
      %s266 = smul.addr %s265, 32
      %s267 = smul.addr %s266, 8
      %s268 = scalar_lea.vmem %s7, %s267
      %p269 = scmp.lt.s32.totalorder %s18, 1
      %s270 = scalar_select %p269, %s18, 1
      %s271 = smul.addr %s270, 32
      %s272 = smul.addr %s271, 8
      %s273 = scalar_lea.vmem %s0, %s272
      %p274 = scmp.lt.s32.totalorder %s18, 1
      %s275 = scalar_select %p274, %s18, 1
      %s276 = smul.addr %s275, 32
      %s277 = smul.addr %s276, 8
      %s278 = scalar_lea.vmem %s7, %s277
      %vm280 = vcmask 60416
      %281 = vst.msk [vmem:[#allocation2] sm:$0xf] %vm280, 0
      %282 = vst.msk [vmem:[#allocation2 + $0x4] sm:$0xf] %vm280, 0
      %vm283 = vcmask 57344
      %284 = vst.msk [vmem:[#allocation2 + $0x8] sm:$0x1] %vm283, 0
      %s285 = scalar_lea.vmem [#allocation2], 204
      %286 = vst.msk [vmem:[%s285] sm:$0xf] %vm280, 0
      %287 = vst.msk [vmem:[%s285 + $0x4] sm:$0xf] %vm280, 0
      %288 = vst.msk [vmem:[%s285 + $0x8] sm:$0x1] %vm283, 0
      %vm289 = vcmask 57344
      %vm290 = vsmask.f32 256
      %vm291 = vmand %vm289, %vm290
      %v292 = vld [vmem:[#allocation2] sm:$0x1]
      %v293 = vsel %vm291, 0, %v292
      %294 = vst [vmem:[#allocation2] sm:$0x1] %v293
      %v295 = vld [vmem:[#allocation2 + $0xc] sm:$0x1]
      %v296 = vsel %vm291, 0, %v295
      %297 = vst [vmem:[#allocation2 + $0xc] sm:$0x1] %v296
      %v298 = vld [vmem:[#allocation2 + $0x18] sm:$0x1]
      %v299 = vsel %vm291, 0, %v298
      %300 = vst [vmem:[#allocation2 + $0x18] sm:$0x1] %v299
      %v301 = vld [vmem:[#allocation2 + $0x24] sm:$0x1]
      %v302 = vsel %vm291, 0, %v301
      %303 = vst [vmem:[#allocation2 + $0x24] sm:$0x1] %v302
      %v304 = vld [vmem:[#allocation2 + $0x30] sm:$0x1]
      %v305 = vsel %vm291, 0, %v304
      %306 = vst [vmem:[#allocation2 + $0x30] sm:$0x1] %v305
      %v307 = vld [vmem:[#allocation2 + $0x3c] sm:$0x1]
      %v308 = vsel %vm291, 0, %v307
      %309 = vst [vmem:[#allocation2 + $0x3c] sm:$0x1] %v308
      %v310 = vld [vmem:[#allocation2 + $0x48] sm:$0x1]
      %v311 = vsel %vm291, 0, %v310
      %312 = vst [vmem:[#allocation2 + $0x48] sm:$0x1] %v311
      %v313 = vld [vmem:[#allocation2 + $0x54] sm:$0x1]
      %v314 = vsel %vm291, 0, %v313
      %315 = vst [vmem:[#allocation2 + $0x54] sm:$0x1] %v314
      %v316 = vld [vmem:[#allocation2 + $0x60] sm:$0x1]
      %v317 = vsel %vm291, 0, %v316
      %318 = vst [vmem:[#allocation2 + $0x60] sm:$0x1] %v317
      %v319 = vld [vmem:[#allocation2 + $0x6c] sm:$0x1]
      %v320 = vsel %vm291, 0, %v319
      %321 = vst [vmem:[#allocation2 + $0x6c] sm:$0x1] %v320
      %v322 = vld [vmem:[#allocation2 + $0x78] sm:$0x1]
      %v323 = vsel %vm291, 0, %v322
      %324 = vst [vmem:[#allocation2 + $0x78] sm:$0x1] %v323
      %v325 = vld [vmem:[#allocation2 + $0x84] sm:$0x1]
      %v326 = vsel %vm291, 0, %v325
      %327 = vst [vmem:[#allocation2 + $0x84] sm:$0x1] %v326
      %v328 = vld [vmem:[#allocation2 + $0x90] sm:$0x1]
      %v329 = vsel %vm291, 0, %v328
      %330 = vst [vmem:[#allocation2 + $0x90] sm:$0x1] %v329
      %v331 = vld [vmem:[#allocation2 + $0x9c] sm:$0x1]
      %v332 = vsel %vm291, 0, %v331
      %333 = vst [vmem:[#allocation2 + $0x9c] sm:$0x1] %v332
      %v334 = vld [vmem:[#allocation2 + $0xa8] sm:$0x1]
      %v335 = vsel %vm291, 0, %v334
      %336 = vst [vmem:[#allocation2 + $0xa8] sm:$0x1] %v335
      %v337 = vld [vmem:[#allocation2 + $0xb4] sm:$0x1]
      %v338 = vsel %vm291, 0, %v337
      %339 = vst [vmem:[#allocation2 + $0xb4] sm:$0x1] %v338
      %v340 = vld [vmem:[#allocation2 + $0xc0] sm:$0x1]
      %v341 = vsel %vm291, 0, %v340
      %342 = vst [vmem:[#allocation2 + $0xc0] sm:$0x1] %v341
      %v343 = vld [vmem:[#allocation2 + $0xcc] sm:$0x1]
      %v344 = vsel %vm291, 0, %v343
      %345 = vst [vmem:[#allocation2 + $0xcc] sm:$0x1] %v344
      %vm346 = vsmask.f32 7938
      %vm347 = vmand %vm289, %vm346
      %v348 = vld [vmem:[#allocation2 + $0x8] sm:$0x1]
      %v349 = vsel %vm347, 0, %v348
      %350 = vst [vmem:[#allocation2 + $0x8] sm:$0x1] %v349
      %v351 = vld [vmem:[#allocation2 + $0x14] sm:$0x1]
      %v352 = vsel %vm347, 0, %v351
      %353 = vst [vmem:[#allocation2 + $0x14] sm:$0x1] %v352
      %v354 = vld [vmem:[#allocation2 + $0x20] sm:$0x1]
      %v355 = vsel %vm347, 0, %v354
      %356 = vst [vmem:[#allocation2 + $0x20] sm:$0x1] %v355
      %v357 = vld [vmem:[#allocation2 + $0x2c] sm:$0x1]
      %v358 = vsel %vm347, 0, %v357
      %359 = vst [vmem:[#allocation2 + $0x2c] sm:$0x1] %v358
      %v360 = vld [vmem:[#allocation2 + $0x38] sm:$0x1]
      %v361 = vsel %vm347, 0, %v360
      %362 = vst [vmem:[#allocation2 + $0x38] sm:$0x1] %v361
      %v363 = vld [vmem:[#allocation2 + $0x44] sm:$0x1]
      %v364 = vsel %vm347, 0, %v363
      %365 = vst [vmem:[#allocation2 + $0x44] sm:$0x1] %v364
      %v366 = vld [vmem:[#allocation2 + $0x50] sm:$0x1]
      %v367 = vsel %vm347, 0, %v366
      %368 = vst [vmem:[#allocation2 + $0x50] sm:$0x1] %v367
      %v369 = vld [vmem:[#allocation2 + $0x5c] sm:$0x1]
      %v370 = vsel %vm347, 0, %v369
      %371 = vst [vmem:[#allocation2 + $0x5c] sm:$0x1] %v370
      %v372 = vld [vmem:[#allocation2 + $0x68] sm:$0x1]
      %v373 = vsel %vm347, 0, %v372
      %374 = vst [vmem:[#allocation2 + $0x68] sm:$0x1] %v373
      %v375 = vld [vmem:[#allocation2 + $0x74] sm:$0x1]
      %v376 = vsel %vm347, 0, %v375
      %377 = vst [vmem:[#allocation2 + $0x74] sm:$0x1] %v376
      %v378 = vld [vmem:[#allocation2 + $0x80] sm:$0x1]
      %v379 = vsel %vm347, 0, %v378
      %380 = vst [vmem:[#allocation2 + $0x80] sm:$0x1] %v379
      %v381 = vld [vmem:[#allocation2 + $0x8c] sm:$0x1]
      %v382 = vsel %vm347, 0, %v381
      %383 = vst [vmem:[#allocation2 + $0x8c] sm:$0x1] %v382
      %v384 = vld [vmem:[#allocation2 + $0x98] sm:$0x1]
      %v385 = vsel %vm347, 0, %v384
      %386 = vst [vmem:[#allocation2 + $0x98] sm:$0x1] %v385
      %v387 = vld [vmem:[#allocation2 + $0xa4] sm:$0x1]
      %v388 = vsel %vm347, 0, %v387
      %389 = vst [vmem:[#allocation2 + $0xa4] sm:$0x1] %v388
      %v390 = vld [vmem:[#allocation2 + $0xb0] sm:$0x1]
      %v391 = vsel %vm347, 0, %v390
      %392 = vst [vmem:[#allocation2 + $0xb0] sm:$0x1] %v391
      %v393 = vld [vmem:[#allocation2 + $0xbc] sm:$0x1]
      %v394 = vsel %vm347, 0, %v393
      %395 = vst [vmem:[#allocation2 + $0xbc] sm:$0x1] %v394
      %v396 = vld [vmem:[#allocation2 + $0xc8] sm:$0x1]
      %v397 = vsel %vm347, 0, %v396
      %398 = vst [vmem:[#allocation2 + $0xc8] sm:$0x1] %v397
      %v399 = vld [vmem:[#allocation2 + $0xd4] sm:$0x1]
      %v400 = vsel %vm347, 0, %v399
      %401 = vst [vmem:[#allocation2 + $0xd4] sm:$0x1] %v400
      %vm402 = vcmask 1044032
      %403 = vst.msk [vmem:[#allocation3] sm:$0xf] %vm402, 0
      %404 = vst.msk [vmem:[#allocation3 + $0x4] sm:$0xf] %vm402, 0
      %405 = vst.msk [vmem:[#allocation3 + $0x8] sm:$0xf] %vm402, 0
      %406 = vst.msk [vmem:[#allocation3 + $0xc] sm:$0xf] %vm402, 0
      %407 = vst.msk [vmem:[#allocation3 + $0x10] sm:$0xf] %vm402, 0
      %408 = vst.msk [vmem:[#allocation3 + $0x14] sm:$0xf] %vm402, 0
      %409 = vst.msk [vmem:[#allocation3 + $0x18] sm:$0xf] %vm402, 0
      %410 = vst.msk [vmem:[#allocation3 + $0x1c] sm:$0xf] %vm402, 0
      %411 = vst.msk [vmem:[#allocation3 + $0x20] sm:$0xf] %vm402, 0
      %412 = vst.msk [vmem:[#allocation3 + $0x24] sm:$0xf] %vm402, 0
      %413 = vst.msk [vmem:[#allocation3 + $0x28] sm:$0xf] %vm402, 0
      %414 = vst.msk [vmem:[#allocation3 + $0x2c] sm:$0xf] %vm402, 0
      %415 = vst.msk [vmem:[#allocation3 + $0x30] sm:$0xf] %vm402, 0
      %416 = vst.msk [vmem:[#allocation3 + $0x34] sm:$0xf] %vm402, 0
      %417 = vst.msk [vmem:[#allocation3 + $0x38] sm:$0xf] %vm402, 0
      %418 = vst.msk [vmem:[#allocation3 + $0x3c] sm:$0xf] %vm402, 0
      %419 = vst.msk [vmem:[#allocation3 + $0x40] sm:$0xf] %vm402, 0
      %420 = vst.msk [vmem:[#allocation3 + $0x44] sm:$0xf] %vm402, 0
      %421 = vst.msk [vmem:[#allocation3 + $0x48] sm:$0xf] %vm402, 0
      %422 = vst.msk [vmem:[#allocation3 + $0x4c] sm:$0xf] %vm402, 0
      %423 = vst.msk [vmem:[#allocation3 + $0x50] sm:$0xf] %vm402, 0
      %424 = vst.msk [vmem:[#allocation3 + $0x54] sm:$0xf] %vm402, 0
      %425 = vst.msk [vmem:[#allocation3 + $0x58] sm:$0xf] %vm402, 0
      %426 = vst.msk [vmem:[#allocation3 + $0x5c] sm:$0xf] %vm402, 0
      %427 = vst.msk [vmem:[#allocation3 + $0x60] sm:$0xf] %vm402, 0
      %428 = vst.msk [vmem:[#allocation3 + $0x64] sm:$0xf] %vm402, 0
      %429 = vst.msk [vmem:[#allocation3 + $0x68] sm:$0xf] %vm402, 0
      %430 = vst.msk [vmem:[#allocation3 + $0x6c] sm:$0xf] %vm402, 0
      %431 = vst.msk [vmem:[#allocation3 + $0x70] sm:$0xf] %vm402, 0
      %432 = vst.msk [vmem:[#allocation3 + $0x74] sm:$0xf] %vm402, 0
      %433 = vst.msk [vmem:[#allocation3 + $0x78] sm:$0xf] %vm402, 0
      %434 = vst.msk [vmem:[#allocation3 + $0x7c] sm:$0xf] %vm402, 0
      %v435 = vld [vmem:[%s273] sm:$0xff]
      %v436 = vld [vmem:[%s273 + $0x8] sm:$0xff]
      %v437 = vld [vmem:[%s273 + $0x10] sm:$0xff]
      %v438 = vld [vmem:[%s273 + $0x18] sm:$0xff]
      %v439 = vld [vmem:[%s273 + $0x20] sm:$0xff]
      %v440 = vld [vmem:[%s273 + $0x28] sm:$0xff]
      %v441 = vld [vmem:[%s273 + $0x30] sm:$0xff]
      %v442 = vld [vmem:[%s273 + $0x38] sm:$0xff]
      %v443 = vld [vmem:[%s273 + $0x40] sm:$0xff]
      %v444 = vld [vmem:[%s273 + $0x48] sm:$0xff]
      %v445 = vld [vmem:[%s273 + $0x50] sm:$0xff]
      %v446 = vld [vmem:[%s273 + $0x58] sm:$0xff]
      %v447 = vld [vmem:[%s273 + $0x60] sm:$0xff]
      %v448 = vld [vmem:[%s273 + $0x68] sm:$0xff]
      %v449 = vld [vmem:[%s273 + $0x70] sm:$0xff]
      %v450 = vld [vmem:[%s273 + $0x78] sm:$0xff]
      %v451 = vld [vmem:[%s273 + $0x80] sm:$0xff]
      %v452 = vld [vmem:[%s273 + $0x88] sm:$0xff]
      %v453 = vld [vmem:[%s273 + $0x90] sm:$0xff]
      %v454 = vld [vmem:[%s273 + $0x98] sm:$0xff]
      %v455 = vld [vmem:[%s273 + $0xa0] sm:$0xff]
      %v456 = vld [vmem:[%s273 + $0xa8] sm:$0xff]
      %v457 = vld [vmem:[%s273 + $0xb0] sm:$0xff]
      %v458 = vld [vmem:[%s273 + $0xb8] sm:$0xff]
      %v459 = vld [vmem:[%s273 + $0xc0] sm:$0xff]
      %v460 = vld [vmem:[%s273 + $0xc8] sm:$0xff]
      %v461 = vld [vmem:[%s273 + $0xd0] sm:$0xff]
      %v462 = vld [vmem:[%s273 + $0xd8] sm:$0xff]
      %v463 = vld [vmem:[%s273 + $0xe0] sm:$0xff]
      %v464 = vld [vmem:[%s273 + $0xe8] sm:$0xff]
      %v465 = vld [vmem:[%s273 + $0xf0] sm:$0xff]
      %v466 = vld [vmem:[%s273 + $0xf8] sm:$0xff]
      %v467 = vld [vmem:[%s3] sm:$0x1]
      %v469 = vperm.slane %v467, 0
      %v471 = vmul.f32 %v435, %v469
      %v472 = vmul.f32 %v436, %v469
      %v473 = vmul.f32 %v437, %v469
      %v474 = vmul.f32 %v438, %v469
      %v475 = vmul.f32 %v439, %v469
      %v476 = vmul.f32 %v440, %v469
      %v477 = vmul.f32 %v441, %v469
      %v478 = vmul.f32 %v442, %v469
      %v479 = vmul.f32 %v443, %v469
      %v480 = vmul.f32 %v444, %v469
      %v481 = vmul.f32 %v445, %v469
      %v482 = vmul.f32 %v446, %v469
      %v483 = vmul.f32 %v447, %v469
      %v484 = vmul.f32 %v448, %v469
      %v485 = vmul.f32 %v449, %v469
      %v486 = vmul.f32 %v450, %v469
      %v487 = vmul.f32 %v451, %v469
      %v488 = vmul.f32 %v452, %v469
      %v489 = vmul.f32 %v453, %v469
      %v490 = vmul.f32 %v454, %v469
      %v491 = vmul.f32 %v455, %v469
      %v492 = vmul.f32 %v456, %v469
      %v493 = vmul.f32 %v457, %v469
      %v494 = vmul.f32 %v458, %v469
      %v495 = vmul.f32 %v459, %v469
      %v496 = vmul.f32 %v460, %v469
      %v497 = vmul.f32 %v461, %v469
      %v498 = vmul.f32 %v462, %v469
      %v499 = vmul.f32 %v463, %v469
      %v500 = vmul.f32 %v464, %v469
      %v501 = vmul.f32 %v465, %v469
      %v502 = vmul.f32 %v466, %v469
      %v503 = vld [vmem:[%s4] sm:$0x1]
      %v505 = vperm.slane %v503, 0
      %v507 = vadd.f32 %v471, %v505
      %v508 = vadd.f32 %v472, %v505
      %v509 = vadd.f32 %v473, %v505
      %v510 = vadd.f32 %v474, %v505
      %v511 = vadd.f32 %v475, %v505
      %v512 = vadd.f32 %v476, %v505
      %v513 = vadd.f32 %v477, %v505
      %v514 = vadd.f32 %v478, %v505
      %v515 = vadd.f32 %v479, %v505
      %v516 = vadd.f32 %v480, %v505
      %v517 = vadd.f32 %v481, %v505
      %v518 = vadd.f32 %v482, %v505
      %v519 = vadd.f32 %v483, %v505
      %v520 = vadd.f32 %v484, %v505
      %v521 = vadd.f32 %v485, %v505
      %v522 = vadd.f32 %v486, %v505
      %v523 = vadd.f32 %v487, %v505
      %v524 = vadd.f32 %v488, %v505
      %v525 = vadd.f32 %v489, %v505
      %v526 = vadd.f32 %v490, %v505
      %v527 = vadd.f32 %v491, %v505
      %v528 = vadd.f32 %v492, %v505
      %v529 = vadd.f32 %v493, %v505
      %v530 = vadd.f32 %v494, %v505
      %v531 = vadd.f32 %v495, %v505
      %v532 = vadd.f32 %v496, %v505
      %v533 = vadd.f32 %v497, %v505
      %v534 = vadd.f32 %v498, %v505
      %v535 = vadd.f32 %v499, %v505
      %v536 = vadd.f32 %v500, %v505
      %v537 = vadd.f32 %v501, %v505
      %v538 = vadd.f32 %v502, %v505
      %v539 = vmax.f32 %v507, 0.0
      %v540 = vmax.f32 %v508, 0.0
      %v541 = vmax.f32 %v509, 0.0
      %v542 = vmax.f32 %v510, 0.0
      %v543 = vmax.f32 %v511, 0.0
      %v544 = vmax.f32 %v512, 0.0
      %v545 = vmax.f32 %v513, 0.0
      %v546 = vmax.f32 %v514, 0.0
      %v547 = vmax.f32 %v515, 0.0
      %v548 = vmax.f32 %v516, 0.0
      %v549 = vmax.f32 %v517, 0.0
      %v550 = vmax.f32 %v518, 0.0
      %v551 = vmax.f32 %v519, 0.0
      %v552 = vmax.f32 %v520, 0.0
      %v553 = vmax.f32 %v521, 0.0
      %v554 = vmax.f32 %v522, 0.0
      %v555 = vmax.f32 %v523, 0.0
      %v556 = vmax.f32 %v524, 0.0
      %v557 = vmax.f32 %v525, 0.0
      %v558 = vmax.f32 %v526, 0.0
      %v559 = vmax.f32 %v527, 0.0
      %v560 = vmax.f32 %v528, 0.0
      %v561 = vmax.f32 %v529, 0.0
      %v562 = vmax.f32 %v530, 0.0
      %v563 = vmax.f32 %v531, 0.0
      %v564 = vmax.f32 %v532, 0.0
      %v565 = vmax.f32 %v533, 0.0
      %v566 = vmax.f32 %v534, 0.0
      %v567 = vmax.f32 %v535, 0.0
      %v568 = vmax.f32 %v536, 0.0
      %v569 = vmax.f32 %v537, 0.0
      %v570 = vmax.f32 %v538, 0.0
      %v571 = vpack.c.bf16 %v539, %v539
      %v572 = vpack.c.bf16 %v540, %v540
      %v573 = vpack.c.bf16 %v541, %v541
      %v574 = vpack.c.bf16 %v542, %v542
      %v575 = vpack.c.bf16 %v543, %v543
      %v576 = vpack.c.bf16 %v544, %v544
      %v577 = vpack.c.bf16 %v545, %v545
      %v578 = vpack.c.bf16 %v546, %v546
      %v579 = vpack.c.bf16 %v547, %v547
      %v580 = vpack.c.bf16 %v548, %v548
      %v581 = vpack.c.bf16 %v549, %v549
      %v582 = vpack.c.bf16 %v550, %v550
      %v583 = vpack.c.bf16 %v551, %v551
      %v584 = vpack.c.bf16 %v552, %v552
      %v585 = vpack.c.bf16 %v553, %v553
      %v586 = vpack.c.bf16 %v554, %v554
      %v587 = vpack.c.bf16 %v555, %v555
      %v588 = vpack.c.bf16 %v556, %v556
      %v589 = vpack.c.bf16 %v557, %v557
      %v590 = vpack.c.bf16 %v558, %v558
      %v591 = vpack.c.bf16 %v559, %v559
      %v592 = vpack.c.bf16 %v560, %v560
      %v593 = vpack.c.bf16 %v561, %v561
      %v594 = vpack.c.bf16 %v562, %v562
      %v595 = vpack.c.bf16 %v563, %v563
      %v596 = vpack.c.bf16 %v564, %v564
      %v597 = vpack.c.bf16 %v565, %v565
      %v598 = vpack.c.bf16 %v566, %v566
      %v599 = vpack.c.bf16 %v567, %v567
      %v600 = vpack.c.bf16 %v568, %v568
      %v601 = vpack.c.bf16 %v569, %v569
      %v602 = vpack.c.bf16 %v570, %v570
      %vm603 = vsmask.f32 4368
      %vm604 = vmor %vm290, %vm603
      %v606 = vshrl.u32 %v571, 16
      %v608 = vrot.slane %v606, 7
      %v609 = vshll.u32 %v571, 16
      %v611 = vor.u32 %v608, %v609
      %v612 = vrot.slane %v608, 4
      %v614 = vshrl.u32 %v572, 16
      %v616 = vrot.slane %v614, 7
      %v617 = vshll.u32 %v572, 16
      %v619 = vor.u32 %v616, %v617
      %v620 = vsel %vm604, %v612, %v619
      %v621 = vrot.slane %v616, 4
      %v623 = vshrl.u32 %v573, 16
      %v625 = vrot.slane %v623, 7
      %v626 = vshll.u32 %v573, 16
      %v628 = vor.u32 %v625, %v626
      %v629 = vrot.slane %v625, 4
      %v631 = vshrl.u32 %v574, 16
      %v633 = vrot.slane %v631, 7
      %v634 = vshll.u32 %v574, 16
      %v636 = vor.u32 %v633, %v634
      %v637 = vsel %vm604, %v629, %v636
      %v638 = vrot.slane %v633, 4
      %v640 = vshrl.u32 %v575, 16
      %v642 = vrot.slane %v640, 7
      %v643 = vshll.u32 %v575, 16
      %v645 = vor.u32 %v642, %v643
      %v646 = vrot.slane %v642, 4
      %v648 = vshrl.u32 %v576, 16
      %v650 = vrot.slane %v648, 7
      %v651 = vshll.u32 %v576, 16
      %v653 = vor.u32 %v650, %v651
      %v654 = vsel %vm604, %v646, %v653
      %v655 = vrot.slane %v650, 4
      %v657 = vshrl.u32 %v577, 16
      %v659 = vrot.slane %v657, 7
      %v660 = vshll.u32 %v577, 16
      %v662 = vor.u32 %v659, %v660
      %v663 = vrot.slane %v659, 4
      %v665 = vshrl.u32 %v578, 16
      %v667 = vrot.slane %v665, 7
      %v668 = vshll.u32 %v578, 16
      %v670 = vor.u32 %v667, %v668
      %v671 = vsel %vm604, %v663, %v670
      %v672 = vrot.slane %v667, 4
      %v674 = vshrl.u32 %v579, 16
      %v676 = vrot.slane %v674, 7
      %v677 = vshll.u32 %v579, 16
      %v679 = vor.u32 %v676, %v677
      %v680 = vrot.slane %v676, 4
      %v682 = vshrl.u32 %v580, 16
      %v684 = vrot.slane %v682, 7
      %v685 = vshll.u32 %v580, 16
      %v687 = vor.u32 %v684, %v685
      %v688 = vsel %vm604, %v680, %v687
      %v689 = vrot.slane %v684, 4
      %v691 = vshrl.u32 %v581, 16
      %v693 = vrot.slane %v691, 7
      %v694 = vshll.u32 %v581, 16
      %v696 = vor.u32 %v693, %v694
      %v697 = vrot.slane %v693, 4
      %v699 = vshrl.u32 %v582, 16
      %v701 = vrot.slane %v699, 7
      %v702 = vshll.u32 %v582, 16
      %v704 = vor.u32 %v701, %v702
      %v705 = vsel %vm604, %v697, %v704
      %v706 = vrot.slane %v701, 4
      %v708 = vshrl.u32 %v583, 16
      %v710 = vrot.slane %v708, 7
      %v711 = vshll.u32 %v583, 16
      %v713 = vor.u32 %v710, %v711
      %v714 = vrot.slane %v710, 4
      %v716 = vshrl.u32 %v584, 16
      %v718 = vrot.slane %v716, 7
      %v719 = vshll.u32 %v584, 16
      %v721 = vor.u32 %v718, %v719
      %v722 = vsel %vm604, %v714, %v721
      %v723 = vrot.slane %v718, 4
      %v725 = vshrl.u32 %v585, 16
      %v727 = vrot.slane %v725, 7
      %v728 = vshll.u32 %v585, 16
      %v730 = vor.u32 %v727, %v728
      %v731 = vrot.slane %v727, 4
      %v733 = vshrl.u32 %v586, 16
      %v735 = vrot.slane %v733, 7
      %v736 = vshll.u32 %v586, 16
      %v738 = vor.u32 %v735, %v736
      %v739 = vsel %vm604, %v731, %v738
      %v740 = vrot.slane %v735, 4
      %v742 = vshrl.u32 %v587, 16
      %v744 = vrot.slane %v742, 7
      %v745 = vshll.u32 %v587, 16
      %v747 = vor.u32 %v744, %v745
      %v748 = vrot.slane %v744, 4
      %v750 = vshrl.u32 %v588, 16
      %v752 = vrot.slane %v750, 7
      %v753 = vshll.u32 %v588, 16
      %v755 = vor.u32 %v752, %v753
      %v756 = vsel %vm604, %v748, %v755
      %v757 = vrot.slane %v752, 4
      %v759 = vshrl.u32 %v589, 16
      %v761 = vrot.slane %v759, 7
      %v762 = vshll.u32 %v589, 16
      %v764 = vor.u32 %v761, %v762
      %v765 = vrot.slane %v761, 4
      %v767 = vshrl.u32 %v590, 16
      %v769 = vrot.slane %v767, 7
      %v770 = vshll.u32 %v590, 16
      %v772 = vor.u32 %v769, %v770
      %v773 = vsel %vm604, %v765, %v772
      %v774 = vrot.slane %v769, 4
      %v776 = vshrl.u32 %v591, 16
      %v778 = vrot.slane %v776, 7
      %v779 = vshll.u32 %v591, 16
      %v781 = vor.u32 %v778, %v779
      %v782 = vrot.slane %v778, 4
      %v784 = vshrl.u32 %v592, 16
      %v786 = vrot.slane %v784, 7
      %v787 = vshll.u32 %v592, 16
      %v789 = vor.u32 %v786, %v787
      %v790 = vsel %vm604, %v782, %v789
      %v791 = vrot.slane %v786, 4
      %v793 = vshrl.u32 %v593, 16
      %v795 = vrot.slane %v793, 7
      %v796 = vshll.u32 %v593, 16
      %v798 = vor.u32 %v795, %v796
      %v799 = vrot.slane %v795, 4
      %v801 = vshrl.u32 %v594, 16
      %v803 = vrot.slane %v801, 7
      %v804 = vshll.u32 %v594, 16
      %v806 = vor.u32 %v803, %v804
      %v807 = vsel %vm604, %v799, %v806
      %v808 = vrot.slane %v803, 4
      %v810 = vshrl.u32 %v595, 16
      %v812 = vrot.slane %v810, 7
      %v813 = vshll.u32 %v595, 16
      %v815 = vor.u32 %v812, %v813
      %v816 = vrot.slane %v812, 4
      %v818 = vshrl.u32 %v596, 16
      %v820 = vrot.slane %v818, 7
      %v821 = vshll.u32 %v596, 16
      %v823 = vor.u32 %v820, %v821
      %v824 = vsel %vm604, %v816, %v823
      %v825 = vrot.slane %v820, 4
      %v827 = vshrl.u32 %v597, 16
      %v829 = vrot.slane %v827, 7
      %v830 = vshll.u32 %v597, 16
      %v832 = vor.u32 %v829, %v830
      %v833 = vrot.slane %v829, 4
      %v835 = vshrl.u32 %v598, 16
      %v837 = vrot.slane %v835, 7
      %v838 = vshll.u32 %v598, 16
      %v840 = vor.u32 %v837, %v838
      %v841 = vsel %vm604, %v833, %v840
      %v842 = vrot.slane %v837, 4
      %v844 = vshrl.u32 %v599, 16
      %v846 = vrot.slane %v844, 7
      %v847 = vshll.u32 %v599, 16
      %v849 = vor.u32 %v846, %v847
      %v850 = vrot.slane %v846, 4
      %v852 = vshrl.u32 %v600, 16
      %v854 = vrot.slane %v852, 7
      %v855 = vshll.u32 %v600, 16
      %v857 = vor.u32 %v854, %v855
      %v858 = vsel %vm604, %v850, %v857
      %v859 = vrot.slane %v854, 4
      %v861 = vshrl.u32 %v601, 16
      %v863 = vrot.slane %v861, 7
      %v864 = vshll.u32 %v601, 16
      %v866 = vor.u32 %v863, %v864
      %v867 = vrot.slane %v863, 4
      %v869 = vshrl.u32 %v602, 16
      %v871 = vrot.slane %v869, 7
      %v872 = vshll.u32 %v602, 16
      %v874 = vor.u32 %v871, %v872
      %v875 = vsel %vm604, %v867, %v874
      %v876 = vrot.slane %v871, 4
      %s925 = scalar_lea.vmem [#allocation2], 12
      %vm926 = vcmask 60416
      %vm927 = vmand %vm926, %vm346
      %v928 = vld [vmem:[%s925] sm:$0xf]
      %v929 = vsel %vm927, %v611, %v928
      %930 = vst [vmem:[%s925] sm:$0xf] %v929
      %931 = vst.msk [vmem:[%s925 + $0x4] sm:$0xf] %vm280, %v620
      %v932 = vld [vmem:[%s925 + $0x8] sm:$0x1]
      %v933 = vsel %vm291, %v621, %v932
      %934 = vst [vmem:[%s925 + $0x8] sm:$0x1] %v933
      %v935 = vld [vmem:[%s925 + $0xc] sm:$0xf]
      %v936 = vsel %vm927, %v628, %v935
      %937 = vst [vmem:[%s925 + $0xc] sm:$0xf] %v936
      %938 = vst.msk [vmem:[%s925 + $0x10] sm:$0xf] %vm280, %v637
      %v939 = vld [vmem:[%s925 + $0x14] sm:$0x1]
      %v940 = vsel %vm291, %v638, %v939
      %941 = vst [vmem:[%s925 + $0x14] sm:$0x1] %v940
      %v942 = vld [vmem:[%s925 + $0x18] sm:$0xf]
      %v943 = vsel %vm927, %v645, %v942
      %944 = vst [vmem:[%s925 + $0x18] sm:$0xf] %v943
      %945 = vst.msk [vmem:[%s925 + $0x1c] sm:$0xf] %vm280, %v654
      %v946 = vld [vmem:[%s925 + $0x20] sm:$0x1]
      %v947 = vsel %vm291, %v655, %v946
      %948 = vst [vmem:[%s925 + $0x20] sm:$0x1] %v947
      %v949 = vld [vmem:[%s925 + $0x24] sm:$0xf]
      %v950 = vsel %vm927, %v662, %v949
      %951 = vst [vmem:[%s925 + $0x24] sm:$0xf] %v950
      %952 = vst.msk [vmem:[%s925 + $0x28] sm:$0xf] %vm280, %v671
      %v953 = vld [vmem:[%s925 + $0x2c] sm:$0x1]
      %v954 = vsel %vm291, %v672, %v953
      %955 = vst [vmem:[%s925 + $0x2c] sm:$0x1] %v954
      %v956 = vld [vmem:[%s925 + $0x30] sm:$0xf]
      %v957 = vsel %vm927, %v679, %v956
      %958 = vst [vmem:[%s925 + $0x30] sm:$0xf] %v957
      %959 = vst.msk [vmem:[%s925 + $0x34] sm:$0xf] %vm280, %v688
      %v960 = vld [vmem:[%s925 + $0x38] sm:$0x1]
      %v961 = vsel %vm291, %v689, %v960
      %962 = vst [vmem:[%s925 + $0x38] sm:$0x1] %v961
      %v963 = vld [vmem:[%s925 + $0x3c] sm:$0xf]
      %v964 = vsel %vm927, %v696, %v963
      %965 = vst [vmem:[%s925 + $0x3c] sm:$0xf] %v964
      %966 = vst.msk [vmem:[%s925 + $0x40] sm:$0xf] %vm280, %v705
      %v967 = vld [vmem:[%s925 + $0x44] sm:$0x1]
      %v968 = vsel %vm291, %v706, %v967
      %969 = vst [vmem:[%s925 + $0x44] sm:$0x1] %v968
      %v970 = vld [vmem:[%s925 + $0x48] sm:$0xf]
      %v971 = vsel %vm927, %v713, %v970
      %972 = vst [vmem:[%s925 + $0x48] sm:$0xf] %v971
      %973 = vst.msk [vmem:[%s925 + $0x4c] sm:$0xf] %vm280, %v722
      %v974 = vld [vmem:[%s925 + $0x50] sm:$0x1]
      %v975 = vsel %vm291, %v723, %v974
      %976 = vst [vmem:[%s925 + $0x50] sm:$0x1] %v975
      %v977 = vld [vmem:[%s925 + $0x54] sm:$0xf]
      %v978 = vsel %vm927, %v730, %v977
      %979 = vst [vmem:[%s925 + $0x54] sm:$0xf] %v978
      %980 = vst.msk [vmem:[%s925 + $0x58] sm:$0xf] %vm280, %v739
      %v981 = vld [vmem:[%s925 + $0x5c] sm:$0x1]
      %v982 = vsel %vm291, %v740, %v981
      %983 = vst [vmem:[%s925 + $0x5c] sm:$0x1] %v982
      %v984 = vld [vmem:[%s925 + $0x60] sm:$0xf]
      %v985 = vsel %vm927, %v747, %v984
      %986 = vst [vmem:[%s925 + $0x60] sm:$0xf] %v985
      %987 = vst.msk [vmem:[%s925 + $0x64] sm:$0xf] %vm280, %v756
      %v988 = vld [vmem:[%s925 + $0x68] sm:$0x1]
      %v989 = vsel %vm291, %v757, %v988
      %990 = vst [vmem:[%s925 + $0x68] sm:$0x1] %v989
      %v991 = vld [vmem:[%s925 + $0x6c] sm:$0xf]
      %v992 = vsel %vm927, %v764, %v991
      %993 = vst [vmem:[%s925 + $0x6c] sm:$0xf] %v992
      %994 = vst.msk [vmem:[%s925 + $0x70] sm:$0xf] %vm280, %v773
      %v995 = vld [vmem:[%s925 + $0x74] sm:$0x1]
      %v996 = vsel %vm291, %v774, %v995
      %997 = vst [vmem:[%s925 + $0x74] sm:$0x1] %v996
      %v998 = vld [vmem:[%s925 + $0x78] sm:$0xf]
      %v999 = vsel %vm927, %v781, %v998
      %1000 = vst [vmem:[%s925 + $0x78] sm:$0xf] %v999
      %1001 = vst.msk [vmem:[%s925 + $0x7c] sm:$0xf] %vm280, %v790
      %v1002 = vld [vmem:[%s925 + $0x80] sm:$0x1]
      %v1003 = vsel %vm291, %v791, %v1002
      %1004 = vst [vmem:[%s925 + $0x80] sm:$0x1] %v1003
      %v1005 = vld [vmem:[%s925 + $0x84] sm:$0xf]
      %v1006 = vsel %vm927, %v798, %v1005
      %1007 = vst [vmem:[%s925 + $0x84] sm:$0xf] %v1006
      %1008 = vst.msk [vmem:[%s925 + $0x88] sm:$0xf] %vm280, %v807
      %v1009 = vld [vmem:[%s925 + $0x8c] sm:$0x1]
      %v1010 = vsel %vm291, %v808, %v1009
      %1011 = vst [vmem:[%s925 + $0x8c] sm:$0x1] %v1010
      %v1012 = vld [vmem:[%s925 + $0x90] sm:$0xf]
      %v1013 = vsel %vm927, %v815, %v1012
      %1014 = vst [vmem:[%s925 + $0x90] sm:$0xf] %v1013
      %1015 = vst.msk [vmem:[%s925 + $0x94] sm:$0xf] %vm280, %v824
      %v1016 = vld [vmem:[%s925 + $0x98] sm:$0x1]
      %v1017 = vsel %vm291, %v825, %v1016
      %1018 = vst [vmem:[%s925 + $0x98] sm:$0x1] %v1017
      %v1019 = vld [vmem:[%s925 + $0x9c] sm:$0xf]
      %v1020 = vsel %vm927, %v832, %v1019
      %1021 = vst [vmem:[%s925 + $0x9c] sm:$0xf] %v1020
      %1022 = vst.msk [vmem:[%s925 + $0xa0] sm:$0xf] %vm280, %v841
      %v1023 = vld [vmem:[%s925 + $0xa4] sm:$0x1]
      %v1024 = vsel %vm291, %v842, %v1023
      %1025 = vst [vmem:[%s925 + $0xa4] sm:$0x1] %v1024
      %v1026 = vld [vmem:[%s925 + $0xa8] sm:$0xf]
      %v1027 = vsel %vm927, %v849, %v1026
      %1028 = vst [vmem:[%s925 + $0xa8] sm:$0xf] %v1027
      %1029 = vst.msk [vmem:[%s925 + $0xac] sm:$0xf] %vm280, %v858
      %v1030 = vld [vmem:[%s925 + $0xb0] sm:$0x1]
      %v1031 = vsel %vm291, %v859, %v1030
      %1032 = vst [vmem:[%s925 + $0xb0] sm:$0x1] %v1031
      %v1033 = vld [vmem:[%s925 + $0xb4] sm:$0xf]
      %v1034 = vsel %vm927, %v866, %v1033
      %1035 = vst [vmem:[%s925 + $0xb4] sm:$0xf] %v1034
      %1036 = vst.msk [vmem:[%s925 + $0xb8] sm:$0xf] %vm280, %v875
      %v1037 = vld [vmem:[%s925 + $0xbc] sm:$0x1]
      %v1038 = vsel %vm291, %v876, %v1037
      %1039 = vst [vmem:[%s925 + $0xbc] sm:$0x1] %v1038
      %v1040 = vld [vmem:[#allocation2] sm:$0xf]
      %v1041 = vld [vmem:[#allocation2 + $0x4] sm:$0xf]
      %v1042 = vld [vmem:[#allocation2 + $0xc] sm:$0xf]
      %v1043 = vld [vmem:[#allocation2 + $0x10] sm:$0xf]
      %v1044 = vld [vmem:[#allocation2 + $0x18] sm:$0xf]
      %v1045 = vld [vmem:[#allocation2 + $0x1c] sm:$0xf]
      %v1046 = vld [vmem:[#allocation2 + $0x24] sm:$0xf]
      %v1047 = vld [vmem:[#allocation2 + $0x28] sm:$0xf]
      %v1048 = vld [vmem:[#allocation2 + $0x30] sm:$0xf]
      %v1049 = vld [vmem:[#allocation2 + $0x34] sm:$0xf]
      %v1050 = vld [vmem:[#allocation2 + $0x3c] sm:$0xf]
      %v1051 = vld [vmem:[#allocation2 + $0x40] sm:$0xf]
      %v1052 = vld [vmem:[#allocation2 + $0x48] sm:$0xf]
      %v1053 = vld [vmem:[#allocation2 + $0x4c] sm:$0xf]
      %v1054 = vld [vmem:[#allocation2 + $0x54] sm:$0xf]
      %v1055 = vld [vmem:[#allocation2 + $0x58] sm:$0xf]
      %v1056 = vld [vmem:[#allocation2 + $0x60] sm:$0xf]
      %v1057 = vld [vmem:[#allocation2 + $0x64] sm:$0xf]
      %v1058 = vld [vmem:[#allocation2 + $0x6c] sm:$0xf]
      %v1059 = vld [vmem:[#allocation2 + $0x70] sm:$0xf]
      %v1060 = vld [vmem:[#allocation2 + $0x78] sm:$0xf]
      %v1061 = vld [vmem:[#allocation2 + $0x7c] sm:$0xf]
      %v1062 = vld [vmem:[#allocation2 + $0x84] sm:$0xf]
      %v1063 = vld [vmem:[#allocation2 + $0x88] sm:$0xf]
      %v1064 = vld [vmem:[#allocation2 + $0x90] sm:$0xf]
      %v1065 = vld [vmem:[#allocation2 + $0x94] sm:$0xf]
      %v1066 = vld [vmem:[#allocation2 + $0x9c] sm:$0xf]
      %v1067 = vld [vmem:[#allocation2 + $0xa0] sm:$0xf]
      %v1068 = vld [vmem:[#allocation2 + $0xa8] sm:$0xf]
      %v1069 = vld [vmem:[#allocation2 + $0xac] sm:$0xf]
      %v1070 = vld [vmem:[#allocation2 + $0xb4] sm:$0xf]
      %v1071 = vld [vmem:[#allocation2 + $0xb8] sm:$0xf]
      %1072 = vst.msk [vmem:[#allocation3] sm:$0xf] %vm280, %v1040
      %1073 = vst.msk [vmem:[#allocation3 + $0x4] sm:$0xf] %vm280, %v1041
      %1074 = vst.msk [vmem:[#allocation3 + $0x8] sm:$0xf] %vm280, %v1042
      %1075 = vst.msk [vmem:[#allocation3 + $0xc] sm:$0xf] %vm280, %v1043
      %1076 = vst.msk [vmem:[#allocation3 + $0x10] sm:$0xf] %vm280, %v1044
      %1077 = vst.msk [vmem:[#allocation3 + $0x14] sm:$0xf] %vm280, %v1045
      %1078 = vst.msk [vmem:[#allocation3 + $0x18] sm:$0xf] %vm280, %v1046
      %1079 = vst.msk [vmem:[#allocation3 + $0x1c] sm:$0xf] %vm280, %v1047
      %1080 = vst.msk [vmem:[#allocation3 + $0x20] sm:$0xf] %vm280, %v1048
      %1081 = vst.msk [vmem:[#allocation3 + $0x24] sm:$0xf] %vm280, %v1049
      %1082 = vst.msk [vmem:[#allocation3 + $0x28] sm:$0xf] %vm280, %v1050
      %1083 = vst.msk [vmem:[#allocation3 + $0x2c] sm:$0xf] %vm280, %v1051
      %1084 = vst.msk [vmem:[#allocation3 + $0x30] sm:$0xf] %vm280, %v1052
      %1085 = vst.msk [vmem:[#allocation3 + $0x34] sm:$0xf] %vm280, %v1053
      %1086 = vst.msk [vmem:[#allocation3 + $0x38] sm:$0xf] %vm280, %v1054
      %1087 = vst.msk [vmem:[#allocation3 + $0x3c] sm:$0xf] %vm280, %v1055
      %1088 = vst.msk [vmem:[#allocation3 + $0x40] sm:$0xf] %vm280, %v1056
      %1089 = vst.msk [vmem:[#allocation3 + $0x44] sm:$0xf] %vm280, %v1057
      %1090 = vst.msk [vmem:[#allocation3 + $0x48] sm:$0xf] %vm280, %v1058
      %1091 = vst.msk [vmem:[#allocation3 + $0x4c] sm:$0xf] %vm280, %v1059
      %1092 = vst.msk [vmem:[#allocation3 + $0x50] sm:$0xf] %vm280, %v1060
      %1093 = vst.msk [vmem:[#allocation3 + $0x54] sm:$0xf] %vm280, %v1061
      %1094 = vst.msk [vmem:[#allocation3 + $0x58] sm:$0xf] %vm280, %v1062
      %1095 = vst.msk [vmem:[#allocation3 + $0x5c] sm:$0xf] %vm280, %v1063
      %1096 = vst.msk [vmem:[#allocation3 + $0x60] sm:$0xf] %vm280, %v1064
      %1097 = vst.msk [vmem:[#allocation3 + $0x64] sm:$0xf] %vm280, %v1065
      %1098 = vst.msk [vmem:[#allocation3 + $0x68] sm:$0xf] %vm280, %v1066
      %1099 = vst.msk [vmem:[#allocation3 + $0x6c] sm:$0xf] %vm280, %v1067
      %1100 = vst.msk [vmem:[#allocation3 + $0x70] sm:$0xf] %vm280, %v1068
      %1101 = vst.msk [vmem:[#allocation3 + $0x74] sm:$0xf] %vm280, %v1069
      %1102 = vst.msk [vmem:[#allocation3 + $0x78] sm:$0xf] %vm280, %v1070
      %1103 = vst.msk [vmem:[#allocation3 + $0x7c] sm:$0xf] %vm280, %v1071
      %v1104 = vld [vmem:[#allocation2] sm:$0xf]
      %v1105 = vld [vmem:[#allocation2 + $0x4] sm:$0xf]
      %v1106 = vld [vmem:[#allocation2 + $0x8] sm:$0x1]
      %v1107 = vld [vmem:[#allocation2 + $0xc] sm:$0xf]
      %v1108 = vld [vmem:[#allocation2 + $0x10] sm:$0xf]
      %v1109 = vld [vmem:[#allocation2 + $0x14] sm:$0x1]
      %v1110 = vld [vmem:[#allocation2 + $0x18] sm:$0xf]
      %v1111 = vld [vmem:[#allocation2 + $0x1c] sm:$0xf]
      %v1112 = vld [vmem:[#allocation2 + $0x20] sm:$0x1]
      %v1113 = vld [vmem:[#allocation2 + $0x24] sm:$0xf]
      %v1114 = vld [vmem:[#allocation2 + $0x28] sm:$0xf]
      %v1115 = vld [vmem:[#allocation2 + $0x2c] sm:$0x1]
      %v1116 = vld [vmem:[#allocation2 + $0x30] sm:$0xf]
      %v1117 = vld [vmem:[#allocation2 + $0x34] sm:$0xf]
      %v1118 = vld [vmem:[#allocation2 + $0x38] sm:$0x1]
      %v1119 = vld [vmem:[#allocation2 + $0x3c] sm:$0xf]
      %v1120 = vld [vmem:[#allocation2 + $0x40] sm:$0xf]
      %v1121 = vld [vmem:[#allocation2 + $0x44] sm:$0x1]
      %v1122 = vld [vmem:[#allocation2 + $0x48] sm:$0xf]
      %v1123 = vld [vmem:[#allocation2 + $0x4c] sm:$0xf]
      %v1124 = vld [vmem:[#allocation2 + $0x50] sm:$0x1]
      %v1125 = vld [vmem:[#allocation2 + $0x54] sm:$0xf]
      %v1126 = vld [vmem:[#allocation2 + $0x58] sm:$0xf]
      %v1127 = vld [vmem:[#allocation2 + $0x5c] sm:$0x1]
      %v1128 = vld [vmem:[#allocation2 + $0x60] sm:$0xf]
      %v1129 = vld [vmem:[#allocation2 + $0x64] sm:$0xf]
      %v1130 = vld [vmem:[#allocation2 + $0x68] sm:$0x1]
      %v1131 = vld [vmem:[#allocation2 + $0x6c] sm:$0xf]
      %v1132 = vld [vmem:[#allocation2 + $0x70] sm:$0xf]
      %v1133 = vld [vmem:[#allocation2 + $0x74] sm:$0x1]
      %v1134 = vld [vmem:[#allocation2 + $0x78] sm:$0xf]
      %v1135 = vld [vmem:[#allocation2 + $0x7c] sm:$0xf]
      %v1136 = vld [vmem:[#allocation2 + $0x80] sm:$0x1]
      %v1137 = vld [vmem:[#allocation2 + $0x84] sm:$0xf]
      %v1138 = vld [vmem:[#allocation2 + $0x88] sm:$0xf]
      %v1139 = vld [vmem:[#allocation2 + $0x8c] sm:$0x1]
      %v1140 = vld [vmem:[#allocation2 + $0x90] sm:$0xf]
      %v1141 = vld [vmem:[#allocation2 + $0x94] sm:$0xf]
      %v1142 = vld [vmem:[#allocation2 + $0x98] sm:$0x1]
      %v1143 = vld [vmem:[#allocation2 + $0x9c] sm:$0xf]
      %v1144 = vld [vmem:[#allocation2 + $0xa0] sm:$0xf]
      %v1145 = vld [vmem:[#allocation2 + $0xa4] sm:$0x1]
      %v1146 = vld [vmem:[#allocation2 + $0xa8] sm:$0xf]
      %v1147 = vld [vmem:[#allocation2 + $0xac] sm:$0xf]
      %v1148 = vld [vmem:[#allocation2 + $0xb0] sm:$0x1]
      %v1149 = vld [vmem:[#allocation2 + $0xb4] sm:$0xf]
      %v1150 = vld [vmem:[#allocation2 + $0xb8] sm:$0xf]
      %v1151 = vld [vmem:[#allocation2 + $0xbc] sm:$0x1]
      %vm1152 = vsmask.f32 3328
      %vm1153 = vsmask.f32 7440
      %vm1154 = vmor %vm1152, %vm1153
      %v1156 = vshrl.u32 %v1104, 16
      %v1158 = vrot.slane %v1156, 4
      %v1159 = vshll.u32 %v1104, 16
      %v1161 = vrot.slane %v1159, 5
      %v1162 = vor.u32 %v1158, %v1161
      %v1163 = vrot.slane %v1162, 4
      %v1165 = vshll.u32 %v1105, 16
      %v1167 = vrot.slane %v1165, 5
      %v1168 = vsel %vm1154, %v1163, %v1167
      %v1169 = vshrl.u32 %v1105, 16
      %v1171 = vrot.slane %v1169, 4
      %v1172 = vor.u32 %v1171, %v1167
      %v1173 = vrot.slane %v1172, 4
      %v1175 = vshll.u32 %v1106, 16
      %v1177 = vrot.slane %v1175, 5
      %v1178 = vsel %vm1154, %v1173, %v1177
      %v1180 = vshrl.u32 %v1107, 16
      %v1182 = vrot.slane %v1180, 4
      %v1183 = vshll.u32 %v1107, 16
      %v1185 = vrot.slane %v1183, 5
      %v1186 = vor.u32 %v1182, %v1185
      %v1187 = vrot.slane %v1186, 4
      %v1189 = vshll.u32 %v1108, 16
      %v1191 = vrot.slane %v1189, 5
      %v1192 = vsel %vm1154, %v1187, %v1191
      %v1193 = vshrl.u32 %v1108, 16
      %v1195 = vrot.slane %v1193, 4
      %v1196 = vor.u32 %v1195, %v1191
      %v1197 = vrot.slane %v1196, 4
      %v1199 = vshll.u32 %v1109, 16
      %v1201 = vrot.slane %v1199, 5
      %v1202 = vsel %vm1154, %v1197, %v1201
      %v1204 = vshrl.u32 %v1110, 16
      %v1206 = vrot.slane %v1204, 4
      %v1207 = vshll.u32 %v1110, 16
      %v1209 = vrot.slane %v1207, 5
      %v1210 = vor.u32 %v1206, %v1209
      %v1211 = vrot.slane %v1210, 4
      %v1213 = vshll.u32 %v1111, 16
      %v1215 = vrot.slane %v1213, 5
      %v1216 = vsel %vm1154, %v1211, %v1215
      %v1217 = vshrl.u32 %v1111, 16
      %v1219 = vrot.slane %v1217, 4
      %v1220 = vor.u32 %v1219, %v1215
      %v1221 = vrot.slane %v1220, 4
      %v1223 = vshll.u32 %v1112, 16
      %v1225 = vrot.slane %v1223, 5
      %v1226 = vsel %vm1154, %v1221, %v1225
      %v1228 = vshrl.u32 %v1113, 16
      %v1230 = vrot.slane %v1228, 4
      %v1231 = vshll.u32 %v1113, 16
      %v1233 = vrot.slane %v1231, 5
      %v1234 = vor.u32 %v1230, %v1233
      %v1235 = vrot.slane %v1234, 4
      %v1237 = vshll.u32 %v1114, 16
      %v1239 = vrot.slane %v1237, 5
      %v1240 = vsel %vm1154, %v1235, %v1239
      %v1241 = vshrl.u32 %v1114, 16
      %v1243 = vrot.slane %v1241, 4
      %v1244 = vor.u32 %v1243, %v1239
      %v1245 = vrot.slane %v1244, 4
      %v1247 = vshll.u32 %v1115, 16
      %v1249 = vrot.slane %v1247, 5
      %v1250 = vsel %vm1154, %v1245, %v1249
      %v1252 = vshrl.u32 %v1116, 16
      %v1254 = vrot.slane %v1252, 4
      %v1255 = vshll.u32 %v1116, 16
      %v1257 = vrot.slane %v1255, 5
      %v1258 = vor.u32 %v1254, %v1257
      %v1259 = vrot.slane %v1258, 4
      %v1261 = vshll.u32 %v1117, 16
      %v1263 = vrot.slane %v1261, 5
      %v1264 = vsel %vm1154, %v1259, %v1263
      %v1265 = vshrl.u32 %v1117, 16
      %v1267 = vrot.slane %v1265, 4
      %v1268 = vor.u32 %v1267, %v1263
      %v1269 = vrot.slane %v1268, 4
      %v1271 = vshll.u32 %v1118, 16
      %v1273 = vrot.slane %v1271, 5
      %v1274 = vsel %vm1154, %v1269, %v1273
      %v1276 = vshrl.u32 %v1119, 16
      %v1278 = vrot.slane %v1276, 4
      %v1279 = vshll.u32 %v1119, 16
      %v1281 = vrot.slane %v1279, 5
      %v1282 = vor.u32 %v1278, %v1281
      %v1283 = vrot.slane %v1282, 4
      %v1285 = vshll.u32 %v1120, 16
      %v1287 = vrot.slane %v1285, 5
      %v1288 = vsel %vm1154, %v1283, %v1287
      %v1289 = vshrl.u32 %v1120, 16
      %v1291 = vrot.slane %v1289, 4
      %v1292 = vor.u32 %v1291, %v1287
      %v1293 = vrot.slane %v1292, 4
      %v1295 = vshll.u32 %v1121, 16
      %v1297 = vrot.slane %v1295, 5
      %v1298 = vsel %vm1154, %v1293, %v1297
      %v1300 = vshrl.u32 %v1122, 16
      %v1302 = vrot.slane %v1300, 4
      %v1303 = vshll.u32 %v1122, 16
      %v1305 = vrot.slane %v1303, 5
      %v1306 = vor.u32 %v1302, %v1305
      %v1307 = vrot.slane %v1306, 4
      %v1309 = vshll.u32 %v1123, 16
      %v1311 = vrot.slane %v1309, 5
      %v1312 = vsel %vm1154, %v1307, %v1311
      %v1313 = vshrl.u32 %v1123, 16
      %v1315 = vrot.slane %v1313, 4
      %v1316 = vor.u32 %v1315, %v1311
      %v1317 = vrot.slane %v1316, 4
      %v1319 = vshll.u32 %v1124, 16
      %v1321 = vrot.slane %v1319, 5
      %v1322 = vsel %vm1154, %v1317, %v1321
      %v1324 = vshrl.u32 %v1125, 16
      %v1326 = vrot.slane %v1324, 4
      %v1327 = vshll.u32 %v1125, 16
      %v1329 = vrot.slane %v1327, 5
      %v1330 = vor.u32 %v1326, %v1329
      %v1331 = vrot.slane %v1330, 4
      %v1333 = vshll.u32 %v1126, 16
      %v1335 = vrot.slane %v1333, 5
      %v1336 = vsel %vm1154, %v1331, %v1335
      %v1337 = vshrl.u32 %v1126, 16
      %v1339 = vrot.slane %v1337, 4
      %v1340 = vor.u32 %v1339, %v1335
      %v1341 = vrot.slane %v1340, 4
      %v1343 = vshll.u32 %v1127, 16
      %v1345 = vrot.slane %v1343, 5
      %v1346 = vsel %vm1154, %v1341, %v1345
      %v1348 = vshrl.u32 %v1128, 16
      %v1350 = vrot.slane %v1348, 4
      %v1351 = vshll.u32 %v1128, 16
      %v1353 = vrot.slane %v1351, 5
      %v1354 = vor.u32 %v1350, %v1353
      %v1355 = vrot.slane %v1354, 4
      %v1357 = vshll.u32 %v1129, 16
      %v1359 = vrot.slane %v1357, 5
      %v1360 = vsel %vm1154, %v1355, %v1359
      %v1361 = vshrl.u32 %v1129, 16
      %v1363 = vrot.slane %v1361, 4
      %v1364 = vor.u32 %v1363, %v1359
      %v1365 = vrot.slane %v1364, 4
      %v1367 = vshll.u32 %v1130, 16
      %v1369 = vrot.slane %v1367, 5
      %v1370 = vsel %vm1154, %v1365, %v1369
      %v1372 = vshrl.u32 %v1131, 16
      %v1374 = vrot.slane %v1372, 4
      %v1375 = vshll.u32 %v1131, 16
      %v1377 = vrot.slane %v1375, 5
      %v1378 = vor.u32 %v1374, %v1377
      %v1379 = vrot.slane %v1378, 4
      %v1381 = vshll.u32 %v1132, 16
      %v1383 = vrot.slane %v1381, 5
      %v1384 = vsel %vm1154, %v1379, %v1383
      %v1385 = vshrl.u32 %v1132, 16
      %v1387 = vrot.slane %v1385, 4
      %v1388 = vor.u32 %v1387, %v1383
      %v1389 = vrot.slane %v1388, 4
      %v1391 = vshll.u32 %v1133, 16
      %v1393 = vrot.slane %v1391, 5
      %v1394 = vsel %vm1154, %v1389, %v1393
      %v1396 = vshrl.u32 %v1134, 16
      %v1398 = vrot.slane %v1396, 4
      %v1399 = vshll.u32 %v1134, 16
      %v1401 = vrot.slane %v1399, 5
      %v1402 = vor.u32 %v1398, %v1401
      %v1403 = vrot.slane %v1402, 4
      %v1405 = vshll.u32 %v1135, 16
      %v1407 = vrot.slane %v1405, 5
      %v1408 = vsel %vm1154, %v1403, %v1407
      %v1409 = vshrl.u32 %v1135, 16
      %v1411 = vrot.slane %v1409, 4
      %v1412 = vor.u32 %v1411, %v1407
      %v1413 = vrot.slane %v1412, 4
      %v1415 = vshll.u32 %v1136, 16
      %v1417 = vrot.slane %v1415, 5
      %v1418 = vsel %vm1154, %v1413, %v1417
      %v1420 = vshrl.u32 %v1137, 16
      %v1422 = vrot.slane %v1420, 4
      %v1423 = vshll.u32 %v1137, 16
      %v1425 = vrot.slane %v1423, 5
      %v1426 = vor.u32 %v1422, %v1425
      %v1427 = vrot.slane %v1426, 4
      %v1429 = vshll.u32 %v1138, 16
      %v1431 = vrot.slane %v1429, 5
      %v1432 = vsel %vm1154, %v1427, %v1431
      %v1433 = vshrl.u32 %v1138, 16
      %v1435 = vrot.slane %v1433, 4
      %v1436 = vor.u32 %v1435, %v1431
      %v1437 = vrot.slane %v1436, 4
      %v1439 = vshll.u32 %v1139, 16
      %v1441 = vrot.slane %v1439, 5
      %v1442 = vsel %vm1154, %v1437, %v1441
      %v1444 = vshrl.u32 %v1140, 16
      %v1446 = vrot.slane %v1444, 4
      %v1447 = vshll.u32 %v1140, 16
      %v1449 = vrot.slane %v1447, 5
      %v1450 = vor.u32 %v1446, %v1449
      %v1451 = vrot.slane %v1450, 4
      %v1453 = vshll.u32 %v1141, 16
      %v1455 = vrot.slane %v1453, 5
      %v1456 = vsel %vm1154, %v1451, %v1455
      %v1457 = vshrl.u32 %v1141, 16
      %v1459 = vrot.slane %v1457, 4
      %v1460 = vor.u32 %v1459, %v1455
      %v1461 = vrot.slane %v1460, 4
      %v1463 = vshll.u32 %v1142, 16
      %v1465 = vrot.slane %v1463, 5
      %v1466 = vsel %vm1154, %v1461, %v1465
      %v1468 = vshrl.u32 %v1143, 16
      %v1470 = vrot.slane %v1468, 4
      %v1471 = vshll.u32 %v1143, 16
      %v1473 = vrot.slane %v1471, 5
      %v1474 = vor.u32 %v1470, %v1473
      %v1475 = vrot.slane %v1474, 4
      %v1477 = vshll.u32 %v1144, 16
      %v1479 = vrot.slane %v1477, 5
      %v1480 = vsel %vm1154, %v1475, %v1479
      %v1481 = vshrl.u32 %v1144, 16
      %v1483 = vrot.slane %v1481, 4
      %v1484 = vor.u32 %v1483, %v1479
      %v1485 = vrot.slane %v1484, 4
      %v1487 = vshll.u32 %v1145, 16
      %v1489 = vrot.slane %v1487, 5
      %v1490 = vsel %vm1154, %v1485, %v1489
      %v1492 = vshrl.u32 %v1146, 16
      %v1494 = vrot.slane %v1492, 4
      %v1495 = vshll.u32 %v1146, 16
      %v1497 = vrot.slane %v1495, 5
      %v1498 = vor.u32 %v1494, %v1497
      %v1499 = vrot.slane %v1498, 4
      %v1501 = vshll.u32 %v1147, 16
      %v1503 = vrot.slane %v1501, 5
      %v1504 = vsel %vm1154, %v1499, %v1503
      %v1505 = vshrl.u32 %v1147, 16
      %v1507 = vrot.slane %v1505, 4
      %v1508 = vor.u32 %v1507, %v1503
      %v1509 = vrot.slane %v1508, 4
      %v1511 = vshll.u32 %v1148, 16
      %v1513 = vrot.slane %v1511, 5
      %v1514 = vsel %vm1154, %v1509, %v1513
      %v1516 = vshrl.u32 %v1149, 16
      %v1518 = vrot.slane %v1516, 4
      %v1519 = vshll.u32 %v1149, 16
      %v1521 = vrot.slane %v1519, 5
      %v1522 = vor.u32 %v1518, %v1521
      %v1523 = vrot.slane %v1522, 4
      %v1525 = vshll.u32 %v1150, 16
      %v1527 = vrot.slane %v1525, 5
      %v1528 = vsel %vm1154, %v1523, %v1527
      %v1529 = vshrl.u32 %v1150, 16
      %v1531 = vrot.slane %v1529, 4
      %v1532 = vor.u32 %v1531, %v1527
      %v1533 = vrot.slane %v1532, 4
      %v1535 = vshll.u32 %v1151, 16
      %v1537 = vrot.slane %v1535, 5
      %v1538 = vsel %vm1154, %v1533, %v1537
      %1539 = vrot.lane.b32.xlu0 %v1168, 8
      %v1540 = vpop.permute.xlu0 %1539
      %1541 = vrot.lane.b32.xlu0 %v1178, 8
      %v1542 = vpop.permute.xlu0 %1541
      %1543 = vrot.lane.b32.xlu0 %v1192, 8
      %v1544 = vpop.permute.xlu0 %1543
      %1545 = vrot.lane.b32.xlu0 %v1202, 8
      %v1546 = vpop.permute.xlu0 %1545
      %1547 = vrot.lane.b32.xlu0 %v1216, 8
      %v1548 = vpop.permute.xlu0 %1547
      %1549 = vrot.lane.b32.xlu0 %v1226, 8
      %v1550 = vpop.permute.xlu0 %1549
      %1551 = vrot.lane.b32.xlu0 %v1240, 8
      %v1552 = vpop.permute.xlu0 %1551
      %1553 = vrot.lane.b32.xlu0 %v1250, 8
      %v1554 = vpop.permute.xlu0 %1553
      %1555 = vrot.lane.b32.xlu0 %v1264, 8
      %v1556 = vpop.permute.xlu0 %1555
      %1557 = vrot.lane.b32.xlu0 %v1274, 8
      %v1558 = vpop.permute.xlu0 %1557
      %1559 = vrot.lane.b32.xlu0 %v1288, 8
      %v1560 = vpop.permute.xlu0 %1559
      %1561 = vrot.lane.b32.xlu0 %v1298, 8
      %v1562 = vpop.permute.xlu0 %1561
      %1563 = vrot.lane.b32.xlu0 %v1312, 8
      %v1564 = vpop.permute.xlu0 %1563
      %1565 = vrot.lane.b32.xlu0 %v1322, 8
      %v1566 = vpop.permute.xlu0 %1565
      %1567 = vrot.lane.b32.xlu0 %v1336, 8
      %v1568 = vpop.permute.xlu0 %1567
      %1569 = vrot.lane.b32.xlu0 %v1346, 8
      %v1570 = vpop.permute.xlu0 %1569
      %1571 = vrot.lane.b32.xlu0 %v1360, 8
      %v1572 = vpop.permute.xlu0 %1571
      %1573 = vrot.lane.b32.xlu0 %v1370, 8
      %v1574 = vpop.permute.xlu0 %1573
      %1575 = vrot.lane.b32.xlu0 %v1384, 8
      %v1576 = vpop.permute.xlu0 %1575
      %1577 = vrot.lane.b32.xlu0 %v1394, 8
      %v1578 = vpop.permute.xlu0 %1577
      %1579 = vrot.lane.b32.xlu0 %v1408, 8
      %v1580 = vpop.permute.xlu0 %1579
      %1581 = vrot.lane.b32.xlu0 %v1418, 8
      %v1582 = vpop.permute.xlu0 %1581
      %1583 = vrot.lane.b32.xlu0 %v1432, 8
      %v1584 = vpop.permute.xlu0 %1583
      %1585 = vrot.lane.b32.xlu0 %v1442, 8
      %v1586 = vpop.permute.xlu0 %1585
      %1587 = vrot.lane.b32.xlu0 %v1456, 8
      %v1588 = vpop.permute.xlu0 %1587
      %1589 = vrot.lane.b32.xlu0 %v1466, 8
      %v1590 = vpop.permute.xlu0 %1589
      %1591 = vrot.lane.b32.xlu0 %v1480, 8
      %v1592 = vpop.permute.xlu0 %1591
      %1593 = vrot.lane.b32.xlu0 %v1490, 8
      %v1594 = vpop.permute.xlu0 %1593
      %1595 = vrot.lane.b32.xlu0 %v1504, 8
      %v1596 = vpop.permute.xlu0 %1595
      %1597 = vrot.lane.b32.xlu0 %v1514, 8
      %v1598 = vpop.permute.xlu0 %1597
      %1599 = vrot.lane.b32.xlu0 %v1528, 8
      %v1600 = vpop.permute.xlu0 %1599
      %1601 = vrot.lane.b32.xlu0 %v1538, 8
      %v1602 = vpop.permute.xlu0 %1601
      %vm1635 = vcmask 126016
      %1636 = vst.msk [vmem:[#allocation3] sm:$0xf] %vm1635, %v1540
      %1637 = vst.msk [vmem:[#allocation3 + $0x4] sm:$0xf] %vm1635, %v1542
      %1638 = vst.msk [vmem:[#allocation3 + $0x8] sm:$0xf] %vm1635, %v1544
      %1639 = vst.msk [vmem:[#allocation3 + $0xc] sm:$0xf] %vm1635, %v1546
      %1640 = vst.msk [vmem:[#allocation3 + $0x10] sm:$0xf] %vm1635, %v1548
      %1641 = vst.msk [vmem:[#allocation3 + $0x14] sm:$0xf] %vm1635, %v1550
      %1642 = vst.msk [vmem:[#allocation3 + $0x18] sm:$0xf] %vm1635, %v1552
      %1643 = vst.msk [vmem:[#allocation3 + $0x1c] sm:$0xf] %vm1635, %v1554
      %1644 = vst.msk [vmem:[#allocation3 + $0x20] sm:$0xf] %vm1635, %v1556
      %1645 = vst.msk [vmem:[#allocation3 + $0x24] sm:$0xf] %vm1635, %v1558
      %1646 = vst.msk [vmem:[#allocation3 + $0x28] sm:$0xf] %vm1635, %v1560
      %1647 = vst.msk [vmem:[#allocation3 + $0x2c] sm:$0xf] %vm1635, %v1562
      %1648 = vst.msk [vmem:[#allocation3 + $0x30] sm:$0xf] %vm1635, %v1564
      %1649 = vst.msk [vmem:[#allocation3 + $0x34] sm:$0xf] %vm1635, %v1566
      %1650 = vst.msk [vmem:[#allocation3 + $0x38] sm:$0xf] %vm1635, %v1568
      %1651 = vst.msk [vmem:[#allocation3 + $0x3c] sm:$0xf] %vm1635, %v1570
      %1652 = vst.msk [vmem:[#allocation3 + $0x40] sm:$0xf] %vm1635, %v1572
      %1653 = vst.msk [vmem:[#allocation3 + $0x44] sm:$0xf] %vm1635, %v1574
      %1654 = vst.msk [vmem:[#allocation3 + $0x48] sm:$0xf] %vm1635, %v1576
      %1655 = vst.msk [vmem:[#allocation3 + $0x4c] sm:$0xf] %vm1635, %v1578
      %1656 = vst.msk [vmem:[#allocation3 + $0x50] sm:$0xf] %vm1635, %v1580
      %1657 = vst.msk [vmem:[#allocation3 + $0x54] sm:$0xf] %vm1635, %v1582
      %1658 = vst.msk [vmem:[#allocation3 + $0x58] sm:$0xf] %vm1635, %v1584
      %1659 = vst.msk [vmem:[#allocation3 + $0x5c] sm:$0xf] %vm1635, %v1586
      %1660 = vst.msk [vmem:[#allocation3 + $0x60] sm:$0xf] %vm1635, %v1588
      %1661 = vst.msk [vmem:[#allocation3 + $0x64] sm:$0xf] %vm1635, %v1590
      %1662 = vst.msk [vmem:[#allocation3 + $0x68] sm:$0xf] %vm1635, %v1592
      %1663 = vst.msk [vmem:[#allocation3 + $0x6c] sm:$0xf] %vm1635, %v1594
      %1664 = vst.msk [vmem:[#allocation3 + $0x70] sm:$0xf] %vm1635, %v1596
      %1665 = vst.msk [vmem:[#allocation3 + $0x74] sm:$0xf] %vm1635, %v1598
      %1666 = vst.msk [vmem:[#allocation3 + $0x78] sm:$0xf] %vm1635, %v1600
      %1667 = vst.msk [vmem:[#allocation3 + $0x7c] sm:$0xf] %vm1635, %v1602
      %v1668 = vld [vmem:[#allocation2] sm:$0xe]
      %v1669 = vld [vmem:[#allocation2 + $0x4] sm:$0xf]
      %v1670 = vld [vmem:[#allocation2 + $0x8] sm:$0x1]
      %v1671 = vld [vmem:[#allocation2 + $0xc] sm:$0xe]
      %v1672 = vld [vmem:[#allocation2 + $0x10] sm:$0xf]
      %v1673 = vld [vmem:[#allocation2 + $0x14] sm:$0x1]
      %v1674 = vld [vmem:[#allocation2 + $0x18] sm:$0xe]
      %v1675 = vld [vmem:[#allocation2 + $0x1c] sm:$0xf]
      %v1676 = vld [vmem:[#allocation2 + $0x20] sm:$0x1]
      %v1677 = vld [vmem:[#allocation2 + $0x24] sm:$0xe]
      %v1678 = vld [vmem:[#allocation2 + $0x28] sm:$0xf]
      %v1679 = vld [vmem:[#allocation2 + $0x2c] sm:$0x1]
      %v1680 = vld [vmem:[#allocation2 + $0x30] sm:$0xe]
      %v1681 = vld [vmem:[#allocation2 + $0x34] sm:$0xf]
      %v1682 = vld [vmem:[#allocation2 + $0x38] sm:$0x1]
      %v1683 = vld [vmem:[#allocation2 + $0x3c] sm:$0xe]
      %v1684 = vld [vmem:[#allocation2 + $0x40] sm:$0xf]
      %v1685 = vld [vmem:[#allocation2 + $0x44] sm:$0x1]
      %v1686 = vld [vmem:[#allocation2 + $0x48] sm:$0xe]
      %v1687 = vld [vmem:[#allocation2 + $0x4c] sm:$0xf]
      %v1688 = vld [vmem:[#allocation2 + $0x50] sm:$0x1]
      %v1689 = vld [vmem:[#allocation2 + $0x54] sm:$0xe]
      %v1690 = vld [vmem:[#allocation2 + $0x58] sm:$0xf]
      %v1691 = vld [vmem:[#allocation2 + $0x5c] sm:$0x1]
      %v1692 = vld [vmem:[#allocation2 + $0x60] sm:$0xe]
      %v1693 = vld [vmem:[#allocation2 + $0x64] sm:$0xf]
      %v1694 = vld [vmem:[#allocation2 + $0x68] sm:$0x1]
      %v1695 = vld [vmem:[#allocation2 + $0x6c] sm:$0xe]
      %v1696 = vld [vmem:[#allocation2 + $0x70] sm:$0xf]
      %v1697 = vld [vmem:[#allocation2 + $0x74] sm:$0x1]
      %v1698 = vld [vmem:[#allocation2 + $0x78] sm:$0xe]
      %v1699 = vld [vmem:[#allocation2 + $0x7c] sm:$0xf]
      %v1700 = vld [vmem:[#allocation2 + $0x80] sm:$0x1]
      %v1701 = vld [vmem:[#allocation2 + $0x84] sm:$0xe]
      %v1702 = vld [vmem:[#allocation2 + $0x88] sm:$0xf]
      %v1703 = vld [vmem:[#allocation2 + $0x8c] sm:$0x1]
      %v1704 = vld [vmem:[#allocation2 + $0x90] sm:$0xe]
      %v1705 = vld [vmem:[#allocation2 + $0x94] sm:$0xf]
      %v1706 = vld [vmem:[#allocation2 + $0x98] sm:$0x1]
      %v1707 = vld [vmem:[#allocation2 + $0x9c] sm:$0xe]
      %v1708 = vld [vmem:[#allocation2 + $0xa0] sm:$0xf]
      %v1709 = vld [vmem:[#allocation2 + $0xa4] sm:$0x1]
      %v1710 = vld [vmem:[#allocation2 + $0xa8] sm:$0xe]
      %v1711 = vld [vmem:[#allocation2 + $0xac] sm:$0xf]
      %v1712 = vld [vmem:[#allocation2 + $0xb0] sm:$0x1]
      %v1713 = vld [vmem:[#allocation2 + $0xb4] sm:$0xe]
      %v1714 = vld [vmem:[#allocation2 + $0xb8] sm:$0xf]
      %v1715 = vld [vmem:[#allocation2 + $0xbc] sm:$0x1]
      %vm1764 = vcmask 1042432
      %vm1765 = vcmask 1046532
      %vm1766 = vmor %vm1764, %vm1765
      %v1767 = vrot.slane %v1668, 5
      %v1768 = vrot.slane %v1767, 4
      %v1769 = vrot.slane %v1669, 5
      %v1770 = vsel %vm1766, %v1768, %v1769
      %v1771 = vrot.slane %v1769, 4
      %v1772 = vrot.slane %v1670, 5
      %v1773 = vsel %vm1766, %v1771, %v1772
      %v1774 = vrot.slane %v1671, 5
      %v1775 = vrot.slane %v1774, 4
      %v1776 = vrot.slane %v1672, 5
      %v1777 = vsel %vm1766, %v1775, %v1776
      %v1778 = vrot.slane %v1776, 4
      %v1779 = vrot.slane %v1673, 5
      %v1780 = vsel %vm1766, %v1778, %v1779
      %v1781 = vrot.slane %v1674, 5
      %v1782 = vrot.slane %v1781, 4
      %v1783 = vrot.slane %v1675, 5
      %v1784 = vsel %vm1766, %v1782, %v1783
      %v1785 = vrot.slane %v1783, 4
      %v1786 = vrot.slane %v1676, 5
      %v1787 = vsel %vm1766, %v1785, %v1786
      %v1788 = vrot.slane %v1677, 5
      %v1789 = vrot.slane %v1788, 4
      %v1790 = vrot.slane %v1678, 5
      %v1791 = vsel %vm1766, %v1789, %v1790
      %v1792 = vrot.slane %v1790, 4
      %v1793 = vrot.slane %v1679, 5
      %v1794 = vsel %vm1766, %v1792, %v1793
      %v1795 = vrot.slane %v1680, 5
      %v1796 = vrot.slane %v1795, 4
      %v1797 = vrot.slane %v1681, 5
      %v1798 = vsel %vm1766, %v1796, %v1797
      %v1799 = vrot.slane %v1797, 4
      %v1800 = vrot.slane %v1682, 5
      %v1801 = vsel %vm1766, %v1799, %v1800
      %v1802 = vrot.slane %v1683, 5
      %v1803 = vrot.slane %v1802, 4
      %v1804 = vrot.slane %v1684, 5
      %v1805 = vsel %vm1766, %v1803, %v1804
      %v1806 = vrot.slane %v1804, 4
      %v1807 = vrot.slane %v1685, 5
      %v1808 = vsel %vm1766, %v1806, %v1807
      %v1809 = vrot.slane %v1686, 5
      %v1810 = vrot.slane %v1809, 4
      %v1811 = vrot.slane %v1687, 5
      %v1812 = vsel %vm1766, %v1810, %v1811
      %v1813 = vrot.slane %v1811, 4
      %v1814 = vrot.slane %v1688, 5
      %v1815 = vsel %vm1766, %v1813, %v1814
      %v1816 = vrot.slane %v1689, 5
      %v1817 = vrot.slane %v1816, 4
      %v1818 = vrot.slane %v1690, 5
      %v1819 = vsel %vm1766, %v1817, %v1818
      %v1820 = vrot.slane %v1818, 4
      %v1821 = vrot.slane %v1691, 5
      %v1822 = vsel %vm1766, %v1820, %v1821
      %v1823 = vrot.slane %v1692, 5
      %v1824 = vrot.slane %v1823, 4
      %v1825 = vrot.slane %v1693, 5
      %v1826 = vsel %vm1766, %v1824, %v1825
      %v1827 = vrot.slane %v1825, 4
      %v1828 = vrot.slane %v1694, 5
      %v1829 = vsel %vm1766, %v1827, %v1828
      %v1830 = vrot.slane %v1695, 5
      %v1831 = vrot.slane %v1830, 4
      %v1832 = vrot.slane %v1696, 5
      %v1833 = vsel %vm1766, %v1831, %v1832
      %v1834 = vrot.slane %v1832, 4
      %v1835 = vrot.slane %v1697, 5
      %v1836 = vsel %vm1766, %v1834, %v1835
      %v1837 = vrot.slane %v1698, 5
      %v1838 = vrot.slane %v1837, 4
      %v1839 = vrot.slane %v1699, 5
      %v1840 = vsel %vm1766, %v1838, %v1839
      %v1841 = vrot.slane %v1839, 4
      %v1842 = vrot.slane %v1700, 5
      %v1843 = vsel %vm1766, %v1841, %v1842
      %v1844 = vrot.slane %v1701, 5
      %v1845 = vrot.slane %v1844, 4
      %v1846 = vrot.slane %v1702, 5
      %v1847 = vsel %vm1766, %v1845, %v1846
      %v1848 = vrot.slane %v1846, 4
      %v1849 = vrot.slane %v1703, 5
      %v1850 = vsel %vm1766, %v1848, %v1849
      %v1851 = vrot.slane %v1704, 5
      %v1852 = vrot.slane %v1851, 4
      %v1853 = vrot.slane %v1705, 5
      %v1854 = vsel %vm1766, %v1852, %v1853
      %v1855 = vrot.slane %v1853, 4
      %v1856 = vrot.slane %v1706, 5
      %v1857 = vsel %vm1766, %v1855, %v1856
      %v1858 = vrot.slane %v1707, 5
      %v1859 = vrot.slane %v1858, 4
      %v1860 = vrot.slane %v1708, 5
      %v1861 = vsel %vm1766, %v1859, %v1860
      %v1862 = vrot.slane %v1860, 4
      %v1863 = vrot.slane %v1709, 5
      %v1864 = vsel %vm1766, %v1862, %v1863
      %v1865 = vrot.slane %v1710, 5
      %v1866 = vrot.slane %v1865, 4
      %v1867 = vrot.slane %v1711, 5
      %v1868 = vsel %vm1766, %v1866, %v1867
      %v1869 = vrot.slane %v1867, 4
      %v1870 = vrot.slane %v1712, 5
      %v1871 = vsel %vm1766, %v1869, %v1870
      %v1872 = vrot.slane %v1713, 5
      %v1873 = vrot.slane %v1872, 4
      %v1874 = vrot.slane %v1714, 5
      %v1875 = vsel %vm1766, %v1873, %v1874
      %v1876 = vrot.slane %v1874, 4
      %v1877 = vrot.slane %v1715, 5
      %v1878 = vsel %vm1766, %v1876, %v1877
      %1879 = vrot.lane.b32.xlu0 %v1770, 16
      %v1880 = vpop.permute.xlu0 %1879
      %1881 = vrot.lane.b32.xlu0 %v1773, 16
      %v1882 = vpop.permute.xlu0 %1881
      %1883 = vrot.lane.b32.xlu0 %v1777, 16
      %v1884 = vpop.permute.xlu0 %1883
      %1885 = vrot.lane.b32.xlu0 %v1780, 16
      %v1886 = vpop.permute.xlu0 %1885
      %1887 = vrot.lane.b32.xlu0 %v1784, 16
      %v1888 = vpop.permute.xlu0 %1887
      %1889 = vrot.lane.b32.xlu0 %v1787, 16
      %v1890 = vpop.permute.xlu0 %1889
      %1891 = vrot.lane.b32.xlu0 %v1791, 16
      %v1892 = vpop.permute.xlu0 %1891
      %1893 = vrot.lane.b32.xlu0 %v1794, 16
      %v1894 = vpop.permute.xlu0 %1893
      %1895 = vrot.lane.b32.xlu0 %v1798, 16
      %v1896 = vpop.permute.xlu0 %1895
      %1897 = vrot.lane.b32.xlu0 %v1801, 16
      %v1898 = vpop.permute.xlu0 %1897
      %1899 = vrot.lane.b32.xlu0 %v1805, 16
      %v1900 = vpop.permute.xlu0 %1899
      %1901 = vrot.lane.b32.xlu0 %v1808, 16
      %v1902 = vpop.permute.xlu0 %1901
      %1903 = vrot.lane.b32.xlu0 %v1812, 16
      %v1904 = vpop.permute.xlu0 %1903
      %1905 = vrot.lane.b32.xlu0 %v1815, 16
      %v1906 = vpop.permute.xlu0 %1905
      %1907 = vrot.lane.b32.xlu0 %v1819, 16
      %v1908 = vpop.permute.xlu0 %1907
      %1909 = vrot.lane.b32.xlu0 %v1822, 16
      %v1910 = vpop.permute.xlu0 %1909
      %1911 = vrot.lane.b32.xlu0 %v1826, 16
      %v1912 = vpop.permute.xlu0 %1911
      %1913 = vrot.lane.b32.xlu0 %v1829, 16
      %v1914 = vpop.permute.xlu0 %1913
      %1915 = vrot.lane.b32.xlu0 %v1833, 16
      %v1916 = vpop.permute.xlu0 %1915
      %1917 = vrot.lane.b32.xlu0 %v1836, 16
      %v1918 = vpop.permute.xlu0 %1917
      %1919 = vrot.lane.b32.xlu0 %v1840, 16
      %v1920 = vpop.permute.xlu0 %1919
      %1921 = vrot.lane.b32.xlu0 %v1843, 16
      %v1922 = vpop.permute.xlu0 %1921
      %1923 = vrot.lane.b32.xlu0 %v1847, 16
      %v1924 = vpop.permute.xlu0 %1923
      %1925 = vrot.lane.b32.xlu0 %v1850, 16
      %v1926 = vpop.permute.xlu0 %1925
      %1927 = vrot.lane.b32.xlu0 %v1854, 16
      %v1928 = vpop.permute.xlu0 %1927
      %1929 = vrot.lane.b32.xlu0 %v1857, 16
      %v1930 = vpop.permute.xlu0 %1929
      %1931 = vrot.lane.b32.xlu0 %v1861, 16
      %v1932 = vpop.permute.xlu0 %1931
      %1933 = vrot.lane.b32.xlu0 %v1864, 16
      %v1934 = vpop.permute.xlu0 %1933
      %1935 = vrot.lane.b32.xlu0 %v1868, 16
      %v1936 = vpop.permute.xlu0 %1935
      %1937 = vrot.lane.b32.xlu0 %v1871, 16
      %v1938 = vpop.permute.xlu0 %1937
      %1939 = vrot.lane.b32.xlu0 %v1875, 16
      %v1940 = vpop.permute.xlu0 %1939
      %1941 = vrot.lane.b32.xlu0 %v1878, 16
      %v1942 = vpop.permute.xlu0 %1941
      %vm1975 = vcmask 191616
      %1976 = vst.msk [vmem:[#allocation3] sm:$0xf] %vm1975, %v1880
      %1977 = vst.msk [vmem:[#allocation3 + $0x4] sm:$0xf] %vm1975, %v1882
      %1978 = vst.msk [vmem:[#allocation3 + $0x8] sm:$0xf] %vm1975, %v1884
      %1979 = vst.msk [vmem:[#allocation3 + $0xc] sm:$0xf] %vm1975, %v1886
      %1980 = vst.msk [vmem:[#allocation3 + $0x10] sm:$0xf] %vm1975, %v1888
      %1981 = vst.msk [vmem:[#allocation3 + $0x14] sm:$0xf] %vm1975, %v1890
      %1982 = vst.msk [vmem:[#allocation3 + $0x18] sm:$0xf] %vm1975, %v1892
      %1983 = vst.msk [vmem:[#allocation3 + $0x1c] sm:$0xf] %vm1975, %v1894
      %1984 = vst.msk [vmem:[#allocation3 + $0x20] sm:$0xf] %vm1975, %v1896
      %1985 = vst.msk [vmem:[#allocation3 + $0x24] sm:$0xf] %vm1975, %v1898
      %1986 = vst.msk [vmem:[#allocation3 + $0x28] sm:$0xf] %vm1975, %v1900
      %1987 = vst.msk [vmem:[#allocation3 + $0x2c] sm:$0xf] %vm1975, %v1902
      %1988 = vst.msk [vmem:[#allocation3 + $0x30] sm:$0xf] %vm1975, %v1904
      %1989 = vst.msk [vmem:[#allocation3 + $0x34] sm:$0xf] %vm1975, %v1906
      %1990 = vst.msk [vmem:[#allocation3 + $0x38] sm:$0xf] %vm1975, %v1908
      %1991 = vst.msk [vmem:[#allocation3 + $0x3c] sm:$0xf] %vm1975, %v1910
      %1992 = vst.msk [vmem:[#allocation3 + $0x40] sm:$0xf] %vm1975, %v1912
      %1993 = vst.msk [vmem:[#allocation3 + $0x44] sm:$0xf] %vm1975, %v1914
      %1994 = vst.msk [vmem:[#allocation3 + $0x48] sm:$0xf] %vm1975, %v1916
      %1995 = vst.msk [vmem:[#allocation3 + $0x4c] sm:$0xf] %vm1975, %v1918
      %1996 = vst.msk [vmem:[#allocation3 + $0x50] sm:$0xf] %vm1975, %v1920
      %1997 = vst.msk [vmem:[#allocation3 + $0x54] sm:$0xf] %vm1975, %v1922
      %1998 = vst.msk [vmem:[#allocation3 + $0x58] sm:$0xf] %vm1975, %v1924
      %1999 = vst.msk [vmem:[#allocation3 + $0x5c] sm:$0xf] %vm1975, %v1926
      %2000 = vst.msk [vmem:[#allocation3 + $0x60] sm:$0xf] %vm1975, %v1928
      %2001 = vst.msk [vmem:[#allocation3 + $0x64] sm:$0xf] %vm1975, %v1930
      %2002 = vst.msk [vmem:[#allocation3 + $0x68] sm:$0xf] %vm1975, %v1932
      %2003 = vst.msk [vmem:[#allocation3 + $0x6c] sm:$0xf] %vm1975, %v1934
      %2004 = vst.msk [vmem:[#allocation3 + $0x70] sm:$0xf] %vm1975, %v1936
      %2005 = vst.msk [vmem:[#allocation3 + $0x74] sm:$0xf] %vm1975, %v1938
      %2006 = vst.msk [vmem:[#allocation3 + $0x78] sm:$0xf] %vm1975, %v1940
      %2007 = vst.msk [vmem:[#allocation3 + $0x7c] sm:$0xf] %vm1975, %v1942
      %v2008 = vld [vmem:[%s925] sm:$0xf]
      %v2009 = vld [vmem:[%s925 + $0x4] sm:$0xf]
      %v2010 = vld [vmem:[%s925 + $0xc] sm:$0xf]
      %v2011 = vld [vmem:[%s925 + $0x10] sm:$0xf]
      %v2012 = vld [vmem:[%s925 + $0x18] sm:$0xf]
      %v2013 = vld [vmem:[%s925 + $0x1c] sm:$0xf]
      %v2014 = vld [vmem:[%s925 + $0x24] sm:$0xf]
      %v2015 = vld [vmem:[%s925 + $0x28] sm:$0xf]
      %v2016 = vld [vmem:[%s925 + $0x30] sm:$0xf]
      %v2017 = vld [vmem:[%s925 + $0x34] sm:$0xf]
      %v2018 = vld [vmem:[%s925 + $0x3c] sm:$0xf]
      %v2019 = vld [vmem:[%s925 + $0x40] sm:$0xf]
      %v2020 = vld [vmem:[%s925 + $0x48] sm:$0xf]
      %v2021 = vld [vmem:[%s925 + $0x4c] sm:$0xf]
      %v2022 = vld [vmem:[%s925 + $0x54] sm:$0xf]
      %v2023 = vld [vmem:[%s925 + $0x58] sm:$0xf]
      %v2024 = vld [vmem:[%s925 + $0x60] sm:$0xf]
      %v2025 = vld [vmem:[%s925 + $0x64] sm:$0xf]
      %v2026 = vld [vmem:[%s925 + $0x6c] sm:$0xf]
      %v2027 = vld [vmem:[%s925 + $0x70] sm:$0xf]
      %v2028 = vld [vmem:[%s925 + $0x78] sm:$0xf]
      %v2029 = vld [vmem:[%s925 + $0x7c] sm:$0xf]
      %v2030 = vld [vmem:[%s925 + $0x84] sm:$0xf]
      %v2031 = vld [vmem:[%s925 + $0x88] sm:$0xf]
      %v2032 = vld [vmem:[%s925 + $0x90] sm:$0xf]
      %v2033 = vld [vmem:[%s925 + $0x94] sm:$0xf]
      %v2034 = vld [vmem:[%s925 + $0x9c] sm:$0xf]
      %v2035 = vld [vmem:[%s925 + $0xa0] sm:$0xf]
      %v2036 = vld [vmem:[%s925 + $0xa8] sm:$0xf]
      %v2037 = vld [vmem:[%s925 + $0xac] sm:$0xf]
      %v2038 = vld [vmem:[%s925 + $0xb4] sm:$0xf]
      %v2039 = vld [vmem:[%s925 + $0xb8] sm:$0xf]
      %2072 = vrot.lane.b32.xlu0 %v2008, 24
      %v2073 = vpop.permute.xlu0 %2072
      %2074 = vrot.lane.b32.xlu0 %v2009, 24
      %v2075 = vpop.permute.xlu0 %2074
      %2076 = vrot.lane.b32.xlu0 %v2010, 24
      %v2077 = vpop.permute.xlu0 %2076
      %2078 = vrot.lane.b32.xlu0 %v2011, 24
      %v2079 = vpop.permute.xlu0 %2078
      %2080 = vrot.lane.b32.xlu0 %v2012, 24
      %v2081 = vpop.permute.xlu0 %2080
      %2082 = vrot.lane.b32.xlu0 %v2013, 24
      %v2083 = vpop.permute.xlu0 %2082
      %2084 = vrot.lane.b32.xlu0 %v2014, 24
      %v2085 = vpop.permute.xlu0 %2084
      %2086 = vrot.lane.b32.xlu0 %v2015, 24
      %v2087 = vpop.permute.xlu0 %2086
      %2088 = vrot.lane.b32.xlu0 %v2016, 24
      %v2089 = vpop.permute.xlu0 %2088
      %2090 = vrot.lane.b32.xlu0 %v2017, 24
      %v2091 = vpop.permute.xlu0 %2090
      %2092 = vrot.lane.b32.xlu0 %v2018, 24
      %v2093 = vpop.permute.xlu0 %2092
      %2094 = vrot.lane.b32.xlu0 %v2019, 24
      %v2095 = vpop.permute.xlu0 %2094
      %2096 = vrot.lane.b32.xlu0 %v2020, 24
      %v2097 = vpop.permute.xlu0 %2096
      %2098 = vrot.lane.b32.xlu0 %v2021, 24
      %v2099 = vpop.permute.xlu0 %2098
      %2100 = vrot.lane.b32.xlu0 %v2022, 24
      %v2101 = vpop.permute.xlu0 %2100
      %2102 = vrot.lane.b32.xlu0 %v2023, 24
      %v2103 = vpop.permute.xlu0 %2102
      %2104 = vrot.lane.b32.xlu0 %v2024, 24
      %v2105 = vpop.permute.xlu0 %2104
      %2106 = vrot.lane.b32.xlu0 %v2025, 24
      %v2107 = vpop.permute.xlu0 %2106
      %2108 = vrot.lane.b32.xlu0 %v2026, 24
      %v2109 = vpop.permute.xlu0 %2108
      %2110 = vrot.lane.b32.xlu0 %v2027, 24
      %v2111 = vpop.permute.xlu0 %2110
      %2112 = vrot.lane.b32.xlu0 %v2028, 24
      %v2113 = vpop.permute.xlu0 %2112
      %2114 = vrot.lane.b32.xlu0 %v2029, 24
      %v2115 = vpop.permute.xlu0 %2114
      %2116 = vrot.lane.b32.xlu0 %v2030, 24
      %v2117 = vpop.permute.xlu0 %2116
      %2118 = vrot.lane.b32.xlu0 %v2031, 24
      %v2119 = vpop.permute.xlu0 %2118
      %2120 = vrot.lane.b32.xlu0 %v2032, 24
      %v2121 = vpop.permute.xlu0 %2120
      %2122 = vrot.lane.b32.xlu0 %v2033, 24
      %v2123 = vpop.permute.xlu0 %2122
      %2124 = vrot.lane.b32.xlu0 %v2034, 24
      %v2125 = vpop.permute.xlu0 %2124
      %2126 = vrot.lane.b32.xlu0 %v2035, 24
      %v2127 = vpop.permute.xlu0 %2126
      %2128 = vrot.lane.b32.xlu0 %v2036, 24
      %v2129 = vpop.permute.xlu0 %2128
      %2130 = vrot.lane.b32.xlu0 %v2037, 24
      %v2131 = vpop.permute.xlu0 %2130
      %2132 = vrot.lane.b32.xlu0 %v2038, 24
      %v2133 = vpop.permute.xlu0 %2132
      %2134 = vrot.lane.b32.xlu0 %v2039, 24
      %v2135 = vpop.permute.xlu0 %2134
      %vm2168 = vcmask 257216
      %2169 = vst.msk [vmem:[#allocation3] sm:$0xf] %vm2168, %v2073
      %2170 = vst.msk [vmem:[#allocation3 + $0x4] sm:$0xf] %vm2168, %v2075
      %2171 = vst.msk [vmem:[#allocation3 + $0x8] sm:$0xf] %vm2168, %v2077
      %2172 = vst.msk [vmem:[#allocation3 + $0xc] sm:$0xf] %vm2168, %v2079
      %2173 = vst.msk [vmem:[#allocation3 + $0x10] sm:$0xf] %vm2168, %v2081
      %2174 = vst.msk [vmem:[#allocation3 + $0x14] sm:$0xf] %vm2168, %v2083
      %2175 = vst.msk [vmem:[#allocation3 + $0x18] sm:$0xf] %vm2168, %v2085
      %2176 = vst.msk [vmem:[#allocation3 + $0x1c] sm:$0xf] %vm2168, %v2087
      %2177 = vst.msk [vmem:[#allocation3 + $0x20] sm:$0xf] %vm2168, %v2089
      %2178 = vst.msk [vmem:[#allocation3 + $0x24] sm:$0xf] %vm2168, %v2091
      %2179 = vst.msk [vmem:[#allocation3 + $0x28] sm:$0xf] %vm2168, %v2093
      %2180 = vst.msk [vmem:[#allocation3 + $0x2c] sm:$0xf] %vm2168, %v2095
      %2181 = vst.msk [vmem:[#allocation3 + $0x30] sm:$0xf] %vm2168, %v2097
      %2182 = vst.msk [vmem:[#allocation3 + $0x34] sm:$0xf] %vm2168, %v2099
      %2183 = vst.msk [vmem:[#allocation3 + $0x38] sm:$0xf] %vm2168, %v2101
      %2184 = vst.msk [vmem:[#allocation3 + $0x3c] sm:$0xf] %vm2168, %v2103
      %2185 = vst.msk [vmem:[#allocation3 + $0x40] sm:$0xf] %vm2168, %v2105
      %2186 = vst.msk [vmem:[#allocation3 + $0x44] sm:$0xf] %vm2168, %v2107
      %2187 = vst.msk [vmem:[#allocation3 + $0x48] sm:$0xf] %vm2168, %v2109
      %2188 = vst.msk [vmem:[#allocation3 + $0x4c] sm:$0xf] %vm2168, %v2111
      %2189 = vst.msk [vmem:[#allocation3 + $0x50] sm:$0xf] %vm2168, %v2113
      %2190 = vst.msk [vmem:[#allocation3 + $0x54] sm:$0xf] %vm2168, %v2115
      %2191 = vst.msk [vmem:[#allocation3 + $0x58] sm:$0xf] %vm2168, %v2117
      %2192 = vst.msk [vmem:[#allocation3 + $0x5c] sm:$0xf] %vm2168, %v2119
      %2193 = vst.msk [vmem:[#allocation3 + $0x60] sm:$0xf] %vm2168, %v2121
      %2194 = vst.msk [vmem:[#allocation3 + $0x64] sm:$0xf] %vm2168, %v2123
      %2195 = vst.msk [vmem:[#allocation3 + $0x68] sm:$0xf] %vm2168, %v2125
      %2196 = vst.msk [vmem:[#allocation3 + $0x6c] sm:$0xf] %vm2168, %v2127
      %2197 = vst.msk [vmem:[#allocation3 + $0x70] sm:$0xf] %vm2168, %v2129
      %2198 = vst.msk [vmem:[#allocation3 + $0x74] sm:$0xf] %vm2168, %v2131
      %2199 = vst.msk [vmem:[#allocation3 + $0x78] sm:$0xf] %vm2168, %v2133
      %2200 = vst.msk [vmem:[#allocation3 + $0x7c] sm:$0xf] %vm2168, %v2135
      %v2201 = vld [vmem:[%s925] sm:$0xf]
      %v2202 = vld [vmem:[%s925 + $0x4] sm:$0xf]
      %v2203 = vld [vmem:[%s925 + $0x8] sm:$0x1]
      %v2204 = vld [vmem:[%s925 + $0xc] sm:$0xf]
      %v2205 = vld [vmem:[%s925 + $0x10] sm:$0xf]
      %v2206 = vld [vmem:[%s925 + $0x14] sm:$0x1]
      %v2207 = vld [vmem:[%s925 + $0x18] sm:$0xf]
      %v2208 = vld [vmem:[%s925 + $0x1c] sm:$0xf]
      %v2209 = vld [vmem:[%s925 + $0x20] sm:$0x1]
      %v2210 = vld [vmem:[%s925 + $0x24] sm:$0xf]
      %v2211 = vld [vmem:[%s925 + $0x28] sm:$0xf]
      %v2212 = vld [vmem:[%s925 + $0x2c] sm:$0x1]
      %v2213 = vld [vmem:[%s925 + $0x30] sm:$0xf]
      %v2214 = vld [vmem:[%s925 + $0x34] sm:$0xf]
      %v2215 = vld [vmem:[%s925 + $0x38] sm:$0x1]
      %v2216 = vld [vmem:[%s925 + $0x3c] sm:$0xf]
      %v2217 = vld [vmem:[%s925 + $0x40] sm:$0xf]
      %v2218 = vld [vmem:[%s925 + $0x44] sm:$0x1]
      %v2219 = vld [vmem:[%s925 + $0x48] sm:$0xf]
      %v2220 = vld [vmem:[%s925 + $0x4c] sm:$0xf]
      %v2221 = vld [vmem:[%s925 + $0x50] sm:$0x1]
      %v2222 = vld [vmem:[%s925 + $0x54] sm:$0xf]
      %v2223 = vld [vmem:[%s925 + $0x58] sm:$0xf]
      %v2224 = vld [vmem:[%s925 + $0x5c] sm:$0x1]
      %v2225 = vld [vmem:[%s925 + $0x60] sm:$0xf]
      %v2226 = vld [vmem:[%s925 + $0x64] sm:$0xf]
      %v2227 = vld [vmem:[%s925 + $0x68] sm:$0x1]
      %v2228 = vld [vmem:[%s925 + $0x6c] sm:$0xf]
      %v2229 = vld [vmem:[%s925 + $0x70] sm:$0xf]
      %v2230 = vld [vmem:[%s925 + $0x74] sm:$0x1]
      %v2231 = vld [vmem:[%s925 + $0x78] sm:$0xf]
      %v2232 = vld [vmem:[%s925 + $0x7c] sm:$0xf]
      %v2233 = vld [vmem:[%s925 + $0x80] sm:$0x1]
      %v2234 = vld [vmem:[%s925 + $0x84] sm:$0xf]
      %v2235 = vld [vmem:[%s925 + $0x88] sm:$0xf]
      %v2236 = vld [vmem:[%s925 + $0x8c] sm:$0x1]
      %v2237 = vld [vmem:[%s925 + $0x90] sm:$0xf]
      %v2238 = vld [vmem:[%s925 + $0x94] sm:$0xf]
      %v2239 = vld [vmem:[%s925 + $0x98] sm:$0x1]
      %v2240 = vld [vmem:[%s925 + $0x9c] sm:$0xf]
      %v2241 = vld [vmem:[%s925 + $0xa0] sm:$0xf]
      %v2242 = vld [vmem:[%s925 + $0xa4] sm:$0x1]
      %v2243 = vld [vmem:[%s925 + $0xa8] sm:$0xf]
      %v2244 = vld [vmem:[%s925 + $0xac] sm:$0xf]
      %v2245 = vld [vmem:[%s925 + $0xb0] sm:$0x1]
      %v2246 = vld [vmem:[%s925 + $0xb4] sm:$0xf]
      %v2247 = vld [vmem:[%s925 + $0xb8] sm:$0xf]
      %v2248 = vld [vmem:[%s925 + $0xbc] sm:$0x1]
      %v2250 = vshrl.u32 %v2201, 16
      %v2252 = vrot.slane %v2250, 4
      %v2253 = vshll.u32 %v2201, 16
      %v2255 = vrot.slane %v2253, 5
      %v2256 = vor.u32 %v2252, %v2255
      %v2257 = vrot.slane %v2256, 4
      %v2259 = vshll.u32 %v2202, 16
      %v2261 = vrot.slane %v2259, 5
      %v2262 = vsel %vm1154, %v2257, %v2261
      %v2263 = vshrl.u32 %v2202, 16
      %v2265 = vrot.slane %v2263, 4
      %v2266 = vor.u32 %v2265, %v2261
      %v2267 = vrot.slane %v2266, 4
      %v2269 = vshll.u32 %v2203, 16
      %v2271 = vrot.slane %v2269, 5
      %v2272 = vsel %vm1154, %v2267, %v2271
      %v2274 = vshrl.u32 %v2204, 16
      %v2276 = vrot.slane %v2274, 4
      %v2277 = vshll.u32 %v2204, 16
      %v2279 = vrot.slane %v2277, 5
      %v2280 = vor.u32 %v2276, %v2279
      %v2281 = vrot.slane %v2280, 4
      %v2283 = vshll.u32 %v2205, 16
      %v2285 = vrot.slane %v2283, 5
      %v2286 = vsel %vm1154, %v2281, %v2285
      %v2287 = vshrl.u32 %v2205, 16
      %v2289 = vrot.slane %v2287, 4
      %v2290 = vor.u32 %v2289, %v2285
      %v2291 = vrot.slane %v2290, 4
      %v2293 = vshll.u32 %v2206, 16
      %v2295 = vrot.slane %v2293, 5
      %v2296 = vsel %vm1154, %v2291, %v2295
      %v2298 = vshrl.u32 %v2207, 16
      %v2300 = vrot.slane %v2298, 4
      %v2301 = vshll.u32 %v2207, 16
      %v2303 = vrot.slane %v2301, 5
      %v2304 = vor.u32 %v2300, %v2303
      %v2305 = vrot.slane %v2304, 4
      %v2307 = vshll.u32 %v2208, 16
      %v2309 = vrot.slane %v2307, 5
      %v2310 = vsel %vm1154, %v2305, %v2309
      %v2311 = vshrl.u32 %v2208, 16
      %v2313 = vrot.slane %v2311, 4
      %v2314 = vor.u32 %v2313, %v2309
      %v2315 = vrot.slane %v2314, 4
      %v2317 = vshll.u32 %v2209, 16
      %v2319 = vrot.slane %v2317, 5
      %v2320 = vsel %vm1154, %v2315, %v2319
      %v2322 = vshrl.u32 %v2210, 16
      %v2324 = vrot.slane %v2322, 4
      %v2325 = vshll.u32 %v2210, 16
      %v2327 = vrot.slane %v2325, 5
      %v2328 = vor.u32 %v2324, %v2327
      %v2329 = vrot.slane %v2328, 4
      %v2331 = vshll.u32 %v2211, 16
      %v2333 = vrot.slane %v2331, 5
      %v2334 = vsel %vm1154, %v2329, %v2333
      %v2335 = vshrl.u32 %v2211, 16
      %v2337 = vrot.slane %v2335, 4
      %v2338 = vor.u32 %v2337, %v2333
      %v2339 = vrot.slane %v2338, 4
      %v2341 = vshll.u32 %v2212, 16
      %v2343 = vrot.slane %v2341, 5
      %v2344 = vsel %vm1154, %v2339, %v2343
      %v2346 = vshrl.u32 %v2213, 16
      %v2348 = vrot.slane %v2346, 4
      %v2349 = vshll.u32 %v2213, 16
      %v2351 = vrot.slane %v2349, 5
      %v2352 = vor.u32 %v2348, %v2351
      %v2353 = vrot.slane %v2352, 4
      %v2355 = vshll.u32 %v2214, 16
      %v2357 = vrot.slane %v2355, 5
      %v2358 = vsel %vm1154, %v2353, %v2357
      %v2359 = vshrl.u32 %v2214, 16
      %v2361 = vrot.slane %v2359, 4
      %v2362 = vor.u32 %v2361, %v2357
      %v2363 = vrot.slane %v2362, 4
      %v2365 = vshll.u32 %v2215, 16
      %v2367 = vrot.slane %v2365, 5
      %v2368 = vsel %vm1154, %v2363, %v2367
      %v2370 = vshrl.u32 %v2216, 16
      %v2372 = vrot.slane %v2370, 4
      %v2373 = vshll.u32 %v2216, 16
      %v2375 = vrot.slane %v2373, 5
      %v2376 = vor.u32 %v2372, %v2375
      %v2377 = vrot.slane %v2376, 4
      %v2379 = vshll.u32 %v2217, 16
      %v2381 = vrot.slane %v2379, 5
      %v2382 = vsel %vm1154, %v2377, %v2381
      %v2383 = vshrl.u32 %v2217, 16
      %v2385 = vrot.slane %v2383, 4
      %v2386 = vor.u32 %v2385, %v2381
      %v2387 = vrot.slane %v2386, 4
      %v2389 = vshll.u32 %v2218, 16
      %v2391 = vrot.slane %v2389, 5
      %v2392 = vsel %vm1154, %v2387, %v2391
      %v2394 = vshrl.u32 %v2219, 16
      %v2396 = vrot.slane %v2394, 4
      %v2397 = vshll.u32 %v2219, 16
      %v2399 = vrot.slane %v2397, 5
      %v2400 = vor.u32 %v2396, %v2399
      %v2401 = vrot.slane %v2400, 4
      %v2403 = vshll.u32 %v2220, 16
      %v2405 = vrot.slane %v2403, 5
      %v2406 = vsel %vm1154, %v2401, %v2405
      %v2407 = vshrl.u32 %v2220, 16
      %v2409 = vrot.slane %v2407, 4
      %v2410 = vor.u32 %v2409, %v2405
      %v2411 = vrot.slane %v2410, 4
      %v2413 = vshll.u32 %v2221, 16
      %v2415 = vrot.slane %v2413, 5
      %v2416 = vsel %vm1154, %v2411, %v2415
      %v2418 = vshrl.u32 %v2222, 16
      %v2420 = vrot.slane %v2418, 4
      %v2421 = vshll.u32 %v2222, 16
      %v2423 = vrot.slane %v2421, 5
      %v2424 = vor.u32 %v2420, %v2423
      %v2425 = vrot.slane %v2424, 4
      %v2427 = vshll.u32 %v2223, 16
      %v2429 = vrot.slane %v2427, 5
      %v2430 = vsel %vm1154, %v2425, %v2429
      %v2431 = vshrl.u32 %v2223, 16
      %v2433 = vrot.slane %v2431, 4
      %v2434 = vor.u32 %v2433, %v2429
      %v2435 = vrot.slane %v2434, 4
      %v2437 = vshll.u32 %v2224, 16
      %v2439 = vrot.slane %v2437, 5
      %v2440 = vsel %vm1154, %v2435, %v2439
      %v2442 = vshrl.u32 %v2225, 16
      %v2444 = vrot.slane %v2442, 4
      %v2445 = vshll.u32 %v2225, 16
      %v2447 = vrot.slane %v2445, 5
      %v2448 = vor.u32 %v2444, %v2447
      %v2449 = vrot.slane %v2448, 4
      %v2451 = vshll.u32 %v2226, 16
      %v2453 = vrot.slane %v2451, 5
      %v2454 = vsel %vm1154, %v2449, %v2453
      %v2455 = vshrl.u32 %v2226, 16
      %v2457 = vrot.slane %v2455, 4
      %v2458 = vor.u32 %v2457, %v2453
      %v2459 = vrot.slane %v2458, 4
      %v2461 = vshll.u32 %v2227, 16
      %v2463 = vrot.slane %v2461, 5
      %v2464 = vsel %vm1154, %v2459, %v2463
      %v2466 = vshrl.u32 %v2228, 16
      %v2468 = vrot.slane %v2466, 4
      %v2469 = vshll.u32 %v2228, 16
      %v2471 = vrot.slane %v2469, 5
      %v2472 = vor.u32 %v2468, %v2471
      %v2473 = vrot.slane %v2472, 4
      %v2475 = vshll.u32 %v2229, 16
      %v2477 = vrot.slane %v2475, 5
      %v2478 = vsel %vm1154, %v2473, %v2477
      %v2479 = vshrl.u32 %v2229, 16
      %v2481 = vrot.slane %v2479, 4
      %v2482 = vor.u32 %v2481, %v2477
      %v2483 = vrot.slane %v2482, 4
      %v2485 = vshll.u32 %v2230, 16
      %v2487 = vrot.slane %v2485, 5
      %v2488 = vsel %vm1154, %v2483, %v2487
      %v2490 = vshrl.u32 %v2231, 16
      %v2492 = vrot.slane %v2490, 4
      %v2493 = vshll.u32 %v2231, 16
      %v2495 = vrot.slane %v2493, 5
      %v2496 = vor.u32 %v2492, %v2495
      %v2497 = vrot.slane %v2496, 4
      %v2499 = vshll.u32 %v2232, 16
      %v2501 = vrot.slane %v2499, 5
      %v2502 = vsel %vm1154, %v2497, %v2501
      %v2503 = vshrl.u32 %v2232, 16
      %v2505 = vrot.slane %v2503, 4
      %v2506 = vor.u32 %v2505, %v2501
      %v2507 = vrot.slane %v2506, 4
      %v2509 = vshll.u32 %v2233, 16
      %v2511 = vrot.slane %v2509, 5
      %v2512 = vsel %vm1154, %v2507, %v2511
      %v2514 = vshrl.u32 %v2234, 16
      %v2516 = vrot.slane %v2514, 4
      %v2517 = vshll.u32 %v2234, 16
      %v2519 = vrot.slane %v2517, 5
      %v2520 = vor.u32 %v2516, %v2519
      %v2521 = vrot.slane %v2520, 4
      %v2523 = vshll.u32 %v2235, 16
      %v2525 = vrot.slane %v2523, 5
      %v2526 = vsel %vm1154, %v2521, %v2525
      %v2527 = vshrl.u32 %v2235, 16
      %v2529 = vrot.slane %v2527, 4
      %v2530 = vor.u32 %v2529, %v2525
      %v2531 = vrot.slane %v2530, 4
      %v2533 = vshll.u32 %v2236, 16
      %v2535 = vrot.slane %v2533, 5
      %v2536 = vsel %vm1154, %v2531, %v2535
      %v2538 = vshrl.u32 %v2237, 16
      %v2540 = vrot.slane %v2538, 4
      %v2541 = vshll.u32 %v2237, 16
      %v2543 = vrot.slane %v2541, 5
      %v2544 = vor.u32 %v2540, %v2543
      %v2545 = vrot.slane %v2544, 4
      %v2547 = vshll.u32 %v2238, 16
      %v2549 = vrot.slane %v2547, 5
      %v2550 = vsel %vm1154, %v2545, %v2549
      %v2551 = vshrl.u32 %v2238, 16
      %v2553 = vrot.slane %v2551, 4
      %v2554 = vor.u32 %v2553, %v2549
      %v2555 = vrot.slane %v2554, 4
      %v2557 = vshll.u32 %v2239, 16
      %v2559 = vrot.slane %v2557, 5
      %v2560 = vsel %vm1154, %v2555, %v2559
      %v2562 = vshrl.u32 %v2240, 16
      %v2564 = vrot.slane %v2562, 4
      %v2565 = vshll.u32 %v2240, 16
      %v2567 = vrot.slane %v2565, 5
      %v2568 = vor.u32 %v2564, %v2567
      %v2569 = vrot.slane %v2568, 4
      %v2571 = vshll.u32 %v2241, 16
      %v2573 = vrot.slane %v2571, 5
      %v2574 = vsel %vm1154, %v2569, %v2573
      %v2575 = vshrl.u32 %v2241, 16
      %v2577 = vrot.slane %v2575, 4
      %v2578 = vor.u32 %v2577, %v2573
      %v2579 = vrot.slane %v2578, 4
      %v2581 = vshll.u32 %v2242, 16
      %v2583 = vrot.slane %v2581, 5
      %v2584 = vsel %vm1154, %v2579, %v2583
      %v2586 = vshrl.u32 %v2243, 16
      %v2588 = vrot.slane %v2586, 4
      %v2589 = vshll.u32 %v2243, 16
      %v2591 = vrot.slane %v2589, 5
      %v2592 = vor.u32 %v2588, %v2591
      %v2593 = vrot.slane %v2592, 4
      %v2595 = vshll.u32 %v2244, 16
      %v2597 = vrot.slane %v2595, 5
      %v2598 = vsel %vm1154, %v2593, %v2597
      %v2599 = vshrl.u32 %v2244, 16
      %v2601 = vrot.slane %v2599, 4
      %v2602 = vor.u32 %v2601, %v2597
      %v2603 = vrot.slane %v2602, 4
      %v2605 = vshll.u32 %v2245, 16
      %v2607 = vrot.slane %v2605, 5
      %v2608 = vsel %vm1154, %v2603, %v2607
      %v2610 = vshrl.u32 %v2246, 16
      %v2612 = vrot.slane %v2610, 4
      %v2613 = vshll.u32 %v2246, 16
      %v2615 = vrot.slane %v2613, 5
      %v2616 = vor.u32 %v2612, %v2615
      %v2617 = vrot.slane %v2616, 4
      %v2619 = vshll.u32 %v2247, 16
      %v2621 = vrot.slane %v2619, 5
      %v2622 = vsel %vm1154, %v2617, %v2621
      %v2623 = vshrl.u32 %v2247, 16
      %v2625 = vrot.slane %v2623, 4
      %v2626 = vor.u32 %v2625, %v2621
      %v2627 = vrot.slane %v2626, 4
      %v2629 = vshll.u32 %v2248, 16
      %v2631 = vrot.slane %v2629, 5
      %v2632 = vsel %vm1154, %v2627, %v2631
      %2633 = vrot.lane.b32.xlu0 %v2262, 32
      %v2634 = vpop.permute.xlu0 %2633
      %2635 = vrot.lane.b32.xlu0 %v2272, 32
      %v2636 = vpop.permute.xlu0 %2635
      %2637 = vrot.lane.b32.xlu0 %v2286, 32
      %v2638 = vpop.permute.xlu0 %2637
      %2639 = vrot.lane.b32.xlu0 %v2296, 32
      %v2640 = vpop.permute.xlu0 %2639
      %2641 = vrot.lane.b32.xlu0 %v2310, 32
      %v2642 = vpop.permute.xlu0 %2641
      %2643 = vrot.lane.b32.xlu0 %v2320, 32
      %v2644 = vpop.permute.xlu0 %2643
      %2645 = vrot.lane.b32.xlu0 %v2334, 32
      %v2646 = vpop.permute.xlu0 %2645
      %2647 = vrot.lane.b32.xlu0 %v2344, 32
      %v2648 = vpop.permute.xlu0 %2647
      %2649 = vrot.lane.b32.xlu0 %v2358, 32
      %v2650 = vpop.permute.xlu0 %2649
      %2651 = vrot.lane.b32.xlu0 %v2368, 32
      %v2652 = vpop.permute.xlu0 %2651
      %2653 = vrot.lane.b32.xlu0 %v2382, 32
      %v2654 = vpop.permute.xlu0 %2653
      %2655 = vrot.lane.b32.xlu0 %v2392, 32
      %v2656 = vpop.permute.xlu0 %2655
      %2657 = vrot.lane.b32.xlu0 %v2406, 32
      %v2658 = vpop.permute.xlu0 %2657
      %2659 = vrot.lane.b32.xlu0 %v2416, 32
      %v2660 = vpop.permute.xlu0 %2659
      %2661 = vrot.lane.b32.xlu0 %v2430, 32
      %v2662 = vpop.permute.xlu0 %2661
      %2663 = vrot.lane.b32.xlu0 %v2440, 32
      %v2664 = vpop.permute.xlu0 %2663
      %2665 = vrot.lane.b32.xlu0 %v2454, 32
      %v2666 = vpop.permute.xlu0 %2665
      %2667 = vrot.lane.b32.xlu0 %v2464, 32
      %v2668 = vpop.permute.xlu0 %2667
      %2669 = vrot.lane.b32.xlu0 %v2478, 32
      %v2670 = vpop.permute.xlu0 %2669
      %2671 = vrot.lane.b32.xlu0 %v2488, 32
      %v2672 = vpop.permute.xlu0 %2671
      %2673 = vrot.lane.b32.xlu0 %v2502, 32
      %v2674 = vpop.permute.xlu0 %2673
      %2675 = vrot.lane.b32.xlu0 %v2512, 32
      %v2676 = vpop.permute.xlu0 %2675
      %2677 = vrot.lane.b32.xlu0 %v2526, 32
      %v2678 = vpop.permute.xlu0 %2677
      %2679 = vrot.lane.b32.xlu0 %v2536, 32
      %v2680 = vpop.permute.xlu0 %2679
      %2681 = vrot.lane.b32.xlu0 %v2550, 32
      %v2682 = vpop.permute.xlu0 %2681
      %2683 = vrot.lane.b32.xlu0 %v2560, 32
      %v2684 = vpop.permute.xlu0 %2683
      %2685 = vrot.lane.b32.xlu0 %v2574, 32
      %v2686 = vpop.permute.xlu0 %2685
      %2687 = vrot.lane.b32.xlu0 %v2584, 32
      %v2688 = vpop.permute.xlu0 %2687
      %2689 = vrot.lane.b32.xlu0 %v2598, 32
      %v2690 = vpop.permute.xlu0 %2689
      %2691 = vrot.lane.b32.xlu0 %v2608, 32
      %v2692 = vpop.permute.xlu0 %2691
      %2693 = vrot.lane.b32.xlu0 %v2622, 32
      %v2694 = vpop.permute.xlu0 %2693
      %2695 = vrot.lane.b32.xlu0 %v2632, 32
      %v2696 = vpop.permute.xlu0 %2695
      %vm2729 = vcmask 322816
      %2730 = vst.msk [vmem:[#allocation3] sm:$0xf] %vm2729, %v2634
      %2731 = vst.msk [vmem:[#allocation3 + $0x4] sm:$0xf] %vm2729, %v2636
      %2732 = vst.msk [vmem:[#allocation3 + $0x8] sm:$0xf] %vm2729, %v2638
      %2733 = vst.msk [vmem:[#allocation3 + $0xc] sm:$0xf] %vm2729, %v2640
      %2734 = vst.msk [vmem:[#allocation3 + $0x10] sm:$0xf] %vm2729, %v2642
      %2735 = vst.msk [vmem:[#allocation3 + $0x14] sm:$0xf] %vm2729, %v2644
      %2736 = vst.msk [vmem:[#allocation3 + $0x18] sm:$0xf] %vm2729, %v2646
      %2737 = vst.msk [vmem:[#allocation3 + $0x1c] sm:$0xf] %vm2729, %v2648
      %2738 = vst.msk [vmem:[#allocation3 + $0x20] sm:$0xf] %vm2729, %v2650
      %2739 = vst.msk [vmem:[#allocation3 + $0x24] sm:$0xf] %vm2729, %v2652
      %2740 = vst.msk [vmem:[#allocation3 + $0x28] sm:$0xf] %vm2729, %v2654
      %2741 = vst.msk [vmem:[#allocation3 + $0x2c] sm:$0xf] %vm2729, %v2656
      %2742 = vst.msk [vmem:[#allocation3 + $0x30] sm:$0xf] %vm2729, %v2658
      %2743 = vst.msk [vmem:[#allocation3 + $0x34] sm:$0xf] %vm2729, %v2660
      %2744 = vst.msk [vmem:[#allocation3 + $0x38] sm:$0xf] %vm2729, %v2662
      %2745 = vst.msk [vmem:[#allocation3 + $0x3c] sm:$0xf] %vm2729, %v2664
      %2746 = vst.msk [vmem:[#allocation3 + $0x40] sm:$0xf] %vm2729, %v2666
      %2747 = vst.msk [vmem:[#allocation3 + $0x44] sm:$0xf] %vm2729, %v2668
      %2748 = vst.msk [vmem:[#allocation3 + $0x48] sm:$0xf] %vm2729, %v2670
      %2749 = vst.msk [vmem:[#allocation3 + $0x4c] sm:$0xf] %vm2729, %v2672
      %2750 = vst.msk [vmem:[#allocation3 + $0x50] sm:$0xf] %vm2729, %v2674
      %2751 = vst.msk [vmem:[#allocation3 + $0x54] sm:$0xf] %vm2729, %v2676
      %2752 = vst.msk [vmem:[#allocation3 + $0x58] sm:$0xf] %vm2729, %v2678
      %2753 = vst.msk [vmem:[#allocation3 + $0x5c] sm:$0xf] %vm2729, %v2680
      %2754 = vst.msk [vmem:[#allocation3 + $0x60] sm:$0xf] %vm2729, %v2682
      %2755 = vst.msk [vmem:[#allocation3 + $0x64] sm:$0xf] %vm2729, %v2684
      %2756 = vst.msk [vmem:[#allocation3 + $0x68] sm:$0xf] %vm2729, %v2686
      %2757 = vst.msk [vmem:[#allocation3 + $0x6c] sm:$0xf] %vm2729, %v2688
      %2758 = vst.msk [vmem:[#allocation3 + $0x70] sm:$0xf] %vm2729, %v2690
      %2759 = vst.msk [vmem:[#allocation3 + $0x74] sm:$0xf] %vm2729, %v2692
      %2760 = vst.msk [vmem:[#allocation3 + $0x78] sm:$0xf] %vm2729, %v2694
      %2761 = vst.msk [vmem:[#allocation3 + $0x7c] sm:$0xf] %vm2729, %v2696
      %v2762 = vld [vmem:[%s925] sm:$0xe]
      %v2763 = vld [vmem:[%s925 + $0x4] sm:$0xf]
      %v2764 = vld [vmem:[%s925 + $0x8] sm:$0x1]
      %v2765 = vld [vmem:[%s925 + $0xc] sm:$0xe]
      %v2766 = vld [vmem:[%s925 + $0x10] sm:$0xf]
      %v2767 = vld [vmem:[%s925 + $0x14] sm:$0x1]
      %v2768 = vld [vmem:[%s925 + $0x18] sm:$0xe]
      %v2769 = vld [vmem:[%s925 + $0x1c] sm:$0xf]
      %v2770 = vld [vmem:[%s925 + $0x20] sm:$0x1]
      %v2771 = vld [vmem:[%s925 + $0x24] sm:$0xe]
      %v2772 = vld [vmem:[%s925 + $0x28] sm:$0xf]
      %v2773 = vld [vmem:[%s925 + $0x2c] sm:$0x1]
      %v2774 = vld [vmem:[%s925 + $0x30] sm:$0xe]
      %v2775 = vld [vmem:[%s925 + $0x34] sm:$0xf]
      %v2776 = vld [vmem:[%s925 + $0x38] sm:$0x1]
      %v2777 = vld [vmem:[%s925 + $0x3c] sm:$0xe]
      %v2778 = vld [vmem:[%s925 + $0x40] sm:$0xf]
      %v2779 = vld [vmem:[%s925 + $0x44] sm:$0x1]
      %v2780 = vld [vmem:[%s925 + $0x48] sm:$0xe]
      %v2781 = vld [vmem:[%s925 + $0x4c] sm:$0xf]
      %v2782 = vld [vmem:[%s925 + $0x50] sm:$0x1]
      %v2783 = vld [vmem:[%s925 + $0x54] sm:$0xe]
      %v2784 = vld [vmem:[%s925 + $0x58] sm:$0xf]
      %v2785 = vld [vmem:[%s925 + $0x5c] sm:$0x1]
      %v2786 = vld [vmem:[%s925 + $0x60] sm:$0xe]
      %v2787 = vld [vmem:[%s925 + $0x64] sm:$0xf]
      %v2788 = vld [vmem:[%s925 + $0x68] sm:$0x1]
      %v2789 = vld [vmem:[%s925 + $0x6c] sm:$0xe]
      %v2790 = vld [vmem:[%s925 + $0x70] sm:$0xf]
      %v2791 = vld [vmem:[%s925 + $0x74] sm:$0x1]
      %v2792 = vld [vmem:[%s925 + $0x78] sm:$0xe]
      %v2793 = vld [vmem:[%s925 + $0x7c] sm:$0xf]
      %v2794 = vld [vmem:[%s925 + $0x80] sm:$0x1]
      %v2795 = vld [vmem:[%s925 + $0x84] sm:$0xe]
      %v2796 = vld [vmem:[%s925 + $0x88] sm:$0xf]
      %v2797 = vld [vmem:[%s925 + $0x8c] sm:$0x1]
      %v2798 = vld [vmem:[%s925 + $0x90] sm:$0xe]
      %v2799 = vld [vmem:[%s925 + $0x94] sm:$0xf]
      %v2800 = vld [vmem:[%s925 + $0x98] sm:$0x1]
      %v2801 = vld [vmem:[%s925 + $0x9c] sm:$0xe]
      %v2802 = vld [vmem:[%s925 + $0xa0] sm:$0xf]
      %v2803 = vld [vmem:[%s925 + $0xa4] sm:$0x1]
      %v2804 = vld [vmem:[%s925 + $0xa8] sm:$0xe]
      %v2805 = vld [vmem:[%s925 + $0xac] sm:$0xf]
      %v2806 = vld [vmem:[%s925 + $0xb0] sm:$0x1]
      %v2807 = vld [vmem:[%s925 + $0xb4] sm:$0xe]
      %v2808 = vld [vmem:[%s925 + $0xb8] sm:$0xf]
      %v2809 = vld [vmem:[%s925 + $0xbc] sm:$0x1]
      %v2858 = vrot.slane %v2762, 5
      %v2859 = vrot.slane %v2858, 4
      %v2860 = vrot.slane %v2763, 5
      %v2861 = vsel %vm1766, %v2859, %v2860
      %v2862 = vrot.slane %v2860, 4
      %v2863 = vrot.slane %v2764, 5
      %v2864 = vsel %vm1766, %v2862, %v2863
      %v2865 = vrot.slane %v2765, 5
      %v2866 = vrot.slane %v2865, 4
      %v2867 = vrot.slane %v2766, 5
      %v2868 = vsel %vm1766, %v2866, %v2867
      %v2869 = vrot.slane %v2867, 4
      %v2870 = vrot.slane %v2767, 5
      %v2871 = vsel %vm1766, %v2869, %v2870
      %v2872 = vrot.slane %v2768, 5
      %v2873 = vrot.slane %v2872, 4
      %v2874 = vrot.slane %v2769, 5
      %v2875 = vsel %vm1766, %v2873, %v2874
      %v2876 = vrot.slane %v2874, 4
      %v2877 = vrot.slane %v2770, 5
      %v2878 = vsel %vm1766, %v2876, %v2877
      %v2879 = vrot.slane %v2771, 5
      %v2880 = vrot.slane %v2879, 4
      %v2881 = vrot.slane %v2772, 5
      %v2882 = vsel %vm1766, %v2880, %v2881
      %v2883 = vrot.slane %v2881, 4
      %v2884 = vrot.slane %v2773, 5
      %v2885 = vsel %vm1766, %v2883, %v2884
      %v2886 = vrot.slane %v2774, 5
      %v2887 = vrot.slane %v2886, 4
      %v2888 = vrot.slane %v2775, 5
      %v2889 = vsel %vm1766, %v2887, %v2888
      %v2890 = vrot.slane %v2888, 4
      %v2891 = vrot.slane %v2776, 5
      %v2892 = vsel %vm1766, %v2890, %v2891
      %v2893 = vrot.slane %v2777, 5
      %v2894 = vrot.slane %v2893, 4
      %v2895 = vrot.slane %v2778, 5
      %v2896 = vsel %vm1766, %v2894, %v2895
      %v2897 = vrot.slane %v2895, 4
      %v2898 = vrot.slane %v2779, 5
      %v2899 = vsel %vm1766, %v2897, %v2898
      %v2900 = vrot.slane %v2780, 5
      %v2901 = vrot.slane %v2900, 4
      %v2902 = vrot.slane %v2781, 5
      %v2903 = vsel %vm1766, %v2901, %v2902
      %v2904 = vrot.slane %v2902, 4
      %v2905 = vrot.slane %v2782, 5
      %v2906 = vsel %vm1766, %v2904, %v2905
      %v2907 = vrot.slane %v2783, 5
      %v2908 = vrot.slane %v2907, 4
      %v2909 = vrot.slane %v2784, 5
      %v2910 = vsel %vm1766, %v2908, %v2909
      %v2911 = vrot.slane %v2909, 4
      %v2912 = vrot.slane %v2785, 5
      %v2913 = vsel %vm1766, %v2911, %v2912
      %v2914 = vrot.slane %v2786, 5
      %v2915 = vrot.slane %v2914, 4
      %v2916 = vrot.slane %v2787, 5
      %v2917 = vsel %vm1766, %v2915, %v2916
      %v2918 = vrot.slane %v2916, 4
      %v2919 = vrot.slane %v2788, 5
      %v2920 = vsel %vm1766, %v2918, %v2919
      %v2921 = vrot.slane %v2789, 5
      %v2922 = vrot.slane %v2921, 4
      %v2923 = vrot.slane %v2790, 5
      %v2924 = vsel %vm1766, %v2922, %v2923
      %v2925 = vrot.slane %v2923, 4
      %v2926 = vrot.slane %v2791, 5
      %v2927 = vsel %vm1766, %v2925, %v2926
      %v2928 = vrot.slane %v2792, 5
      %v2929 = vrot.slane %v2928, 4
      %v2930 = vrot.slane %v2793, 5
      %v2931 = vsel %vm1766, %v2929, %v2930
      %v2932 = vrot.slane %v2930, 4
      %v2933 = vrot.slane %v2794, 5
      %v2934 = vsel %vm1766, %v2932, %v2933
      %v2935 = vrot.slane %v2795, 5
      %v2936 = vrot.slane %v2935, 4
      %v2937 = vrot.slane %v2796, 5
      %v2938 = vsel %vm1766, %v2936, %v2937
      %v2939 = vrot.slane %v2937, 4
      %v2940 = vrot.slane %v2797, 5
      %v2941 = vsel %vm1766, %v2939, %v2940
      %v2942 = vrot.slane %v2798, 5
      %v2943 = vrot.slane %v2942, 4
      %v2944 = vrot.slane %v2799, 5
      %v2945 = vsel %vm1766, %v2943, %v2944
      %v2946 = vrot.slane %v2944, 4
      %v2947 = vrot.slane %v2800, 5
      %v2948 = vsel %vm1766, %v2946, %v2947
      %v2949 = vrot.slane %v2801, 5
      %v2950 = vrot.slane %v2949, 4
      %v2951 = vrot.slane %v2802, 5
      %v2952 = vsel %vm1766, %v2950, %v2951
      %v2953 = vrot.slane %v2951, 4
      %v2954 = vrot.slane %v2803, 5
      %v2955 = vsel %vm1766, %v2953, %v2954
      %v2956 = vrot.slane %v2804, 5
      %v2957 = vrot.slane %v2956, 4
      %v2958 = vrot.slane %v2805, 5
      %v2959 = vsel %vm1766, %v2957, %v2958
      %v2960 = vrot.slane %v2958, 4
      %v2961 = vrot.slane %v2806, 5
      %v2962 = vsel %vm1766, %v2960, %v2961
      %v2963 = vrot.slane %v2807, 5
      %v2964 = vrot.slane %v2963, 4
      %v2965 = vrot.slane %v2808, 5
      %v2966 = vsel %vm1766, %v2964, %v2965
      %v2967 = vrot.slane %v2965, 4
      %v2968 = vrot.slane %v2809, 5
      %v2969 = vsel %vm1766, %v2967, %v2968
      %2970 = vrot.lane.b32.xlu0 %v2861, 40
      %v2971 = vpop.permute.xlu0 %2970
      %2972 = vrot.lane.b32.xlu0 %v2864, 40
      %v2973 = vpop.permute.xlu0 %2972
      %2974 = vrot.lane.b32.xlu0 %v2868, 40
      %v2975 = vpop.permute.xlu0 %2974
      %2976 = vrot.lane.b32.xlu0 %v2871, 40
      %v2977 = vpop.permute.xlu0 %2976
      %2978 = vrot.lane.b32.xlu0 %v2875, 40
      %v2979 = vpop.permute.xlu0 %2978
      %2980 = vrot.lane.b32.xlu0 %v2878, 40
      %v2981 = vpop.permute.xlu0 %2980
      %2982 = vrot.lane.b32.xlu0 %v2882, 40
      %v2983 = vpop.permute.xlu0 %2982
      %2984 = vrot.lane.b32.xlu0 %v2885, 40
      %v2985 = vpop.permute.xlu0 %2984
      %2986 = vrot.lane.b32.xlu0 %v2889, 40
      %v2987 = vpop.permute.xlu0 %2986
      %2988 = vrot.lane.b32.xlu0 %v2892, 40
      %v2989 = vpop.permute.xlu0 %2988
      %2990 = vrot.lane.b32.xlu0 %v2896, 40
      %v2991 = vpop.permute.xlu0 %2990
      %2992 = vrot.lane.b32.xlu0 %v2899, 40
      %v2993 = vpop.permute.xlu0 %2992
      %2994 = vrot.lane.b32.xlu0 %v2903, 40
      %v2995 = vpop.permute.xlu0 %2994
      %2996 = vrot.lane.b32.xlu0 %v2906, 40
      %v2997 = vpop.permute.xlu0 %2996
      %2998 = vrot.lane.b32.xlu0 %v2910, 40
      %v2999 = vpop.permute.xlu0 %2998
      %3000 = vrot.lane.b32.xlu0 %v2913, 40
      %v3001 = vpop.permute.xlu0 %3000
      %3002 = vrot.lane.b32.xlu0 %v2917, 40
      %v3003 = vpop.permute.xlu0 %3002
      %3004 = vrot.lane.b32.xlu0 %v2920, 40
      %v3005 = vpop.permute.xlu0 %3004
      %3006 = vrot.lane.b32.xlu0 %v2924, 40
      %v3007 = vpop.permute.xlu0 %3006
      %3008 = vrot.lane.b32.xlu0 %v2927, 40
      %v3009 = vpop.permute.xlu0 %3008
      %3010 = vrot.lane.b32.xlu0 %v2931, 40
      %v3011 = vpop.permute.xlu0 %3010
      %3012 = vrot.lane.b32.xlu0 %v2934, 40
      %v3013 = vpop.permute.xlu0 %3012
      %3014 = vrot.lane.b32.xlu0 %v2938, 40
      %v3015 = vpop.permute.xlu0 %3014
      %3016 = vrot.lane.b32.xlu0 %v2941, 40
      %v3017 = vpop.permute.xlu0 %3016
      %3018 = vrot.lane.b32.xlu0 %v2945, 40
      %v3019 = vpop.permute.xlu0 %3018
      %3020 = vrot.lane.b32.xlu0 %v2948, 40
      %v3021 = vpop.permute.xlu0 %3020
      %3022 = vrot.lane.b32.xlu0 %v2952, 40
      %v3023 = vpop.permute.xlu0 %3022
      %3024 = vrot.lane.b32.xlu0 %v2955, 40
      %v3025 = vpop.permute.xlu0 %3024
      %3026 = vrot.lane.b32.xlu0 %v2959, 40
      %v3027 = vpop.permute.xlu0 %3026
      %3028 = vrot.lane.b32.xlu0 %v2962, 40
      %v3029 = vpop.permute.xlu0 %3028
      %3030 = vrot.lane.b32.xlu0 %v2966, 40
      %v3031 = vpop.permute.xlu0 %3030
      %3032 = vrot.lane.b32.xlu0 %v2969, 40
      %v3033 = vpop.permute.xlu0 %3032
      %vm3066 = vcmask 388416
      %3067 = vst.msk [vmem:[#allocation3] sm:$0xf] %vm3066, %v2971
      %3068 = vst.msk [vmem:[#allocation3 + $0x4] sm:$0xf] %vm3066, %v2973
      %3069 = vst.msk [vmem:[#allocation3 + $0x8] sm:$0xf] %vm3066, %v2975
      %3070 = vst.msk [vmem:[#allocation3 + $0xc] sm:$0xf] %vm3066, %v2977
      %3071 = vst.msk [vmem:[#allocation3 + $0x10] sm:$0xf] %vm3066, %v2979
      %3072 = vst.msk [vmem:[#allocation3 + $0x14] sm:$0xf] %vm3066, %v2981
      %3073 = vst.msk [vmem:[#allocation3 + $0x18] sm:$0xf] %vm3066, %v2983
      %3074 = vst.msk [vmem:[#allocation3 + $0x1c] sm:$0xf] %vm3066, %v2985
      %3075 = vst.msk [vmem:[#allocation3 + $0x20] sm:$0xf] %vm3066, %v2987
      %3076 = vst.msk [vmem:[#allocation3 + $0x24] sm:$0xf] %vm3066, %v2989
      %3077 = vst.msk [vmem:[#allocation3 + $0x28] sm:$0xf] %vm3066, %v2991
      %3078 = vst.msk [vmem:[#allocation3 + $0x2c] sm:$0xf] %vm3066, %v2993
      %3079 = vst.msk [vmem:[#allocation3 + $0x30] sm:$0xf] %vm3066, %v2995
      %3080 = vst.msk [vmem:[#allocation3 + $0x34] sm:$0xf] %vm3066, %v2997
      %3081 = vst.msk [vmem:[#allocation3 + $0x38] sm:$0xf] %vm3066, %v2999
      %3082 = vst.msk [vmem:[#allocation3 + $0x3c] sm:$0xf] %vm3066, %v3001
      %3083 = vst.msk [vmem:[#allocation3 + $0x40] sm:$0xf] %vm3066, %v3003
      %3084 = vst.msk [vmem:[#allocation3 + $0x44] sm:$0xf] %vm3066, %v3005
      %3085 = vst.msk [vmem:[#allocation3 + $0x48] sm:$0xf] %vm3066, %v3007
      %3086 = vst.msk [vmem:[#allocation3 + $0x4c] sm:$0xf] %vm3066, %v3009
      %3087 = vst.msk [vmem:[#allocation3 + $0x50] sm:$0xf] %vm3066, %v3011
      %3088 = vst.msk [vmem:[#allocation3 + $0x54] sm:$0xf] %vm3066, %v3013
      %3089 = vst.msk [vmem:[#allocation3 + $0x58] sm:$0xf] %vm3066, %v3015
      %3090 = vst.msk [vmem:[#allocation3 + $0x5c] sm:$0xf] %vm3066, %v3017
      %3091 = vst.msk [vmem:[#allocation3 + $0x60] sm:$0xf] %vm3066, %v3019
      %3092 = vst.msk [vmem:[#allocation3 + $0x64] sm:$0xf] %vm3066, %v3021
      %3093 = vst.msk [vmem:[#allocation3 + $0x68] sm:$0xf] %vm3066, %v3023
      %3094 = vst.msk [vmem:[#allocation3 + $0x6c] sm:$0xf] %vm3066, %v3025
      %3095 = vst.msk [vmem:[#allocation3 + $0x70] sm:$0xf] %vm3066, %v3027
      %3096 = vst.msk [vmem:[#allocation3 + $0x74] sm:$0xf] %vm3066, %v3029
      %3097 = vst.msk [vmem:[#allocation3 + $0x78] sm:$0xf] %vm3066, %v3031
      %3098 = vst.msk [vmem:[#allocation3 + $0x7c] sm:$0xf] %vm3066, %v3033
      %s3099 = scalar_lea.vmem [#allocation2], 24
      %v3100 = vld [vmem:[%s3099] sm:$0xf]
      %v3101 = vld [vmem:[%s3099 + $0x4] sm:$0xf]
      %v3102 = vld [vmem:[%s3099 + $0xc] sm:$0xf]
      %v3103 = vld [vmem:[%s3099 + $0x10] sm:$0xf]
      %v3104 = vld [vmem:[%s3099 + $0x18] sm:$0xf]
      %v3105 = vld [vmem:[%s3099 + $0x1c] sm:$0xf]
      %v3106 = vld [vmem:[%s3099 + $0x24] sm:$0xf]
      %v3107 = vld [vmem:[%s3099 + $0x28] sm:$0xf]
      %v3108 = vld [vmem:[%s3099 + $0x30] sm:$0xf]
      %v3109 = vld [vmem:[%s3099 + $0x34] sm:$0xf]
      %v3110 = vld [vmem:[%s3099 + $0x3c] sm:$0xf]
      %v3111 = vld [vmem:[%s3099 + $0x40] sm:$0xf]
      %v3112 = vld [vmem:[%s3099 + $0x48] sm:$0xf]
      %v3113 = vld [vmem:[%s3099 + $0x4c] sm:$0xf]
      %v3114 = vld [vmem:[%s3099 + $0x54] sm:$0xf]
      %v3115 = vld [vmem:[%s3099 + $0x58] sm:$0xf]
      %v3116 = vld [vmem:[%s3099 + $0x60] sm:$0xf]
      %v3117 = vld [vmem:[%s3099 + $0x64] sm:$0xf]
      %v3118 = vld [vmem:[%s3099 + $0x6c] sm:$0xf]
      %v3119 = vld [vmem:[%s3099 + $0x70] sm:$0xf]
      %v3120 = vld [vmem:[%s3099 + $0x78] sm:$0xf]
      %v3121 = vld [vmem:[%s3099 + $0x7c] sm:$0xf]
      %v3122 = vld [vmem:[%s3099 + $0x84] sm:$0xf]
      %v3123 = vld [vmem:[%s3099 + $0x88] sm:$0xf]
      %v3124 = vld [vmem:[%s3099 + $0x90] sm:$0xf]
      %v3125 = vld [vmem:[%s3099 + $0x94] sm:$0xf]
      %v3126 = vld [vmem:[%s3099 + $0x9c] sm:$0xf]
      %v3127 = vld [vmem:[%s3099 + $0xa0] sm:$0xf]
      %v3128 = vld [vmem:[%s3099 + $0xa8] sm:$0xf]
      %v3129 = vld [vmem:[%s3099 + $0xac] sm:$0xf]
      %v3130 = vld [vmem:[%s3099 + $0xb4] sm:$0xf]
      %v3131 = vld [vmem:[%s3099 + $0xb8] sm:$0xf]
      %3164 = vrot.lane.b32.xlu0 %v3100, 48
      %v3165 = vpop.permute.xlu0 %3164
      %3166 = vrot.lane.b32.xlu0 %v3101, 48
      %v3167 = vpop.permute.xlu0 %3166
      %3168 = vrot.lane.b32.xlu0 %v3102, 48
      %v3169 = vpop.permute.xlu0 %3168
      %3170 = vrot.lane.b32.xlu0 %v3103, 48
      %v3171 = vpop.permute.xlu0 %3170
      %3172 = vrot.lane.b32.xlu0 %v3104, 48
      %v3173 = vpop.permute.xlu0 %3172
      %3174 = vrot.lane.b32.xlu0 %v3105, 48
      %v3175 = vpop.permute.xlu0 %3174
      %3176 = vrot.lane.b32.xlu0 %v3106, 48
      %v3177 = vpop.permute.xlu0 %3176
      %3178 = vrot.lane.b32.xlu0 %v3107, 48
      %v3179 = vpop.permute.xlu0 %3178
      %3180 = vrot.lane.b32.xlu0 %v3108, 48
      %v3181 = vpop.permute.xlu0 %3180
      %3182 = vrot.lane.b32.xlu0 %v3109, 48
      %v3183 = vpop.permute.xlu0 %3182
      %3184 = vrot.lane.b32.xlu0 %v3110, 48
      %v3185 = vpop.permute.xlu0 %3184
      %3186 = vrot.lane.b32.xlu0 %v3111, 48
      %v3187 = vpop.permute.xlu0 %3186
      %3188 = vrot.lane.b32.xlu0 %v3112, 48
      %v3189 = vpop.permute.xlu0 %3188
      %3190 = vrot.lane.b32.xlu0 %v3113, 48
      %v3191 = vpop.permute.xlu0 %3190
      %3192 = vrot.lane.b32.xlu0 %v3114, 48
      %v3193 = vpop.permute.xlu0 %3192
      %3194 = vrot.lane.b32.xlu0 %v3115, 48
      %v3195 = vpop.permute.xlu0 %3194
      %3196 = vrot.lane.b32.xlu0 %v3116, 48
      %v3197 = vpop.permute.xlu0 %3196
      %3198 = vrot.lane.b32.xlu0 %v3117, 48
      %v3199 = vpop.permute.xlu0 %3198
      %3200 = vrot.lane.b32.xlu0 %v3118, 48
      %v3201 = vpop.permute.xlu0 %3200
      %3202 = vrot.lane.b32.xlu0 %v3119, 48
      %v3203 = vpop.permute.xlu0 %3202
      %3204 = vrot.lane.b32.xlu0 %v3120, 48
      %v3205 = vpop.permute.xlu0 %3204
      %3206 = vrot.lane.b32.xlu0 %v3121, 48
      %v3207 = vpop.permute.xlu0 %3206
      %3208 = vrot.lane.b32.xlu0 %v3122, 48
      %v3209 = vpop.permute.xlu0 %3208
      %3210 = vrot.lane.b32.xlu0 %v3123, 48
      %v3211 = vpop.permute.xlu0 %3210
      %3212 = vrot.lane.b32.xlu0 %v3124, 48
      %v3213 = vpop.permute.xlu0 %3212
      %3214 = vrot.lane.b32.xlu0 %v3125, 48
      %v3215 = vpop.permute.xlu0 %3214
      %3216 = vrot.lane.b32.xlu0 %v3126, 48
      %v3217 = vpop.permute.xlu0 %3216
      %3218 = vrot.lane.b32.xlu0 %v3127, 48
      %v3219 = vpop.permute.xlu0 %3218
      %3220 = vrot.lane.b32.xlu0 %v3128, 48
      %v3221 = vpop.permute.xlu0 %3220
      %3222 = vrot.lane.b32.xlu0 %v3129, 48
      %v3223 = vpop.permute.xlu0 %3222
      %3224 = vrot.lane.b32.xlu0 %v3130, 48
      %v3225 = vpop.permute.xlu0 %3224
      %3226 = vrot.lane.b32.xlu0 %v3131, 48
      %v3227 = vpop.permute.xlu0 %3226
      %vm3260 = vcmask 454016
      %3261 = vst.msk [vmem:[#allocation3] sm:$0xf] %vm3260, %v3165
      %3262 = vst.msk [vmem:[#allocation3 + $0x4] sm:$0xf] %vm3260, %v3167
      %3263 = vst.msk [vmem:[#allocation3 + $0x8] sm:$0xf] %vm3260, %v3169
      %3264 = vst.msk [vmem:[#allocation3 + $0xc] sm:$0xf] %vm3260, %v3171
      %3265 = vst.msk [vmem:[#allocation3 + $0x10] sm:$0xf] %vm3260, %v3173
      %3266 = vst.msk [vmem:[#allocation3 + $0x14] sm:$0xf] %vm3260, %v3175
      %3267 = vst.msk [vmem:[#allocation3 + $0x18] sm:$0xf] %vm3260, %v3177
      %3268 = vst.msk [vmem:[#allocation3 + $0x1c] sm:$0xf] %vm3260, %v3179
      %3269 = vst.msk [vmem:[#allocation3 + $0x20] sm:$0xf] %vm3260, %v3181
      %3270 = vst.msk [vmem:[#allocation3 + $0x24] sm:$0xf] %vm3260, %v3183
      %3271 = vst.msk [vmem:[#allocation3 + $0x28] sm:$0xf] %vm3260, %v3185
      %3272 = vst.msk [vmem:[#allocation3 + $0x2c] sm:$0xf] %vm3260, %v3187
      %3273 = vst.msk [vmem:[#allocation3 + $0x30] sm:$0xf] %vm3260, %v3189
      %3274 = vst.msk [vmem:[#allocation3 + $0x34] sm:$0xf] %vm3260, %v3191
      %3275 = vst.msk [vmem:[#allocation3 + $0x38] sm:$0xf] %vm3260, %v3193
      %3276 = vst.msk [vmem:[#allocation3 + $0x3c] sm:$0xf] %vm3260, %v3195
      %3277 = vst.msk [vmem:[#allocation3 + $0x40] sm:$0xf] %vm3260, %v3197
      %3278 = vst.msk [vmem:[#allocation3 + $0x44] sm:$0xf] %vm3260, %v3199
      %3279 = vst.msk [vmem:[#allocation3 + $0x48] sm:$0xf] %vm3260, %v3201
      %3280 = vst.msk [vmem:[#allocation3 + $0x4c] sm:$0xf] %vm3260, %v3203
      %3281 = vst.msk [vmem:[#allocation3 + $0x50] sm:$0xf] %vm3260, %v3205
      %3282 = vst.msk [vmem:[#allocation3 + $0x54] sm:$0xf] %vm3260, %v3207
      %3283 = vst.msk [vmem:[#allocation3 + $0x58] sm:$0xf] %vm3260, %v3209
      %3284 = vst.msk [vmem:[#allocation3 + $0x5c] sm:$0xf] %vm3260, %v3211
      %3285 = vst.msk [vmem:[#allocation3 + $0x60] sm:$0xf] %vm3260, %v3213
      %3286 = vst.msk [vmem:[#allocation3 + $0x64] sm:$0xf] %vm3260, %v3215
      %3287 = vst.msk [vmem:[#allocation3 + $0x68] sm:$0xf] %vm3260, %v3217
      %3288 = vst.msk [vmem:[#allocation3 + $0x6c] sm:$0xf] %vm3260, %v3219
      %3289 = vst.msk [vmem:[#allocation3 + $0x70] sm:$0xf] %vm3260, %v3221
      %3290 = vst.msk [vmem:[#allocation3 + $0x74] sm:$0xf] %vm3260, %v3223
      %3291 = vst.msk [vmem:[#allocation3 + $0x78] sm:$0xf] %vm3260, %v3225
      %3292 = vst.msk [vmem:[#allocation3 + $0x7c] sm:$0xf] %vm3260, %v3227
      %v3293 = vld [vmem:[%s3099] sm:$0xf]
      %v3294 = vld [vmem:[%s3099 + $0x4] sm:$0xf]
      %v3295 = vld [vmem:[%s3099 + $0x8] sm:$0x1]
      %v3296 = vld [vmem:[%s3099 + $0xc] sm:$0xf]
      %v3297 = vld [vmem:[%s3099 + $0x10] sm:$0xf]
      %v3298 = vld [vmem:[%s3099 + $0x14] sm:$0x1]
      %v3299 = vld [vmem:[%s3099 + $0x18] sm:$0xf]
      %v3300 = vld [vmem:[%s3099 + $0x1c] sm:$0xf]
      %v3301 = vld [vmem:[%s3099 + $0x20] sm:$0x1]
      %v3302 = vld [vmem:[%s3099 + $0x24] sm:$0xf]
      %v3303 = vld [vmem:[%s3099 + $0x28] sm:$0xf]
      %v3304 = vld [vmem:[%s3099 + $0x2c] sm:$0x1]
      %v3305 = vld [vmem:[%s3099 + $0x30] sm:$0xf]
      %v3306 = vld [vmem:[%s3099 + $0x34] sm:$0xf]
      %v3307 = vld [vmem:[%s3099 + $0x38] sm:$0x1]
      %v3308 = vld [vmem:[%s3099 + $0x3c] sm:$0xf]
      %v3309 = vld [vmem:[%s3099 + $0x40] sm:$0xf]
      %v3310 = vld [vmem:[%s3099 + $0x44] sm:$0x1]
      %v3311 = vld [vmem:[%s3099 + $0x48] sm:$0xf]
      %v3312 = vld [vmem:[%s3099 + $0x4c] sm:$0xf]
      %v3313 = vld [vmem:[%s3099 + $0x50] sm:$0x1]
      %v3314 = vld [vmem:[%s3099 + $0x54] sm:$0xf]
      %v3315 = vld [vmem:[%s3099 + $0x58] sm:$0xf]
      %v3316 = vld [vmem:[%s3099 + $0x5c] sm:$0x1]
      %v3317 = vld [vmem:[%s3099 + $0x60] sm:$0xf]
      %v3318 = vld [vmem:[%s3099 + $0x64] sm:$0xf]
      %v3319 = vld [vmem:[%s3099 + $0x68] sm:$0x1]
      %v3320 = vld [vmem:[%s3099 + $0x6c] sm:$0xf]
      %v3321 = vld [vmem:[%s3099 + $0x70] sm:$0xf]
      %v3322 = vld [vmem:[%s3099 + $0x74] sm:$0x1]
      %v3323 = vld [vmem:[%s3099 + $0x78] sm:$0xf]
      %v3324 = vld [vmem:[%s3099 + $0x7c] sm:$0xf]
      %v3325 = vld [vmem:[%s3099 + $0x80] sm:$0x1]
      %v3326 = vld [vmem:[%s3099 + $0x84] sm:$0xf]
      %v3327 = vld [vmem:[%s3099 + $0x88] sm:$0xf]
      %v3328 = vld [vmem:[%s3099 + $0x8c] sm:$0x1]
      %v3329 = vld [vmem:[%s3099 + $0x90] sm:$0xf]
      %v3330 = vld [vmem:[%s3099 + $0x94] sm:$0xf]
      %v3331 = vld [vmem:[%s3099 + $0x98] sm:$0x1]
      %v3332 = vld [vmem:[%s3099 + $0x9c] sm:$0xf]
      %v3333 = vld [vmem:[%s3099 + $0xa0] sm:$0xf]
      %v3334 = vld [vmem:[%s3099 + $0xa4] sm:$0x1]
      %v3335 = vld [vmem:[%s3099 + $0xa8] sm:$0xf]
      %v3336 = vld [vmem:[%s3099 + $0xac] sm:$0xf]
      %v3337 = vld [vmem:[%s3099 + $0xb0] sm:$0x1]
      %v3338 = vld [vmem:[%s3099 + $0xb4] sm:$0xf]
      %v3339 = vld [vmem:[%s3099 + $0xb8] sm:$0xf]
      %v3340 = vld [vmem:[%s3099 + $0xbc] sm:$0x1]
      %v3342 = vshrl.u32 %v3293, 16
      %v3344 = vrot.slane %v3342, 4
      %v3345 = vshll.u32 %v3293, 16
      %v3347 = vrot.slane %v3345, 5
      %v3348 = vor.u32 %v3344, %v3347
      %v3349 = vrot.slane %v3348, 4
      %v3351 = vshll.u32 %v3294, 16
      %v3353 = vrot.slane %v3351, 5
      %v3354 = vsel %vm1154, %v3349, %v3353
      %v3355 = vshrl.u32 %v3294, 16
      %v3357 = vrot.slane %v3355, 4
      %v3358 = vor.u32 %v3357, %v3353
      %v3359 = vrot.slane %v3358, 4
      %v3361 = vshll.u32 %v3295, 16
      %v3363 = vrot.slane %v3361, 5
      %v3364 = vsel %vm1154, %v3359, %v3363
      %v3366 = vshrl.u32 %v3296, 16
      %v3368 = vrot.slane %v3366, 4
      %v3369 = vshll.u32 %v3296, 16
      %v3371 = vrot.slane %v3369, 5
      %v3372 = vor.u32 %v3368, %v3371
      %v3373 = vrot.slane %v3372, 4
      %v3375 = vshll.u32 %v3297, 16
      %v3377 = vrot.slane %v3375, 5
      %v3378 = vsel %vm1154, %v3373, %v3377
      %v3379 = vshrl.u32 %v3297, 16
      %v3381 = vrot.slane %v3379, 4
      %v3382 = vor.u32 %v3381, %v3377
      %v3383 = vrot.slane %v3382, 4
      %v3385 = vshll.u32 %v3298, 16
      %v3387 = vrot.slane %v3385, 5
      %v3388 = vsel %vm1154, %v3383, %v3387
      %v3390 = vshrl.u32 %v3299, 16
      %v3392 = vrot.slane %v3390, 4
      %v3393 = vshll.u32 %v3299, 16
      %v3395 = vrot.slane %v3393, 5
      %v3396 = vor.u32 %v3392, %v3395
      %v3397 = vrot.slane %v3396, 4
      %v3399 = vshll.u32 %v3300, 16
      %v3401 = vrot.slane %v3399, 5
      %v3402 = vsel %vm1154, %v3397, %v3401
      %v3403 = vshrl.u32 %v3300, 16
      %v3405 = vrot.slane %v3403, 4
      %v3406 = vor.u32 %v3405, %v3401
      %v3407 = vrot.slane %v3406, 4
      %v3409 = vshll.u32 %v3301, 16
      %v3411 = vrot.slane %v3409, 5
      %v3412 = vsel %vm1154, %v3407, %v3411
      %v3414 = vshrl.u32 %v3302, 16
      %v3416 = vrot.slane %v3414, 4
      %v3417 = vshll.u32 %v3302, 16
      %v3419 = vrot.slane %v3417, 5
      %v3420 = vor.u32 %v3416, %v3419
      %v3421 = vrot.slane %v3420, 4
      %v3423 = vshll.u32 %v3303, 16
      %v3425 = vrot.slane %v3423, 5
      %v3426 = vsel %vm1154, %v3421, %v3425
      %v3427 = vshrl.u32 %v3303, 16
      %v3429 = vrot.slane %v3427, 4
      %v3430 = vor.u32 %v3429, %v3425
      %v3431 = vrot.slane %v3430, 4
      %v3433 = vshll.u32 %v3304, 16
      %v3435 = vrot.slane %v3433, 5
      %v3436 = vsel %vm1154, %v3431, %v3435
      %v3438 = vshrl.u32 %v3305, 16
      %v3440 = vrot.slane %v3438, 4
      %v3441 = vshll.u32 %v3305, 16
      %v3443 = vrot.slane %v3441, 5
      %v3444 = vor.u32 %v3440, %v3443
      %v3445 = vrot.slane %v3444, 4
      %v3447 = vshll.u32 %v3306, 16
      %v3449 = vrot.slane %v3447, 5
      %v3450 = vsel %vm1154, %v3445, %v3449
      %v3451 = vshrl.u32 %v3306, 16
      %v3453 = vrot.slane %v3451, 4
      %v3454 = vor.u32 %v3453, %v3449
      %v3455 = vrot.slane %v3454, 4
      %v3457 = vshll.u32 %v3307, 16
      %v3459 = vrot.slane %v3457, 5
      %v3460 = vsel %vm1154, %v3455, %v3459
      %v3462 = vshrl.u32 %v3308, 16
      %v3464 = vrot.slane %v3462, 4
      %v3465 = vshll.u32 %v3308, 16
      %v3467 = vrot.slane %v3465, 5
      %v3468 = vor.u32 %v3464, %v3467
      %v3469 = vrot.slane %v3468, 4
      %v3471 = vshll.u32 %v3309, 16
      %v3473 = vrot.slane %v3471, 5
      %v3474 = vsel %vm1154, %v3469, %v3473
      %v3475 = vshrl.u32 %v3309, 16
      %v3477 = vrot.slane %v3475, 4
      %v3478 = vor.u32 %v3477, %v3473
      %v3479 = vrot.slane %v3478, 4
      %v3481 = vshll.u32 %v3310, 16
      %v3483 = vrot.slane %v3481, 5
      %v3484 = vsel %vm1154, %v3479, %v3483
      %v3486 = vshrl.u32 %v3311, 16
      %v3488 = vrot.slane %v3486, 4
      %v3489 = vshll.u32 %v3311, 16
      %v3491 = vrot.slane %v3489, 5
      %v3492 = vor.u32 %v3488, %v3491
      %v3493 = vrot.slane %v3492, 4
      %v3495 = vshll.u32 %v3312, 16
      %v3497 = vrot.slane %v3495, 5
      %v3498 = vsel %vm1154, %v3493, %v3497
      %v3499 = vshrl.u32 %v3312, 16
      %v3501 = vrot.slane %v3499, 4
      %v3502 = vor.u32 %v3501, %v3497
      %v3503 = vrot.slane %v3502, 4
      %v3505 = vshll.u32 %v3313, 16
      %v3507 = vrot.slane %v3505, 5
      %v3508 = vsel %vm1154, %v3503, %v3507
      %v3510 = vshrl.u32 %v3314, 16
      %v3512 = vrot.slane %v3510, 4
      %v3513 = vshll.u32 %v3314, 16
      %v3515 = vrot.slane %v3513, 5
      %v3516 = vor.u32 %v3512, %v3515
      %v3517 = vrot.slane %v3516, 4
      %v3519 = vshll.u32 %v3315, 16
      %v3521 = vrot.slane %v3519, 5
      %v3522 = vsel %vm1154, %v3517, %v3521
      %v3523 = vshrl.u32 %v3315, 16
      %v3525 = vrot.slane %v3523, 4
      %v3526 = vor.u32 %v3525, %v3521
      %v3527 = vrot.slane %v3526, 4
      %v3529 = vshll.u32 %v3316, 16
      %v3531 = vrot.slane %v3529, 5
      %v3532 = vsel %vm1154, %v3527, %v3531
      %v3534 = vshrl.u32 %v3317, 16
      %v3536 = vrot.slane %v3534, 4
      %v3537 = vshll.u32 %v3317, 16
      %v3539 = vrot.slane %v3537, 5
      %v3540 = vor.u32 %v3536, %v3539
      %v3541 = vrot.slane %v3540, 4
      %v3543 = vshll.u32 %v3318, 16
      %v3545 = vrot.slane %v3543, 5
      %v3546 = vsel %vm1154, %v3541, %v3545
      %v3547 = vshrl.u32 %v3318, 16
      %v3549 = vrot.slane %v3547, 4
      %v3550 = vor.u32 %v3549, %v3545
      %v3551 = vrot.slane %v3550, 4
      %v3553 = vshll.u32 %v3319, 16
      %v3555 = vrot.slane %v3553, 5
      %v3556 = vsel %vm1154, %v3551, %v3555
      %v3558 = vshrl.u32 %v3320, 16
      %v3560 = vrot.slane %v3558, 4
      %v3561 = vshll.u32 %v3320, 16
      %v3563 = vrot.slane %v3561, 5
      %v3564 = vor.u32 %v3560, %v3563
      %v3565 = vrot.slane %v3564, 4
      %v3567 = vshll.u32 %v3321, 16
      %v3569 = vrot.slane %v3567, 5
      %v3570 = vsel %vm1154, %v3565, %v3569
      %v3571 = vshrl.u32 %v3321, 16
      %v3573 = vrot.slane %v3571, 4
      %v3574 = vor.u32 %v3573, %v3569
      %v3575 = vrot.slane %v3574, 4
      %v3577 = vshll.u32 %v3322, 16
      %v3579 = vrot.slane %v3577, 5
      %v3580 = vsel %vm1154, %v3575, %v3579
      %v3582 = vshrl.u32 %v3323, 16
      %v3584 = vrot.slane %v3582, 4
      %v3585 = vshll.u32 %v3323, 16
      %v3587 = vrot.slane %v3585, 5
      %v3588 = vor.u32 %v3584, %v3587
      %v3589 = vrot.slane %v3588, 4
      %v3591 = vshll.u32 %v3324, 16
      %v3593 = vrot.slane %v3591, 5
      %v3594 = vsel %vm1154, %v3589, %v3593
      %v3595 = vshrl.u32 %v3324, 16
      %v3597 = vrot.slane %v3595, 4
      %v3598 = vor.u32 %v3597, %v3593
      %v3599 = vrot.slane %v3598, 4
      %v3601 = vshll.u32 %v3325, 16
      %v3603 = vrot.slane %v3601, 5
      %v3604 = vsel %vm1154, %v3599, %v3603
      %v3606 = vshrl.u32 %v3326, 16
      %v3608 = vrot.slane %v3606, 4
      %v3609 = vshll.u32 %v3326, 16
      %v3611 = vrot.slane %v3609, 5
      %v3612 = vor.u32 %v3608, %v3611
      %v3613 = vrot.slane %v3612, 4
      %v3615 = vshll.u32 %v3327, 16
      %v3617 = vrot.slane %v3615, 5
      %v3618 = vsel %vm1154, %v3613, %v3617
      %v3619 = vshrl.u32 %v3327, 16
      %v3621 = vrot.slane %v3619, 4
      %v3622 = vor.u32 %v3621, %v3617
      %v3623 = vrot.slane %v3622, 4
      %v3625 = vshll.u32 %v3328, 16
      %v3627 = vrot.slane %v3625, 5
      %v3628 = vsel %vm1154, %v3623, %v3627
      %v3630 = vshrl.u32 %v3329, 16
      %v3632 = vrot.slane %v3630, 4
      %v3633 = vshll.u32 %v3329, 16
      %v3635 = vrot.slane %v3633, 5
      %v3636 = vor.u32 %v3632, %v3635
      %v3637 = vrot.slane %v3636, 4
      %v3639 = vshll.u32 %v3330, 16
      %v3641 = vrot.slane %v3639, 5
      %v3642 = vsel %vm1154, %v3637, %v3641
      %v3643 = vshrl.u32 %v3330, 16
      %v3645 = vrot.slane %v3643, 4
      %v3646 = vor.u32 %v3645, %v3641
      %v3647 = vrot.slane %v3646, 4
      %v3649 = vshll.u32 %v3331, 16
      %v3651 = vrot.slane %v3649, 5
      %v3652 = vsel %vm1154, %v3647, %v3651
      %v3654 = vshrl.u32 %v3332, 16
      %v3656 = vrot.slane %v3654, 4
      %v3657 = vshll.u32 %v3332, 16
      %v3659 = vrot.slane %v3657, 5
      %v3660 = vor.u32 %v3656, %v3659
      %v3661 = vrot.slane %v3660, 4
      %v3663 = vshll.u32 %v3333, 16
      %v3665 = vrot.slane %v3663, 5
      %v3666 = vsel %vm1154, %v3661, %v3665
      %v3667 = vshrl.u32 %v3333, 16
      %v3669 = vrot.slane %v3667, 4
      %v3670 = vor.u32 %v3669, %v3665
      %v3671 = vrot.slane %v3670, 4
      %v3673 = vshll.u32 %v3334, 16
      %v3675 = vrot.slane %v3673, 5
      %v3676 = vsel %vm1154, %v3671, %v3675
      %v3678 = vshrl.u32 %v3335, 16
      %v3680 = vrot.slane %v3678, 4
      %v3681 = vshll.u32 %v3335, 16
      %v3683 = vrot.slane %v3681, 5
      %v3684 = vor.u32 %v3680, %v3683
      %v3685 = vrot.slane %v3684, 4
      %v3687 = vshll.u32 %v3336, 16
      %v3689 = vrot.slane %v3687, 5
      %v3690 = vsel %vm1154, %v3685, %v3689
      %v3691 = vshrl.u32 %v3336, 16
      %v3693 = vrot.slane %v3691, 4
      %v3694 = vor.u32 %v3693, %v3689
      %v3695 = vrot.slane %v3694, 4
      %v3697 = vshll.u32 %v3337, 16
      %v3699 = vrot.slane %v3697, 5
      %v3700 = vsel %vm1154, %v3695, %v3699
      %v3702 = vshrl.u32 %v3338, 16
      %v3704 = vrot.slane %v3702, 4
      %v3705 = vshll.u32 %v3338, 16
      %v3707 = vrot.slane %v3705, 5
      %v3708 = vor.u32 %v3704, %v3707
      %v3709 = vrot.slane %v3708, 4
      %v3711 = vshll.u32 %v3339, 16
      %v3713 = vrot.slane %v3711, 5
      %v3714 = vsel %vm1154, %v3709, %v3713
      %v3715 = vshrl.u32 %v3339, 16
      %v3717 = vrot.slane %v3715, 4
      %v3718 = vor.u32 %v3717, %v3713
      %v3719 = vrot.slane %v3718, 4
      %v3721 = vshll.u32 %v3340, 16
      %v3723 = vrot.slane %v3721, 5
      %v3724 = vsel %vm1154, %v3719, %v3723
      %3725 = vrot.lane.b32.xlu0 %v3354, 56
      %v3726 = vpop.permute.xlu0 %3725
      %3727 = vrot.lane.b32.xlu0 %v3364, 56
      %v3728 = vpop.permute.xlu0 %3727
      %3729 = vrot.lane.b32.xlu0 %v3378, 56
      %v3730 = vpop.permute.xlu0 %3729
      %3731 = vrot.lane.b32.xlu0 %v3388, 56
      %v3732 = vpop.permute.xlu0 %3731
      %3733 = vrot.lane.b32.xlu0 %v3402, 56
      %v3734 = vpop.permute.xlu0 %3733
      %3735 = vrot.lane.b32.xlu0 %v3412, 56
      %v3736 = vpop.permute.xlu0 %3735
      %3737 = vrot.lane.b32.xlu0 %v3426, 56
      %v3738 = vpop.permute.xlu0 %3737
      %3739 = vrot.lane.b32.xlu0 %v3436, 56
      %v3740 = vpop.permute.xlu0 %3739
      %3741 = vrot.lane.b32.xlu0 %v3450, 56
      %v3742 = vpop.permute.xlu0 %3741
      %3743 = vrot.lane.b32.xlu0 %v3460, 56
      %v3744 = vpop.permute.xlu0 %3743
      %3745 = vrot.lane.b32.xlu0 %v3474, 56
      %v3746 = vpop.permute.xlu0 %3745
      %3747 = vrot.lane.b32.xlu0 %v3484, 56
      %v3748 = vpop.permute.xlu0 %3747
      %3749 = vrot.lane.b32.xlu0 %v3498, 56
      %v3750 = vpop.permute.xlu0 %3749
      %3751 = vrot.lane.b32.xlu0 %v3508, 56
      %v3752 = vpop.permute.xlu0 %3751
      %3753 = vrot.lane.b32.xlu0 %v3522, 56
      %v3754 = vpop.permute.xlu0 %3753
      %3755 = vrot.lane.b32.xlu0 %v3532, 56
      %v3756 = vpop.permute.xlu0 %3755
      %3757 = vrot.lane.b32.xlu0 %v3546, 56
      %v3758 = vpop.permute.xlu0 %3757
      %3759 = vrot.lane.b32.xlu0 %v3556, 56
      %v3760 = vpop.permute.xlu0 %3759
      %3761 = vrot.lane.b32.xlu0 %v3570, 56
      %v3762 = vpop.permute.xlu0 %3761
      %3763 = vrot.lane.b32.xlu0 %v3580, 56
      %v3764 = vpop.permute.xlu0 %3763
      %3765 = vrot.lane.b32.xlu0 %v3594, 56
      %v3766 = vpop.permute.xlu0 %3765
      %3767 = vrot.lane.b32.xlu0 %v3604, 56
      %v3768 = vpop.permute.xlu0 %3767
      %3769 = vrot.lane.b32.xlu0 %v3618, 56
      %v3770 = vpop.permute.xlu0 %3769
      %3771 = vrot.lane.b32.xlu0 %v3628, 56
      %v3772 = vpop.permute.xlu0 %3771
      %3773 = vrot.lane.b32.xlu0 %v3642, 56
      %v3774 = vpop.permute.xlu0 %3773
      %3775 = vrot.lane.b32.xlu0 %v3652, 56
      %v3776 = vpop.permute.xlu0 %3775
      %3777 = vrot.lane.b32.xlu0 %v3666, 56
      %v3778 = vpop.permute.xlu0 %3777
      %3779 = vrot.lane.b32.xlu0 %v3676, 56
      %v3780 = vpop.permute.xlu0 %3779
      %3781 = vrot.lane.b32.xlu0 %v3690, 56
      %v3782 = vpop.permute.xlu0 %3781
      %3783 = vrot.lane.b32.xlu0 %v3700, 56
      %v3784 = vpop.permute.xlu0 %3783
      %3785 = vrot.lane.b32.xlu0 %v3714, 56
      %v3786 = vpop.permute.xlu0 %3785
      %3787 = vrot.lane.b32.xlu0 %v3724, 56
      %v3788 = vpop.permute.xlu0 %3787
      %vm3821 = vcmask 519616
      %3822 = vst.msk [vmem:[#allocation3] sm:$0xf] %vm3821, %v3726
      %3823 = vst.msk [vmem:[#allocation3 + $0x4] sm:$0xf] %vm3821, %v3728
      %3824 = vst.msk [vmem:[#allocation3 + $0x8] sm:$0xf] %vm3821, %v3730
      %3825 = vst.msk [vmem:[#allocation3 + $0xc] sm:$0xf] %vm3821, %v3732
      %3826 = vst.msk [vmem:[#allocation3 + $0x10] sm:$0xf] %vm3821, %v3734
      %3827 = vst.msk [vmem:[#allocation3 + $0x14] sm:$0xf] %vm3821, %v3736
      %3828 = vst.msk [vmem:[#allocation3 + $0x18] sm:$0xf] %vm3821, %v3738
      %3829 = vst.msk [vmem:[#allocation3 + $0x1c] sm:$0xf] %vm3821, %v3740
      %3830 = vst.msk [vmem:[#allocation3 + $0x20] sm:$0xf] %vm3821, %v3742
      %3831 = vst.msk [vmem:[#allocation3 + $0x24] sm:$0xf] %vm3821, %v3744
      %3832 = vst.msk [vmem:[#allocation3 + $0x28] sm:$0xf] %vm3821, %v3746
      %3833 = vst.msk [vmem:[#allocation3 + $0x2c] sm:$0xf] %vm3821, %v3748
      %3834 = vst.msk [vmem:[#allocation3 + $0x30] sm:$0xf] %vm3821, %v3750
      %3835 = vst.msk [vmem:[#allocation3 + $0x34] sm:$0xf] %vm3821, %v3752
      %3836 = vst.msk [vmem:[#allocation3 + $0x38] sm:$0xf] %vm3821, %v3754
      %3837 = vst.msk [vmem:[#allocation3 + $0x3c] sm:$0xf] %vm3821, %v3756
      %3838 = vst.msk [vmem:[#allocation3 + $0x40] sm:$0xf] %vm3821, %v3758
      %3839 = vst.msk [vmem:[#allocation3 + $0x44] sm:$0xf] %vm3821, %v3760
      %3840 = vst.msk [vmem:[#allocation3 + $0x48] sm:$0xf] %vm3821, %v3762
      %3841 = vst.msk [vmem:[#allocation3 + $0x4c] sm:$0xf] %vm3821, %v3764
      %3842 = vst.msk [vmem:[#allocation3 + $0x50] sm:$0xf] %vm3821, %v3766
      %3843 = vst.msk [vmem:[#allocation3 + $0x54] sm:$0xf] %vm3821, %v3768
      %3844 = vst.msk [vmem:[#allocation3 + $0x58] sm:$0xf] %vm3821, %v3770
      %3845 = vst.msk [vmem:[#allocation3 + $0x5c] sm:$0xf] %vm3821, %v3772
      %3846 = vst.msk [vmem:[#allocation3 + $0x60] sm:$0xf] %vm3821, %v3774
      %3847 = vst.msk [vmem:[#allocation3 + $0x64] sm:$0xf] %vm3821, %v3776
      %3848 = vst.msk [vmem:[#allocation3 + $0x68] sm:$0xf] %vm3821, %v3778
      %3849 = vst.msk [vmem:[#allocation3 + $0x6c] sm:$0xf] %vm3821, %v3780
      %3850 = vst.msk [vmem:[#allocation3 + $0x70] sm:$0xf] %vm3821, %v3782
      %3851 = vst.msk [vmem:[#allocation3 + $0x74] sm:$0xf] %vm3821, %v3784
      %3852 = vst.msk [vmem:[#allocation3 + $0x78] sm:$0xf] %vm3821, %v3786
      %3853 = vst.msk [vmem:[#allocation3 + $0x7c] sm:$0xf] %vm3821, %v3788
      %v3854 = vld [vmem:[%s3099] sm:$0xe]
      %v3855 = vld [vmem:[%s3099 + $0x4] sm:$0xf]
      %v3856 = vld [vmem:[%s3099 + $0x8] sm:$0x1]
      %v3857 = vld [vmem:[%s3099 + $0xc] sm:$0xe]
      %v3858 = vld [vmem:[%s3099 + $0x10] sm:$0xf]
      %v3859 = vld [vmem:[%s3099 + $0x14] sm:$0x1]
      %v3860 = vld [vmem:[%s3099 + $0x18] sm:$0xe]
      %v3861 = vld [vmem:[%s3099 + $0x1c] sm:$0xf]
      %v3862 = vld [vmem:[%s3099 + $0x20] sm:$0x1]
      %v3863 = vld [vmem:[%s3099 + $0x24] sm:$0xe]
      %v3864 = vld [vmem:[%s3099 + $0x28] sm:$0xf]
      %v3865 = vld [vmem:[%s3099 + $0x2c] sm:$0x1]
      %v3866 = vld [vmem:[%s3099 + $0x30] sm:$0xe]
      %v3867 = vld [vmem:[%s3099 + $0x34] sm:$0xf]
      %v3868 = vld [vmem:[%s3099 + $0x38] sm:$0x1]
      %v3869 = vld [vmem:[%s3099 + $0x3c] sm:$0xe]
      %v3870 = vld [vmem:[%s3099 + $0x40] sm:$0xf]
      %v3871 = vld [vmem:[%s3099 + $0x44] sm:$0x1]
      %v3872 = vld [vmem:[%s3099 + $0x48] sm:$0xe]
      %v3873 = vld [vmem:[%s3099 + $0x4c] sm:$0xf]
      %v3874 = vld [vmem:[%s3099 + $0x50] sm:$0x1]
      %v3875 = vld [vmem:[%s3099 + $0x54] sm:$0xe]
      %v3876 = vld [vmem:[%s3099 + $0x58] sm:$0xf]
      %v3877 = vld [vmem:[%s3099 + $0x5c] sm:$0x1]
      %v3878 = vld [vmem:[%s3099 + $0x60] sm:$0xe]
      %v3879 = vld [vmem:[%s3099 + $0x64] sm:$0xf]
      %v3880 = vld [vmem:[%s3099 + $0x68] sm:$0x1]
      %v3881 = vld [vmem:[%s3099 + $0x6c] sm:$0xe]
      %v3882 = vld [vmem:[%s3099 + $0x70] sm:$0xf]
      %v3883 = vld [vmem:[%s3099 + $0x74] sm:$0x1]
      %v3884 = vld [vmem:[%s3099 + $0x78] sm:$0xe]
      %v3885 = vld [vmem:[%s3099 + $0x7c] sm:$0xf]
      %v3886 = vld [vmem:[%s3099 + $0x80] sm:$0x1]
      %v3887 = vld [vmem:[%s3099 + $0x84] sm:$0xe]
      %v3888 = vld [vmem:[%s3099 + $0x88] sm:$0xf]
      %v3889 = vld [vmem:[%s3099 + $0x8c] sm:$0x1]
      %v3890 = vld [vmem:[%s3099 + $0x90] sm:$0xe]
      %v3891 = vld [vmem:[%s3099 + $0x94] sm:$0xf]
      %v3892 = vld [vmem:[%s3099 + $0x98] sm:$0x1]
      %v3893 = vld [vmem:[%s3099 + $0x9c] sm:$0xe]
      %v3894 = vld [vmem:[%s3099 + $0xa0] sm:$0xf]
      %v3895 = vld [vmem:[%s3099 + $0xa4] sm:$0x1]
      %v3896 = vld [vmem:[%s3099 + $0xa8] sm:$0xe]
      %v3897 = vld [vmem:[%s3099 + $0xac] sm:$0xf]
      %v3898 = vld [vmem:[%s3099 + $0xb0] sm:$0x1]
      %v3899 = vld [vmem:[%s3099 + $0xb4] sm:$0xe]
      %v3900 = vld [vmem:[%s3099 + $0xb8] sm:$0xf]
      %v3901 = vld [vmem:[%s3099 + $0xbc] sm:$0x1]
      %v3950 = vrot.slane %v3854, 5
      %v3951 = vrot.slane %v3950, 4
      %v3952 = vrot.slane %v3855, 5
      %v3953 = vsel %vm1766, %v3951, %v3952
      %v3954 = vrot.slane %v3952, 4
      %v3955 = vrot.slane %v3856, 5
      %v3956 = vsel %vm1766, %v3954, %v3955
      %v3957 = vrot.slane %v3857, 5
      %v3958 = vrot.slane %v3957, 4
      %v3959 = vrot.slane %v3858, 5
      %v3960 = vsel %vm1766, %v3958, %v3959
      %v3961 = vrot.slane %v3959, 4
      %v3962 = vrot.slane %v3859, 5
      %v3963 = vsel %vm1766, %v3961, %v3962
      %v3964 = vrot.slane %v3860, 5
      %v3965 = vrot.slane %v3964, 4
      %v3966 = vrot.slane %v3861, 5
      %v3967 = vsel %vm1766, %v3965, %v3966
      %v3968 = vrot.slane %v3966, 4
      %v3969 = vrot.slane %v3862, 5
      %v3970 = vsel %vm1766, %v3968, %v3969
      %v3971 = vrot.slane %v3863, 5
      %v3972 = vrot.slane %v3971, 4
      %v3973 = vrot.slane %v3864, 5
      %v3974 = vsel %vm1766, %v3972, %v3973
      %v3975 = vrot.slane %v3973, 4
      %v3976 = vrot.slane %v3865, 5
      %v3977 = vsel %vm1766, %v3975, %v3976
      %v3978 = vrot.slane %v3866, 5
      %v3979 = vrot.slane %v3978, 4
      %v3980 = vrot.slane %v3867, 5
      %v3981 = vsel %vm1766, %v3979, %v3980
      %v3982 = vrot.slane %v3980, 4
      %v3983 = vrot.slane %v3868, 5
      %v3984 = vsel %vm1766, %v3982, %v3983
      %v3985 = vrot.slane %v3869, 5
      %v3986 = vrot.slane %v3985, 4
      %v3987 = vrot.slane %v3870, 5
      %v3988 = vsel %vm1766, %v3986, %v3987
      %v3989 = vrot.slane %v3987, 4
      %v3990 = vrot.slane %v3871, 5
      %v3991 = vsel %vm1766, %v3989, %v3990
      %v3992 = vrot.slane %v3872, 5
      %v3993 = vrot.slane %v3992, 4
      %v3994 = vrot.slane %v3873, 5
      %v3995 = vsel %vm1766, %v3993, %v3994
      %v3996 = vrot.slane %v3994, 4
      %v3997 = vrot.slane %v3874, 5
      %v3998 = vsel %vm1766, %v3996, %v3997
      %v3999 = vrot.slane %v3875, 5
      %v4000 = vrot.slane %v3999, 4
      %v4001 = vrot.slane %v3876, 5
      %v4002 = vsel %vm1766, %v4000, %v4001
      %v4003 = vrot.slane %v4001, 4
      %v4004 = vrot.slane %v3877, 5
      %v4005 = vsel %vm1766, %v4003, %v4004
      %v4006 = vrot.slane %v3878, 5
      %v4007 = vrot.slane %v4006, 4
      %v4008 = vrot.slane %v3879, 5
      %v4009 = vsel %vm1766, %v4007, %v4008
      %v4010 = vrot.slane %v4008, 4
      %v4011 = vrot.slane %v3880, 5
      %v4012 = vsel %vm1766, %v4010, %v4011
      %v4013 = vrot.slane %v3881, 5
      %v4014 = vrot.slane %v4013, 4
      %v4015 = vrot.slane %v3882, 5
      %v4016 = vsel %vm1766, %v4014, %v4015
      %v4017 = vrot.slane %v4015, 4
      %v4018 = vrot.slane %v3883, 5
      %v4019 = vsel %vm1766, %v4017, %v4018
      %v4020 = vrot.slane %v3884, 5
      %v4021 = vrot.slane %v4020, 4
      %v4022 = vrot.slane %v3885, 5
      %v4023 = vsel %vm1766, %v4021, %v4022
      %v4024 = vrot.slane %v4022, 4
      %v4025 = vrot.slane %v3886, 5
      %v4026 = vsel %vm1766, %v4024, %v4025
      %v4027 = vrot.slane %v3887, 5
      %v4028 = vrot.slane %v4027, 4
      %v4029 = vrot.slane %v3888, 5
      %v4030 = vsel %vm1766, %v4028, %v4029
      %v4031 = vrot.slane %v4029, 4
      %v4032 = vrot.slane %v3889, 5
      %v4033 = vsel %vm1766, %v4031, %v4032
      %v4034 = vrot.slane %v3890, 5
      %v4035 = vrot.slane %v4034, 4
      %v4036 = vrot.slane %v3891, 5
      %v4037 = vsel %vm1766, %v4035, %v4036
      %v4038 = vrot.slane %v4036, 4
      %v4039 = vrot.slane %v3892, 5
      %v4040 = vsel %vm1766, %v4038, %v4039
      %v4041 = vrot.slane %v3893, 5
      %v4042 = vrot.slane %v4041, 4
      %v4043 = vrot.slane %v3894, 5
      %v4044 = vsel %vm1766, %v4042, %v4043
      %v4045 = vrot.slane %v4043, 4
      %v4046 = vrot.slane %v3895, 5
      %v4047 = vsel %vm1766, %v4045, %v4046
      %v4048 = vrot.slane %v3896, 5
      %v4049 = vrot.slane %v4048, 4
      %v4050 = vrot.slane %v3897, 5
      %v4051 = vsel %vm1766, %v4049, %v4050
      %v4052 = vrot.slane %v4050, 4
      %v4053 = vrot.slane %v3898, 5
      %v4054 = vsel %vm1766, %v4052, %v4053
      %v4055 = vrot.slane %v3899, 5
      %v4056 = vrot.slane %v4055, 4
      %v4057 = vrot.slane %v3900, 5
      %v4058 = vsel %vm1766, %v4056, %v4057
      %v4059 = vrot.slane %v4057, 4
      %v4060 = vrot.slane %v3901, 5
      %v4061 = vsel %vm1766, %v4059, %v4060
      %4062 = vrot.lane.b32.xlu0 %v3953, 64
      %v4063 = vpop.permute.xlu0 %4062
      %4064 = vrot.lane.b32.xlu0 %v3956, 64
      %v4065 = vpop.permute.xlu0 %4064
      %4066 = vrot.lane.b32.xlu0 %v3960, 64
      %v4067 = vpop.permute.xlu0 %4066
      %4068 = vrot.lane.b32.xlu0 %v3963, 64
      %v4069 = vpop.permute.xlu0 %4068
      %4070 = vrot.lane.b32.xlu0 %v3967, 64
      %v4071 = vpop.permute.xlu0 %4070
      %4072 = vrot.lane.b32.xlu0 %v3970, 64
      %v4073 = vpop.permute.xlu0 %4072
      %4074 = vrot.lane.b32.xlu0 %v3974, 64
      %v4075 = vpop.permute.xlu0 %4074
      %4076 = vrot.lane.b32.xlu0 %v3977, 64
      %v4077 = vpop.permute.xlu0 %4076
      %4078 = vrot.lane.b32.xlu0 %v3981, 64
      %v4079 = vpop.permute.xlu0 %4078
      %4080 = vrot.lane.b32.xlu0 %v3984, 64
      %v4081 = vpop.permute.xlu0 %4080
      %4082 = vrot.lane.b32.xlu0 %v3988, 64
      %v4083 = vpop.permute.xlu0 %4082
      %4084 = vrot.lane.b32.xlu0 %v3991, 64
      %v4085 = vpop.permute.xlu0 %4084
      %4086 = vrot.lane.b32.xlu0 %v3995, 64
      %v4087 = vpop.permute.xlu0 %4086
      %4088 = vrot.lane.b32.xlu0 %v3998, 64
      %v4089 = vpop.permute.xlu0 %4088
      %4090 = vrot.lane.b32.xlu0 %v4002, 64
      %v4091 = vpop.permute.xlu0 %4090
      %4092 = vrot.lane.b32.xlu0 %v4005, 64
      %v4093 = vpop.permute.xlu0 %4092
      %4094 = vrot.lane.b32.xlu0 %v4009, 64
      %v4095 = vpop.permute.xlu0 %4094
      %4096 = vrot.lane.b32.xlu0 %v4012, 64
      %v4097 = vpop.permute.xlu0 %4096
      %4098 = vrot.lane.b32.xlu0 %v4016, 64
      %v4099 = vpop.permute.xlu0 %4098
      %4100 = vrot.lane.b32.xlu0 %v4019, 64
      %v4101 = vpop.permute.xlu0 %4100
      %4102 = vrot.lane.b32.xlu0 %v4023, 64
      %v4103 = vpop.permute.xlu0 %4102
      %4104 = vrot.lane.b32.xlu0 %v4026, 64
      %v4105 = vpop.permute.xlu0 %4104
      %4106 = vrot.lane.b32.xlu0 %v4030, 64
      %v4107 = vpop.permute.xlu0 %4106
      %4108 = vrot.lane.b32.xlu0 %v4033, 64
      %v4109 = vpop.permute.xlu0 %4108
      %4110 = vrot.lane.b32.xlu0 %v4037, 64
      %v4111 = vpop.permute.xlu0 %4110
      %4112 = vrot.lane.b32.xlu0 %v4040, 64
      %v4113 = vpop.permute.xlu0 %4112
      %4114 = vrot.lane.b32.xlu0 %v4044, 64
      %v4115 = vpop.permute.xlu0 %4114
      %4116 = vrot.lane.b32.xlu0 %v4047, 64
      %v4117 = vpop.permute.xlu0 %4116
      %4118 = vrot.lane.b32.xlu0 %v4051, 64
      %v4119 = vpop.permute.xlu0 %4118
      %4120 = vrot.lane.b32.xlu0 %v4054, 64
      %v4121 = vpop.permute.xlu0 %4120
      %4122 = vrot.lane.b32.xlu0 %v4058, 64
      %v4123 = vpop.permute.xlu0 %4122
      %4124 = vrot.lane.b32.xlu0 %v4061, 64
      %v4125 = vpop.permute.xlu0 %4124
      %vm4158 = vcmask 585216
      %4159 = vst.msk [vmem:[#allocation3] sm:$0xf] %vm4158, %v4063
      %4160 = vst.msk [vmem:[#allocation3 + $0x4] sm:$0xf] %vm4158, %v4065
      %4161 = vst.msk [vmem:[#allocation3 + $0x8] sm:$0xf] %vm4158, %v4067
      %4162 = vst.msk [vmem:[#allocation3 + $0xc] sm:$0xf] %vm4158, %v4069
      %4163 = vst.msk [vmem:[#allocation3 + $0x10] sm:$0xf] %vm4158, %v4071
      %4164 = vst.msk [vmem:[#allocation3 + $0x14] sm:$0xf] %vm4158, %v4073
      %4165 = vst.msk [vmem:[#allocation3 + $0x18] sm:$0xf] %vm4158, %v4075
      %4166 = vst.msk [vmem:[#allocation3 + $0x1c] sm:$0xf] %vm4158, %v4077
      %4167 = vst.msk [vmem:[#allocation3 + $0x20] sm:$0xf] %vm4158, %v4079
      %4168 = vst.msk [vmem:[#allocation3 + $0x24] sm:$0xf] %vm4158, %v4081
      %4169 = vst.msk [vmem:[#allocation3 + $0x28] sm:$0xf] %vm4158, %v4083
      %4170 = vst.msk [vmem:[#allocation3 + $0x2c] sm:$0xf] %vm4158, %v4085
      %4171 = vst.msk [vmem:[#allocation3 + $0x30] sm:$0xf] %vm4158, %v4087
      %4172 = vst.msk [vmem:[#allocation3 + $0x34] sm:$0xf] %vm4158, %v4089
      %4173 = vst.msk [vmem:[#allocation3 + $0x38] sm:$0xf] %vm4158, %v4091
      %4174 = vst.msk [vmem:[#allocation3 + $0x3c] sm:$0xf] %vm4158, %v4093
      %4175 = vst.msk [vmem:[#allocation3 + $0x40] sm:$0xf] %vm4158, %v4095
      %4176 = vst.msk [vmem:[#allocation3 + $0x44] sm:$0xf] %vm4158, %v4097
      %4177 = vst.msk [vmem:[#allocation3 + $0x48] sm:$0xf] %vm4158, %v4099
      %4178 = vst.msk [vmem:[#allocation3 + $0x4c] sm:$0xf] %vm4158, %v4101
      %4179 = vst.msk [vmem:[#allocation3 + $0x50] sm:$0xf] %vm4158, %v4103
      %4180 = vst.msk [vmem:[#allocation3 + $0x54] sm:$0xf] %vm4158, %v4105
      %4181 = vst.msk [vmem:[#allocation3 + $0x58] sm:$0xf] %vm4158, %v4107
      %4182 = vst.msk [vmem:[#allocation3 + $0x5c] sm:$0xf] %vm4158, %v4109
      %4183 = vst.msk [vmem:[#allocation3 + $0x60] sm:$0xf] %vm4158, %v4111
      %4184 = vst.msk [vmem:[#allocation3 + $0x64] sm:$0xf] %vm4158, %v4113
      %4185 = vst.msk [vmem:[#allocation3 + $0x68] sm:$0xf] %vm4158, %v4115
      %4186 = vst.msk [vmem:[#allocation3 + $0x6c] sm:$0xf] %vm4158, %v4117
      %4187 = vst.msk [vmem:[#allocation3 + $0x70] sm:$0xf] %vm4158, %v4119
      %4188 = vst.msk [vmem:[#allocation3 + $0x74] sm:$0xf] %vm4158, %v4121
      %4189 = vst.msk [vmem:[#allocation3 + $0x78] sm:$0xf] %vm4158, %v4123
      %4190 = vst.msk [vmem:[#allocation3 + $0x7c] sm:$0xf] %vm4158, %v4125
      %v4191 = vld [vmem:[#allocation3] sm:$0xf]
      %v4192 = vld [vmem:[#allocation3 + $0x4] sm:$0xf]
      %v4193 = vld [vmem:[#allocation3 + $0x8] sm:$0xf]
      %v4194 = vld [vmem:[#allocation3 + $0xc] sm:$0xf]
      %v4195 = vld [vmem:[#allocation3 + $0x10] sm:$0xf]
      %v4196 = vld [vmem:[#allocation3 + $0x14] sm:$0xf]
      %v4197 = vld [vmem:[#allocation3 + $0x18] sm:$0xf]
      %v4198 = vld [vmem:[#allocation3 + $0x1c] sm:$0xf]
      %v4199 = vld [vmem:[#allocation3 + $0x20] sm:$0xf]
      %v4200 = vld [vmem:[#allocation3 + $0x24] sm:$0xf]
      %v4201 = vld [vmem:[#allocation3 + $0x28] sm:$0xf]
      %v4202 = vld [vmem:[#allocation3 + $0x2c] sm:$0xf]
      %v4203 = vld [vmem:[#allocation3 + $0x30] sm:$0xf]
      %v4204 = vld [vmem:[#allocation3 + $0x34] sm:$0xf]
      %v4205 = vld [vmem:[#allocation3 + $0x38] sm:$0xf]
      %v4206 = vld [vmem:[#allocation3 + $0x3c] sm:$0xf]
      %v4207 = vld [vmem:[#allocation3 + $0x40] sm:$0xf]
      %v4208 = vld [vmem:[#allocation3 + $0x44] sm:$0xf]
      %v4209 = vld [vmem:[#allocation3 + $0x48] sm:$0xf]
      %v4210 = vld [vmem:[#allocation3 + $0x4c] sm:$0xf]
      %v4211 = vld [vmem:[#allocation3 + $0x50] sm:$0xf]
      %v4212 = vld [vmem:[#allocation3 + $0x54] sm:$0xf]
      %v4213 = vld [vmem:[#allocation3 + $0x58] sm:$0xf]
      %v4214 = vld [vmem:[#allocation3 + $0x5c] sm:$0xf]
      %v4215 = vld [vmem:[#allocation3 + $0x60] sm:$0xf]
      %v4216 = vld [vmem:[#allocation3 + $0x64] sm:$0xf]
      %v4217 = vld [vmem:[#allocation3 + $0x68] sm:$0xf]
      %v4218 = vld [vmem:[#allocation3 + $0x6c] sm:$0xf]
      %v4219 = vld [vmem:[#allocation3 + $0x70] sm:$0xf]
      %v4220 = vld [vmem:[#allocation3 + $0x74] sm:$0xf]
      %v4221 = vld [vmem:[#allocation3 + $0x78] sm:$0xf]
      %v4222 = vld [vmem:[#allocation3 + $0x7c] sm:$0xf]
      %v4223 = vld [vmem:[%s1] sm:$0xf]
      %v4224 = vld [vmem:[%s1 + $0x4] sm:$0xf]
      %v4225 = vld [vmem:[%s1 + $0x8] sm:$0xf]
      %v4226 = vld [vmem:[%s1 + $0xc] sm:$0xf]
      %v4227 = vld [vmem:[%s1 + $0x10] sm:$0xf]
      %v4228 = vld [vmem:[%s1 + $0x14] sm:$0xf]
      %v4229 = vld [vmem:[%s1 + $0x18] sm:$0xf]
      %v4230 = vld [vmem:[%s1 + $0x1c] sm:$0xf]
      %v4231 = vld [vmem:[%s1 + $0x20] sm:$0xf]
      %v4232 = vld [vmem:[%s1 + $0x24] sm:$0xf]
      %v4233 = vld [vmem:[%s1 + $0x28] sm:$0xf]
      %v4234 = vld [vmem:[%s1 + $0x2c] sm:$0xf]
      %v4235 = vld [vmem:[%s1 + $0x30] sm:$0xf]
      %v4236 = vld [vmem:[%s1 + $0x34] sm:$0xf]
      %v4237 = vld [vmem:[%s1 + $0x38] sm:$0xf]
      %v4238 = vld [vmem:[%s1 + $0x3c] sm:$0xf]
      %v4271 = vunpack.c.l.b16 %v4191
      %v4272 = vunpack.c.l.b16 %v4192
      %v4273 = vunpack.c.l.b16 %v4193
      %v4274 = vunpack.c.l.b16 %v4194
      %v4275 = vunpack.c.l.b16 %v4195
      %v4276 = vunpack.c.l.b16 %v4196
      %v4277 = vunpack.c.l.b16 %v4197
      %v4278 = vunpack.c.l.b16 %v4198
      %v4279 = vunpack.c.l.b16 %v4199
      %v4280 = vunpack.c.l.b16 %v4200
      %v4281 = vunpack.c.l.b16 %v4201
      %v4282 = vunpack.c.l.b16 %v4202
      %v4283 = vunpack.c.l.b16 %v4203
      %v4284 = vunpack.c.l.b16 %v4204
      %v4285 = vunpack.c.l.b16 %v4205
      %v4286 = vunpack.c.l.b16 %v4206
      %v4287 = vunpack.c.l.b16 %v4207
      %v4288 = vunpack.c.l.b16 %v4208
      %v4289 = vunpack.c.l.b16 %v4209
      %v4290 = vunpack.c.l.b16 %v4210
      %v4291 = vunpack.c.l.b16 %v4211
      %v4292 = vunpack.c.l.b16 %v4212
      %v4293 = vunpack.c.l.b16 %v4213
      %v4294 = vunpack.c.l.b16 %v4214
      %v4295 = vunpack.c.l.b16 %v4215
      %v4296 = vunpack.c.l.b16 %v4216
      %v4297 = vunpack.c.l.b16 %v4217
      %v4298 = vunpack.c.l.b16 %v4218
      %v4299 = vunpack.c.l.b16 %v4219
      %v4300 = vunpack.c.l.b16 %v4220
      %v4301 = vunpack.c.l.b16 %v4221
      %v4302 = vunpack.c.l.b16 %v4222
      %v4303 = vpack.c.b16 %v4272, %v4271
      %v4304 = vpack.c.b16 %v4274, %v4273
      %v4305 = vpack.c.b16 %v4276, %v4275
      %v4306 = vpack.c.b16 %v4278, %v4277
      %v4307 = vpack.c.b16 %v4280, %v4279
      %v4308 = vpack.c.b16 %v4282, %v4281
      %v4309 = vpack.c.b16 %v4284, %v4283
      %v4310 = vpack.c.b16 %v4286, %v4285
      %v4311 = vpack.c.b16 %v4288, %v4287
      %v4312 = vpack.c.b16 %v4290, %v4289
      %v4313 = vpack.c.b16 %v4292, %v4291
      %v4314 = vpack.c.b16 %v4294, %v4293
      %v4315 = vpack.c.b16 %v4296, %v4295
      %v4316 = vpack.c.b16 %v4298, %v4297
      %v4317 = vpack.c.b16 %v4300, %v4299
      %v4318 = vpack.c.b16 %v4302, %v4301
      %v4351 = vunpack.c.l.b16 %v4223
      %v4352 = vunpack.c.l.b16 %v4224
      %v4353 = vunpack.c.l.b16 %v4225
      %v4354 = vunpack.c.l.b16 %v4226
      %v4355 = vunpack.c.l.b16 %v4227
      %v4356 = vunpack.c.l.b16 %v4228
      %v4357 = vunpack.c.l.b16 %v4229
      %v4358 = vunpack.c.l.b16 %v4230
      %v4359 = vunpack.c.l.b16 %v4231
      %v4360 = vunpack.c.l.b16 %v4232
      %v4361 = vunpack.c.l.b16 %v4233
      %v4362 = vunpack.c.l.b16 %v4234
      %v4363 = vunpack.c.l.b16 %v4235
      %v4364 = vunpack.c.l.b16 %v4236
      %v4365 = vunpack.c.l.b16 %v4237
      %v4366 = vunpack.c.l.b16 %v4238
      %v4367 = vpack.c.b16 %v4352, %v4351
      %v4368 = vpack.c.b16 %v4354, %v4353
      %v4369 = vpack.c.b16 %v4356, %v4355
      %v4370 = vpack.c.b16 %v4358, %v4357
      %v4371 = vpack.c.b16 %v4360, %v4359
      %v4372 = vpack.c.b16 %v4362, %v4361
      %v4373 = vpack.c.b16 %v4364, %v4363
      %v4374 = vpack.c.b16 %v4366, %v4365
      %4383 = vmatpush.bf16.msra.mxu0 %v4374
      %4384 = vmatpush.bf16.msra.mxu0 %v4373
      %4385 = vmatpush.bf16.msra.mxu0 %v4372
      %4386 = vmatpush.bf16.msra.mxu0 %v4371
      %4387 = vmatpush.bf16.msra.mxu0 %v4370
      %4388 = vmatpush.bf16.msra.mxu0 %v4369
      %4389 = vmatpush.bf16.msra.mxu0 %v4368
      %4390 = vmatpush.bf16.msra.mxu0 %v4367
      %4391 = vmatmul.bf16.gmra.mxu0 %v4303
      %v4392 = vpop.f32.mrf.mxu0
      %v4393 = vadd.f32 0.0, %v4392
      %v4394 = vpop.f32.mrf.mxu0
      %v4395 = vadd.f32 0.0, %v4394
      %4396 = vmatmul.bf16.gmra.mxu0 %v4304
      %v4397 = vpop.f32.mrf.mxu0
      %v4398 = vadd.f32 0.0, %v4397
      %v4399 = vpop.f32.mrf.mxu0
      %v4400 = vadd.f32 0.0, %v4399
      %4401 = vmatmul.bf16.gmra.mxu0 %v4305
      %v4402 = vpop.f32.mrf.mxu0
      %v4403 = vadd.f32 0.0, %v4402
      %v4404 = vpop.f32.mrf.mxu0
      %v4405 = vadd.f32 0.0, %v4404
      %4406 = vmatmul.bf16.gmra.mxu0 %v4306
      %v4407 = vpop.f32.mrf.mxu0
      %v4408 = vadd.f32 0.0, %v4407
      %v4409 = vpop.f32.mrf.mxu0
      %v4410 = vadd.f32 0.0, %v4409
      %4411 = vmatmul.bf16.gmra.mxu0 %v4307
      %v4412 = vpop.f32.mrf.mxu0
      %v4413 = vadd.f32 0.0, %v4412
      %v4414 = vpop.f32.mrf.mxu0
      %v4415 = vadd.f32 0.0, %v4414
      %4416 = vmatmul.bf16.gmra.mxu0 %v4308
      %v4417 = vpop.f32.mrf.mxu0
      %v4418 = vadd.f32 0.0, %v4417
      %v4419 = vpop.f32.mrf.mxu0
      %v4420 = vadd.f32 0.0, %v4419
      %4421 = vmatmul.bf16.gmra.mxu0 %v4309
      %v4422 = vpop.f32.mrf.mxu0
      %v4423 = vadd.f32 0.0, %v4422
      %v4424 = vpop.f32.mrf.mxu0
      %v4425 = vadd.f32 0.0, %v4424
      %4426 = vmatmul.bf16.gmra.mxu0 %v4310
      %v4427 = vpop.f32.mrf.mxu0
      %v4428 = vadd.f32 0.0, %v4427
      %v4429 = vpop.f32.mrf.mxu0
      %v4430 = vadd.f32 0.0, %v4429
      %4431 = vmatmul.bf16.gmra.mxu0 %v4311
      %v4432 = vpop.f32.mrf.mxu0
      %v4433 = vadd.f32 0.0, %v4432
      %v4434 = vpop.f32.mrf.mxu0
      %v4435 = vadd.f32 0.0, %v4434
      %4436 = vmatmul.bf16.gmra.mxu0 %v4312
      %v4437 = vpop.f32.mrf.mxu0
      %v4438 = vadd.f32 0.0, %v4437
      %v4439 = vpop.f32.mrf.mxu0
      %v4440 = vadd.f32 0.0, %v4439
      %4441 = vmatmul.bf16.gmra.mxu0 %v4313
      %v4442 = vpop.f32.mrf.mxu0
      %v4443 = vadd.f32 0.0, %v4442
      %v4444 = vpop.f32.mrf.mxu0
      %v4445 = vadd.f32 0.0, %v4444
      %4446 = vmatmul.bf16.gmra.mxu0 %v4314
      %v4447 = vpop.f32.mrf.mxu0
      %v4448 = vadd.f32 0.0, %v4447
      %v4449 = vpop.f32.mrf.mxu0
      %v4450 = vadd.f32 0.0, %v4449
      %4451 = vmatmul.bf16.gmra.mxu0 %v4315
      %v4452 = vpop.f32.mrf.mxu0
      %v4453 = vadd.f32 0.0, %v4452
      %v4454 = vpop.f32.mrf.mxu0
      %v4455 = vadd.f32 0.0, %v4454
      %4456 = vmatmul.bf16.gmra.mxu0 %v4316
      %v4457 = vpop.f32.mrf.mxu0
      %v4458 = vadd.f32 0.0, %v4457
      %v4459 = vpop.f32.mrf.mxu0
      %v4460 = vadd.f32 0.0, %v4459
      %4461 = vmatmul.bf16.gmra.mxu0 %v4317
      %v4462 = vpop.f32.mrf.mxu0
      %v4463 = vadd.f32 0.0, %v4462
      %v4464 = vpop.f32.mrf.mxu0
      %v4465 = vadd.f32 0.0, %v4464
      %4466 = vmatmul.bf16.gmra.mxu0 %v4318
      %v4467 = vpop.f32.mrf.mxu0
      %v4468 = vadd.f32 0.0, %v4467
      %v4469 = vpop.f32.mrf.mxu0
      %v4470 = vadd.f32 0.0, %v4469
      %4471 = vdwg.mxu0
      %4472 = vst [vmem:[#allocation4] sm:$0xff] %v4393
      %4473 = vst [vmem:[#allocation4 + $0x8] sm:$0xff] %v4395
      %4474 = vst [vmem:[#allocation4 + $0x10] sm:$0xff] %v4398
      %4475 = vst [vmem:[#allocation4 + $0x18] sm:$0xff] %v4400
      %4476 = vst [vmem:[#allocation4 + $0x20] sm:$0xff] %v4403
      %4477 = vst [vmem:[#allocation4 + $0x28] sm:$0xff] %v4405
      %4478 = vst [vmem:[#allocation4 + $0x30] sm:$0xff] %v4408
      %4479 = vst [vmem:[#allocation4 + $0x38] sm:$0xff] %v4410
      %4480 = vst [vmem:[#allocation4 + $0x40] sm:$0xff] %v4413
      %4481 = vst [vmem:[#allocation4 + $0x48] sm:$0xff] %v4415
      %4482 = vst [vmem:[#allocation4 + $0x50] sm:$0xff] %v4418
      %4483 = vst [vmem:[#allocation4 + $0x58] sm:$0xff] %v4420
      %4484 = vst [vmem:[#allocation4 + $0x60] sm:$0xff] %v4423
      %4485 = vst [vmem:[#allocation4 + $0x68] sm:$0xff] %v4425
      %4486 = vst [vmem:[#allocation4 + $0x70] sm:$0xff] %v4428
      %4487 = vst [vmem:[#allocation4 + $0x78] sm:$0xff] %v4430
      %4488 = vst [vmem:[#allocation4 + $0x80] sm:$0xff] %v4433
      %4489 = vst [vmem:[#allocation4 + $0x88] sm:$0xff] %v4435
      %4490 = vst [vmem:[#allocation4 + $0x90] sm:$0xff] %v4438
      %4491 = vst [vmem:[#allocation4 + $0x98] sm:$0xff] %v4440
      %4492 = vst [vmem:[#allocation4 + $0xa0] sm:$0xff] %v4443
      %4493 = vst [vmem:[#allocation4 + $0xa8] sm:$0xff] %v4445
      %4494 = vst [vmem:[#allocation4 + $0xb0] sm:$0xff] %v4448
      %4495 = vst [vmem:[#allocation4 + $0xb8] sm:$0xff] %v4450
      %4496 = vst [vmem:[#allocation4 + $0xc0] sm:$0xff] %v4453
      %4497 = vst [vmem:[#allocation4 + $0xc8] sm:$0xff] %v4455
      %4498 = vst [vmem:[#allocation4 + $0xd0] sm:$0xff] %v4458
      %4499 = vst [vmem:[#allocation4 + $0xd8] sm:$0xff] %v4460
      %4500 = vst [vmem:[#allocation4 + $0xe0] sm:$0xff] %v4463
      %4501 = vst [vmem:[#allocation4 + $0xe8] sm:$0xff] %v4465
      %4502 = vst [vmem:[#allocation4 + $0xf0] sm:$0xff] %v4468
      %4503 = vst [vmem:[#allocation4 + $0xf8] sm:$0xff] %v4470
      %v4504 = vld [vmem:[#allocation4] sm:$0xff]
      %v4505 = vld [vmem:[#allocation4 + $0x8] sm:$0xff]
      %v4506 = vld [vmem:[#allocation4 + $0x10] sm:$0xff]
      %v4507 = vld [vmem:[#allocation4 + $0x18] sm:$0xff]
      %v4508 = vld [vmem:[#allocation4 + $0x20] sm:$0xff]
      %v4509 = vld [vmem:[#allocation4 + $0x28] sm:$0xff]
      %v4510 = vld [vmem:[#allocation4 + $0x30] sm:$0xff]
      %v4511 = vld [vmem:[#allocation4 + $0x38] sm:$0xff]
      %v4512 = vld [vmem:[#allocation4 + $0x40] sm:$0xff]
      %v4513 = vld [vmem:[#allocation4 + $0x48] sm:$0xff]
      %v4514 = vld [vmem:[#allocation4 + $0x50] sm:$0xff]
      %v4515 = vld [vmem:[#allocation4 + $0x58] sm:$0xff]
      %v4516 = vld [vmem:[#allocation4 + $0x60] sm:$0xff]
      %v4517 = vld [vmem:[#allocation4 + $0x68] sm:$0xff]
      %v4518 = vld [vmem:[#allocation4 + $0x70] sm:$0xff]
      %v4519 = vld [vmem:[#allocation4 + $0x78] sm:$0xff]
      %v4520 = vld [vmem:[#allocation4 + $0x80] sm:$0xff]
      %v4521 = vld [vmem:[#allocation4 + $0x88] sm:$0xff]
      %v4522 = vld [vmem:[#allocation4 + $0x90] sm:$0xff]
      %v4523 = vld [vmem:[#allocation4 + $0x98] sm:$0xff]
      %v4524 = vld [vmem:[#allocation4 + $0xa0] sm:$0xff]
      %v4525 = vld [vmem:[#allocation4 + $0xa8] sm:$0xff]
      %v4526 = vld [vmem:[#allocation4 + $0xb0] sm:$0xff]
      %v4527 = vld [vmem:[#allocation4 + $0xb8] sm:$0xff]
      %v4528 = vld [vmem:[#allocation4 + $0xc0] sm:$0xff]
      %v4529 = vld [vmem:[#allocation4 + $0xc8] sm:$0xff]
      %v4530 = vld [vmem:[#allocation4 + $0xd0] sm:$0xff]
      %v4531 = vld [vmem:[#allocation4 + $0xd8] sm:$0xff]
      %v4532 = vld [vmem:[#allocation4 + $0xe0] sm:$0xff]
      %v4533 = vld [vmem:[#allocation4 + $0xe8] sm:$0xff]
      %v4534 = vld [vmem:[#allocation4 + $0xf0] sm:$0xff]
      %v4535 = vld [vmem:[#allocation4 + $0xf8] sm:$0xff]
      %v4536 = vld [vmem:[%s5] sm:$0x1]
      %v4538 = vperm.slane %v4536, 0
      %v4540 = vmul.f32 %v4504, %v4538
      %v4541 = vmul.f32 %v4505, %v4538
      %v4542 = vmul.f32 %v4506, %v4538
      %v4543 = vmul.f32 %v4507, %v4538
      %v4544 = vmul.f32 %v4508, %v4538
      %v4545 = vmul.f32 %v4509, %v4538
      %v4546 = vmul.f32 %v4510, %v4538
      %v4547 = vmul.f32 %v4511, %v4538
      %v4548 = vmul.f32 %v4512, %v4538
      %v4549 = vmul.f32 %v4513, %v4538
      %v4550 = vmul.f32 %v4514, %v4538
      %v4551 = vmul.f32 %v4515, %v4538
      %v4552 = vmul.f32 %v4516, %v4538
      %v4553 = vmul.f32 %v4517, %v4538
      %v4554 = vmul.f32 %v4518, %v4538
      %v4555 = vmul.f32 %v4519, %v4538
      %v4556 = vmul.f32 %v4520, %v4538
      %v4557 = vmul.f32 %v4521, %v4538
      %v4558 = vmul.f32 %v4522, %v4538
      %v4559 = vmul.f32 %v4523, %v4538
      %v4560 = vmul.f32 %v4524, %v4538
      %v4561 = vmul.f32 %v4525, %v4538
      %v4562 = vmul.f32 %v4526, %v4538
      %v4563 = vmul.f32 %v4527, %v4538
      %v4564 = vmul.f32 %v4528, %v4538
      %v4565 = vmul.f32 %v4529, %v4538
      %v4566 = vmul.f32 %v4530, %v4538
      %v4567 = vmul.f32 %v4531, %v4538
      %v4568 = vmul.f32 %v4532, %v4538
      %v4569 = vmul.f32 %v4533, %v4538
      %v4570 = vmul.f32 %v4534, %v4538
      %v4571 = vmul.f32 %v4535, %v4538
      %v4572 = vld [vmem:[%s6] sm:$0x1]
      %v4574 = vperm.slane %v4572, 0
      %v4576 = vadd.f32 %v4540, %v4574
      %v4577 = vadd.f32 %v4541, %v4574
      %v4578 = vadd.f32 %v4542, %v4574
      %v4579 = vadd.f32 %v4543, %v4574
      %v4580 = vadd.f32 %v4544, %v4574
      %v4581 = vadd.f32 %v4545, %v4574
      %v4582 = vadd.f32 %v4546, %v4574
      %v4583 = vadd.f32 %v4547, %v4574
      %v4584 = vadd.f32 %v4548, %v4574
      %v4585 = vadd.f32 %v4549, %v4574
      %v4586 = vadd.f32 %v4550, %v4574
      %v4587 = vadd.f32 %v4551, %v4574
      %v4588 = vadd.f32 %v4552, %v4574
      %v4589 = vadd.f32 %v4553, %v4574
      %v4590 = vadd.f32 %v4554, %v4574
      %v4591 = vadd.f32 %v4555, %v4574
      %v4592 = vadd.f32 %v4556, %v4574
      %v4593 = vadd.f32 %v4557, %v4574
      %v4594 = vadd.f32 %v4558, %v4574
      %v4595 = vadd.f32 %v4559, %v4574
      %v4596 = vadd.f32 %v4560, %v4574
      %v4597 = vadd.f32 %v4561, %v4574
      %v4598 = vadd.f32 %v4562, %v4574
      %v4599 = vadd.f32 %v4563, %v4574
      %v4600 = vadd.f32 %v4564, %v4574
      %v4601 = vadd.f32 %v4565, %v4574
      %v4602 = vadd.f32 %v4566, %v4574
      %v4603 = vadd.f32 %v4567, %v4574
      %v4604 = vadd.f32 %v4568, %v4574
      %v4605 = vadd.f32 %v4569, %v4574
      %v4606 = vadd.f32 %v4570, %v4574
      %v4607 = vadd.f32 %v4571, %v4574
      %v4608 = vmax.f32 %v4576, 0.0
      %v4609 = vmax.f32 %v4577, 0.0
      %v4610 = vmax.f32 %v4578, 0.0
      %v4611 = vmax.f32 %v4579, 0.0
      %v4612 = vmax.f32 %v4580, 0.0
      %v4613 = vmax.f32 %v4581, 0.0
      %v4614 = vmax.f32 %v4582, 0.0
      %v4615 = vmax.f32 %v4583, 0.0
      %v4616 = vmax.f32 %v4584, 0.0
      %v4617 = vmax.f32 %v4585, 0.0
      %v4618 = vmax.f32 %v4586, 0.0
      %v4619 = vmax.f32 %v4587, 0.0
      %v4620 = vmax.f32 %v4588, 0.0
      %v4621 = vmax.f32 %v4589, 0.0
      %v4622 = vmax.f32 %v4590, 0.0
      %v4623 = vmax.f32 %v4591, 0.0
      %v4624 = vmax.f32 %v4592, 0.0
      %v4625 = vmax.f32 %v4593, 0.0
      %v4626 = vmax.f32 %v4594, 0.0
      %v4627 = vmax.f32 %v4595, 0.0
      %v4628 = vmax.f32 %v4596, 0.0
      %v4629 = vmax.f32 %v4597, 0.0
      %v4630 = vmax.f32 %v4598, 0.0
      %v4631 = vmax.f32 %v4599, 0.0
      %v4632 = vmax.f32 %v4600, 0.0
      %v4633 = vmax.f32 %v4601, 0.0
      %v4634 = vmax.f32 %v4602, 0.0
      %v4635 = vmax.f32 %v4603, 0.0
      %v4636 = vmax.f32 %v4604, 0.0
      %v4637 = vmax.f32 %v4605, 0.0
      %v4638 = vmax.f32 %v4606, 0.0
      %v4639 = vmax.f32 %v4607, 0.0
      %v4640 = vpack.c.bf16 %v4608, %v4608
      %v4641 = vpack.c.bf16 %v4609, %v4609
      %v4642 = vpack.c.bf16 %v4610, %v4610
      %v4643 = vpack.c.bf16 %v4611, %v4611
      %v4644 = vpack.c.bf16 %v4612, %v4612
      %v4645 = vpack.c.bf16 %v4613, %v4613
      %v4646 = vpack.c.bf16 %v4614, %v4614
      %v4647 = vpack.c.bf16 %v4615, %v4615
      %v4648 = vpack.c.bf16 %v4616, %v4616
      %v4649 = vpack.c.bf16 %v4617, %v4617
      %v4650 = vpack.c.bf16 %v4618, %v4618
      %v4651 = vpack.c.bf16 %v4619, %v4619
      %v4652 = vpack.c.bf16 %v4620, %v4620
      %v4653 = vpack.c.bf16 %v4621, %v4621
      %v4654 = vpack.c.bf16 %v4622, %v4622
      %v4655 = vpack.c.bf16 %v4623, %v4623
      %v4656 = vpack.c.bf16 %v4624, %v4624
      %v4657 = vpack.c.bf16 %v4625, %v4625
      %v4658 = vpack.c.bf16 %v4626, %v4626
      %v4659 = vpack.c.bf16 %v4627, %v4627
      %v4660 = vpack.c.bf16 %v4628, %v4628
      %v4661 = vpack.c.bf16 %v4629, %v4629
      %v4662 = vpack.c.bf16 %v4630, %v4630
      %v4663 = vpack.c.bf16 %v4631, %v4631
      %v4664 = vpack.c.bf16 %v4632, %v4632
      %v4665 = vpack.c.bf16 %v4633, %v4633
      %v4666 = vpack.c.bf16 %v4634, %v4634
      %v4667 = vpack.c.bf16 %v4635, %v4635
      %v4668 = vpack.c.bf16 %v4636, %v4636
      %v4669 = vpack.c.bf16 %v4637, %v4637
      %v4670 = vpack.c.bf16 %v4638, %v4638
      %v4671 = vpack.c.bf16 %v4639, %v4639
      %v4673 = vshrl.u32 %v4640, 16
      %v4675 = vrot.slane %v4673, 7
      %v4676 = vshll.u32 %v4640, 16
      %v4678 = vor.u32 %v4675, %v4676
      %v4679 = vrot.slane %v4675, 4
      %v4681 = vshrl.u32 %v4641, 16
      %v4683 = vrot.slane %v4681, 7
      %v4684 = vshll.u32 %v4641, 16
      %v4686 = vor.u32 %v4683, %v4684
      %v4687 = vsel %vm604, %v4679, %v4686
      %v4688 = vrot.slane %v4683, 4
      %v4690 = vshrl.u32 %v4642, 16
      %v4692 = vrot.slane %v4690, 7
      %v4693 = vshll.u32 %v4642, 16
      %v4695 = vor.u32 %v4692, %v4693
      %v4696 = vrot.slane %v4692, 4
      %v4698 = vshrl.u32 %v4643, 16
      %v4700 = vrot.slane %v4698, 7
      %v4701 = vshll.u32 %v4643, 16
      %v4703 = vor.u32 %v4700, %v4701
      %v4704 = vsel %vm604, %v4696, %v4703
      %v4705 = vrot.slane %v4700, 4
      %v4707 = vshrl.u32 %v4644, 16
      %v4709 = vrot.slane %v4707, 7
      %v4710 = vshll.u32 %v4644, 16
      %v4712 = vor.u32 %v4709, %v4710
      %v4713 = vrot.slane %v4709, 4
      %v4715 = vshrl.u32 %v4645, 16
      %v4717 = vrot.slane %v4715, 7
      %v4718 = vshll.u32 %v4645, 16
      %v4720 = vor.u32 %v4717, %v4718
      %v4721 = vsel %vm604, %v4713, %v4720
      %v4722 = vrot.slane %v4717, 4
      %v4724 = vshrl.u32 %v4646, 16
      %v4726 = vrot.slane %v4724, 7
      %v4727 = vshll.u32 %v4646, 16
      %v4729 = vor.u32 %v4726, %v4727
      %v4730 = vrot.slane %v4726, 4
      %v4732 = vshrl.u32 %v4647, 16
      %v4734 = vrot.slane %v4732, 7
      %v4735 = vshll.u32 %v4647, 16
      %v4737 = vor.u32 %v4734, %v4735
      %v4738 = vsel %vm604, %v4730, %v4737
      %v4739 = vrot.slane %v4734, 4
      %v4741 = vshrl.u32 %v4648, 16
      %v4743 = vrot.slane %v4741, 7
      %v4744 = vshll.u32 %v4648, 16
      %v4746 = vor.u32 %v4743, %v4744
      %v4747 = vrot.slane %v4743, 4
      %v4749 = vshrl.u32 %v4649, 16
      %v4751 = vrot.slane %v4749, 7
      %v4752 = vshll.u32 %v4649, 16
      %v4754 = vor.u32 %v4751, %v4752
      %v4755 = vsel %vm604, %v4747, %v4754
      %v4756 = vrot.slane %v4751, 4
      %v4758 = vshrl.u32 %v4650, 16
      %v4760 = vrot.slane %v4758, 7
      %v4761 = vshll.u32 %v4650, 16
      %v4763 = vor.u32 %v4760, %v4761
      %v4764 = vrot.slane %v4760, 4
      %v4766 = vshrl.u32 %v4651, 16
      %v4768 = vrot.slane %v4766, 7
      %v4769 = vshll.u32 %v4651, 16
      %v4771 = vor.u32 %v4768, %v4769
      %v4772 = vsel %vm604, %v4764, %v4771
      %v4773 = vrot.slane %v4768, 4
      %v4775 = vshrl.u32 %v4652, 16
      %v4777 = vrot.slane %v4775, 7
      %v4778 = vshll.u32 %v4652, 16
      %v4780 = vor.u32 %v4777, %v4778
      %v4781 = vrot.slane %v4777, 4
      %v4783 = vshrl.u32 %v4653, 16
      %v4785 = vrot.slane %v4783, 7
      %v4786 = vshll.u32 %v4653, 16
      %v4788 = vor.u32 %v4785, %v4786
      %v4789 = vsel %vm604, %v4781, %v4788
      %v4790 = vrot.slane %v4785, 4
      %v4792 = vshrl.u32 %v4654, 16
      %v4794 = vrot.slane %v4792, 7
      %v4795 = vshll.u32 %v4654, 16
      %v4797 = vor.u32 %v4794, %v4795
      %v4798 = vrot.slane %v4794, 4
      %v4800 = vshrl.u32 %v4655, 16
      %v4802 = vrot.slane %v4800, 7
      %v4803 = vshll.u32 %v4655, 16
      %v4805 = vor.u32 %v4802, %v4803
      %v4806 = vsel %vm604, %v4798, %v4805
      %v4807 = vrot.slane %v4802, 4
      %v4809 = vshrl.u32 %v4656, 16
      %v4811 = vrot.slane %v4809, 7
      %v4812 = vshll.u32 %v4656, 16
      %v4814 = vor.u32 %v4811, %v4812
      %v4815 = vrot.slane %v4811, 4
      %v4817 = vshrl.u32 %v4657, 16
      %v4819 = vrot.slane %v4817, 7
      %v4820 = vshll.u32 %v4657, 16
      %v4822 = vor.u32 %v4819, %v4820
      %v4823 = vsel %vm604, %v4815, %v4822
      %v4824 = vrot.slane %v4819, 4
      %v4826 = vshrl.u32 %v4658, 16
      %v4828 = vrot.slane %v4826, 7
      %v4829 = vshll.u32 %v4658, 16
      %v4831 = vor.u32 %v4828, %v4829
      %v4832 = vrot.slane %v4828, 4
      %v4834 = vshrl.u32 %v4659, 16
      %v4836 = vrot.slane %v4834, 7
      %v4837 = vshll.u32 %v4659, 16
      %v4839 = vor.u32 %v4836, %v4837
      %v4840 = vsel %vm604, %v4832, %v4839
      %v4841 = vrot.slane %v4836, 4
      %v4843 = vshrl.u32 %v4660, 16
      %v4845 = vrot.slane %v4843, 7
      %v4846 = vshll.u32 %v4660, 16
      %v4848 = vor.u32 %v4845, %v4846
      %v4849 = vrot.slane %v4845, 4
      %v4851 = vshrl.u32 %v4661, 16
      %v4853 = vrot.slane %v4851, 7
      %v4854 = vshll.u32 %v4661, 16
      %v4856 = vor.u32 %v4853, %v4854
      %v4857 = vsel %vm604, %v4849, %v4856
      %v4858 = vrot.slane %v4853, 4
      %v4860 = vshrl.u32 %v4662, 16
      %v4862 = vrot.slane %v4860, 7
      %v4863 = vshll.u32 %v4662, 16
      %v4865 = vor.u32 %v4862, %v4863
      %v4866 = vrot.slane %v4862, 4
      %v4868 = vshrl.u32 %v4663, 16
      %v4870 = vrot.slane %v4868, 7
      %v4871 = vshll.u32 %v4663, 16
      %v4873 = vor.u32 %v4870, %v4871
      %v4874 = vsel %vm604, %v4866, %v4873
      %v4875 = vrot.slane %v4870, 4
      %v4877 = vshrl.u32 %v4664, 16
      %v4879 = vrot.slane %v4877, 7
      %v4880 = vshll.u32 %v4664, 16
      %v4882 = vor.u32 %v4879, %v4880
      %v4883 = vrot.slane %v4879, 4
      %v4885 = vshrl.u32 %v4665, 16
      %v4887 = vrot.slane %v4885, 7
      %v4888 = vshll.u32 %v4665, 16
      %v4890 = vor.u32 %v4887, %v4888
      %v4891 = vsel %vm604, %v4883, %v4890
      %v4892 = vrot.slane %v4887, 4
      %v4894 = vshrl.u32 %v4666, 16
      %v4896 = vrot.slane %v4894, 7
      %v4897 = vshll.u32 %v4666, 16
      %v4899 = vor.u32 %v4896, %v4897
      %v4900 = vrot.slane %v4896, 4
      %v4902 = vshrl.u32 %v4667, 16
      %v4904 = vrot.slane %v4902, 7
      %v4905 = vshll.u32 %v4667, 16
      %v4907 = vor.u32 %v4904, %v4905
      %v4908 = vsel %vm604, %v4900, %v4907
      %v4909 = vrot.slane %v4904, 4
      %v4911 = vshrl.u32 %v4668, 16
      %v4913 = vrot.slane %v4911, 7
      %v4914 = vshll.u32 %v4668, 16
      %v4916 = vor.u32 %v4913, %v4914
      %v4917 = vrot.slane %v4913, 4
      %v4919 = vshrl.u32 %v4669, 16
      %v4921 = vrot.slane %v4919, 7
      %v4922 = vshll.u32 %v4669, 16
      %v4924 = vor.u32 %v4921, %v4922
      %v4925 = vsel %vm604, %v4917, %v4924
      %v4926 = vrot.slane %v4921, 4
      %v4928 = vshrl.u32 %v4670, 16
      %v4930 = vrot.slane %v4928, 7
      %v4931 = vshll.u32 %v4670, 16
      %v4933 = vor.u32 %v4930, %v4931
      %v4934 = vrot.slane %v4930, 4
      %v4936 = vshrl.u32 %v4671, 16
      %v4938 = vrot.slane %v4936, 7
      %v4939 = vshll.u32 %v4671, 16
      %v4941 = vor.u32 %v4938, %v4939
      %v4942 = vsel %vm604, %v4934, %v4941
      %v4943 = vrot.slane %v4938, 4
      %v4992 = vld [vmem:[%s925] sm:$0xf]
      %v4993 = vsel %vm927, %v4678, %v4992
      %4994 = vst [vmem:[%s925] sm:$0xf] %v4993
      %4995 = vst.msk [vmem:[%s925 + $0x4] sm:$0xf] %vm280, %v4687
      %v4996 = vld [vmem:[%s925 + $0x8] sm:$0x1]
      %v4997 = vsel %vm291, %v4688, %v4996
      %4998 = vst [vmem:[%s925 + $0x8] sm:$0x1] %v4997
      %v4999 = vld [vmem:[%s925 + $0xc] sm:$0xf]
      %v5000 = vsel %vm927, %v4695, %v4999
      %5001 = vst [vmem:[%s925 + $0xc] sm:$0xf] %v5000
      %5002 = vst.msk [vmem:[%s925 + $0x10] sm:$0xf] %vm280, %v4704
      %v5003 = vld [vmem:[%s925 + $0x14] sm:$0x1]
      %v5004 = vsel %vm291, %v4705, %v5003
      %5005 = vst [vmem:[%s925 + $0x14] sm:$0x1] %v5004
      %v5006 = vld [vmem:[%s925 + $0x18] sm:$0xf]
      %v5007 = vsel %vm927, %v4712, %v5006
      %5008 = vst [vmem:[%s925 + $0x18] sm:$0xf] %v5007
      %5009 = vst.msk [vmem:[%s925 + $0x1c] sm:$0xf] %vm280, %v4721
      %v5010 = vld [vmem:[%s925 + $0x20] sm:$0x1]
      %v5011 = vsel %vm291, %v4722, %v5010
      %5012 = vst [vmem:[%s925 + $0x20] sm:$0x1] %v5011
      %v5013 = vld [vmem:[%s925 + $0x24] sm:$0xf]
      %v5014 = vsel %vm927, %v4729, %v5013
      %5015 = vst [vmem:[%s925 + $0x24] sm:$0xf] %v5014
      %5016 = vst.msk [vmem:[%s925 + $0x28] sm:$0xf] %vm280, %v4738
      %v5017 = vld [vmem:[%s925 + $0x2c] sm:$0x1]
      %v5018 = vsel %vm291, %v4739, %v5017
      %5019 = vst [vmem:[%s925 + $0x2c] sm:$0x1] %v5018
      %v5020 = vld [vmem:[%s925 + $0x30] sm:$0xf]
      %v5021 = vsel %vm927, %v4746, %v5020
      %5022 = vst [vmem:[%s925 + $0x30] sm:$0xf] %v5021
      %5023 = vst.msk [vmem:[%s925 + $0x34] sm:$0xf] %vm280, %v4755
      %v5024 = vld [vmem:[%s925 + $0x38] sm:$0x1]
      %v5025 = vsel %vm291, %v4756, %v5024
      %5026 = vst [vmem:[%s925 + $0x38] sm:$0x1] %v5025
      %v5027 = vld [vmem:[%s925 + $0x3c] sm:$0xf]
      %v5028 = vsel %vm927, %v4763, %v5027
      %5029 = vst [vmem:[%s925 + $0x3c] sm:$0xf] %v5028
      %5030 = vst.msk [vmem:[%s925 + $0x40] sm:$0xf] %vm280, %v4772
      %v5031 = vld [vmem:[%s925 + $0x44] sm:$0x1]
      %v5032 = vsel %vm291, %v4773, %v5031
      %5033 = vst [vmem:[%s925 + $0x44] sm:$0x1] %v5032
      %v5034 = vld [vmem:[%s925 + $0x48] sm:$0xf]
      %v5035 = vsel %vm927, %v4780, %v5034
      %5036 = vst [vmem:[%s925 + $0x48] sm:$0xf] %v5035
      %5037 = vst.msk [vmem:[%s925 + $0x4c] sm:$0xf] %vm280, %v4789
      %v5038 = vld [vmem:[%s925 + $0x50] sm:$0x1]
      %v5039 = vsel %vm291, %v4790, %v5038
      %5040 = vst [vmem:[%s925 + $0x50] sm:$0x1] %v5039
      %v5041 = vld [vmem:[%s925 + $0x54] sm:$0xf]
      %v5042 = vsel %vm927, %v4797, %v5041
      %5043 = vst [vmem:[%s925 + $0x54] sm:$0xf] %v5042
      %5044 = vst.msk [vmem:[%s925 + $0x58] sm:$0xf] %vm280, %v4806
      %v5045 = vld [vmem:[%s925 + $0x5c] sm:$0x1]
      %v5046 = vsel %vm291, %v4807, %v5045
      %5047 = vst [vmem:[%s925 + $0x5c] sm:$0x1] %v5046
      %v5048 = vld [vmem:[%s925 + $0x60] sm:$0xf]
      %v5049 = vsel %vm927, %v4814, %v5048
      %5050 = vst [vmem:[%s925 + $0x60] sm:$0xf] %v5049
      %5051 = vst.msk [vmem:[%s925 + $0x64] sm:$0xf] %vm280, %v4823
      %v5052 = vld [vmem:[%s925 + $0x68] sm:$0x1]
      %v5053 = vsel %vm291, %v4824, %v5052
      %5054 = vst [vmem:[%s925 + $0x68] sm:$0x1] %v5053
      %v5055 = vld [vmem:[%s925 + $0x6c] sm:$0xf]
      %v5056 = vsel %vm927, %v4831, %v5055
      %5057 = vst [vmem:[%s925 + $0x6c] sm:$0xf] %v5056
      %5058 = vst.msk [vmem:[%s925 + $0x70] sm:$0xf] %vm280, %v4840
      %v5059 = vld [vmem:[%s925 + $0x74] sm:$0x1]
      %v5060 = vsel %vm291, %v4841, %v5059
      %5061 = vst [vmem:[%s925 + $0x74] sm:$0x1] %v5060
      %v5062 = vld [vmem:[%s925 + $0x78] sm:$0xf]
      %v5063 = vsel %vm927, %v4848, %v5062
      %5064 = vst [vmem:[%s925 + $0x78] sm:$0xf] %v5063
      %5065 = vst.msk [vmem:[%s925 + $0x7c] sm:$0xf] %vm280, %v4857
      %v5066 = vld [vmem:[%s925 + $0x80] sm:$0x1]
      %v5067 = vsel %vm291, %v4858, %v5066
      %5068 = vst [vmem:[%s925 + $0x80] sm:$0x1] %v5067
      %v5069 = vld [vmem:[%s925 + $0x84] sm:$0xf]
      %v5070 = vsel %vm927, %v4865, %v5069
      %5071 = vst [vmem:[%s925 + $0x84] sm:$0xf] %v5070
      %5072 = vst.msk [vmem:[%s925 + $0x88] sm:$0xf] %vm280, %v4874
      %v5073 = vld [vmem:[%s925 + $0x8c] sm:$0x1]
      %v5074 = vsel %vm291, %v4875, %v5073
      %5075 = vst [vmem:[%s925 + $0x8c] sm:$0x1] %v5074
      %v5076 = vld [vmem:[%s925 + $0x90] sm:$0xf]
      %v5077 = vsel %vm927, %v4882, %v5076
      %5078 = vst [vmem:[%s925 + $0x90] sm:$0xf] %v5077
      %5079 = vst.msk [vmem:[%s925 + $0x94] sm:$0xf] %vm280, %v4891
      %v5080 = vld [vmem:[%s925 + $0x98] sm:$0x1]
      %v5081 = vsel %vm291, %v4892, %v5080
      %5082 = vst [vmem:[%s925 + $0x98] sm:$0x1] %v5081
      %v5083 = vld [vmem:[%s925 + $0x9c] sm:$0xf]
      %v5084 = vsel %vm927, %v4899, %v5083
      %5085 = vst [vmem:[%s925 + $0x9c] sm:$0xf] %v5084
      %5086 = vst.msk [vmem:[%s925 + $0xa0] sm:$0xf] %vm280, %v4908
      %v5087 = vld [vmem:[%s925 + $0xa4] sm:$0x1]
      %v5088 = vsel %vm291, %v4909, %v5087
      %5089 = vst [vmem:[%s925 + $0xa4] sm:$0x1] %v5088
      %v5090 = vld [vmem:[%s925 + $0xa8] sm:$0xf]
      %v5091 = vsel %vm927, %v4916, %v5090
      %5092 = vst [vmem:[%s925 + $0xa8] sm:$0xf] %v5091
      %5093 = vst.msk [vmem:[%s925 + $0xac] sm:$0xf] %vm280, %v4925
      %v5094 = vld [vmem:[%s925 + $0xb0] sm:$0x1]
      %v5095 = vsel %vm291, %v4926, %v5094
      %5096 = vst [vmem:[%s925 + $0xb0] sm:$0x1] %v5095
      %v5097 = vld [vmem:[%s925 + $0xb4] sm:$0xf]
      %v5098 = vsel %vm927, %v4933, %v5097
      %5099 = vst [vmem:[%s925 + $0xb4] sm:$0xf] %v5098
      %5100 = vst.msk [vmem:[%s925 + $0xb8] sm:$0xf] %vm280, %v4942
      %v5101 = vld [vmem:[%s925 + $0xbc] sm:$0x1]
      %v5102 = vsel %vm291, %v4943, %v5101
      %5103 = vst [vmem:[%s925 + $0xbc] sm:$0x1] %v5102
      %v5104 = vld [vmem:[#allocation2] sm:$0xf]
      %v5105 = vld [vmem:[#allocation2 + $0x4] sm:$0xf]
      %v5106 = vld [vmem:[#allocation2 + $0xc] sm:$0xf]
      %v5107 = vld [vmem:[#allocation2 + $0x10] sm:$0xf]
      %v5108 = vld [vmem:[#allocation2 + $0x18] sm:$0xf]
      %v5109 = vld [vmem:[#allocation2 + $0x1c] sm:$0xf]
      %v5110 = vld [vmem:[#allocation2 + $0x24] sm:$0xf]
      %v5111 = vld [vmem:[#allocation2 + $0x28] sm:$0xf]
      %v5112 = vld [vmem:[#allocation2 + $0x30] sm:$0xf]
      %v5113 = vld [vmem:[#allocation2 + $0x34] sm:$0xf]
      %v5114 = vld [vmem:[#allocation2 + $0x3c] sm:$0xf]
      %v5115 = vld [vmem:[#allocation2 + $0x40] sm:$0xf]
      %v5116 = vld [vmem:[#allocation2 + $0x48] sm:$0xf]
      %v5117 = vld [vmem:[#allocation2 + $0x4c] sm:$0xf]
      %v5118 = vld [vmem:[#allocation2 + $0x54] sm:$0xf]
      %v5119 = vld [vmem:[#allocation2 + $0x58] sm:$0xf]
      %v5120 = vld [vmem:[#allocation2 + $0x60] sm:$0xf]
      %v5121 = vld [vmem:[#allocation2 + $0x64] sm:$0xf]
      %v5122 = vld [vmem:[#allocation2 + $0x6c] sm:$0xf]
      %v5123 = vld [vmem:[#allocation2 + $0x70] sm:$0xf]
      %v5124 = vld [vmem:[#allocation2 + $0x78] sm:$0xf]
      %v5125 = vld [vmem:[#allocation2 + $0x7c] sm:$0xf]
      %v5126 = vld [vmem:[#allocation2 + $0x84] sm:$0xf]
      %v5127 = vld [vmem:[#allocation2 + $0x88] sm:$0xf]
      %v5128 = vld [vmem:[#allocation2 + $0x90] sm:$0xf]
      %v5129 = vld [vmem:[#allocation2 + $0x94] sm:$0xf]
      %v5130 = vld [vmem:[#allocation2 + $0x9c] sm:$0xf]
      %v5131 = vld [vmem:[#allocation2 + $0xa0] sm:$0xf]
      %v5132 = vld [vmem:[#allocation2 + $0xa8] sm:$0xf]
      %v5133 = vld [vmem:[#allocation2 + $0xac] sm:$0xf]
      %v5134 = vld [vmem:[#allocation2 + $0xb4] sm:$0xf]
      %v5135 = vld [vmem:[#allocation2 + $0xb8] sm:$0xf]
      %5136 = vst.msk [vmem:[#allocation3] sm:$0xf] %vm280, %v5104
      %5137 = vst.msk [vmem:[#allocation3 + $0x4] sm:$0xf] %vm280, %v5105
      %5138 = vst.msk [vmem:[#allocation3 + $0x8] sm:$0xf] %vm280, %v5106
      %5139 = vst.msk [vmem:[#allocation3 + $0xc] sm:$0xf] %vm280, %v5107
      %5140 = vst.msk [vmem:[#allocation3 + $0x10] sm:$0xf] %vm280, %v5108
      %5141 = vst.msk [vmem:[#allocation3 + $0x14] sm:$0xf] %vm280, %v5109
      %5142 = vst.msk [vmem:[#allocation3 + $0x18] sm:$0xf] %vm280, %v5110
      %5143 = vst.msk [vmem:[#allocation3 + $0x1c] sm:$0xf] %vm280, %v5111
      %5144 = vst.msk [vmem:[#allocation3 + $0x20] sm:$0xf] %vm280, %v5112
      %5145 = vst.msk [vmem:[#allocation3 + $0x24] sm:$0xf] %vm280, %v5113
      %5146 = vst.msk [vmem:[#allocation3 + $0x28] sm:$0xf] %vm280, %v5114
      %5147 = vst.msk [vmem:[#allocation3 + $0x2c] sm:$0xf] %vm280, %v5115
      %5148 = vst.msk [vmem:[#allocation3 + $0x30] sm:$0xf] %vm280, %v5116
      %5149 = vst.msk [vmem:[#allocation3 + $0x34] sm:$0xf] %vm280, %v5117
      %5150 = vst.msk [vmem:[#allocation3 + $0x38] sm:$0xf] %vm280, %v5118
      %5151 = vst.msk [vmem:[#allocation3 + $0x3c] sm:$0xf] %vm280, %v5119
      %5152 = vst.msk [vmem:[#allocation3 + $0x40] sm:$0xf] %vm280, %v5120
      %5153 = vst.msk [vmem:[#allocation3 + $0x44] sm:$0xf] %vm280, %v5121
      %5154 = vst.msk [vmem:[#allocation3 + $0x48] sm:$0xf] %vm280, %v5122
      %5155 = vst.msk [vmem:[#allocation3 + $0x4c] sm:$0xf] %vm280, %v5123
      %5156 = vst.msk [vmem:[#allocation3 + $0x50] sm:$0xf] %vm280, %v5124
      %5157 = vst.msk [vmem:[#allocation3 + $0x54] sm:$0xf] %vm280, %v5125
      %5158 = vst.msk [vmem:[#allocation3 + $0x58] sm:$0xf] %vm280, %v5126
      %5159 = vst.msk [vmem:[#allocation3 + $0x5c] sm:$0xf] %vm280, %v5127
      %5160 = vst.msk [vmem:[#allocation3 + $0x60] sm:$0xf] %vm280, %v5128
      %5161 = vst.msk [vmem:[#allocation3 + $0x64] sm:$0xf] %vm280, %v5129
      %5162 = vst.msk [vmem:[#allocation3 + $0x68] sm:$0xf] %vm280, %v5130
      %5163 = vst.msk [vmem:[#allocation3 + $0x6c] sm:$0xf] %vm280, %v5131
      %5164 = vst.msk [vmem:[#allocation3 + $0x70] sm:$0xf] %vm280, %v5132
      %5165 = vst.msk [vmem:[#allocation3 + $0x74] sm:$0xf] %vm280, %v5133
      %5166 = vst.msk [vmem:[#allocation3 + $0x78] sm:$0xf] %vm280, %v5134
      %5167 = vst.msk [vmem:[#allocation3 + $0x7c] sm:$0xf] %vm280, %v5135
      %v5168 = vld [vmem:[#allocation2] sm:$0xf]
      %v5169 = vld [vmem:[#allocation2 + $0x4] sm:$0xf]
      %v5170 = vld [vmem:[#allocation2 + $0x8] sm:$0x1]
      %v5171 = vld [vmem:[#allocation2 + $0xc] sm:$0xf]
      %v5172 = vld [vmem:[#allocation2 + $0x10] sm:$0xf]
      %v5173 = vld [vmem:[#allocation2 + $0x14] sm:$0x1]
      %v5174 = vld [vmem:[#allocation2 + $0x18] sm:$0xf]
      %v5175 = vld [vmem:[#allocation2 + $0x1c] sm:$0xf]
      %v5176 = vld [vmem:[#allocation2 + $0x20] sm:$0x1]
      %v5177 = vld [vmem:[#allocation2 + $0x24] sm:$0xf]
      %v5178 = vld [vmem:[#allocation2 + $0x28] sm:$0xf]
      %v5179 = vld [vmem:[#allocation2 + $0x2c] sm:$0x1]
      %v5180 = vld [vmem:[#allocation2 + $0x30] sm:$0xf]
      %v5181 = vld [vmem:[#allocation2 + $0x34] sm:$0xf]
      %v5182 = vld [vmem:[#allocation2 + $0x38] sm:$0x1]
      %v5183 = vld [vmem:[#allocation2 + $0x3c] sm:$0xf]
      %v5184 = vld [vmem:[#allocation2 + $0x40] sm:$0xf]
      %v5185 = vld [vmem:[#allocation2 + $0x44] sm:$0x1]
      %v5186 = vld [vmem:[#allocation2 + $0x48] sm:$0xf]
      %v5187 = vld [vmem:[#allocation2 + $0x4c] sm:$0xf]
      %v5188 = vld [vmem:[#allocation2 + $0x50] sm:$0x1]
      %v5189 = vld [vmem:[#allocation2 + $0x54] sm:$0xf]
      %v5190 = vld [vmem:[#allocation2 + $0x58] sm:$0xf]
      %v5191 = vld [vmem:[#allocation2 + $0x5c] sm:$0x1]
      %v5192 = vld [vmem:[#allocation2 + $0x60] sm:$0xf]
      %v5193 = vld [vmem:[#allocation2 + $0x64] sm:$0xf]
      %v5194 = vld [vmem:[#allocation2 + $0x68] sm:$0x1]
      %v5195 = vld [vmem:[#allocation2 + $0x6c] sm:$0xf]
      %v5196 = vld [vmem:[#allocation2 + $0x70] sm:$0xf]
      %v5197 = vld [vmem:[#allocation2 + $0x74] sm:$0x1]
      %v5198 = vld [vmem:[#allocation2 + $0x78] sm:$0xf]
      %v5199 = vld [vmem:[#allocation2 + $0x7c] sm:$0xf]
      %v5200 = vld [vmem:[#allocation2 + $0x80] sm:$0x1]
      %v5201 = vld [vmem:[#allocation2 + $0x84] sm:$0xf]
      %v5202 = vld [vmem:[#allocation2 + $0x88] sm:$0xf]
      %v5203 = vld [vmem:[#allocation2 + $0x8c] sm:$0x1]
      %v5204 = vld [vmem:[#allocation2 + $0x90] sm:$0xf]
      %v5205 = vld [vmem:[#allocation2 + $0x94] sm:$0xf]
      %v5206 = vld [vmem:[#allocation2 + $0x98] sm:$0x1]
      %v5207 = vld [vmem:[#allocation2 + $0x9c] sm:$0xf]
      %v5208 = vld [vmem:[#allocation2 + $0xa0] sm:$0xf]
      %v5209 = vld [vmem:[#allocation2 + $0xa4] sm:$0x1]
      %v5210 = vld [vmem:[#allocation2 + $0xa8] sm:$0xf]
      %v5211 = vld [vmem:[#allocation2 + $0xac] sm:$0xf]
      %v5212 = vld [vmem:[#allocation2 + $0xb0] sm:$0x1]
      %v5213 = vld [vmem:[#allocation2 + $0xb4] sm:$0xf]
      %v5214 = vld [vmem:[#allocation2 + $0xb8] sm:$0xf]
      %v5215 = vld [vmem:[#allocation2 + $0xbc] sm:$0x1]
      %v5217 = vshrl.u32 %v5168, 16
      %v5219 = vrot.slane %v5217, 4
      %v5220 = vshll.u32 %v5168, 16
      %v5222 = vrot.slane %v5220, 5
      %v5223 = vor.u32 %v5219, %v5222
      %v5224 = vrot.slane %v5223, 4
      %v5226 = vshll.u32 %v5169, 16
      %v5228 = vrot.slane %v5226, 5
      %v5229 = vsel %vm1154, %v5224, %v5228
      %v5230 = vshrl.u32 %v5169, 16
      %v5232 = vrot.slane %v5230, 4
      %v5233 = vor.u32 %v5232, %v5228
      %v5234 = vrot.slane %v5233, 4
      %v5236 = vshll.u32 %v5170, 16
      %v5238 = vrot.slane %v5236, 5
      %v5239 = vsel %vm1154, %v5234, %v5238
      %v5241 = vshrl.u32 %v5171, 16
      %v5243 = vrot.slane %v5241, 4
      %v5244 = vshll.u32 %v5171, 16
      %v5246 = vrot.slane %v5244, 5
      %v5247 = vor.u32 %v5243, %v5246
      %v5248 = vrot.slane %v5247, 4
      %v5250 = vshll.u32 %v5172, 16
      %v5252 = vrot.slane %v5250, 5
      %v5253 = vsel %vm1154, %v5248, %v5252
      %v5254 = vshrl.u32 %v5172, 16
      %v5256 = vrot.slane %v5254, 4
      %v5257 = vor.u32 %v5256, %v5252
      %v5258 = vrot.slane %v5257, 4
      %v5260 = vshll.u32 %v5173, 16
      %v5262 = vrot.slane %v5260, 5
      %v5263 = vsel %vm1154, %v5258, %v5262
      %v5265 = vshrl.u32 %v5174, 16
      %v5267 = vrot.slane %v5265, 4
      %v5268 = vshll.u32 %v5174, 16
      %v5270 = vrot.slane %v5268, 5
      %v5271 = vor.u32 %v5267, %v5270
      %v5272 = vrot.slane %v5271, 4
      %v5274 = vshll.u32 %v5175, 16
      %v5276 = vrot.slane %v5274, 5
      %v5277 = vsel %vm1154, %v5272, %v5276
      %v5278 = vshrl.u32 %v5175, 16
      %v5280 = vrot.slane %v5278, 4
      %v5281 = vor.u32 %v5280, %v5276
      %v5282 = vrot.slane %v5281, 4
      %v5284 = vshll.u32 %v5176, 16
      %v5286 = vrot.slane %v5284, 5
      %v5287 = vsel %vm1154, %v5282, %v5286
      %v5289 = vshrl.u32 %v5177, 16
      %v5291 = vrot.slane %v5289, 4
      %v5292 = vshll.u32 %v5177, 16
      %v5294 = vrot.slane %v5292, 5
      %v5295 = vor.u32 %v5291, %v5294
      %v5296 = vrot.slane %v5295, 4
      %v5298 = vshll.u32 %v5178, 16
      %v5300 = vrot.slane %v5298, 5
      %v5301 = vsel %vm1154, %v5296, %v5300
      %v5302 = vshrl.u32 %v5178, 16
      %v5304 = vrot.slane %v5302, 4
      %v5305 = vor.u32 %v5304, %v5300
      %v5306 = vrot.slane %v5305, 4
      %v5308 = vshll.u32 %v5179, 16
      %v5310 = vrot.slane %v5308, 5
      %v5311 = vsel %vm1154, %v5306, %v5310
      %v5313 = vshrl.u32 %v5180, 16
      %v5315 = vrot.slane %v5313, 4
      %v5316 = vshll.u32 %v5180, 16
      %v5318 = vrot.slane %v5316, 5
      %v5319 = vor.u32 %v5315, %v5318
      %v5320 = vrot.slane %v5319, 4
      %v5322 = vshll.u32 %v5181, 16
      %v5324 = vrot.slane %v5322, 5
      %v5325 = vsel %vm1154, %v5320, %v5324
      %v5326 = vshrl.u32 %v5181, 16
      %v5328 = vrot.slane %v5326, 4
      %v5329 = vor.u32 %v5328, %v5324
      %v5330 = vrot.slane %v5329, 4
      %v5332 = vshll.u32 %v5182, 16
      %v5334 = vrot.slane %v5332, 5
      %v5335 = vsel %vm1154, %v5330, %v5334
      %v5337 = vshrl.u32 %v5183, 16
      %v5339 = vrot.slane %v5337, 4
      %v5340 = vshll.u32 %v5183, 16
      %v5342 = vrot.slane %v5340, 5
      %v5343 = vor.u32 %v5339, %v5342
      %v5344 = vrot.slane %v5343, 4
      %v5346 = vshll.u32 %v5184, 16
      %v5348 = vrot.slane %v5346, 5
      %v5349 = vsel %vm1154, %v5344, %v5348
      %v5350 = vshrl.u32 %v5184, 16
      %v5352 = vrot.slane %v5350, 4
      %v5353 = vor.u32 %v5352, %v5348
      %v5354 = vrot.slane %v5353, 4
      %v5356 = vshll.u32 %v5185, 16
      %v5358 = vrot.slane %v5356, 5
      %v5359 = vsel %vm1154, %v5354, %v5358
      %v5361 = vshrl.u32 %v5186, 16
      %v5363 = vrot.slane %v5361, 4
      %v5364 = vshll.u32 %v5186, 16
      %v5366 = vrot.slane %v5364, 5
      %v5367 = vor.u32 %v5363, %v5366
      %v5368 = vrot.slane %v5367, 4
      %v5370 = vshll.u32 %v5187, 16
      %v5372 = vrot.slane %v5370, 5
      %v5373 = vsel %vm1154, %v5368, %v5372
      %v5374 = vshrl.u32 %v5187, 16
      %v5376 = vrot.slane %v5374, 4
      %v5377 = vor.u32 %v5376, %v5372
      %v5378 = vrot.slane %v5377, 4
      %v5380 = vshll.u32 %v5188, 16
      %v5382 = vrot.slane %v5380, 5
      %v5383 = vsel %vm1154, %v5378, %v5382
      %v5385 = vshrl.u32 %v5189, 16
      %v5387 = vrot.slane %v5385, 4
      %v5388 = vshll.u32 %v5189, 16
      %v5390 = vrot.slane %v5388, 5
      %v5391 = vor.u32 %v5387, %v5390
      %v5392 = vrot.slane %v5391, 4
      %v5394 = vshll.u32 %v5190, 16
      %v5396 = vrot.slane %v5394, 5
      %v5397 = vsel %vm1154, %v5392, %v5396
      %v5398 = vshrl.u32 %v5190, 16
      %v5400 = vrot.slane %v5398, 4
      %v5401 = vor.u32 %v5400, %v5396
      %v5402 = vrot.slane %v5401, 4
      %v5404 = vshll.u32 %v5191, 16
      %v5406 = vrot.slane %v5404, 5
      %v5407 = vsel %vm1154, %v5402, %v5406
      %v5409 = vshrl.u32 %v5192, 16
      %v5411 = vrot.slane %v5409, 4
      %v5412 = vshll.u32 %v5192, 16
      %v5414 = vrot.slane %v5412, 5
      %v5415 = vor.u32 %v5411, %v5414
      %v5416 = vrot.slane %v5415, 4
      %v5418 = vshll.u32 %v5193, 16
      %v5420 = vrot.slane %v5418, 5
      %v5421 = vsel %vm1154, %v5416, %v5420
      %v5422 = vshrl.u32 %v5193, 16
      %v5424 = vrot.slane %v5422, 4
      %v5425 = vor.u32 %v5424, %v5420
      %v5426 = vrot.slane %v5425, 4
      %v5428 = vshll.u32 %v5194, 16
      %v5430 = vrot.slane %v5428, 5
      %v5431 = vsel %vm1154, %v5426, %v5430
      %v5433 = vshrl.u32 %v5195, 16
      %v5435 = vrot.slane %v5433, 4
      %v5436 = vshll.u32 %v5195, 16
      %v5438 = vrot.slane %v5436, 5
      %v5439 = vor.u32 %v5435, %v5438
      %v5440 = vrot.slane %v5439, 4
      %v5442 = vshll.u32 %v5196, 16
      %v5444 = vrot.slane %v5442, 5
      %v5445 = vsel %vm1154, %v5440, %v5444
      %v5446 = vshrl.u32 %v5196, 16
      %v5448 = vrot.slane %v5446, 4
      %v5449 = vor.u32 %v5448, %v5444
      %v5450 = vrot.slane %v5449, 4
      %v5452 = vshll.u32 %v5197, 16
      %v5454 = vrot.slane %v5452, 5
      %v5455 = vsel %vm1154, %v5450, %v5454
      %v5457 = vshrl.u32 %v5198, 16
      %v5459 = vrot.slane %v5457, 4
      %v5460 = vshll.u32 %v5198, 16
      %v5462 = vrot.slane %v5460, 5
      %v5463 = vor.u32 %v5459, %v5462
      %v5464 = vrot.slane %v5463, 4
      %v5466 = vshll.u32 %v5199, 16
      %v5468 = vrot.slane %v5466, 5
      %v5469 = vsel %vm1154, %v5464, %v5468
      %v5470 = vshrl.u32 %v5199, 16
      %v5472 = vrot.slane %v5470, 4
      %v5473 = vor.u32 %v5472, %v5468
      %v5474 = vrot.slane %v5473, 4
      %v5476 = vshll.u32 %v5200, 16
      %v5478 = vrot.slane %v5476, 5
      %v5479 = vsel %vm1154, %v5474, %v5478
      %v5481 = vshrl.u32 %v5201, 16
      %v5483 = vrot.slane %v5481, 4
      %v5484 = vshll.u32 %v5201, 16
      %v5486 = vrot.slane %v5484, 5
      %v5487 = vor.u32 %v5483, %v5486
      %v5488 = vrot.slane %v5487, 4
      %v5490 = vshll.u32 %v5202, 16
      %v5492 = vrot.slane %v5490, 5
      %v5493 = vsel %vm1154, %v5488, %v5492
      %v5494 = vshrl.u32 %v5202, 16
      %v5496 = vrot.slane %v5494, 4
      %v5497 = vor.u32 %v5496, %v5492
      %v5498 = vrot.slane %v5497, 4
      %v5500 = vshll.u32 %v5203, 16
      %v5502 = vrot.slane %v5500, 5
      %v5503 = vsel %vm1154, %v5498, %v5502
      %v5505 = vshrl.u32 %v5204, 16
      %v5507 = vrot.slane %v5505, 4
      %v5508 = vshll.u32 %v5204, 16
      %v5510 = vrot.slane %v5508, 5
      %v5511 = vor.u32 %v5507, %v5510
      %v5512 = vrot.slane %v5511, 4
      %v5514 = vshll.u32 %v5205, 16
      %v5516 = vrot.slane %v5514, 5
      %v5517 = vsel %vm1154, %v5512, %v5516
      %v5518 = vshrl.u32 %v5205, 16
      %v5520 = vrot.slane %v5518, 4
      %v5521 = vor.u32 %v5520, %v5516
      %v5522 = vrot.slane %v5521, 4
      %v5524 = vshll.u32 %v5206, 16
      %v5526 = vrot.slane %v5524, 5
      %v5527 = vsel %vm1154, %v5522, %v5526
      %v5529 = vshrl.u32 %v5207, 16
      %v5531 = vrot.slane %v5529, 4
      %v5532 = vshll.u32 %v5207, 16
      %v5534 = vrot.slane %v5532, 5
      %v5535 = vor.u32 %v5531, %v5534
      %v5536 = vrot.slane %v5535, 4
      %v5538 = vshll.u32 %v5208, 16
      %v5540 = vrot.slane %v5538, 5
      %v5541 = vsel %vm1154, %v5536, %v5540
      %v5542 = vshrl.u32 %v5208, 16
      %v5544 = vrot.slane %v5542, 4
      %v5545 = vor.u32 %v5544, %v5540
      %v5546 = vrot.slane %v5545, 4
      %v5548 = vshll.u32 %v5209, 16
      %v5550 = vrot.slane %v5548, 5
      %v5551 = vsel %vm1154, %v5546, %v5550
      %v5553 = vshrl.u32 %v5210, 16
      %v5555 = vrot.slane %v5553, 4
      %v5556 = vshll.u32 %v5210, 16
      %v5558 = vrot.slane %v5556, 5
      %v5559 = vor.u32 %v5555, %v5558
      %v5560 = vrot.slane %v5559, 4
      %v5562 = vshll.u32 %v5211, 16
      %v5564 = vrot.slane %v5562, 5
      %v5565 = vsel %vm1154, %v5560, %v5564
      %v5566 = vshrl.u32 %v5211, 16
      %v5568 = vrot.slane %v5566, 4
      %v5569 = vor.u32 %v5568, %v5564
      %v5570 = vrot.slane %v5569, 4
      %v5572 = vshll.u32 %v5212, 16
      %v5574 = vrot.slane %v5572, 5
      %v5575 = vsel %vm1154, %v5570, %v5574
      %v5577 = vshrl.u32 %v5213, 16
      %v5579 = vrot.slane %v5577, 4
      %v5580 = vshll.u32 %v5213, 16
      %v5582 = vrot.slane %v5580, 5
      %v5583 = vor.u32 %v5579, %v5582
      %v5584 = vrot.slane %v5583, 4
      %v5586 = vshll.u32 %v5214, 16
      %v5588 = vrot.slane %v5586, 5
      %v5589 = vsel %vm1154, %v5584, %v5588
      %v5590 = vshrl.u32 %v5214, 16
      %v5592 = vrot.slane %v5590, 4
      %v5593 = vor.u32 %v5592, %v5588
      %v5594 = vrot.slane %v5593, 4
      %v5596 = vshll.u32 %v5215, 16
      %v5598 = vrot.slane %v5596, 5
      %v5599 = vsel %vm1154, %v5594, %v5598
      %5600 = vrot.lane.b32.xlu0 %v5229, 8
      %v5601 = vpop.permute.xlu0 %5600
      %5602 = vrot.lane.b32.xlu0 %v5239, 8
      %v5603 = vpop.permute.xlu0 %5602
      %5604 = vrot.lane.b32.xlu0 %v5253, 8
      %v5605 = vpop.permute.xlu0 %5604
      %5606 = vrot.lane.b32.xlu0 %v5263, 8
      %v5607 = vpop.permute.xlu0 %5606
      %5608 = vrot.lane.b32.xlu0 %v5277, 8
      %v5609 = vpop.permute.xlu0 %5608
      %5610 = vrot.lane.b32.xlu0 %v5287, 8
      %v5611 = vpop.permute.xlu0 %5610
      %5612 = vrot.lane.b32.xlu0 %v5301, 8
      %v5613 = vpop.permute.xlu0 %5612
      %5614 = vrot.lane.b32.xlu0 %v5311, 8
      %v5615 = vpop.permute.xlu0 %5614
      %5616 = vrot.lane.b32.xlu0 %v5325, 8
      %v5617 = vpop.permute.xlu0 %5616
      %5618 = vrot.lane.b32.xlu0 %v5335, 8
      %v5619 = vpop.permute.xlu0 %5618
      %5620 = vrot.lane.b32.xlu0 %v5349, 8
      %v5621 = vpop.permute.xlu0 %5620
      %5622 = vrot.lane.b32.xlu0 %v5359, 8
      %v5623 = vpop.permute.xlu0 %5622
      %5624 = vrot.lane.b32.xlu0 %v5373, 8
      %v5625 = vpop.permute.xlu0 %5624
      %5626 = vrot.lane.b32.xlu0 %v5383, 8
      %v5627 = vpop.permute.xlu0 %5626
      %5628 = vrot.lane.b32.xlu0 %v5397, 8
      %v5629 = vpop.permute.xlu0 %5628
      %5630 = vrot.lane.b32.xlu0 %v5407, 8
      %v5631 = vpop.permute.xlu0 %5630
      %5632 = vrot.lane.b32.xlu0 %v5421, 8
      %v5633 = vpop.permute.xlu0 %5632
      %5634 = vrot.lane.b32.xlu0 %v5431, 8
      %v5635 = vpop.permute.xlu0 %5634
      %5636 = vrot.lane.b32.xlu0 %v5445, 8
      %v5637 = vpop.permute.xlu0 %5636
      %5638 = vrot.lane.b32.xlu0 %v5455, 8
      %v5639 = vpop.permute.xlu0 %5638
      %5640 = vrot.lane.b32.xlu0 %v5469, 8
      %v5641 = vpop.permute.xlu0 %5640
      %5642 = vrot.lane.b32.xlu0 %v5479, 8
      %v5643 = vpop.permute.xlu0 %5642
      %5644 = vrot.lane.b32.xlu0 %v5493, 8
      %v5645 = vpop.permute.xlu0 %5644
      %5646 = vrot.lane.b32.xlu0 %v5503, 8
      %v5647 = vpop.permute.xlu0 %5646
      %5648 = vrot.lane.b32.xlu0 %v5517, 8
      %v5649 = vpop.permute.xlu0 %5648
      %5650 = vrot.lane.b32.xlu0 %v5527, 8
      %v5651 = vpop.permute.xlu0 %5650
      %5652 = vrot.lane.b32.xlu0 %v5541, 8
      %v5653 = vpop.permute.xlu0 %5652
      %5654 = vrot.lane.b32.xlu0 %v5551, 8
      %v5655 = vpop.permute.xlu0 %5654
      %5656 = vrot.lane.b32.xlu0 %v5565, 8
      %v5657 = vpop.permute.xlu0 %5656
      %5658 = vrot.lane.b32.xlu0 %v5575, 8
      %v5659 = vpop.permute.xlu0 %5658
      %5660 = vrot.lane.b32.xlu0 %v5589, 8
      %v5661 = vpop.permute.xlu0 %5660
      %5662 = vrot.lane.b32.xlu0 %v5599, 8
      %v5663 = vpop.permute.xlu0 %5662
      %5696 = vst.msk [vmem:[#allocation3] sm:$0xf] %vm1635, %v5601
      %5697 = vst.msk [vmem:[#allocation3 + $0x4] sm:$0xf] %vm1635, %v5603
      %5698 = vst.msk [vmem:[#allocation3 + $0x8] sm:$0xf] %vm1635, %v5605
      %5699 = vst.msk [vmem:[#allocation3 + $0xc] sm:$0xf] %vm1635, %v5607
      %5700 = vst.msk [vmem:[#allocation3 + $0x10] sm:$0xf] %vm1635, %v5609
      %5701 = vst.msk [vmem:[#allocation3 + $0x14] sm:$0xf] %vm1635, %v5611
      %5702 = vst.msk [vmem:[#allocation3 + $0x18] sm:$0xf] %vm1635, %v5613
      %5703 = vst.msk [vmem:[#allocation3 + $0x1c] sm:$0xf] %vm1635, %v5615
      %5704 = vst.msk [vmem:[#allocation3 + $0x20] sm:$0xf] %vm1635, %v5617
      %5705 = vst.msk [vmem:[#allocation3 + $0x24] sm:$0xf] %vm1635, %v5619
      %5706 = vst.msk [vmem:[#allocation3 + $0x28] sm:$0xf] %vm1635, %v5621
      %5707 = vst.msk [vmem:[#allocation3 + $0x2c] sm:$0xf] %vm1635, %v5623
      %5708 = vst.msk [vmem:[#allocation3 + $0x30] sm:$0xf] %vm1635, %v5625
      %5709 = vst.msk [vmem:[#allocation3 + $0x34] sm:$0xf] %vm1635, %v5627
      %5710 = vst.msk [vmem:[#allocation3 + $0x38] sm:$0xf] %vm1635, %v5629
      %5711 = vst.msk [vmem:[#allocation3 + $0x3c] sm:$0xf] %vm1635, %v5631
      %5712 = vst.msk [vmem:[#allocation3 + $0x40] sm:$0xf] %vm1635, %v5633
      %5713 = vst.msk [vmem:[#allocation3 + $0x44] sm:$0xf] %vm1635, %v5635
      %5714 = vst.msk [vmem:[#allocation3 + $0x48] sm:$0xf] %vm1635, %v5637
      %5715 = vst.msk [vmem:[#allocation3 + $0x4c] sm:$0xf] %vm1635, %v5639
      %5716 = vst.msk [vmem:[#allocation3 + $0x50] sm:$0xf] %vm1635, %v5641
      %5717 = vst.msk [vmem:[#allocation3 + $0x54] sm:$0xf] %vm1635, %v5643
      %5718 = vst.msk [vmem:[#allocation3 + $0x58] sm:$0xf] %vm1635, %v5645
      %5719 = vst.msk [vmem:[#allocation3 + $0x5c] sm:$0xf] %vm1635, %v5647
      %5720 = vst.msk [vmem:[#allocation3 + $0x60] sm:$0xf] %vm1635, %v5649
      %5721 = vst.msk [vmem:[#allocation3 + $0x64] sm:$0xf] %vm1635, %v5651
      %5722 = vst.msk [vmem:[#allocation3 + $0x68] sm:$0xf] %vm1635, %v5653
      %5723 = vst.msk [vmem:[#allocation3 + $0x6c] sm:$0xf] %vm1635, %v5655
      %5724 = vst.msk [vmem:[#allocation3 + $0x70] sm:$0xf] %vm1635, %v5657
      %5725 = vst.msk [vmem:[#allocation3 + $0x74] sm:$0xf] %vm1635, %v5659
      %5726 = vst.msk [vmem:[#allocation3 + $0x78] sm:$0xf] %vm1635, %v5661
      %5727 = vst.msk [vmem:[#allocation3 + $0x7c] sm:$0xf] %vm1635, %v5663
      %v5728 = vld [vmem:[#allocation2] sm:$0xe]
      %v5729 = vld [vmem:[#allocation2 + $0x4] sm:$0xf]
      %v5730 = vld [vmem:[#allocation2 + $0x8] sm:$0x1]
      %v5731 = vld [vmem:[#allocation2 + $0xc] sm:$0xe]
      %v5732 = vld [vmem:[#allocation2 + $0x10] sm:$0xf]
      %v5733 = vld [vmem:[#allocation2 + $0x14] sm:$0x1]
      %v5734 = vld [vmem:[#allocation2 + $0x18] sm:$0xe]
      %v5735 = vld [vmem:[#allocation2 + $0x1c] sm:$0xf]
      %v5736 = vld [vmem:[#allocation2 + $0x20] sm:$0x1]
      %v5737 = vld [vmem:[#allocation2 + $0x24] sm:$0xe]
      %v5738 = vld [vmem:[#allocation2 + $0x28] sm:$0xf]
      %v5739 = vld [vmem:[#allocation2 + $0x2c] sm:$0x1]
      %v5740 = vld [vmem:[#allocation2 + $0x30] sm:$0xe]
      %v5741 = vld [vmem:[#allocation2 + $0x34] sm:$0xf]
      %v5742 = vld [vmem:[#allocation2 + $0x38] sm:$0x1]
      %v5743 = vld [vmem:[#allocation2 + $0x3c] sm:$0xe]
      %v5744 = vld [vmem:[#allocation2 + $0x40] sm:$0xf]
      %v5745 = vld [vmem:[#allocation2 + $0x44] sm:$0x1]
      %v5746 = vld [vmem:[#allocation2 + $0x48] sm:$0xe]
      %v5747 = vld [vmem:[#allocation2 + $0x4c] sm:$0xf]
      %v5748 = vld [vmem:[#allocation2 + $0x50] sm:$0x1]
      %v5749 = vld [vmem:[#allocation2 + $0x54] sm:$0xe]
      %v5750 = vld [vmem:[#allocation2 + $0x58] sm:$0xf]
      %v5751 = vld [vmem:[#allocation2 + $0x5c] sm:$0x1]
      %v5752 = vld [vmem:[#allocation2 + $0x60] sm:$0xe]
      %v5753 = vld [vmem:[#allocation2 + $0x64] sm:$0xf]
      %v5754 = vld [vmem:[#allocation2 + $0x68] sm:$0x1]
      %v5755 = vld [vmem:[#allocation2 + $0x6c] sm:$0xe]
      %v5756 = vld [vmem:[#allocation2 + $0x70] sm:$0xf]
      %v5757 = vld [vmem:[#allocation2 + $0x74] sm:$0x1]
      %v5758 = vld [vmem:[#allocation2 + $0x78] sm:$0xe]
      %v5759 = vld [vmem:[#allocation2 + $0x7c] sm:$0xf]
      %v5760 = vld [vmem:[#allocation2 + $0x80] sm:$0x1]
      %v5761 = vld [vmem:[#allocation2 + $0x84] sm:$0xe]
      %v5762 = vld [vmem:[#allocation2 + $0x88] sm:$0xf]
      %v5763 = vld [vmem:[#allocation2 + $0x8c] sm:$0x1]
      %v5764 = vld [vmem:[#allocation2 + $0x90] sm:$0xe]
      %v5765 = vld [vmem:[#allocation2 + $0x94] sm:$0xf]
      %v5766 = vld [vmem:[#allocation2 + $0x98] sm:$0x1]
      %v5767 = vld [vmem:[#allocation2 + $0x9c] sm:$0xe]
      %v5768 = vld [vmem:[#allocation2 + $0xa0] sm:$0xf]
      %v5769 = vld [vmem:[#allocation2 + $0xa4] sm:$0x1]
      %v5770 = vld [vmem:[#allocation2 + $0xa8] sm:$0xe]
      %v5771 = vld [vmem:[#allocation2 + $0xac] sm:$0xf]
      %v5772 = vld [vmem:[#allocation2 + $0xb0] sm:$0x1]
      %v5773 = vld [vmem:[#allocation2 + $0xb4] sm:$0xe]
      %v5774 = vld [vmem:[#allocation2 + $0xb8] sm:$0xf]
      %v5775 = vld [vmem:[#allocation2 + $0xbc] sm:$0x1]
      %v5824 = vrot.slane %v5728, 5
      %v5825 = vrot.slane %v5824, 4
      %v5826 = vrot.slane %v5729, 5
      %v5827 = vsel %vm1766, %v5825, %v5826
      %v5828 = vrot.slane %v5826, 4
      %v5829 = vrot.slane %v5730, 5
      %v5830 = vsel %vm1766, %v5828, %v5829
      %v5831 = vrot.slane %v5731, 5
      %v5832 = vrot.slane %v5831, 4
      %v5833 = vrot.slane %v5732, 5
      %v5834 = vsel %vm1766, %v5832, %v5833
      %v5835 = vrot.slane %v5833, 4
      %v5836 = vrot.slane %v5733, 5
      %v5837 = vsel %vm1766, %v5835, %v5836
      %v5838 = vrot.slane %v5734, 5
      %v5839 = vrot.slane %v5838, 4
      %v5840 = vrot.slane %v5735, 5
      %v5841 = vsel %vm1766, %v5839, %v5840
      %v5842 = vrot.slane %v5840, 4
      %v5843 = vrot.slane %v5736, 5
      %v5844 = vsel %vm1766, %v5842, %v5843
      %v5845 = vrot.slane %v5737, 5
      %v5846 = vrot.slane %v5845, 4
      %v5847 = vrot.slane %v5738, 5
      %v5848 = vsel %vm1766, %v5846, %v5847
      %v5849 = vrot.slane %v5847, 4
      %v5850 = vrot.slane %v5739, 5
      %v5851 = vsel %vm1766, %v5849, %v5850
      %v5852 = vrot.slane %v5740, 5
      %v5853 = vrot.slane %v5852, 4
      %v5854 = vrot.slane %v5741, 5
      %v5855 = vsel %vm1766, %v5853, %v5854
      %v5856 = vrot.slane %v5854, 4
      %v5857 = vrot.slane %v5742, 5
      %v5858 = vsel %vm1766, %v5856, %v5857
      %v5859 = vrot.slane %v5743, 5
      %v5860 = vrot.slane %v5859, 4
      %v5861 = vrot.slane %v5744, 5
      %v5862 = vsel %vm1766, %v5860, %v5861
      %v5863 = vrot.slane %v5861, 4
      %v5864 = vrot.slane %v5745, 5
      %v5865 = vsel %vm1766, %v5863, %v5864
      %v5866 = vrot.slane %v5746, 5
      %v5867 = vrot.slane %v5866, 4
      %v5868 = vrot.slane %v5747, 5
      %v5869 = vsel %vm1766, %v5867, %v5868
      %v5870 = vrot.slane %v5868, 4
      %v5871 = vrot.slane %v5748, 5
      %v5872 = vsel %vm1766, %v5870, %v5871
      %v5873 = vrot.slane %v5749, 5
      %v5874 = vrot.slane %v5873, 4
      %v5875 = vrot.slane %v5750, 5
      %v5876 = vsel %vm1766, %v5874, %v5875
      %v5877 = vrot.slane %v5875, 4
      %v5878 = vrot.slane %v5751, 5
      %v5879 = vsel %vm1766, %v5877, %v5878
      %v5880 = vrot.slane %v5752, 5
      %v5881 = vrot.slane %v5880, 4
      %v5882 = vrot.slane %v5753, 5
      %v5883 = vsel %vm1766, %v5881, %v5882
      %v5884 = vrot.slane %v5882, 4
      %v5885 = vrot.slane %v5754, 5
      %v5886 = vsel %vm1766, %v5884, %v5885
      %v5887 = vrot.slane %v5755, 5
      %v5888 = vrot.slane %v5887, 4
      %v5889 = vrot.slane %v5756, 5
      %v5890 = vsel %vm1766, %v5888, %v5889
      %v5891 = vrot.slane %v5889, 4
      %v5892 = vrot.slane %v5757, 5
      %v5893 = vsel %vm1766, %v5891, %v5892
      %v5894 = vrot.slane %v5758, 5
      %v5895 = vrot.slane %v5894, 4
      %v5896 = vrot.slane %v5759, 5
      %v5897 = vsel %vm1766, %v5895, %v5896
      %v5898 = vrot.slane %v5896, 4
      %v5899 = vrot.slane %v5760, 5
      %v5900 = vsel %vm1766, %v5898, %v5899
      %v5901 = vrot.slane %v5761, 5
      %v5902 = vrot.slane %v5901, 4
      %v5903 = vrot.slane %v5762, 5
      %v5904 = vsel %vm1766, %v5902, %v5903
      %v5905 = vrot.slane %v5903, 4
      %v5906 = vrot.slane %v5763, 5
      %v5907 = vsel %vm1766, %v5905, %v5906
      %v5908 = vrot.slane %v5764, 5
      %v5909 = vrot.slane %v5908, 4
      %v5910 = vrot.slane %v5765, 5
      %v5911 = vsel %vm1766, %v5909, %v5910
      %v5912 = vrot.slane %v5910, 4
      %v5913 = vrot.slane %v5766, 5
      %v5914 = vsel %vm1766, %v5912, %v5913
      %v5915 = vrot.slane %v5767, 5
      %v5916 = vrot.slane %v5915, 4
      %v5917 = vrot.slane %v5768, 5
      %v5918 = vsel %vm1766, %v5916, %v5917
      %v5919 = vrot.slane %v5917, 4
      %v5920 = vrot.slane %v5769, 5
      %v5921 = vsel %vm1766, %v5919, %v5920
      %v5922 = vrot.slane %v5770, 5
      %v5923 = vrot.slane %v5922, 4
      %v5924 = vrot.slane %v5771, 5
      %v5925 = vsel %vm1766, %v5923, %v5924
      %v5926 = vrot.slane %v5924, 4
      %v5927 = vrot.slane %v5772, 5
      %v5928 = vsel %vm1766, %v5926, %v5927
      %v5929 = vrot.slane %v5773, 5
      %v5930 = vrot.slane %v5929, 4
      %v5931 = vrot.slane %v5774, 5
      %v5932 = vsel %vm1766, %v5930, %v5931
      %v5933 = vrot.slane %v5931, 4
      %v5934 = vrot.slane %v5775, 5
      %v5935 = vsel %vm1766, %v5933, %v5934
      %5936 = vrot.lane.b32.xlu0 %v5827, 16
      %v5937 = vpop.permute.xlu0 %5936
      %5938 = vrot.lane.b32.xlu0 %v5830, 16
      %v5939 = vpop.permute.xlu0 %5938
      %5940 = vrot.lane.b32.xlu0 %v5834, 16
      %v5941 = vpop.permute.xlu0 %5940
      %5942 = vrot.lane.b32.xlu0 %v5837, 16
      %v5943 = vpop.permute.xlu0 %5942
      %5944 = vrot.lane.b32.xlu0 %v5841, 16
      %v5945 = vpop.permute.xlu0 %5944
      %5946 = vrot.lane.b32.xlu0 %v5844, 16
      %v5947 = vpop.permute.xlu0 %5946
      %5948 = vrot.lane.b32.xlu0 %v5848, 16
      %v5949 = vpop.permute.xlu0 %5948
      %5950 = vrot.lane.b32.xlu0 %v5851, 16
      %v5951 = vpop.permute.xlu0 %5950
      %5952 = vrot.lane.b32.xlu0 %v5855, 16
      %v5953 = vpop.permute.xlu0 %5952
      %5954 = vrot.lane.b32.xlu0 %v5858, 16
      %v5955 = vpop.permute.xlu0 %5954
      %5956 = vrot.lane.b32.xlu0 %v5862, 16
      %v5957 = vpop.permute.xlu0 %5956
      %5958 = vrot.lane.b32.xlu0 %v5865, 16
      %v5959 = vpop.permute.xlu0 %5958
      %5960 = vrot.lane.b32.xlu0 %v5869, 16
      %v5961 = vpop.permute.xlu0 %5960
      %5962 = vrot.lane.b32.xlu0 %v5872, 16
      %v5963 = vpop.permute.xlu0 %5962
      %5964 = vrot.lane.b32.xlu0 %v5876, 16
      %v5965 = vpop.permute.xlu0 %5964
      %5966 = vrot.lane.b32.xlu0 %v5879, 16
      %v5967 = vpop.permute.xlu0 %5966
      %5968 = vrot.lane.b32.xlu0 %v5883, 16
      %v5969 = vpop.permute.xlu0 %5968
      %5970 = vrot.lane.b32.xlu0 %v5886, 16
      %v5971 = vpop.permute.xlu0 %5970
      %5972 = vrot.lane.b32.xlu0 %v5890, 16
      %v5973 = vpop.permute.xlu0 %5972
      %5974 = vrot.lane.b32.xlu0 %v5893, 16
      %v5975 = vpop.permute.xlu0 %5974
      %5976 = vrot.lane.b32.xlu0 %v5897, 16
      %v5977 = vpop.permute.xlu0 %5976
      %5978 = vrot.lane.b32.xlu0 %v5900, 16
      %v5979 = vpop.permute.xlu0 %5978
      %5980 = vrot.lane.b32.xlu0 %v5904, 16
      %v5981 = vpop.permute.xlu0 %5980
      %5982 = vrot.lane.b32.xlu0 %v5907, 16
      %v5983 = vpop.permute.xlu0 %5982
      %5984 = vrot.lane.b32.xlu0 %v5911, 16
      %v5985 = vpop.permute.xlu0 %5984
      %5986 = vrot.lane.b32.xlu0 %v5914, 16
      %v5987 = vpop.permute.xlu0 %5986
      %5988 = vrot.lane.b32.xlu0 %v5918, 16
      %v5989 = vpop.permute.xlu0 %5988
      %5990 = vrot.lane.b32.xlu0 %v5921, 16
      %v5991 = vpop.permute.xlu0 %5990
      %5992 = vrot.lane.b32.xlu0 %v5925, 16
      %v5993 = vpop.permute.xlu0 %5992
      %5994 = vrot.lane.b32.xlu0 %v5928, 16
      %v5995 = vpop.permute.xlu0 %5994
      %5996 = vrot.lane.b32.xlu0 %v5932, 16
      %v5997 = vpop.permute.xlu0 %5996
      %5998 = vrot.lane.b32.xlu0 %v5935, 16
      %v5999 = vpop.permute.xlu0 %5998
      %6032 = vst.msk [vmem:[#allocation3] sm:$0xf] %vm1975, %v5937
      %6033 = vst.msk [vmem:[#allocation3 + $0x4] sm:$0xf] %vm1975, %v5939
      %6034 = vst.msk [vmem:[#allocation3 + $0x8] sm:$0xf] %vm1975, %v5941
      %6035 = vst.msk [vmem:[#allocation3 + $0xc] sm:$0xf] %vm1975, %v5943
      %6036 = vst.msk [vmem:[#allocation3 + $0x10] sm:$0xf] %vm1975, %v5945
      %6037 = vst.msk [vmem:[#allocation3 + $0x14] sm:$0xf] %vm1975, %v5947
      %6038 = vst.msk [vmem:[#allocation3 + $0x18] sm:$0xf] %vm1975, %v5949
      %6039 = vst.msk [vmem:[#allocation3 + $0x1c] sm:$0xf] %vm1975, %v5951
      %6040 = vst.msk [vmem:[#allocation3 + $0x20] sm:$0xf] %vm1975, %v5953
      %6041 = vst.msk [vmem:[#allocation3 + $0x24] sm:$0xf] %vm1975, %v5955
      %6042 = vst.msk [vmem:[#allocation3 + $0x28] sm:$0xf] %vm1975, %v5957
      %6043 = vst.msk [vmem:[#allocation3 + $0x2c] sm:$0xf] %vm1975, %v5959
      %6044 = vst.msk [vmem:[#allocation3 + $0x30] sm:$0xf] %vm1975, %v5961
      %6045 = vst.msk [vmem:[#allocation3 + $0x34] sm:$0xf] %vm1975, %v5963
      %6046 = vst.msk [vmem:[#allocation3 + $0x38] sm:$0xf] %vm1975, %v5965
      %6047 = vst.msk [vmem:[#allocation3 + $0x3c] sm:$0xf] %vm1975, %v5967
      %6048 = vst.msk [vmem:[#allocation3 + $0x40] sm:$0xf] %vm1975, %v5969
      %6049 = vst.msk [vmem:[#allocation3 + $0x44] sm:$0xf] %vm1975, %v5971
      %6050 = vst.msk [vmem:[#allocation3 + $0x48] sm:$0xf] %vm1975, %v5973
      %6051 = vst.msk [vmem:[#allocation3 + $0x4c] sm:$0xf] %vm1975, %v5975
      %6052 = vst.msk [vmem:[#allocation3 + $0x50] sm:$0xf] %vm1975, %v5977
      %6053 = vst.msk [vmem:[#allocation3 + $0x54] sm:$0xf] %vm1975, %v5979
      %6054 = vst.msk [vmem:[#allocation3 + $0x58] sm:$0xf] %vm1975, %v5981
      %6055 = vst.msk [vmem:[#allocation3 + $0x5c] sm:$0xf] %vm1975, %v5983
      %6056 = vst.msk [vmem:[#allocation3 + $0x60] sm:$0xf] %vm1975, %v5985
      %6057 = vst.msk [vmem:[#allocation3 + $0x64] sm:$0xf] %vm1975, %v5987
      %6058 = vst.msk [vmem:[#allocation3 + $0x68] sm:$0xf] %vm1975, %v5989
      %6059 = vst.msk [vmem:[#allocation3 + $0x6c] sm:$0xf] %vm1975, %v5991
      %6060 = vst.msk [vmem:[#allocation3 + $0x70] sm:$0xf] %vm1975, %v5993
      %6061 = vst.msk [vmem:[#allocation3 + $0x74] sm:$0xf] %vm1975, %v5995
      %6062 = vst.msk [vmem:[#allocation3 + $0x78] sm:$0xf] %vm1975, %v5997
      %6063 = vst.msk [vmem:[#allocation3 + $0x7c] sm:$0xf] %vm1975, %v5999
      %v6064 = vld [vmem:[%s925] sm:$0xf]
      %v6065 = vld [vmem:[%s925 + $0x4] sm:$0xf]
      %v6066 = vld [vmem:[%s925 + $0xc] sm:$0xf]
      %v6067 = vld [vmem:[%s925 + $0x10] sm:$0xf]
      %v6068 = vld [vmem:[%s925 + $0x18] sm:$0xf]
      %v6069 = vld [vmem:[%s925 + $0x1c] sm:$0xf]
      %v6070 = vld [vmem:[%s925 + $0x24] sm:$0xf]
      %v6071 = vld [vmem:[%s925 + $0x28] sm:$0xf]
      %v6072 = vld [vmem:[%s925 + $0x30] sm:$0xf]
      %v6073 = vld [vmem:[%s925 + $0x34] sm:$0xf]
      %v6074 = vld [vmem:[%s925 + $0x3c] sm:$0xf]
      %v6075 = vld [vmem:[%s925 + $0x40] sm:$0xf]
      %v6076 = vld [vmem:[%s925 + $0x48] sm:$0xf]
      %v6077 = vld [vmem:[%s925 + $0x4c] sm:$0xf]
      %v6078 = vld [vmem:[%s925 + $0x54] sm:$0xf]
      %v6079 = vld [vmem:[%s925 + $0x58] sm:$0xf]
      %v6080 = vld [vmem:[%s925 + $0x60] sm:$0xf]
      %v6081 = vld [vmem:[%s925 + $0x64] sm:$0xf]
      %v6082 = vld [vmem:[%s925 + $0x6c] sm:$0xf]
      %v6083 = vld [vmem:[%s925 + $0x70] sm:$0xf]
      %v6084 = vld [vmem:[%s925 + $0x78] sm:$0xf]
      %v6085 = vld [vmem:[%s925 + $0x7c] sm:$0xf]
      %v6086 = vld [vmem:[%s925 + $0x84] sm:$0xf]
      %v6087 = vld [vmem:[%s925 + $0x88] sm:$0xf]
      %v6088 = vld [vmem:[%s925 + $0x90] sm:$0xf]
      %v6089 = vld [vmem:[%s925 + $0x94] sm:$0xf]
      %v6090 = vld [vmem:[%s925 + $0x9c] sm:$0xf]
      %v6091 = vld [vmem:[%s925 + $0xa0] sm:$0xf]
      %v6092 = vld [vmem:[%s925 + $0xa8] sm:$0xf]
      %v6093 = vld [vmem:[%s925 + $0xac] sm:$0xf]
      %v6094 = vld [vmem:[%s925 + $0xb4] sm:$0xf]
      %v6095 = vld [vmem:[%s925 + $0xb8] sm:$0xf]
      %6128 = vrot.lane.b32.xlu0 %v6064, 24
      %v6129 = vpop.permute.xlu0 %6128
      %6130 = vrot.lane.b32.xlu0 %v6065, 24
      %v6131 = vpop.permute.xlu0 %6130
      %6132 = vrot.lane.b32.xlu0 %v6066, 24
      %v6133 = vpop.permute.xlu0 %6132
      %6134 = vrot.lane.b32.xlu0 %v6067, 24
      %v6135 = vpop.permute.xlu0 %6134
      %6136 = vrot.lane.b32.xlu0 %v6068, 24
      %v6137 = vpop.permute.xlu0 %6136
      %6138 = vrot.lane.b32.xlu0 %v6069, 24
      %v6139 = vpop.permute.xlu0 %6138
      %6140 = vrot.lane.b32.xlu0 %v6070, 24
      %v6141 = vpop.permute.xlu0 %6140
      %6142 = vrot.lane.b32.xlu0 %v6071, 24
      %v6143 = vpop.permute.xlu0 %6142
      %6144 = vrot.lane.b32.xlu0 %v6072, 24
      %v6145 = vpop.permute.xlu0 %6144
      %6146 = vrot.lane.b32.xlu0 %v6073, 24
      %v6147 = vpop.permute.xlu0 %6146
      %6148 = vrot.lane.b32.xlu0 %v6074, 24
      %v6149 = vpop.permute.xlu0 %6148
      %6150 = vrot.lane.b32.xlu0 %v6075, 24
      %v6151 = vpop.permute.xlu0 %6150
      %6152 = vrot.lane.b32.xlu0 %v6076, 24
      %v6153 = vpop.permute.xlu0 %6152
      %6154 = vrot.lane.b32.xlu0 %v6077, 24
      %v6155 = vpop.permute.xlu0 %6154
      %6156 = vrot.lane.b32.xlu0 %v6078, 24
      %v6157 = vpop.permute.xlu0 %6156
      %6158 = vrot.lane.b32.xlu0 %v6079, 24
      %v6159 = vpop.permute.xlu0 %6158
      %6160 = vrot.lane.b32.xlu0 %v6080, 24
      %v6161 = vpop.permute.xlu0 %6160
      %6162 = vrot.lane.b32.xlu0 %v6081, 24
      %v6163 = vpop.permute.xlu0 %6162
      %6164 = vrot.lane.b32.xlu0 %v6082, 24
      %v6165 = vpop.permute.xlu0 %6164
      %6166 = vrot.lane.b32.xlu0 %v6083, 24
      %v6167 = vpop.permute.xlu0 %6166
      %6168 = vrot.lane.b32.xlu0 %v6084, 24
      %v6169 = vpop.permute.xlu0 %6168
      %6170 = vrot.lane.b32.xlu0 %v6085, 24
      %v6171 = vpop.permute.xlu0 %6170
      %6172 = vrot.lane.b32.xlu0 %v6086, 24
      %v6173 = vpop.permute.xlu0 %6172
      %6174 = vrot.lane.b32.xlu0 %v6087, 24
      %v6175 = vpop.permute.xlu0 %6174
      %6176 = vrot.lane.b32.xlu0 %v6088, 24
      %v6177 = vpop.permute.xlu0 %6176
      %6178 = vrot.lane.b32.xlu0 %v6089, 24
      %v6179 = vpop.permute.xlu0 %6178
      %6180 = vrot.lane.b32.xlu0 %v6090, 24
      %v6181 = vpop.permute.xlu0 %6180
      %6182 = vrot.lane.b32.xlu0 %v6091, 24
      %v6183 = vpop.permute.xlu0 %6182
      %6184 = vrot.lane.b32.xlu0 %v6092, 24
      %v6185 = vpop.permute.xlu0 %6184
      %6186 = vrot.lane.b32.xlu0 %v6093, 24
      %v6187 = vpop.permute.xlu0 %6186
      %6188 = vrot.lane.b32.xlu0 %v6094, 24
      %v6189 = vpop.permute.xlu0 %6188
      %6190 = vrot.lane.b32.xlu0 %v6095, 24
      %v6191 = vpop.permute.xlu0 %6190
      %6224 = vst.msk [vmem:[#allocation3] sm:$0xf] %vm2168, %v6129
      %6225 = vst.msk [vmem:[#allocation3 + $0x4] sm:$0xf] %vm2168, %v6131
      %6226 = vst.msk [vmem:[#allocation3 + $0x8] sm:$0xf] %vm2168, %v6133
      %6227 = vst.msk [vmem:[#allocation3 + $0xc] sm:$0xf] %vm2168, %v6135
      %6228 = vst.msk [vmem:[#allocation3 + $0x10] sm:$0xf] %vm2168, %v6137
      %6229 = vst.msk [vmem:[#allocation3 + $0x14] sm:$0xf] %vm2168, %v6139
      %6230 = vst.msk [vmem:[#allocation3 + $0x18] sm:$0xf] %vm2168, %v6141
      %6231 = vst.msk [vmem:[#allocation3 + $0x1c] sm:$0xf] %vm2168, %v6143
      %6232 = vst.msk [vmem:[#allocation3 + $0x20] sm:$0xf] %vm2168, %v6145
      %6233 = vst.msk [vmem:[#allocation3 + $0x24] sm:$0xf] %vm2168, %v6147
      %6234 = vst.msk [vmem:[#allocation3 + $0x28] sm:$0xf] %vm2168, %v6149
      %6235 = vst.msk [vmem:[#allocation3 + $0x2c] sm:$0xf] %vm2168, %v6151
      %6236 = vst.msk [vmem:[#allocation3 + $0x30] sm:$0xf] %vm2168, %v6153
      %6237 = vst.msk [vmem:[#allocation3 + $0x34] sm:$0xf] %vm2168, %v6155
      %6238 = vst.msk [vmem:[#allocation3 + $0x38] sm:$0xf] %vm2168, %v6157
      %6239 = vst.msk [vmem:[#allocation3 + $0x3c] sm:$0xf] %vm2168, %v6159
      %6240 = vst.msk [vmem:[#allocation3 + $0x40] sm:$0xf] %vm2168, %v6161
      %6241 = vst.msk [vmem:[#allocation3 + $0x44] sm:$0xf] %vm2168, %v6163
      %6242 = vst.msk [vmem:[#allocation3 + $0x48] sm:$0xf] %vm2168, %v6165
      %6243 = vst.msk [vmem:[#allocation3 + $0x4c] sm:$0xf] %vm2168, %v6167
      %6244 = vst.msk [vmem:[#allocation3 + $0x50] sm:$0xf] %vm2168, %v6169
      %6245 = vst.msk [vmem:[#allocation3 + $0x54] sm:$0xf] %vm2168, %v6171
      %6246 = vst.msk [vmem:[#allocation3 + $0x58] sm:$0xf] %vm2168, %v6173
      %6247 = vst.msk [vmem:[#allocation3 + $0x5c] sm:$0xf] %vm2168, %v6175
      %6248 = vst.msk [vmem:[#allocation3 + $0x60] sm:$0xf] %vm2168, %v6177
      %6249 = vst.msk [vmem:[#allocation3 + $0x64] sm:$0xf] %vm2168, %v6179
      %6250 = vst.msk [vmem:[#allocation3 + $0x68] sm:$0xf] %vm2168, %v6181
      %6251 = vst.msk [vmem:[#allocation3 + $0x6c] sm:$0xf] %vm2168, %v6183
      %6252 = vst.msk [vmem:[#allocation3 + $0x70] sm:$0xf] %vm2168, %v6185
      %6253 = vst.msk [vmem:[#allocation3 + $0x74] sm:$0xf] %vm2168, %v6187
      %6254 = vst.msk [vmem:[#allocation3 + $0x78] sm:$0xf] %vm2168, %v6189
      %6255 = vst.msk [vmem:[#allocation3 + $0x7c] sm:$0xf] %vm2168, %v6191
      %v6256 = vld [vmem:[%s925] sm:$0xf]
      %v6257 = vld [vmem:[%s925 + $0x4] sm:$0xf]
      %v6258 = vld [vmem:[%s925 + $0x8] sm:$0x1]
      %v6259 = vld [vmem:[%s925 + $0xc] sm:$0xf]
      %v6260 = vld [vmem:[%s925 + $0x10] sm:$0xf]
      %v6261 = vld [vmem:[%s925 + $0x14] sm:$0x1]
      %v6262 = vld [vmem:[%s925 + $0x18] sm:$0xf]
      %v6263 = vld [vmem:[%s925 + $0x1c] sm:$0xf]
      %v6264 = vld [vmem:[%s925 + $0x20] sm:$0x1]
      %v6265 = vld [vmem:[%s925 + $0x24] sm:$0xf]
      %v6266 = vld [vmem:[%s925 + $0x28] sm:$0xf]
      %v6267 = vld [vmem:[%s925 + $0x2c] sm:$0x1]
      %v6268 = vld [vmem:[%s925 + $0x30] sm:$0xf]
      %v6269 = vld [vmem:[%s925 + $0x34] sm:$0xf]
      %v6270 = vld [vmem:[%s925 + $0x38] sm:$0x1]
      %v6271 = vld [vmem:[%s925 + $0x3c] sm:$0xf]
      %v6272 = vld [vmem:[%s925 + $0x40] sm:$0xf]
      %v6273 = vld [vmem:[%s925 + $0x44] sm:$0x1]
      %v6274 = vld [vmem:[%s925 + $0x48] sm:$0xf]
      %v6275 = vld [vmem:[%s925 + $0x4c] sm:$0xf]
      %v6276 = vld [vmem:[%s925 + $0x50] sm:$0x1]
      %v6277 = vld [vmem:[%s925 + $0x54] sm:$0xf]
      %v6278 = vld [vmem:[%s925 + $0x58] sm:$0xf]
      %v6279 = vld [vmem:[%s925 + $0x5c] sm:$0x1]
      %v6280 = vld [vmem:[%s925 + $0x60] sm:$0xf]
      %v6281 = vld [vmem:[%s925 + $0x64] sm:$0xf]
      %v6282 = vld [vmem:[%s925 + $0x68] sm:$0x1]
      %v6283 = vld [vmem:[%s925 + $0x6c] sm:$0xf]
      %v6284 = vld [vmem:[%s925 + $0x70] sm:$0xf]
      %v6285 = vld [vmem:[%s925 + $0x74] sm:$0x1]
      %v6286 = vld [vmem:[%s925 + $0x78] sm:$0xf]
      %v6287 = vld [vmem:[%s925 + $0x7c] sm:$0xf]
      %v6288 = vld [vmem:[%s925 + $0x80] sm:$0x1]
      %v6289 = vld [vmem:[%s925 + $0x84] sm:$0xf]
      %v6290 = vld [vmem:[%s925 + $0x88] sm:$0xf]
      %v6291 = vld [vmem:[%s925 + $0x8c] sm:$0x1]
      %v6292 = vld [vmem:[%s925 + $0x90] sm:$0xf]
      %v6293 = vld [vmem:[%s925 + $0x94] sm:$0xf]
      %v6294 = vld [vmem:[%s925 + $0x98] sm:$0x1]
      %v6295 = vld [vmem:[%s925 + $0x9c] sm:$0xf]
      %v6296 = vld [vmem:[%s925 + $0xa0] sm:$0xf]
      %v6297 = vld [vmem:[%s925 + $0xa4] sm:$0x1]
      %v6298 = vld [vmem:[%s925 + $0xa8] sm:$0xf]
      %v6299 = vld [vmem:[%s925 + $0xac] sm:$0xf]
      %v6300 = vld [vmem:[%s925 + $0xb0] sm:$0x1]
      %v6301 = vld [vmem:[%s925 + $0xb4] sm:$0xf]
      %v6302 = vld [vmem:[%s925 + $0xb8] sm:$0xf]
      %v6303 = vld [vmem:[%s925 + $0xbc] sm:$0x1]
      %v6305 = vshrl.u32 %v6256, 16
      %v6307 = vrot.slane %v6305, 4
      %v6308 = vshll.u32 %v6256, 16
      %v6310 = vrot.slane %v6308, 5
      %v6311 = vor.u32 %v6307, %v6310
      %v6312 = vrot.slane %v6311, 4
      %v6314 = vshll.u32 %v6257, 16
      %v6316 = vrot.slane %v6314, 5
      %v6317 = vsel %vm1154, %v6312, %v6316
      %v6318 = vshrl.u32 %v6257, 16
      %v6320 = vrot.slane %v6318, 4
      %v6321 = vor.u32 %v6320, %v6316
      %v6322 = vrot.slane %v6321, 4
      %v6324 = vshll.u32 %v6258, 16
      %v6326 = vrot.slane %v6324, 5
      %v6327 = vsel %vm1154, %v6322, %v6326
      %v6329 = vshrl.u32 %v6259, 16
      %v6331 = vrot.slane %v6329, 4
      %v6332 = vshll.u32 %v6259, 16
      %v6334 = vrot.slane %v6332, 5
      %v6335 = vor.u32 %v6331, %v6334
      %v6336 = vrot.slane %v6335, 4
      %v6338 = vshll.u32 %v6260, 16
      %v6340 = vrot.slane %v6338, 5
      %v6341 = vsel %vm1154, %v6336, %v6340
      %v6342 = vshrl.u32 %v6260, 16
      %v6344 = vrot.slane %v6342, 4
      %v6345 = vor.u32 %v6344, %v6340
      %v6346 = vrot.slane %v6345, 4
      %v6348 = vshll.u32 %v6261, 16
      %v6350 = vrot.slane %v6348, 5
      %v6351 = vsel %vm1154, %v6346, %v6350
      %v6353 = vshrl.u32 %v6262, 16
      %v6355 = vrot.slane %v6353, 4
      %v6356 = vshll.u32 %v6262, 16
      %v6358 = vrot.slane %v6356, 5
      %v6359 = vor.u32 %v6355, %v6358
      %v6360 = vrot.slane %v6359, 4
      %v6362 = vshll.u32 %v6263, 16
      %v6364 = vrot.slane %v6362, 5
      %v6365 = vsel %vm1154, %v6360, %v6364
      %v6366 = vshrl.u32 %v6263, 16
      %v6368 = vrot.slane %v6366, 4
      %v6369 = vor.u32 %v6368, %v6364
      %v6370 = vrot.slane %v6369, 4
      %v6372 = vshll.u32 %v6264, 16
      %v6374 = vrot.slane %v6372, 5
      %v6375 = vsel %vm1154, %v6370, %v6374
      %v6377 = vshrl.u32 %v6265, 16
      %v6379 = vrot.slane %v6377, 4
      %v6380 = vshll.u32 %v6265, 16
      %v6382 = vrot.slane %v6380, 5
      %v6383 = vor.u32 %v6379, %v6382
      %v6384 = vrot.slane %v6383, 4
      %v6386 = vshll.u32 %v6266, 16
      %v6388 = vrot.slane %v6386, 5
      %v6389 = vsel %vm1154, %v6384, %v6388
      %v6390 = vshrl.u32 %v6266, 16
      %v6392 = vrot.slane %v6390, 4
      %v6393 = vor.u32 %v6392, %v6388
      %v6394 = vrot.slane %v6393, 4
      %v6396 = vshll.u32 %v6267, 16
      %v6398 = vrot.slane %v6396, 5
      %v6399 = vsel %vm1154, %v6394, %v6398
      %v6401 = vshrl.u32 %v6268, 16
      %v6403 = vrot.slane %v6401, 4
      %v6404 = vshll.u32 %v6268, 16
      %v6406 = vrot.slane %v6404, 5
      %v6407 = vor.u32 %v6403, %v6406
      %v6408 = vrot.slane %v6407, 4
      %v6410 = vshll.u32 %v6269, 16
      %v6412 = vrot.slane %v6410, 5
      %v6413 = vsel %vm1154, %v6408, %v6412
      %v6414 = vshrl.u32 %v6269, 16
      %v6416 = vrot.slane %v6414, 4
      %v6417 = vor.u32 %v6416, %v6412
      %v6418 = vrot.slane %v6417, 4
      %v6420 = vshll.u32 %v6270, 16
      %v6422 = vrot.slane %v6420, 5
      %v6423 = vsel %vm1154, %v6418, %v6422
      %v6425 = vshrl.u32 %v6271, 16
      %v6427 = vrot.slane %v6425, 4
      %v6428 = vshll.u32 %v6271, 16
      %v6430 = vrot.slane %v6428, 5
      %v6431 = vor.u32 %v6427, %v6430
      %v6432 = vrot.slane %v6431, 4
      %v6434 = vshll.u32 %v6272, 16
      %v6436 = vrot.slane %v6434, 5
      %v6437 = vsel %vm1154, %v6432, %v6436
      %v6438 = vshrl.u32 %v6272, 16
      %v6440 = vrot.slane %v6438, 4
      %v6441 = vor.u32 %v6440, %v6436
      %v6442 = vrot.slane %v6441, 4
      %v6444 = vshll.u32 %v6273, 16
      %v6446 = vrot.slane %v6444, 5
      %v6447 = vsel %vm1154, %v6442, %v6446
      %v6449 = vshrl.u32 %v6274, 16
      %v6451 = vrot.slane %v6449, 4
      %v6452 = vshll.u32 %v6274, 16
      %v6454 = vrot.slane %v6452, 5
      %v6455 = vor.u32 %v6451, %v6454
      %v6456 = vrot.slane %v6455, 4
      %v6458 = vshll.u32 %v6275, 16
      %v6460 = vrot.slane %v6458, 5
      %v6461 = vsel %vm1154, %v6456, %v6460
      %v6462 = vshrl.u32 %v6275, 16
      %v6464 = vrot.slane %v6462, 4
      %v6465 = vor.u32 %v6464, %v6460
      %v6466 = vrot.slane %v6465, 4
      %v6468 = vshll.u32 %v6276, 16
      %v6470 = vrot.slane %v6468, 5
      %v6471 = vsel %vm1154, %v6466, %v6470
      %v6473 = vshrl.u32 %v6277, 16
      %v6475 = vrot.slane %v6473, 4
      %v6476 = vshll.u32 %v6277, 16
      %v6478 = vrot.slane %v6476, 5
      %v6479 = vor.u32 %v6475, %v6478
      %v6480 = vrot.slane %v6479, 4
      %v6482 = vshll.u32 %v6278, 16
      %v6484 = vrot.slane %v6482, 5
      %v6485 = vsel %vm1154, %v6480, %v6484
      %v6486 = vshrl.u32 %v6278, 16
      %v6488 = vrot.slane %v6486, 4
      %v6489 = vor.u32 %v6488, %v6484
      %v6490 = vrot.slane %v6489, 4
      %v6492 = vshll.u32 %v6279, 16
      %v6494 = vrot.slane %v6492, 5
      %v6495 = vsel %vm1154, %v6490, %v6494
      %v6497 = vshrl.u32 %v6280, 16
      %v6499 = vrot.slane %v6497, 4
      %v6500 = vshll.u32 %v6280, 16
      %v6502 = vrot.slane %v6500, 5
      %v6503 = vor.u32 %v6499, %v6502
      %v6504 = vrot.slane %v6503, 4
      %v6506 = vshll.u32 %v6281, 16
      %v6508 = vrot.slane %v6506, 5
      %v6509 = vsel %vm1154, %v6504, %v6508
      %v6510 = vshrl.u32 %v6281, 16
      %v6512 = vrot.slane %v6510, 4
      %v6513 = vor.u32 %v6512, %v6508
      %v6514 = vrot.slane %v6513, 4
      %v6516 = vshll.u32 %v6282, 16
      %v6518 = vrot.slane %v6516, 5
      %v6519 = vsel %vm1154, %v6514, %v6518
      %v6521 = vshrl.u32 %v6283, 16
      %v6523 = vrot.slane %v6521, 4
      %v6524 = vshll.u32 %v6283, 16
      %v6526 = vrot.slane %v6524, 5
      %v6527 = vor.u32 %v6523, %v6526
      %v6528 = vrot.slane %v6527, 4
      %v6530 = vshll.u32 %v6284, 16
      %v6532 = vrot.slane %v6530, 5
      %v6533 = vsel %vm1154, %v6528, %v6532
      %v6534 = vshrl.u32 %v6284, 16
      %v6536 = vrot.slane %v6534, 4
      %v6537 = vor.u32 %v6536, %v6532
      %v6538 = vrot.slane %v6537, 4
      %v6540 = vshll.u32 %v6285, 16
      %v6542 = vrot.slane %v6540, 5
      %v6543 = vsel %vm1154, %v6538, %v6542
      %v6545 = vshrl.u32 %v6286, 16
      %v6547 = vrot.slane %v6545, 4
      %v6548 = vshll.u32 %v6286, 16
      %v6550 = vrot.slane %v6548, 5
      %v6551 = vor.u32 %v6547, %v6550
      %v6552 = vrot.slane %v6551, 4
      %v6554 = vshll.u32 %v6287, 16
      %v6556 = vrot.slane %v6554, 5
      %v6557 = vsel %vm1154, %v6552, %v6556
      %v6558 = vshrl.u32 %v6287, 16
      %v6560 = vrot.slane %v6558, 4
      %v6561 = vor.u32 %v6560, %v6556
      %v6562 = vrot.slane %v6561, 4
      %v6564 = vshll.u32 %v6288, 16
      %v6566 = vrot.slane %v6564, 5
      %v6567 = vsel %vm1154, %v6562, %v6566
      %v6569 = vshrl.u32 %v6289, 16
      %v6571 = vrot.slane %v6569, 4
      %v6572 = vshll.u32 %v6289, 16
      %v6574 = vrot.slane %v6572, 5
      %v6575 = vor.u32 %v6571, %v6574
      %v6576 = vrot.slane %v6575, 4
      %v6578 = vshll.u32 %v6290, 16
      %v6580 = vrot.slane %v6578, 5
      %v6581 = vsel %vm1154, %v6576, %v6580
      %v6582 = vshrl.u32 %v6290, 16
      %v6584 = vrot.slane %v6582, 4
      %v6585 = vor.u32 %v6584, %v6580
      %v6586 = vrot.slane %v6585, 4
      %v6588 = vshll.u32 %v6291, 16
      %v6590 = vrot.slane %v6588, 5
      %v6591 = vsel %vm1154, %v6586, %v6590
      %v6593 = vshrl.u32 %v6292, 16
      %v6595 = vrot.slane %v6593, 4
      %v6596 = vshll.u32 %v6292, 16
      %v6598 = vrot.slane %v6596, 5
      %v6599 = vor.u32 %v6595, %v6598
      %v6600 = vrot.slane %v6599, 4
      %v6602 = vshll.u32 %v6293, 16
      %v6604 = vrot.slane %v6602, 5
      %v6605 = vsel %vm1154, %v6600, %v6604
      %v6606 = vshrl.u32 %v6293, 16
      %v6608 = vrot.slane %v6606, 4
      %v6609 = vor.u32 %v6608, %v6604
      %v6610 = vrot.slane %v6609, 4
      %v6612 = vshll.u32 %v6294, 16
      %v6614 = vrot.slane %v6612, 5
      %v6615 = vsel %vm1154, %v6610, %v6614
      %v6617 = vshrl.u32 %v6295, 16
      %v6619 = vrot.slane %v6617, 4
      %v6620 = vshll.u32 %v6295, 16
      %v6622 = vrot.slane %v6620, 5
      %v6623 = vor.u32 %v6619, %v6622
      %v6624 = vrot.slane %v6623, 4
      %v6626 = vshll.u32 %v6296, 16
      %v6628 = vrot.slane %v6626, 5
      %v6629 = vsel %vm1154, %v6624, %v6628
      %v6630 = vshrl.u32 %v6296, 16
      %v6632 = vrot.slane %v6630, 4
      %v6633 = vor.u32 %v6632, %v6628
      %v6634 = vrot.slane %v6633, 4
      %v6636 = vshll.u32 %v6297, 16
      %v6638 = vrot.slane %v6636, 5
      %v6639 = vsel %vm1154, %v6634, %v6638
      %v6641 = vshrl.u32 %v6298, 16
      %v6643 = vrot.slane %v6641, 4
      %v6644 = vshll.u32 %v6298, 16
      %v6646 = vrot.slane %v6644, 5
      %v6647 = vor.u32 %v6643, %v6646
      %v6648 = vrot.slane %v6647, 4
      %v6650 = vshll.u32 %v6299, 16
      %v6652 = vrot.slane %v6650, 5
      %v6653 = vsel %vm1154, %v6648, %v6652
      %v6654 = vshrl.u32 %v6299, 16
      %v6656 = vrot.slane %v6654, 4
      %v6657 = vor.u32 %v6656, %v6652
      %v6658 = vrot.slane %v6657, 4
      %v6660 = vshll.u32 %v6300, 16
      %v6662 = vrot.slane %v6660, 5
      %v6663 = vsel %vm1154, %v6658, %v6662
      %v6665 = vshrl.u32 %v6301, 16
      %v6667 = vrot.slane %v6665, 4
      %v6668 = vshll.u32 %v6301, 16
      %v6670 = vrot.slane %v6668, 5
      %v6671 = vor.u32 %v6667, %v6670
      %v6672 = vrot.slane %v6671, 4
      %v6674 = vshll.u32 %v6302, 16
      %v6676 = vrot.slane %v6674, 5
      %v6677 = vsel %vm1154, %v6672, %v6676
      %v6678 = vshrl.u32 %v6302, 16
      %v6680 = vrot.slane %v6678, 4
      %v6681 = vor.u32 %v6680, %v6676
      %v6682 = vrot.slane %v6681, 4
      %v6684 = vshll.u32 %v6303, 16
      %v6686 = vrot.slane %v6684, 5
      %v6687 = vsel %vm1154, %v6682, %v6686
      %6688 = vrot.lane.b32.xlu0 %v6317, 32
      %v6689 = vpop.permute.xlu0 %6688
      %6690 = vrot.lane.b32.xlu0 %v6327, 32
      %v6691 = vpop.permute.xlu0 %6690
      %6692 = vrot.lane.b32.xlu0 %v6341, 32
      %v6693 = vpop.permute.xlu0 %6692
      %6694 = vrot.lane.b32.xlu0 %v6351, 32
      %v6695 = vpop.permute.xlu0 %6694
      %6696 = vrot.lane.b32.xlu0 %v6365, 32
      %v6697 = vpop.permute.xlu0 %6696
      %6698 = vrot.lane.b32.xlu0 %v6375, 32
      %v6699 = vpop.permute.xlu0 %6698
      %6700 = vrot.lane.b32.xlu0 %v6389, 32
      %v6701 = vpop.permute.xlu0 %6700
      %6702 = vrot.lane.b32.xlu0 %v6399, 32
      %v6703 = vpop.permute.xlu0 %6702
      %6704 = vrot.lane.b32.xlu0 %v6413, 32
      %v6705 = vpop.permute.xlu0 %6704
      %6706 = vrot.lane.b32.xlu0 %v6423, 32
      %v6707 = vpop.permute.xlu0 %6706
      %6708 = vrot.lane.b32.xlu0 %v6437, 32
      %v6709 = vpop.permute.xlu0 %6708
      %6710 = vrot.lane.b32.xlu0 %v6447, 32
      %v6711 = vpop.permute.xlu0 %6710
      %6712 = vrot.lane.b32.xlu0 %v6461, 32
      %v6713 = vpop.permute.xlu0 %6712
      %6714 = vrot.lane.b32.xlu0 %v6471, 32
      %v6715 = vpop.permute.xlu0 %6714
      %6716 = vrot.lane.b32.xlu0 %v6485, 32
      %v6717 = vpop.permute.xlu0 %6716
      %6718 = vrot.lane.b32.xlu0 %v6495, 32
      %v6719 = vpop.permute.xlu0 %6718
      %6720 = vrot.lane.b32.xlu0 %v6509, 32
      %v6721 = vpop.permute.xlu0 %6720
      %6722 = vrot.lane.b32.xlu0 %v6519, 32
      %v6723 = vpop.permute.xlu0 %6722
      %6724 = vrot.lane.b32.xlu0 %v6533, 32
      %v6725 = vpop.permute.xlu0 %6724
      %6726 = vrot.lane.b32.xlu0 %v6543, 32
      %v6727 = vpop.permute.xlu0 %6726
      %6728 = vrot.lane.b32.xlu0 %v6557, 32
      %v6729 = vpop.permute.xlu0 %6728
      %6730 = vrot.lane.b32.xlu0 %v6567, 32
      %v6731 = vpop.permute.xlu0 %6730
      %6732 = vrot.lane.b32.xlu0 %v6581, 32
      %v6733 = vpop.permute.xlu0 %6732
      %6734 = vrot.lane.b32.xlu0 %v6591, 32
      %v6735 = vpop.permute.xlu0 %6734
      %6736 = vrot.lane.b32.xlu0 %v6605, 32
      %v6737 = vpop.permute.xlu0 %6736
      %6738 = vrot.lane.b32.xlu0 %v6615, 32
      %v6739 = vpop.permute.xlu0 %6738
      %6740 = vrot.lane.b32.xlu0 %v6629, 32
      %v6741 = vpop.permute.xlu0 %6740
      %6742 = vrot.lane.b32.xlu0 %v6639, 32
      %v6743 = vpop.permute.xlu0 %6742
      %6744 = vrot.lane.b32.xlu0 %v6653, 32
      %v6745 = vpop.permute.xlu0 %6744
      %6746 = vrot.lane.b32.xlu0 %v6663, 32
      %v6747 = vpop.permute.xlu0 %6746
      %6748 = vrot.lane.b32.xlu0 %v6677, 32
      %v6749 = vpop.permute.xlu0 %6748
      %6750 = vrot.lane.b32.xlu0 %v6687, 32
      %v6751 = vpop.permute.xlu0 %6750
      %6784 = vst.msk [vmem:[#allocation3] sm:$0xf] %vm2729, %v6689
      %6785 = vst.msk [vmem:[#allocation3 + $0x4] sm:$0xf] %vm2729, %v6691
      %6786 = vst.msk [vmem:[#allocation3 + $0x8] sm:$0xf] %vm2729, %v6693
      %6787 = vst.msk [vmem:[#allocation3 + $0xc] sm:$0xf] %vm2729, %v6695
      %6788 = vst.msk [vmem:[#allocation3 + $0x10] sm:$0xf] %vm2729, %v6697
      %6789 = vst.msk [vmem:[#allocation3 + $0x14] sm:$0xf] %vm2729, %v6699
      %6790 = vst.msk [vmem:[#allocation3 + $0x18] sm:$0xf] %vm2729, %v6701
      %6791 = vst.msk [vmem:[#allocation3 + $0x1c] sm:$0xf] %vm2729, %v6703
      %6792 = vst.msk [vmem:[#allocation3 + $0x20] sm:$0xf] %vm2729, %v6705
      %6793 = vst.msk [vmem:[#allocation3 + $0x24] sm:$0xf] %vm2729, %v6707
      %6794 = vst.msk [vmem:[#allocation3 + $0x28] sm:$0xf] %vm2729, %v6709
      %6795 = vst.msk [vmem:[#allocation3 + $0x2c] sm:$0xf] %vm2729, %v6711
      %6796 = vst.msk [vmem:[#allocation3 + $0x30] sm:$0xf] %vm2729, %v6713
      %6797 = vst.msk [vmem:[#allocation3 + $0x34] sm:$0xf] %vm2729, %v6715
      %6798 = vst.msk [vmem:[#allocation3 + $0x38] sm:$0xf] %vm2729, %v6717
      %6799 = vst.msk [vmem:[#allocation3 + $0x3c] sm:$0xf] %vm2729, %v6719
      %6800 = vst.msk [vmem:[#allocation3 + $0x40] sm:$0xf] %vm2729, %v6721
      %6801 = vst.msk [vmem:[#allocation3 + $0x44] sm:$0xf] %vm2729, %v6723
      %6802 = vst.msk [vmem:[#allocation3 + $0x48] sm:$0xf] %vm2729, %v6725
      %6803 = vst.msk [vmem:[#allocation3 + $0x4c] sm:$0xf] %vm2729, %v6727
      %6804 = vst.msk [vmem:[#allocation3 + $0x50] sm:$0xf] %vm2729, %v6729
      %6805 = vst.msk [vmem:[#allocation3 + $0x54] sm:$0xf] %vm2729, %v6731
      %6806 = vst.msk [vmem:[#allocation3 + $0x58] sm:$0xf] %vm2729, %v6733
      %6807 = vst.msk [vmem:[#allocation3 + $0x5c] sm:$0xf] %vm2729, %v6735
      %6808 = vst.msk [vmem:[#allocation3 + $0x60] sm:$0xf] %vm2729, %v6737
      %6809 = vst.msk [vmem:[#allocation3 + $0x64] sm:$0xf] %vm2729, %v6739
      %6810 = vst.msk [vmem:[#allocation3 + $0x68] sm:$0xf] %vm2729, %v6741
      %6811 = vst.msk [vmem:[#allocation3 + $0x6c] sm:$0xf] %vm2729, %v6743
      %6812 = vst.msk [vmem:[#allocation3 + $0x70] sm:$0xf] %vm2729, %v6745
      %6813 = vst.msk [vmem:[#allocation3 + $0x74] sm:$0xf] %vm2729, %v6747
      %6814 = vst.msk [vmem:[#allocation3 + $0x78] sm:$0xf] %vm2729, %v6749
      %6815 = vst.msk [vmem:[#allocation3 + $0x7c] sm:$0xf] %vm2729, %v6751
      %v6816 = vld [vmem:[%s925] sm:$0xe]
      %v6817 = vld [vmem:[%s925 + $0x4] sm:$0xf]
      %v6818 = vld [vmem:[%s925 + $0x8] sm:$0x1]
      %v6819 = vld [vmem:[%s925 + $0xc] sm:$0xe]
      %v6820 = vld [vmem:[%s925 + $0x10] sm:$0xf]
      %v6821 = vld [vmem:[%s925 + $0x14] sm:$0x1]
      %v6822 = vld [vmem:[%s925 + $0x18] sm:$0xe]
      %v6823 = vld [vmem:[%s925 + $0x1c] sm:$0xf]
      %v6824 = vld [vmem:[%s925 + $0x20] sm:$0x1]
      %v6825 = vld [vmem:[%s925 + $0x24] sm:$0xe]
      %v6826 = vld [vmem:[%s925 + $0x28] sm:$0xf]
      %v6827 = vld [vmem:[%s925 + $0x2c] sm:$0x1]
      %v6828 = vld [vmem:[%s925 + $0x30] sm:$0xe]
      %v6829 = vld [vmem:[%s925 + $0x34] sm:$0xf]
      %v6830 = vld [vmem:[%s925 + $0x38] sm:$0x1]
      %v6831 = vld [vmem:[%s925 + $0x3c] sm:$0xe]
      %v6832 = vld [vmem:[%s925 + $0x40] sm:$0xf]
      %v6833 = vld [vmem:[%s925 + $0x44] sm:$0x1]
      %v6834 = vld [vmem:[%s925 + $0x48] sm:$0xe]
      %v6835 = vld [vmem:[%s925 + $0x4c] sm:$0xf]
      %v6836 = vld [vmem:[%s925 + $0x50] sm:$0x1]
      %v6837 = vld [vmem:[%s925 + $0x54] sm:$0xe]
      %v6838 = vld [vmem:[%s925 + $0x58] sm:$0xf]
      %v6839 = vld [vmem:[%s925 + $0x5c] sm:$0x1]
      %v6840 = vld [vmem:[%s925 + $0x60] sm:$0xe]
      %v6841 = vld [vmem:[%s925 + $0x64] sm:$0xf]
      %v6842 = vld [vmem:[%s925 + $0x68] sm:$0x1]
      %v6843 = vld [vmem:[%s925 + $0x6c] sm:$0xe]
      %v6844 = vld [vmem:[%s925 + $0x70] sm:$0xf]
      %v6845 = vld [vmem:[%s925 + $0x74] sm:$0x1]
      %v6846 = vld [vmem:[%s925 + $0x78] sm:$0xe]
      %v6847 = vld [vmem:[%s925 + $0x7c] sm:$0xf]
      %v6848 = vld [vmem:[%s925 + $0x80] sm:$0x1]
      %v6849 = vld [vmem:[%s925 + $0x84] sm:$0xe]
      %v6850 = vld [vmem:[%s925 + $0x88] sm:$0xf]
      %v6851 = vld [vmem:[%s925 + $0x8c] sm:$0x1]
      %v6852 = vld [vmem:[%s925 + $0x90] sm:$0xe]
      %v6853 = vld [vmem:[%s925 + $0x94] sm:$0xf]
      %v6854 = vld [vmem:[%s925 + $0x98] sm:$0x1]
      %v6855 = vld [vmem:[%s925 + $0x9c] sm:$0xe]
      %v6856 = vld [vmem:[%s925 + $0xa0] sm:$0xf]
      %v6857 = vld [vmem:[%s925 + $0xa4] sm:$0x1]
      %v6858 = vld [vmem:[%s925 + $0xa8] sm:$0xe]
      %v6859 = vld [vmem:[%s925 + $0xac] sm:$0xf]
      %v6860 = vld [vmem:[%s925 + $0xb0] sm:$0x1]
      %v6861 = vld [vmem:[%s925 + $0xb4] sm:$0xe]
      %v6862 = vld [vmem:[%s925 + $0xb8] sm:$0xf]
      %v6863 = vld [vmem:[%s925 + $0xbc] sm:$0x1]
      %v6912 = vrot.slane %v6816, 5
      %v6913 = vrot.slane %v6912, 4
      %v6914 = vrot.slane %v6817, 5
      %v6915 = vsel %vm1766, %v6913, %v6914
      %v6916 = vrot.slane %v6914, 4
      %v6917 = vrot.slane %v6818, 5
      %v6918 = vsel %vm1766, %v6916, %v6917
      %v6919 = vrot.slane %v6819, 5
      %v6920 = vrot.slane %v6919, 4
      %v6921 = vrot.slane %v6820, 5
      %v6922 = vsel %vm1766, %v6920, %v6921
      %v6923 = vrot.slane %v6921, 4
      %v6924 = vrot.slane %v6821, 5
      %v6925 = vsel %vm1766, %v6923, %v6924
      %v6926 = vrot.slane %v6822, 5
      %v6927 = vrot.slane %v6926, 4
      %v6928 = vrot.slane %v6823, 5
      %v6929 = vsel %vm1766, %v6927, %v6928
      %v6930 = vrot.slane %v6928, 4
      %v6931 = vrot.slane %v6824, 5
      %v6932 = vsel %vm1766, %v6930, %v6931
      %v6933 = vrot.slane %v6825, 5
      %v6934 = vrot.slane %v6933, 4
      %v6935 = vrot.slane %v6826, 5
      %v6936 = vsel %vm1766, %v6934, %v6935
      %v6937 = vrot.slane %v6935, 4
      %v6938 = vrot.slane %v6827, 5
      %v6939 = vsel %vm1766, %v6937, %v6938
      %v6940 = vrot.slane %v6828, 5
      %v6941 = vrot.slane %v6940, 4
      %v6942 = vrot.slane %v6829, 5
      %v6943 = vsel %vm1766, %v6941, %v6942
      %v6944 = vrot.slane %v6942, 4
      %v6945 = vrot.slane %v6830, 5
      %v6946 = vsel %vm1766, %v6944, %v6945
      %v6947 = vrot.slane %v6831, 5
      %v6948 = vrot.slane %v6947, 4
      %v6949 = vrot.slane %v6832, 5
      %v6950 = vsel %vm1766, %v6948, %v6949
      %v6951 = vrot.slane %v6949, 4
      %v6952 = vrot.slane %v6833, 5
      %v6953 = vsel %vm1766, %v6951, %v6952
      %v6954 = vrot.slane %v6834, 5
      %v6955 = vrot.slane %v6954, 4
      %v6956 = vrot.slane %v6835, 5
      %v6957 = vsel %vm1766, %v6955, %v6956
      %v6958 = vrot.slane %v6956, 4
      %v6959 = vrot.slane %v6836, 5
      %v6960 = vsel %vm1766, %v6958, %v6959
      %v6961 = vrot.slane %v6837, 5
      %v6962 = vrot.slane %v6961, 4
      %v6963 = vrot.slane %v6838, 5
      %v6964 = vsel %vm1766, %v6962, %v6963
      %v6965 = vrot.slane %v6963, 4
      %v6966 = vrot.slane %v6839, 5
      %v6967 = vsel %vm1766, %v6965, %v6966
      %v6968 = vrot.slane %v6840, 5
      %v6969 = vrot.slane %v6968, 4
      %v6970 = vrot.slane %v6841, 5
      %v6971 = vsel %vm1766, %v6969, %v6970
      %v6972 = vrot.slane %v6970, 4
      %v6973 = vrot.slane %v6842, 5
      %v6974 = vsel %vm1766, %v6972, %v6973
      %v6975 = vrot.slane %v6843, 5
      %v6976 = vrot.slane %v6975, 4
      %v6977 = vrot.slane %v6844, 5
      %v6978 = vsel %vm1766, %v6976, %v6977
      %v6979 = vrot.slane %v6977, 4
      %v6980 = vrot.slane %v6845, 5
      %v6981 = vsel %vm1766, %v6979, %v6980
      %v6982 = vrot.slane %v6846, 5
      %v6983 = vrot.slane %v6982, 4
      %v6984 = vrot.slane %v6847, 5
      %v6985 = vsel %vm1766, %v6983, %v6984
      %v6986 = vrot.slane %v6984, 4
      %v6987 = vrot.slane %v6848, 5
      %v6988 = vsel %vm1766, %v6986, %v6987
      %v6989 = vrot.slane %v6849, 5
      %v6990 = vrot.slane %v6989, 4
      %v6991 = vrot.slane %v6850, 5
      %v6992 = vsel %vm1766, %v6990, %v6991
      %v6993 = vrot.slane %v6991, 4
      %v6994 = vrot.slane %v6851, 5
      %v6995 = vsel %vm1766, %v6993, %v6994
      %v6996 = vrot.slane %v6852, 5
      %v6997 = vrot.slane %v6996, 4
      %v6998 = vrot.slane %v6853, 5
      %v6999 = vsel %vm1766, %v6997, %v6998
      %v7000 = vrot.slane %v6998, 4
      %v7001 = vrot.slane %v6854, 5
      %v7002 = vsel %vm1766, %v7000, %v7001
      %v7003 = vrot.slane %v6855, 5
      %v7004 = vrot.slane %v7003, 4
      %v7005 = vrot.slane %v6856, 5
      %v7006 = vsel %vm1766, %v7004, %v7005
      %v7007 = vrot.slane %v7005, 4
      %v7008 = vrot.slane %v6857, 5
      %v7009 = vsel %vm1766, %v7007, %v7008
      %v7010 = vrot.slane %v6858, 5
      %v7011 = vrot.slane %v7010, 4
      %v7012 = vrot.slane %v6859, 5
      %v7013 = vsel %vm1766, %v7011, %v7012
      %v7014 = vrot.slane %v7012, 4
      %v7015 = vrot.slane %v6860, 5
      %v7016 = vsel %vm1766, %v7014, %v7015
      %v7017 = vrot.slane %v6861, 5
      %v7018 = vrot.slane %v7017, 4
      %v7019 = vrot.slane %v6862, 5
      %v7020 = vsel %vm1766, %v7018, %v7019
      %v7021 = vrot.slane %v7019, 4
      %v7022 = vrot.slane %v6863, 5
      %v7023 = vsel %vm1766, %v7021, %v7022
      %7024 = vrot.lane.b32.xlu0 %v6915, 40
      %v7025 = vpop.permute.xlu0 %7024
      %7026 = vrot.lane.b32.xlu0 %v6918, 40
      %v7027 = vpop.permute.xlu0 %7026
      %7028 = vrot.lane.b32.xlu0 %v6922, 40
      %v7029 = vpop.permute.xlu0 %7028
      %7030 = vrot.lane.b32.xlu0 %v6925, 40
      %v7031 = vpop.permute.xlu0 %7030
      %7032 = vrot.lane.b32.xlu0 %v6929, 40
      %v7033 = vpop.permute.xlu0 %7032
      %7034 = vrot.lane.b32.xlu0 %v6932, 40
      %v7035 = vpop.permute.xlu0 %7034
      %7036 = vrot.lane.b32.xlu0 %v6936, 40
      %v7037 = vpop.permute.xlu0 %7036
      %7038 = vrot.lane.b32.xlu0 %v6939, 40
      %v7039 = vpop.permute.xlu0 %7038
      %7040 = vrot.lane.b32.xlu0 %v6943, 40
      %v7041 = vpop.permute.xlu0 %7040
      %7042 = vrot.lane.b32.xlu0 %v6946, 40
      %v7043 = vpop.permute.xlu0 %7042
      %7044 = vrot.lane.b32.xlu0 %v6950, 40
      %v7045 = vpop.permute.xlu0 %7044
      %7046 = vrot.lane.b32.xlu0 %v6953, 40
      %v7047 = vpop.permute.xlu0 %7046
      %7048 = vrot.lane.b32.xlu0 %v6957, 40
      %v7049 = vpop.permute.xlu0 %7048
      %7050 = vrot.lane.b32.xlu0 %v6960, 40
      %v7051 = vpop.permute.xlu0 %7050
      %7052 = vrot.lane.b32.xlu0 %v6964, 40
      %v7053 = vpop.permute.xlu0 %7052
      %7054 = vrot.lane.b32.xlu0 %v6967, 40
      %v7055 = vpop.permute.xlu0 %7054
      %7056 = vrot.lane.b32.xlu0 %v6971, 40
      %v7057 = vpop.permute.xlu0 %7056
      %7058 = vrot.lane.b32.xlu0 %v6974, 40
      %v7059 = vpop.permute.xlu0 %7058
      %7060 = vrot.lane.b32.xlu0 %v6978, 40
      %v7061 = vpop.permute.xlu0 %7060
      %7062 = vrot.lane.b32.xlu0 %v6981, 40
      %v7063 = vpop.permute.xlu0 %7062
      %7064 = vrot.lane.b32.xlu0 %v6985, 40
      %v7065 = vpop.permute.xlu0 %7064
      %7066 = vrot.lane.b32.xlu0 %v6988, 40
      %v7067 = vpop.permute.xlu0 %7066
      %7068 = vrot.lane.b32.xlu0 %v6992, 40
      %v7069 = vpop.permute.xlu0 %7068
      %7070 = vrot.lane.b32.xlu0 %v6995, 40
      %v7071 = vpop.permute.xlu0 %7070
      %7072 = vrot.lane.b32.xlu0 %v6999, 40
      %v7073 = vpop.permute.xlu0 %7072
      %7074 = vrot.lane.b32.xlu0 %v7002, 40
      %v7075 = vpop.permute.xlu0 %7074
      %7076 = vrot.lane.b32.xlu0 %v7006, 40
      %v7077 = vpop.permute.xlu0 %7076
      %7078 = vrot.lane.b32.xlu0 %v7009, 40
      %v7079 = vpop.permute.xlu0 %7078
      %7080 = vrot.lane.b32.xlu0 %v7013, 40
      %v7081 = vpop.permute.xlu0 %7080
      %7082 = vrot.lane.b32.xlu0 %v7016, 40
      %v7083 = vpop.permute.xlu0 %7082
      %7084 = vrot.lane.b32.xlu0 %v7020, 40
      %v7085 = vpop.permute.xlu0 %7084
      %7086 = vrot.lane.b32.xlu0 %v7023, 40
      %v7087 = vpop.permute.xlu0 %7086
      %7120 = vst.msk [vmem:[#allocation3] sm:$0xf] %vm3066, %v7025
      %7121 = vst.msk [vmem:[#allocation3 + $0x4] sm:$0xf] %vm3066, %v7027
      %7122 = vst.msk [vmem:[#allocation3 + $0x8] sm:$0xf] %vm3066, %v7029
      %7123 = vst.msk [vmem:[#allocation3 + $0xc] sm:$0xf] %vm3066, %v7031
      %7124 = vst.msk [vmem:[#allocation3 + $0x10] sm:$0xf] %vm3066, %v7033
      %7125 = vst.msk [vmem:[#allocation3 + $0x14] sm:$0xf] %vm3066, %v7035
      %7126 = vst.msk [vmem:[#allocation3 + $0x18] sm:$0xf] %vm3066, %v7037
      %7127 = vst.msk [vmem:[#allocation3 + $0x1c] sm:$0xf] %vm3066, %v7039
      %7128 = vst.msk [vmem:[#allocation3 + $0x20] sm:$0xf] %vm3066, %v7041
      %7129 = vst.msk [vmem:[#allocation3 + $0x24] sm:$0xf] %vm3066, %v7043
      %7130 = vst.msk [vmem:[#allocation3 + $0x28] sm:$0xf] %vm3066, %v7045
      %7131 = vst.msk [vmem:[#allocation3 + $0x2c] sm:$0xf] %vm3066, %v7047
      %7132 = vst.msk [vmem:[#allocation3 + $0x30] sm:$0xf] %vm3066, %v7049
      %7133 = vst.msk [vmem:[#allocation3 + $0x34] sm:$0xf] %vm3066, %v7051
      %7134 = vst.msk [vmem:[#allocation3 + $0x38] sm:$0xf] %vm3066, %v7053
      %7135 = vst.msk [vmem:[#allocation3 + $0x3c] sm:$0xf] %vm3066, %v7055
      %7136 = vst.msk [vmem:[#allocation3 + $0x40] sm:$0xf] %vm3066, %v7057
      %7137 = vst.msk [vmem:[#allocation3 + $0x44] sm:$0xf] %vm3066, %v7059
      %7138 = vst.msk [vmem:[#allocation3 + $0x48] sm:$0xf] %vm3066, %v7061
      %7139 = vst.msk [vmem:[#allocation3 + $0x4c] sm:$0xf] %vm3066, %v7063
      %7140 = vst.msk [vmem:[#allocation3 + $0x50] sm:$0xf] %vm3066, %v7065
      %7141 = vst.msk [vmem:[#allocation3 + $0x54] sm:$0xf] %vm3066, %v7067
      %7142 = vst.msk [vmem:[#allocation3 + $0x58] sm:$0xf] %vm3066, %v7069
      %7143 = vst.msk [vmem:[#allocation3 + $0x5c] sm:$0xf] %vm3066, %v7071
      %7144 = vst.msk [vmem:[#allocation3 + $0x60] sm:$0xf] %vm3066, %v7073
      %7145 = vst.msk [vmem:[#allocation3 + $0x64] sm:$0xf] %vm3066, %v7075
      %7146 = vst.msk [vmem:[#allocation3 + $0x68] sm:$0xf] %vm3066, %v7077
      %7147 = vst.msk [vmem:[#allocation3 + $0x6c] sm:$0xf] %vm3066, %v7079
      %7148 = vst.msk [vmem:[#allocation3 + $0x70] sm:$0xf] %vm3066, %v7081
      %7149 = vst.msk [vmem:[#allocation3 + $0x74] sm:$0xf] %vm3066, %v7083
      %7150 = vst.msk [vmem:[#allocation3 + $0x78] sm:$0xf] %vm3066, %v7085
      %7151 = vst.msk [vmem:[#allocation3 + $0x7c] sm:$0xf] %vm3066, %v7087
      %v7152 = vld [vmem:[%s3099] sm:$0xf]
      %v7153 = vld [vmem:[%s3099 + $0x4] sm:$0xf]
      %v7154 = vld [vmem:[%s3099 + $0xc] sm:$0xf]
      %v7155 = vld [vmem:[%s3099 + $0x10] sm:$0xf]
      %v7156 = vld [vmem:[%s3099 + $0x18] sm:$0xf]
      %v7157 = vld [vmem:[%s3099 + $0x1c] sm:$0xf]
      %v7158 = vld [vmem:[%s3099 + $0x24] sm:$0xf]
      %v7159 = vld [vmem:[%s3099 + $0x28] sm:$0xf]
      %v7160 = vld [vmem:[%s3099 + $0x30] sm:$0xf]
      %v7161 = vld [vmem:[%s3099 + $0x34] sm:$0xf]
      %v7162 = vld [vmem:[%s3099 + $0x3c] sm:$0xf]
      %v7163 = vld [vmem:[%s3099 + $0x40] sm:$0xf]
      %v7164 = vld [vmem:[%s3099 + $0x48] sm:$0xf]
      %v7165 = vld [vmem:[%s3099 + $0x4c] sm:$0xf]
      %v7166 = vld [vmem:[%s3099 + $0x54] sm:$0xf]
      %v7167 = vld [vmem:[%s3099 + $0x58] sm:$0xf]
      %v7168 = vld [vmem:[%s3099 + $0x60] sm:$0xf]
      %v7169 = vld [vmem:[%s3099 + $0x64] sm:$0xf]
      %v7170 = vld [vmem:[%s3099 + $0x6c] sm:$0xf]
      %v7171 = vld [vmem:[%s3099 + $0x70] sm:$0xf]
      %v7172 = vld [vmem:[%s3099 + $0x78] sm:$0xf]
      %v7173 = vld [vmem:[%s3099 + $0x7c] sm:$0xf]
      %v7174 = vld [vmem:[%s3099 + $0x84] sm:$0xf]
      %v7175 = vld [vmem:[%s3099 + $0x88] sm:$0xf]
      %v7176 = vld [vmem:[%s3099 + $0x90] sm:$0xf]
      %v7177 = vld [vmem:[%s3099 + $0x94] sm:$0xf]
      %v7178 = vld [vmem:[%s3099 + $0x9c] sm:$0xf]
      %v7179 = vld [vmem:[%s3099 + $0xa0] sm:$0xf]
      %v7180 = vld [vmem:[%s3099 + $0xa8] sm:$0xf]
      %v7181 = vld [vmem:[%s3099 + $0xac] sm:$0xf]
      %v7182 = vld [vmem:[%s3099 + $0xb4] sm:$0xf]
      %v7183 = vld [vmem:[%s3099 + $0xb8] sm:$0xf]
      %7216 = vrot.lane.b32.xlu0 %v7152, 48
      %v7217 = vpop.permute.xlu0 %7216
      %7218 = vrot.lane.b32.xlu0 %v7153, 48
      %v7219 = vpop.permute.xlu0 %7218
      %7220 = vrot.lane.b32.xlu0 %v7154, 48
      %v7221 = vpop.permute.xlu0 %7220
      %7222 = vrot.lane.b32.xlu0 %v7155, 48
      %v7223 = vpop.permute.xlu0 %7222
      %7224 = vrot.lane.b32.xlu0 %v7156, 48
      %v7225 = vpop.permute.xlu0 %7224
      %7226 = vrot.lane.b32.xlu0 %v7157, 48
      %v7227 = vpop.permute.xlu0 %7226
      %7228 = vrot.lane.b32.xlu0 %v7158, 48
      %v7229 = vpop.permute.xlu0 %7228
      %7230 = vrot.lane.b32.xlu0 %v7159, 48
      %v7231 = vpop.permute.xlu0 %7230
      %7232 = vrot.lane.b32.xlu0 %v7160, 48
      %v7233 = vpop.permute.xlu0 %7232
      %7234 = vrot.lane.b32.xlu0 %v7161, 48
      %v7235 = vpop.permute.xlu0 %7234
      %7236 = vrot.lane.b32.xlu0 %v7162, 48
      %v7237 = vpop.permute.xlu0 %7236
      %7238 = vrot.lane.b32.xlu0 %v7163, 48
      %v7239 = vpop.permute.xlu0 %7238
      %7240 = vrot.lane.b32.xlu0 %v7164, 48
      %v7241 = vpop.permute.xlu0 %7240
      %7242 = vrot.lane.b32.xlu0 %v7165, 48
      %v7243 = vpop.permute.xlu0 %7242
      %7244 = vrot.lane.b32.xlu0 %v7166, 48
      %v7245 = vpop.permute.xlu0 %7244
      %7246 = vrot.lane.b32.xlu0 %v7167, 48
      %v7247 = vpop.permute.xlu0 %7246
      %7248 = vrot.lane.b32.xlu0 %v7168, 48
      %v7249 = vpop.permute.xlu0 %7248
      %7250 = vrot.lane.b32.xlu0 %v7169, 48
      %v7251 = vpop.permute.xlu0 %7250
      %7252 = vrot.lane.b32.xlu0 %v7170, 48
      %v7253 = vpop.permute.xlu0 %7252
      %7254 = vrot.lane.b32.xlu0 %v7171, 48
      %v7255 = vpop.permute.xlu0 %7254
      %7256 = vrot.lane.b32.xlu0 %v7172, 48
      %v7257 = vpop.permute.xlu0 %7256
      %7258 = vrot.lane.b32.xlu0 %v7173, 48
      %v7259 = vpop.permute.xlu0 %7258
      %7260 = vrot.lane.b32.xlu0 %v7174, 48
      %v7261 = vpop.permute.xlu0 %7260
      %7262 = vrot.lane.b32.xlu0 %v7175, 48
      %v7263 = vpop.permute.xlu0 %7262
      %7264 = vrot.lane.b32.xlu0 %v7176, 48
      %v7265 = vpop.permute.xlu0 %7264
      %7266 = vrot.lane.b32.xlu0 %v7177, 48
      %v7267 = vpop.permute.xlu0 %7266
      %7268 = vrot.lane.b32.xlu0 %v7178, 48
      %v7269 = vpop.permute.xlu0 %7268
      %7270 = vrot.lane.b32.xlu0 %v7179, 48
      %v7271 = vpop.permute.xlu0 %7270
      %7272 = vrot.lane.b32.xlu0 %v7180, 48
      %v7273 = vpop.permute.xlu0 %7272
      %7274 = vrot.lane.b32.xlu0 %v7181, 48
      %v7275 = vpop.permute.xlu0 %7274
      %7276 = vrot.lane.b32.xlu0 %v7182, 48
      %v7277 = vpop.permute.xlu0 %7276
      %7278 = vrot.lane.b32.xlu0 %v7183, 48
      %v7279 = vpop.permute.xlu0 %7278
      %7312 = vst.msk [vmem:[#allocation3] sm:$0xf] %vm3260, %v7217
      %7313 = vst.msk [vmem:[#allocation3 + $0x4] sm:$0xf] %vm3260, %v7219
      %7314 = vst.msk [vmem:[#allocation3 + $0x8] sm:$0xf] %vm3260, %v7221
      %7315 = vst.msk [vmem:[#allocation3 + $0xc] sm:$0xf] %vm3260, %v7223
      %7316 = vst.msk [vmem:[#allocation3 + $0x10] sm:$0xf] %vm3260, %v7225
      %7317 = vst.msk [vmem:[#allocation3 + $0x14] sm:$0xf] %vm3260, %v7227
      %7318 = vst.msk [vmem:[#allocation3 + $0x18] sm:$0xf] %vm3260, %v7229
      %7319 = vst.msk [vmem:[#allocation3 + $0x1c] sm:$0xf] %vm3260, %v7231
      %7320 = vst.msk [vmem:[#allocation3 + $0x20] sm:$0xf] %vm3260, %v7233
      %7321 = vst.msk [vmem:[#allocation3 + $0x24] sm:$0xf] %vm3260, %v7235
      %7322 = vst.msk [vmem:[#allocation3 + $0x28] sm:$0xf] %vm3260, %v7237
      %7323 = vst.msk [vmem:[#allocation3 + $0x2c] sm:$0xf] %vm3260, %v7239
      %7324 = vst.msk [vmem:[#allocation3 + $0x30] sm:$0xf] %vm3260, %v7241
      %7325 = vst.msk [vmem:[#allocation3 + $0x34] sm:$0xf] %vm3260, %v7243
      %7326 = vst.msk [vmem:[#allocation3 + $0x38] sm:$0xf] %vm3260, %v7245
      %7327 = vst.msk [vmem:[#allocation3 + $0x3c] sm:$0xf] %vm3260, %v7247
      %7328 = vst.msk [vmem:[#allocation3 + $0x40] sm:$0xf] %vm3260, %v7249
      %7329 = vst.msk [vmem:[#allocation3 + $0x44] sm:$0xf] %vm3260, %v7251
      %7330 = vst.msk [vmem:[#allocation3 + $0x48] sm:$0xf] %vm3260, %v7253
      %7331 = vst.msk [vmem:[#allocation3 + $0x4c] sm:$0xf] %vm3260, %v7255
      %7332 = vst.msk [vmem:[#allocation3 + $0x50] sm:$0xf] %vm3260, %v7257
      %7333 = vst.msk [vmem:[#allocation3 + $0x54] sm:$0xf] %vm3260, %v7259
      %7334 = vst.msk [vmem:[#allocation3 + $0x58] sm:$0xf] %vm3260, %v7261
      %7335 = vst.msk [vmem:[#allocation3 + $0x5c] sm:$0xf] %vm3260, %v7263
      %7336 = vst.msk [vmem:[#allocation3 + $0x60] sm:$0xf] %vm3260, %v7265
      %7337 = vst.msk [vmem:[#allocation3 + $0x64] sm:$0xf] %vm3260, %v7267
      %7338 = vst.msk [vmem:[#allocation3 + $0x68] sm:$0xf] %vm3260, %v7269
      %7339 = vst.msk [vmem:[#allocation3 + $0x6c] sm:$0xf] %vm3260, %v7271
      %7340 = vst.msk [vmem:[#allocation3 + $0x70] sm:$0xf] %vm3260, %v7273
      %7341 = vst.msk [vmem:[#allocation3 + $0x74] sm:$0xf] %vm3260, %v7275
      %7342 = vst.msk [vmem:[#allocation3 + $0x78] sm:$0xf] %vm3260, %v7277
      %7343 = vst.msk [vmem:[#allocation3 + $0x7c] sm:$0xf] %vm3260, %v7279
      %v7344 = vld [vmem:[%s3099] sm:$0xf]
      %v7345 = vld [vmem:[%s3099 + $0x4] sm:$0xf]
      %v7346 = vld [vmem:[%s3099 + $0x8] sm:$0x1]
      %v7347 = vld [vmem:[%s3099 + $0xc] sm:$0xf]
      %v7348 = vld [vmem:[%s3099 + $0x10] sm:$0xf]
      %v7349 = vld [vmem:[%s3099 + $0x14] sm:$0x1]
      %v7350 = vld [vmem:[%s3099 + $0x18] sm:$0xf]
      %v7351 = vld [vmem:[%s3099 + $0x1c] sm:$0xf]
      %v7352 = vld [vmem:[%s3099 + $0x20] sm:$0x1]
      %v7353 = vld [vmem:[%s3099 + $0x24] sm:$0xf]
      %v7354 = vld [vmem:[%s3099 + $0x28] sm:$0xf]
      %v7355 = vld [vmem:[%s3099 + $0x2c] sm:$0x1]
      %v7356 = vld [vmem:[%s3099 + $0x30] sm:$0xf]
      %v7357 = vld [vmem:[%s3099 + $0x34] sm:$0xf]
      %v7358 = vld [vmem:[%s3099 + $0x38] sm:$0x1]
      %v7359 = vld [vmem:[%s3099 + $0x3c] sm:$0xf]
      %v7360 = vld [vmem:[%s3099 + $0x40] sm:$0xf]
      %v7361 = vld [vmem:[%s3099 + $0x44] sm:$0x1]
      %v7362 = vld [vmem:[%s3099 + $0x48] sm:$0xf]
      %v7363 = vld [vmem:[%s3099 + $0x4c] sm:$0xf]
      %v7364 = vld [vmem:[%s3099 + $0x50] sm:$0x1]
      %v7365 = vld [vmem:[%s3099 + $0x54] sm:$0xf]
      %v7366 = vld [vmem:[%s3099 + $0x58] sm:$0xf]
      %v7367 = vld [vmem:[%s3099 + $0x5c] sm:$0x1]
      %v7368 = vld [vmem:[%s3099 + $0x60] sm:$0xf]
      %v7369 = vld [vmem:[%s3099 + $0x64] sm:$0xf]
      %v7370 = vld [vmem:[%s3099 + $0x68] sm:$0x1]
      %v7371 = vld [vmem:[%s3099 + $0x6c] sm:$0xf]
      %v7372 = vld [vmem:[%s3099 + $0x70] sm:$0xf]
      %v7373 = vld [vmem:[%s3099 + $0x74] sm:$0x1]
      %v7374 = vld [vmem:[%s3099 + $0x78] sm:$0xf]
      %v7375 = vld [vmem:[%s3099 + $0x7c] sm:$0xf]
      %v7376 = vld [vmem:[%s3099 + $0x80] sm:$0x1]
      %v7377 = vld [vmem:[%s3099 + $0x84] sm:$0xf]
      %v7378 = vld [vmem:[%s3099 + $0x88] sm:$0xf]
      %v7379 = vld [vmem:[%s3099 + $0x8c] sm:$0x1]
      %v7380 = vld [vmem:[%s3099 + $0x90] sm:$0xf]
      %v7381 = vld [vmem:[%s3099 + $0x94] sm:$0xf]
      %v7382 = vld [vmem:[%s3099 + $0x98] sm:$0x1]
      %v7383 = vld [vmem:[%s3099 + $0x9c] sm:$0xf]
      %v7384 = vld [vmem:[%s3099 + $0xa0] sm:$0xf]
      %v7385 = vld [vmem:[%s3099 + $0xa4] sm:$0x1]
      %v7386 = vld [vmem:[%s3099 + $0xa8] sm:$0xf]
      %v7387 = vld [vmem:[%s3099 + $0xac] sm:$0xf]
      %v7388 = vld [vmem:[%s3099 + $0xb0] sm:$0x1]
      %v7389 = vld [vmem:[%s3099 + $0xb4] sm:$0xf]
      %v7390 = vld [vmem:[%s3099 + $0xb8] sm:$0xf]
      %v7391 = vld [vmem:[%s3099 + $0xbc] sm:$0x1]
      %v7393 = vshrl.u32 %v7344, 16
      %v7395 = vrot.slane %v7393, 4
      %v7396 = vshll.u32 %v7344, 16
      %v7398 = vrot.slane %v7396, 5
      %v7399 = vor.u32 %v7395, %v7398
      %v7400 = vrot.slane %v7399, 4
      %v7402 = vshll.u32 %v7345, 16
      %v7404 = vrot.slane %v7402, 5
      %v7405 = vsel %vm1154, %v7400, %v7404
      %v7406 = vshrl.u32 %v7345, 16
      %v7408 = vrot.slane %v7406, 4
      %v7409 = vor.u32 %v7408, %v7404
      %v7410 = vrot.slane %v7409, 4
      %v7412 = vshll.u32 %v7346, 16
      %v7414 = vrot.slane %v7412, 5
      %v7415 = vsel %vm1154, %v7410, %v7414
      %v7417 = vshrl.u32 %v7347, 16
      %v7419 = vrot.slane %v7417, 4
      %v7420 = vshll.u32 %v7347, 16
      %v7422 = vrot.slane %v7420, 5
      %v7423 = vor.u32 %v7419, %v7422
      %v7424 = vrot.slane %v7423, 4
      %v7426 = vshll.u32 %v7348, 16
      %v7428 = vrot.slane %v7426, 5
      %v7429 = vsel %vm1154, %v7424, %v7428
      %v7430 = vshrl.u32 %v7348, 16
      %v7432 = vrot.slane %v7430, 4
      %v7433 = vor.u32 %v7432, %v7428
      %v7434 = vrot.slane %v7433, 4
      %v7436 = vshll.u32 %v7349, 16
      %v7438 = vrot.slane %v7436, 5
      %v7439 = vsel %vm1154, %v7434, %v7438
      %v7441 = vshrl.u32 %v7350, 16
      %v7443 = vrot.slane %v7441, 4
      %v7444 = vshll.u32 %v7350, 16
      %v7446 = vrot.slane %v7444, 5
      %v7447 = vor.u32 %v7443, %v7446
      %v7448 = vrot.slane %v7447, 4
      %v7450 = vshll.u32 %v7351, 16
      %v7452 = vrot.slane %v7450, 5
      %v7453 = vsel %vm1154, %v7448, %v7452
      %v7454 = vshrl.u32 %v7351, 16
      %v7456 = vrot.slane %v7454, 4
      %v7457 = vor.u32 %v7456, %v7452
      %v7458 = vrot.slane %v7457, 4
      %v7460 = vshll.u32 %v7352, 16
      %v7462 = vrot.slane %v7460, 5
      %v7463 = vsel %vm1154, %v7458, %v7462
      %v7465 = vshrl.u32 %v7353, 16
      %v7467 = vrot.slane %v7465, 4
      %v7468 = vshll.u32 %v7353, 16
      %v7470 = vrot.slane %v7468, 5
      %v7471 = vor.u32 %v7467, %v7470
      %v7472 = vrot.slane %v7471, 4
      %v7474 = vshll.u32 %v7354, 16
      %v7476 = vrot.slane %v7474, 5
      %v7477 = vsel %vm1154, %v7472, %v7476
      %v7478 = vshrl.u32 %v7354, 16
      %v7480 = vrot.slane %v7478, 4
      %v7481 = vor.u32 %v7480, %v7476
      %v7482 = vrot.slane %v7481, 4
      %v7484 = vshll.u32 %v7355, 16
      %v7486 = vrot.slane %v7484, 5
      %v7487 = vsel %vm1154, %v7482, %v7486
      %v7489 = vshrl.u32 %v7356, 16
      %v7491 = vrot.slane %v7489, 4
      %v7492 = vshll.u32 %v7356, 16
      %v7494 = vrot.slane %v7492, 5
      %v7495 = vor.u32 %v7491, %v7494
      %v7496 = vrot.slane %v7495, 4
      %v7498 = vshll.u32 %v7357, 16
      %v7500 = vrot.slane %v7498, 5
      %v7501 = vsel %vm1154, %v7496, %v7500
      %v7502 = vshrl.u32 %v7357, 16
      %v7504 = vrot.slane %v7502, 4
      %v7505 = vor.u32 %v7504, %v7500
      %v7506 = vrot.slane %v7505, 4
      %v7508 = vshll.u32 %v7358, 16
      %v7510 = vrot.slane %v7508, 5
      %v7511 = vsel %vm1154, %v7506, %v7510
      %v7513 = vshrl.u32 %v7359, 16
      %v7515 = vrot.slane %v7513, 4
      %v7516 = vshll.u32 %v7359, 16
      %v7518 = vrot.slane %v7516, 5
      %v7519 = vor.u32 %v7515, %v7518
      %v7520 = vrot.slane %v7519, 4
      %v7522 = vshll.u32 %v7360, 16
      %v7524 = vrot.slane %v7522, 5
      %v7525 = vsel %vm1154, %v7520, %v7524
      %v7526 = vshrl.u32 %v7360, 16
      %v7528 = vrot.slane %v7526, 4
      %v7529 = vor.u32 %v7528, %v7524
      %v7530 = vrot.slane %v7529, 4
      %v7532 = vshll.u32 %v7361, 16
      %v7534 = vrot.slane %v7532, 5
      %v7535 = vsel %vm1154, %v7530, %v7534
      %v7537 = vshrl.u32 %v7362, 16
      %v7539 = vrot.slane %v7537, 4
      %v7540 = vshll.u32 %v7362, 16
      %v7542 = vrot.slane %v7540, 5
      %v7543 = vor.u32 %v7539, %v7542
      %v7544 = vrot.slane %v7543, 4
      %v7546 = vshll.u32 %v7363, 16
      %v7548 = vrot.slane %v7546, 5
      %v7549 = vsel %vm1154, %v7544, %v7548
      %v7550 = vshrl.u32 %v7363, 16
      %v7552 = vrot.slane %v7550, 4
      %v7553 = vor.u32 %v7552, %v7548
      %v7554 = vrot.slane %v7553, 4
      %v7556 = vshll.u32 %v7364, 16
      %v7558 = vrot.slane %v7556, 5
      %v7559 = vsel %vm1154, %v7554, %v7558
      %v7561 = vshrl.u32 %v7365, 16
      %v7563 = vrot.slane %v7561, 4
      %v7564 = vshll.u32 %v7365, 16
      %v7566 = vrot.slane %v7564, 5
      %v7567 = vor.u32 %v7563, %v7566
      %v7568 = vrot.slane %v7567, 4
      %v7570 = vshll.u32 %v7366, 16
      %v7572 = vrot.slane %v7570, 5
      %v7573 = vsel %vm1154, %v7568, %v7572
      %v7574 = vshrl.u32 %v7366, 16
      %v7576 = vrot.slane %v7574, 4
      %v7577 = vor.u32 %v7576, %v7572
      %v7578 = vrot.slane %v7577, 4
      %v7580 = vshll.u32 %v7367, 16
      %v7582 = vrot.slane %v7580, 5
      %v7583 = vsel %vm1154, %v7578, %v7582
      %v7585 = vshrl.u32 %v7368, 16
      %v7587 = vrot.slane %v7585, 4
      %v7588 = vshll.u32 %v7368, 16
      %v7590 = vrot.slane %v7588, 5
      %v7591 = vor.u32 %v7587, %v7590
      %v7592 = vrot.slane %v7591, 4
      %v7594 = vshll.u32 %v7369, 16
      %v7596 = vrot.slane %v7594, 5
      %v7597 = vsel %vm1154, %v7592, %v7596
      %v7598 = vshrl.u32 %v7369, 16
      %v7600 = vrot.slane %v7598, 4
      %v7601 = vor.u32 %v7600, %v7596
      %v7602 = vrot.slane %v7601, 4
      %v7604 = vshll.u32 %v7370, 16
      %v7606 = vrot.slane %v7604, 5
      %v7607 = vsel %vm1154, %v7602, %v7606
      %v7609 = vshrl.u32 %v7371, 16
      %v7611 = vrot.slane %v7609, 4
      %v7612 = vshll.u32 %v7371, 16
      %v7614 = vrot.slane %v7612, 5
      %v7615 = vor.u32 %v7611, %v7614
      %v7616 = vrot.slane %v7615, 4
      %v7618 = vshll.u32 %v7372, 16
      %v7620 = vrot.slane %v7618, 5
      %v7621 = vsel %vm1154, %v7616, %v7620
      %v7622 = vshrl.u32 %v7372, 16
      %v7624 = vrot.slane %v7622, 4
      %v7625 = vor.u32 %v7624, %v7620
      %v7626 = vrot.slane %v7625, 4
      %v7628 = vshll.u32 %v7373, 16
      %v7630 = vrot.slane %v7628, 5
      %v7631 = vsel %vm1154, %v7626, %v7630
      %v7633 = vshrl.u32 %v7374, 16
      %v7635 = vrot.slane %v7633, 4
      %v7636 = vshll.u32 %v7374, 16
      %v7638 = vrot.slane %v7636, 5
      %v7639 = vor.u32 %v7635, %v7638
      %v7640 = vrot.slane %v7639, 4
      %v7642 = vshll.u32 %v7375, 16
      %v7644 = vrot.slane %v7642, 5
      %v7645 = vsel %vm1154, %v7640, %v7644
      %v7646 = vshrl.u32 %v7375, 16
      %v7648 = vrot.slane %v7646, 4
      %v7649 = vor.u32 %v7648, %v7644
      %v7650 = vrot.slane %v7649, 4
      %v7652 = vshll.u32 %v7376, 16
      %v7654 = vrot.slane %v7652, 5
      %v7655 = vsel %vm1154, %v7650, %v7654
      %v7657 = vshrl.u32 %v7377, 16
      %v7659 = vrot.slane %v7657, 4
      %v7660 = vshll.u32 %v7377, 16
      %v7662 = vrot.slane %v7660, 5
      %v7663 = vor.u32 %v7659, %v7662
      %v7664 = vrot.slane %v7663, 4
      %v7666 = vshll.u32 %v7378, 16
      %v7668 = vrot.slane %v7666, 5
      %v7669 = vsel %vm1154, %v7664, %v7668
      %v7670 = vshrl.u32 %v7378, 16
      %v7672 = vrot.slane %v7670, 4
      %v7673 = vor.u32 %v7672, %v7668
      %v7674 = vrot.slane %v7673, 4
      %v7676 = vshll.u32 %v7379, 16
      %v7678 = vrot.slane %v7676, 5
      %v7679 = vsel %vm1154, %v7674, %v7678
      %v7681 = vshrl.u32 %v7380, 16
      %v7683 = vrot.slane %v7681, 4
      %v7684 = vshll.u32 %v7380, 16
      %v7686 = vrot.slane %v7684, 5
      %v7687 = vor.u32 %v7683, %v7686
      %v7688 = vrot.slane %v7687, 4
      %v7690 = vshll.u32 %v7381, 16
      %v7692 = vrot.slane %v7690, 5
      %v7693 = vsel %vm1154, %v7688, %v7692
      %v7694 = vshrl.u32 %v7381, 16
      %v7696 = vrot.slane %v7694, 4
      %v7697 = vor.u32 %v7696, %v7692
      %v7698 = vrot.slane %v7697, 4
      %v7700 = vshll.u32 %v7382, 16
      %v7702 = vrot.slane %v7700, 5
      %v7703 = vsel %vm1154, %v7698, %v7702
      %v7705 = vshrl.u32 %v7383, 16
      %v7707 = vrot.slane %v7705, 4
      %v7708 = vshll.u32 %v7383, 16
      %v7710 = vrot.slane %v7708, 5
      %v7711 = vor.u32 %v7707, %v7710
      %v7712 = vrot.slane %v7711, 4
      %v7714 = vshll.u32 %v7384, 16
      %v7716 = vrot.slane %v7714, 5
      %v7717 = vsel %vm1154, %v7712, %v7716
      %v7718 = vshrl.u32 %v7384, 16
      %v7720 = vrot.slane %v7718, 4
      %v7721 = vor.u32 %v7720, %v7716
      %v7722 = vrot.slane %v7721, 4
      %v7724 = vshll.u32 %v7385, 16
      %v7726 = vrot.slane %v7724, 5
      %v7727 = vsel %vm1154, %v7722, %v7726
      %v7729 = vshrl.u32 %v7386, 16
      %v7731 = vrot.slane %v7729, 4
      %v7732 = vshll.u32 %v7386, 16
      %v7734 = vrot.slane %v7732, 5
      %v7735 = vor.u32 %v7731, %v7734
      %v7736 = vrot.slane %v7735, 4
      %v7738 = vshll.u32 %v7387, 16
      %v7740 = vrot.slane %v7738, 5
      %v7741 = vsel %vm1154, %v7736, %v7740
      %v7742 = vshrl.u32 %v7387, 16
      %v7744 = vrot.slane %v7742, 4
      %v7745 = vor.u32 %v7744, %v7740
      %v7746 = vrot.slane %v7745, 4
      %v7748 = vshll.u32 %v7388, 16
      %v7750 = vrot.slane %v7748, 5
      %v7751 = vsel %vm1154, %v7746, %v7750
      %v7753 = vshrl.u32 %v7389, 16
      %v7755 = vrot.slane %v7753, 4
      %v7756 = vshll.u32 %v7389, 16
      %v7758 = vrot.slane %v7756, 5
      %v7759 = vor.u32 %v7755, %v7758
      %v7760 = vrot.slane %v7759, 4
      %v7762 = vshll.u32 %v7390, 16
      %v7764 = vrot.slane %v7762, 5
      %v7765 = vsel %vm1154, %v7760, %v7764
      %v7766 = vshrl.u32 %v7390, 16
      %v7768 = vrot.slane %v7766, 4
      %v7769 = vor.u32 %v7768, %v7764
      %v7770 = vrot.slane %v7769, 4
      %v7772 = vshll.u32 %v7391, 16
      %v7774 = vrot.slane %v7772, 5
      %v7775 = vsel %vm1154, %v7770, %v7774
      %7776 = vrot.lane.b32.xlu0 %v7405, 56
      %v7777 = vpop.permute.xlu0 %7776
      %7778 = vrot.lane.b32.xlu0 %v7415, 56
      %v7779 = vpop.permute.xlu0 %7778
      %7780 = vrot.lane.b32.xlu0 %v7429, 56
      %v7781 = vpop.permute.xlu0 %7780
      %7782 = vrot.lane.b32.xlu0 %v7439, 56
      %v7783 = vpop.permute.xlu0 %7782
      %7784 = vrot.lane.b32.xlu0 %v7453, 56
      %v7785 = vpop.permute.xlu0 %7784
      %7786 = vrot.lane.b32.xlu0 %v7463, 56
      %v7787 = vpop.permute.xlu0 %7786
      %7788 = vrot.lane.b32.xlu0 %v7477, 56
      %v7789 = vpop.permute.xlu0 %7788
      %7790 = vrot.lane.b32.xlu0 %v7487, 56
      %v7791 = vpop.permute.xlu0 %7790
      %7792 = vrot.lane.b32.xlu0 %v7501, 56
      %v7793 = vpop.permute.xlu0 %7792
      %7794 = vrot.lane.b32.xlu0 %v7511, 56
      %v7795 = vpop.permute.xlu0 %7794
      %7796 = vrot.lane.b32.xlu0 %v7525, 56
      %v7797 = vpop.permute.xlu0 %7796
      %7798 = vrot.lane.b32.xlu0 %v7535, 56
      %v7799 = vpop.permute.xlu0 %7798
      %7800 = vrot.lane.b32.xlu0 %v7549, 56
      %v7801 = vpop.permute.xlu0 %7800
      %7802 = vrot.lane.b32.xlu0 %v7559, 56
      %v7803 = vpop.permute.xlu0 %7802
      %7804 = vrot.lane.b32.xlu0 %v7573, 56
      %v7805 = vpop.permute.xlu0 %7804
      %7806 = vrot.lane.b32.xlu0 %v7583, 56
      %v7807 = vpop.permute.xlu0 %7806
      %7808 = vrot.lane.b32.xlu0 %v7597, 56
      %v7809 = vpop.permute.xlu0 %7808
      %7810 = vrot.lane.b32.xlu0 %v7607, 56
      %v7811 = vpop.permute.xlu0 %7810
      %7812 = vrot.lane.b32.xlu0 %v7621, 56
      %v7813 = vpop.permute.xlu0 %7812
      %7814 = vrot.lane.b32.xlu0 %v7631, 56
      %v7815 = vpop.permute.xlu0 %7814
      %7816 = vrot.lane.b32.xlu0 %v7645, 56
      %v7817 = vpop.permute.xlu0 %7816
      %7818 = vrot.lane.b32.xlu0 %v7655, 56
      %v7819 = vpop.permute.xlu0 %7818
      %7820 = vrot.lane.b32.xlu0 %v7669, 56
      %v7821 = vpop.permute.xlu0 %7820
      %7822 = vrot.lane.b32.xlu0 %v7679, 56
      %v7823 = vpop.permute.xlu0 %7822
      %7824 = vrot.lane.b32.xlu0 %v7693, 56
      %v7825 = vpop.permute.xlu0 %7824
      %7826 = vrot.lane.b32.xlu0 %v7703, 56
      %v7827 = vpop.permute.xlu0 %7826
      %7828 = vrot.lane.b32.xlu0 %v7717, 56
      %v7829 = vpop.permute.xlu0 %7828
      %7830 = vrot.lane.b32.xlu0 %v7727, 56
      %v7831 = vpop.permute.xlu0 %7830
      %7832 = vrot.lane.b32.xlu0 %v7741, 56
      %v7833 = vpop.permute.xlu0 %7832
      %7834 = vrot.lane.b32.xlu0 %v7751, 56
      %v7835 = vpop.permute.xlu0 %7834
      %7836 = vrot.lane.b32.xlu0 %v7765, 56
      %v7837 = vpop.permute.xlu0 %7836
      %7838 = vrot.lane.b32.xlu0 %v7775, 56
      %v7839 = vpop.permute.xlu0 %7838
      %7872 = vst.msk [vmem:[#allocation3] sm:$0xf] %vm3821, %v7777
      %7873 = vst.msk [vmem:[#allocation3 + $0x4] sm:$0xf] %vm3821, %v7779
      %7874 = vst.msk [vmem:[#allocation3 + $0x8] sm:$0xf] %vm3821, %v7781
      %7875 = vst.msk [vmem:[#allocation3 + $0xc] sm:$0xf] %vm3821, %v7783
      %7876 = vst.msk [vmem:[#allocation3 + $0x10] sm:$0xf] %vm3821, %v7785
      %7877 = vst.msk [vmem:[#allocation3 + $0x14] sm:$0xf] %vm3821, %v7787
      %7878 = vst.msk [vmem:[#allocation3 + $0x18] sm:$0xf] %vm3821, %v7789
      %7879 = vst.msk [vmem:[#allocation3 + $0x1c] sm:$0xf] %vm3821, %v7791
      %7880 = vst.msk [vmem:[#allocation3 + $0x20] sm:$0xf] %vm3821, %v7793
      %7881 = vst.msk [vmem:[#allocation3 + $0x24] sm:$0xf] %vm3821, %v7795
      %7882 = vst.msk [vmem:[#allocation3 + $0x28] sm:$0xf] %vm3821, %v7797
      %7883 = vst.msk [vmem:[#allocation3 + $0x2c] sm:$0xf] %vm3821, %v7799
      %7884 = vst.msk [vmem:[#allocation3 + $0x30] sm:$0xf] %vm3821, %v7801
      %7885 = vst.msk [vmem:[#allocation3 + $0x34] sm:$0xf] %vm3821, %v7803
      %7886 = vst.msk [vmem:[#allocation3 + $0x38] sm:$0xf] %vm3821, %v7805
      %7887 = vst.msk [vmem:[#allocation3 + $0x3c] sm:$0xf] %vm3821, %v7807
      %7888 = vst.msk [vmem:[#allocation3 + $0x40] sm:$0xf] %vm3821, %v7809
      %7889 = vst.msk [vmem:[#allocation3 + $0x44] sm:$0xf] %vm3821, %v7811
      %7890 = vst.msk [vmem:[#allocation3 + $0x48] sm:$0xf] %vm3821, %v7813
      %7891 = vst.msk [vmem:[#allocation3 + $0x4c] sm:$0xf] %vm3821, %v7815
      %7892 = vst.msk [vmem:[#allocation3 + $0x50] sm:$0xf] %vm3821, %v7817
      %7893 = vst.msk [vmem:[#allocation3 + $0x54] sm:$0xf] %vm3821, %v7819
      %7894 = vst.msk [vmem:[#allocation3 + $0x58] sm:$0xf] %vm3821, %v7821
      %7895 = vst.msk [vmem:[#allocation3 + $0x5c] sm:$0xf] %vm3821, %v7823
      %7896 = vst.msk [vmem:[#allocation3 + $0x60] sm:$0xf] %vm3821, %v7825
      %7897 = vst.msk [vmem:[#allocation3 + $0x64] sm:$0xf] %vm3821, %v7827
      %7898 = vst.msk [vmem:[#allocation3 + $0x68] sm:$0xf] %vm3821, %v7829
      %7899 = vst.msk [vmem:[#allocation3 + $0x6c] sm:$0xf] %vm3821, %v7831
      %7900 = vst.msk [vmem:[#allocation3 + $0x70] sm:$0xf] %vm3821, %v7833
      %7901 = vst.msk [vmem:[#allocation3 + $0x74] sm:$0xf] %vm3821, %v7835
      %7902 = vst.msk [vmem:[#allocation3 + $0x78] sm:$0xf] %vm3821, %v7837
      %7903 = vst.msk [vmem:[#allocation3 + $0x7c] sm:$0xf] %vm3821, %v7839
      %v7904 = vld [vmem:[%s3099] sm:$0xe]
      %v7905 = vld [vmem:[%s3099 + $0x4] sm:$0xf]
      %v7906 = vld [vmem:[%s3099 + $0x8] sm:$0x1]
      %v7907 = vld [vmem:[%s3099 + $0xc] sm:$0xe]
      %v7908 = vld [vmem:[%s3099 + $0x10] sm:$0xf]
      %v7909 = vld [vmem:[%s3099 + $0x14] sm:$0x1]
      %v7910 = vld [vmem:[%s3099 + $0x18] sm:$0xe]
      %v7911 = vld [vmem:[%s3099 + $0x1c] sm:$0xf]
      %v7912 = vld [vmem:[%s3099 + $0x20] sm:$0x1]
      %v7913 = vld [vmem:[%s3099 + $0x24] sm:$0xe]
      %v7914 = vld [vmem:[%s3099 + $0x28] sm:$0xf]
      %v7915 = vld [vmem:[%s3099 + $0x2c] sm:$0x1]
      %v7916 = vld [vmem:[%s3099 + $0x30] sm:$0xe]
      %v7917 = vld [vmem:[%s3099 + $0x34] sm:$0xf]
      %v7918 = vld [vmem:[%s3099 + $0x38] sm:$0x1]
      %v7919 = vld [vmem:[%s3099 + $0x3c] sm:$0xe]
      %v7920 = vld [vmem:[%s3099 + $0x40] sm:$0xf]
      %v7921 = vld [vmem:[%s3099 + $0x44] sm:$0x1]
      %v7922 = vld [vmem:[%s3099 + $0x48] sm:$0xe]
      %v7923 = vld [vmem:[%s3099 + $0x4c] sm:$0xf]
      %v7924 = vld [vmem:[%s3099 + $0x50] sm:$0x1]
      %v7925 = vld [vmem:[%s3099 + $0x54] sm:$0xe]
      %v7926 = vld [vmem:[%s3099 + $0x58] sm:$0xf]
      %v7927 = vld [vmem:[%s3099 + $0x5c] sm:$0x1]
      %v7928 = vld [vmem:[%s3099 + $0x60] sm:$0xe]
      %v7929 = vld [vmem:[%s3099 + $0x64] sm:$0xf]
      %v7930 = vld [vmem:[%s3099 + $0x68] sm:$0x1]
      %v7931 = vld [vmem:[%s3099 + $0x6c] sm:$0xe]
      %v7932 = vld [vmem:[%s3099 + $0x70] sm:$0xf]
      %v7933 = vld [vmem:[%s3099 + $0x74] sm:$0x1]
      %v7934 = vld [vmem:[%s3099 + $0x78] sm:$0xe]
      %v7935 = vld [vmem:[%s3099 + $0x7c] sm:$0xf]
      %v7936 = vld [vmem:[%s3099 + $0x80] sm:$0x1]
      %v7937 = vld [vmem:[%s3099 + $0x84] sm:$0xe]
      %v7938 = vld [vmem:[%s3099 + $0x88] sm:$0xf]
      %v7939 = vld [vmem:[%s3099 + $0x8c] sm:$0x1]
      %v7940 = vld [vmem:[%s3099 + $0x90] sm:$0xe]
      %v7941 = vld [vmem:[%s3099 + $0x94] sm:$0xf]
      %v7942 = vld [vmem:[%s3099 + $0x98] sm:$0x1]
      %v7943 = vld [vmem:[%s3099 + $0x9c] sm:$0xe]
      %v7944 = vld [vmem:[%s3099 + $0xa0] sm:$0xf]
      %v7945 = vld [vmem:[%s3099 + $0xa4] sm:$0x1]
      %v7946 = vld [vmem:[%s3099 + $0xa8] sm:$0xe]
      %v7947 = vld [vmem:[%s3099 + $0xac] sm:$0xf]
      %v7948 = vld [vmem:[%s3099 + $0xb0] sm:$0x1]
      %v7949 = vld [vmem:[%s3099 + $0xb4] sm:$0xe]
      %v7950 = vld [vmem:[%s3099 + $0xb8] sm:$0xf]
      %v7951 = vld [vmem:[%s3099 + $0xbc] sm:$0x1]
      %v8000 = vrot.slane %v7904, 5
      %v8001 = vrot.slane %v8000, 4
      %v8002 = vrot.slane %v7905, 5
      %v8003 = vsel %vm1766, %v8001, %v8002
      %v8004 = vrot.slane %v8002, 4
      %v8005 = vrot.slane %v7906, 5
      %v8006 = vsel %vm1766, %v8004, %v8005
      %v8007 = vrot.slane %v7907, 5
      %v8008 = vrot.slane %v8007, 4
      %v8009 = vrot.slane %v7908, 5
      %v8010 = vsel %vm1766, %v8008, %v8009
      %v8011 = vrot.slane %v8009, 4
      %v8012 = vrot.slane %v7909, 5
      %v8013 = vsel %vm1766, %v8011, %v8012
      %v8014 = vrot.slane %v7910, 5
      %v8015 = vrot.slane %v8014, 4
      %v8016 = vrot.slane %v7911, 5
      %v8017 = vsel %vm1766, %v8015, %v8016
      %v8018 = vrot.slane %v8016, 4
      %v8019 = vrot.slane %v7912, 5
      %v8020 = vsel %vm1766, %v8018, %v8019
      %v8021 = vrot.slane %v7913, 5
      %v8022 = vrot.slane %v8021, 4
      %v8023 = vrot.slane %v7914, 5
      %v8024 = vsel %vm1766, %v8022, %v8023
      %v8025 = vrot.slane %v8023, 4
      %v8026 = vrot.slane %v7915, 5
      %v8027 = vsel %vm1766, %v8025, %v8026
      %v8028 = vrot.slane %v7916, 5
      %v8029 = vrot.slane %v8028, 4
      %v8030 = vrot.slane %v7917, 5
      %v8031 = vsel %vm1766, %v8029, %v8030
      %v8032 = vrot.slane %v8030, 4
      %v8033 = vrot.slane %v7918, 5
      %v8034 = vsel %vm1766, %v8032, %v8033
      %v8035 = vrot.slane %v7919, 5
      %v8036 = vrot.slane %v8035, 4
      %v8037 = vrot.slane %v7920, 5
      %v8038 = vsel %vm1766, %v8036, %v8037
      %v8039 = vrot.slane %v8037, 4
      %v8040 = vrot.slane %v7921, 5
      %v8041 = vsel %vm1766, %v8039, %v8040
      %v8042 = vrot.slane %v7922, 5
      %v8043 = vrot.slane %v8042, 4
      %v8044 = vrot.slane %v7923, 5
      %v8045 = vsel %vm1766, %v8043, %v8044
      %v8046 = vrot.slane %v8044, 4
      %v8047 = vrot.slane %v7924, 5
      %v8048 = vsel %vm1766, %v8046, %v8047
      %v8049 = vrot.slane %v7925, 5
      %v8050 = vrot.slane %v8049, 4
      %v8051 = vrot.slane %v7926, 5
      %v8052 = vsel %vm1766, %v8050, %v8051
      %v8053 = vrot.slane %v8051, 4
      %v8054 = vrot.slane %v7927, 5
      %v8055 = vsel %vm1766, %v8053, %v8054
      %v8056 = vrot.slane %v7928, 5
      %v8057 = vrot.slane %v8056, 4
      %v8058 = vrot.slane %v7929, 5
      %v8059 = vsel %vm1766, %v8057, %v8058
      %v8060 = vrot.slane %v8058, 4
      %v8061 = vrot.slane %v7930, 5
      %v8062 = vsel %vm1766, %v8060, %v8061
      %v8063 = vrot.slane %v7931, 5
      %v8064 = vrot.slane %v8063, 4
      %v8065 = vrot.slane %v7932, 5
      %v8066 = vsel %vm1766, %v8064, %v8065
      %v8067 = vrot.slane %v8065, 4
      %v8068 = vrot.slane %v7933, 5
      %v8069 = vsel %vm1766, %v8067, %v8068
      %v8070 = vrot.slane %v7934, 5
      %v8071 = vrot.slane %v8070, 4
      %v8072 = vrot.slane %v7935, 5
      %v8073 = vsel %vm1766, %v8071, %v8072
      %v8074 = vrot.slane %v8072, 4
      %v8075 = vrot.slane %v7936, 5
      %v8076 = vsel %vm1766, %v8074, %v8075
      %v8077 = vrot.slane %v7937, 5
      %v8078 = vrot.slane %v8077, 4
      %v8079 = vrot.slane %v7938, 5
      %v8080 = vsel %vm1766, %v8078, %v8079
      %v8081 = vrot.slane %v8079, 4
      %v8082 = vrot.slane %v7939, 5
      %v8083 = vsel %vm1766, %v8081, %v8082
      %v8084 = vrot.slane %v7940, 5
      %v8085 = vrot.slane %v8084, 4
      %v8086 = vrot.slane %v7941, 5
      %v8087 = vsel %vm1766, %v8085, %v8086
      %v8088 = vrot.slane %v8086, 4
      %v8089 = vrot.slane %v7942, 5
      %v8090 = vsel %vm1766, %v8088, %v8089
      %v8091 = vrot.slane %v7943, 5
      %v8092 = vrot.slane %v8091, 4
      %v8093 = vrot.slane %v7944, 5
      %v8094 = vsel %vm1766, %v8092, %v8093
      %v8095 = vrot.slane %v8093, 4
      %v8096 = vrot.slane %v7945, 5
      %v8097 = vsel %vm1766, %v8095, %v8096
      %v8098 = vrot.slane %v7946, 5
      %v8099 = vrot.slane %v8098, 4
      %v8100 = vrot.slane %v7947, 5
      %v8101 = vsel %vm1766, %v8099, %v8100
      %v8102 = vrot.slane %v8100, 4
      %v8103 = vrot.slane %v7948, 5
      %v8104 = vsel %vm1766, %v8102, %v8103
      %v8105 = vrot.slane %v7949, 5
      %v8106 = vrot.slane %v8105, 4
      %v8107 = vrot.slane %v7950, 5
      %v8108 = vsel %vm1766, %v8106, %v8107
      %v8109 = vrot.slane %v8107, 4
      %v8110 = vrot.slane %v7951, 5
      %v8111 = vsel %vm1766, %v8109, %v8110
      %8112 = vrot.lane.b32.xlu0 %v8003, 64
      %v8113 = vpop.permute.xlu0 %8112
      %8114 = vrot.lane.b32.xlu0 %v8006, 64
      %v8115 = vpop.permute.xlu0 %8114
      %8116 = vrot.lane.b32.xlu0 %v8010, 64
      %v8117 = vpop.permute.xlu0 %8116
      %8118 = vrot.lane.b32.xlu0 %v8013, 64
      %v8119 = vpop.permute.xlu0 %8118
      %8120 = vrot.lane.b32.xlu0 %v8017, 64
      %v8121 = vpop.permute.xlu0 %8120
      %8122 = vrot.lane.b32.xlu0 %v8020, 64
      %v8123 = vpop.permute.xlu0 %8122
      %8124 = vrot.lane.b32.xlu0 %v8024, 64
      %v8125 = vpop.permute.xlu0 %8124
      %8126 = vrot.lane.b32.xlu0 %v8027, 64
      %v8127 = vpop.permute.xlu0 %8126
      %8128 = vrot.lane.b32.xlu0 %v8031, 64
      %v8129 = vpop.permute.xlu0 %8128
      %8130 = vrot.lane.b32.xlu0 %v8034, 64
      %v8131 = vpop.permute.xlu0 %8130
      %8132 = vrot.lane.b32.xlu0 %v8038, 64
      %v8133 = vpop.permute.xlu0 %8132
      %8134 = vrot.lane.b32.xlu0 %v8041, 64
      %v8135 = vpop.permute.xlu0 %8134
      %8136 = vrot.lane.b32.xlu0 %v8045, 64
      %v8137 = vpop.permute.xlu0 %8136
      %8138 = vrot.lane.b32.xlu0 %v8048, 64
      %v8139 = vpop.permute.xlu0 %8138
      %8140 = vrot.lane.b32.xlu0 %v8052, 64
      %v8141 = vpop.permute.xlu0 %8140
      %8142 = vrot.lane.b32.xlu0 %v8055, 64
      %v8143 = vpop.permute.xlu0 %8142
      %8144 = vrot.lane.b32.xlu0 %v8059, 64
      %v8145 = vpop.permute.xlu0 %8144
      %8146 = vrot.lane.b32.xlu0 %v8062, 64
      %v8147 = vpop.permute.xlu0 %8146
      %8148 = vrot.lane.b32.xlu0 %v8066, 64
      %v8149 = vpop.permute.xlu0 %8148
      %8150 = vrot.lane.b32.xlu0 %v8069, 64
      %v8151 = vpop.permute.xlu0 %8150
      %8152 = vrot.lane.b32.xlu0 %v8073, 64
      %v8153 = vpop.permute.xlu0 %8152
      %8154 = vrot.lane.b32.xlu0 %v8076, 64
      %v8155 = vpop.permute.xlu0 %8154
      %8156 = vrot.lane.b32.xlu0 %v8080, 64
      %v8157 = vpop.permute.xlu0 %8156
      %8158 = vrot.lane.b32.xlu0 %v8083, 64
      %v8159 = vpop.permute.xlu0 %8158
      %8160 = vrot.lane.b32.xlu0 %v8087, 64
      %v8161 = vpop.permute.xlu0 %8160
      %8162 = vrot.lane.b32.xlu0 %v8090, 64
      %v8163 = vpop.permute.xlu0 %8162
      %8164 = vrot.lane.b32.xlu0 %v8094, 64
      %v8165 = vpop.permute.xlu0 %8164
      %8166 = vrot.lane.b32.xlu0 %v8097, 64
      %v8167 = vpop.permute.xlu0 %8166
      %8168 = vrot.lane.b32.xlu0 %v8101, 64
      %v8169 = vpop.permute.xlu0 %8168
      %8170 = vrot.lane.b32.xlu0 %v8104, 64
      %v8171 = vpop.permute.xlu0 %8170
      %8172 = vrot.lane.b32.xlu0 %v8108, 64
      %v8173 = vpop.permute.xlu0 %8172
      %8174 = vrot.lane.b32.xlu0 %v8111, 64
      %v8175 = vpop.permute.xlu0 %8174
      %8208 = vst.msk [vmem:[#allocation3] sm:$0xf] %vm4158, %v8113
      %8209 = vst.msk [vmem:[#allocation3 + $0x4] sm:$0xf] %vm4158, %v8115
      %8210 = vst.msk [vmem:[#allocation3 + $0x8] sm:$0xf] %vm4158, %v8117
      %8211 = vst.msk [vmem:[#allocation3 + $0xc] sm:$0xf] %vm4158, %v8119
      %8212 = vst.msk [vmem:[#allocation3 + $0x10] sm:$0xf] %vm4158, %v8121
      %8213 = vst.msk [vmem:[#allocation3 + $0x14] sm:$0xf] %vm4158, %v8123
      %8214 = vst.msk [vmem:[#allocation3 + $0x18] sm:$0xf] %vm4158, %v8125
      %8215 = vst.msk [vmem:[#allocation3 + $0x1c] sm:$0xf] %vm4158, %v8127
      %8216 = vst.msk [vmem:[#allocation3 + $0x20] sm:$0xf] %vm4158, %v8129
      %8217 = vst.msk [vmem:[#allocation3 + $0x24] sm:$0xf] %vm4158, %v8131
      %8218 = vst.msk [vmem:[#allocation3 + $0x28] sm:$0xf] %vm4158, %v8133
      %8219 = vst.msk [vmem:[#allocation3 + $0x2c] sm:$0xf] %vm4158, %v8135
      %8220 = vst.msk [vmem:[#allocation3 + $0x30] sm:$0xf] %vm4158, %v8137
      %8221 = vst.msk [vmem:[#allocation3 + $0x34] sm:$0xf] %vm4158, %v8139
      %8222 = vst.msk [vmem:[#allocation3 + $0x38] sm:$0xf] %vm4158, %v8141
      %8223 = vst.msk [vmem:[#allocation3 + $0x3c] sm:$0xf] %vm4158, %v8143
      %8224 = vst.msk [vmem:[#allocation3 + $0x40] sm:$0xf] %vm4158, %v8145
      %8225 = vst.msk [vmem:[#allocation3 + $0x44] sm:$0xf] %vm4158, %v8147
      %8226 = vst.msk [vmem:[#allocation3 + $0x48] sm:$0xf] %vm4158, %v8149
      %8227 = vst.msk [vmem:[#allocation3 + $0x4c] sm:$0xf] %vm4158, %v8151
      %8228 = vst.msk [vmem:[#allocation3 + $0x50] sm:$0xf] %vm4158, %v8153
      %8229 = vst.msk [vmem:[#allocation3 + $0x54] sm:$0xf] %vm4158, %v8155
      %8230 = vst.msk [vmem:[#allocation3 + $0x58] sm:$0xf] %vm4158, %v8157
      %8231 = vst.msk [vmem:[#allocation3 + $0x5c] sm:$0xf] %vm4158, %v8159
      %8232 = vst.msk [vmem:[#allocation3 + $0x60] sm:$0xf] %vm4158, %v8161
      %8233 = vst.msk [vmem:[#allocation3 + $0x64] sm:$0xf] %vm4158, %v8163
      %8234 = vst.msk [vmem:[#allocation3 + $0x68] sm:$0xf] %vm4158, %v8165
      %8235 = vst.msk [vmem:[#allocation3 + $0x6c] sm:$0xf] %vm4158, %v8167
      %8236 = vst.msk [vmem:[#allocation3 + $0x70] sm:$0xf] %vm4158, %v8169
      %8237 = vst.msk [vmem:[#allocation3 + $0x74] sm:$0xf] %vm4158, %v8171
      %8238 = vst.msk [vmem:[#allocation3 + $0x78] sm:$0xf] %vm4158, %v8173
      %8239 = vst.msk [vmem:[#allocation3 + $0x7c] sm:$0xf] %vm4158, %v8175
      %v8240 = vld [vmem:[#allocation3] sm:$0xf]
      %v8241 = vld [vmem:[#allocation3 + $0x4] sm:$0xf]
      %v8242 = vld [vmem:[#allocation3 + $0x8] sm:$0xf]
      %v8243 = vld [vmem:[#allocation3 + $0xc] sm:$0xf]
      %v8244 = vld [vmem:[#allocation3 + $0x10] sm:$0xf]
      %v8245 = vld [vmem:[#allocation3 + $0x14] sm:$0xf]
      %v8246 = vld [vmem:[#allocation3 + $0x18] sm:$0xf]
      %v8247 = vld [vmem:[#allocation3 + $0x1c] sm:$0xf]
      %v8248 = vld [vmem:[#allocation3 + $0x20] sm:$0xf]
      %v8249 = vld [vmem:[#allocation3 + $0x24] sm:$0xf]
      %v8250 = vld [vmem:[#allocation3 + $0x28] sm:$0xf]
      %v8251 = vld [vmem:[#allocation3 + $0x2c] sm:$0xf]
      %v8252 = vld [vmem:[#allocation3 + $0x30] sm:$0xf]
      %v8253 = vld [vmem:[#allocation3 + $0x34] sm:$0xf]
      %v8254 = vld [vmem:[#allocation3 + $0x38] sm:$0xf]
      %v8255 = vld [vmem:[#allocation3 + $0x3c] sm:$0xf]
      %v8256 = vld [vmem:[#allocation3 + $0x40] sm:$0xf]
      %v8257 = vld [vmem:[#allocation3 + $0x44] sm:$0xf]
      %v8258 = vld [vmem:[#allocation3 + $0x48] sm:$0xf]
      %v8259 = vld [vmem:[#allocation3 + $0x4c] sm:$0xf]
      %v8260 = vld [vmem:[#allocation3 + $0x50] sm:$0xf]
      %v8261 = vld [vmem:[#allocation3 + $0x54] sm:$0xf]
      %v8262 = vld [vmem:[#allocation3 + $0x58] sm:$0xf]
      %v8263 = vld [vmem:[#allocation3 + $0x5c] sm:$0xf]
      %v8264 = vld [vmem:[#allocation3 + $0x60] sm:$0xf]
      %v8265 = vld [vmem:[#allocation3 + $0x64] sm:$0xf]
      %v8266 = vld [vmem:[#allocation3 + $0x68] sm:$0xf]
      %v8267 = vld [vmem:[#allocation3 + $0x6c] sm:$0xf]
      %v8268 = vld [vmem:[#allocation3 + $0x70] sm:$0xf]
      %v8269 = vld [vmem:[#allocation3 + $0x74] sm:$0xf]
      %v8270 = vld [vmem:[#allocation3 + $0x78] sm:$0xf]
      %v8271 = vld [vmem:[#allocation3 + $0x7c] sm:$0xf]
      %v8272 = vld [vmem:[%s2] sm:$0xf]
      %v8273 = vld [vmem:[%s2 + $0x4] sm:$0xf]
      %v8274 = vld [vmem:[%s2 + $0x8] sm:$0xf]
      %v8275 = vld [vmem:[%s2 + $0xc] sm:$0xf]
      %v8276 = vld [vmem:[%s2 + $0x10] sm:$0xf]
      %v8277 = vld [vmem:[%s2 + $0x14] sm:$0xf]
      %v8278 = vld [vmem:[%s2 + $0x18] sm:$0xf]
      %v8279 = vld [vmem:[%s2 + $0x1c] sm:$0xf]
      %v8280 = vld [vmem:[%s2 + $0x20] sm:$0xf]
      %v8281 = vld [vmem:[%s2 + $0x24] sm:$0xf]
      %v8282 = vld [vmem:[%s2 + $0x28] sm:$0xf]
      %v8283 = vld [vmem:[%s2 + $0x2c] sm:$0xf]
      %v8284 = vld [vmem:[%s2 + $0x30] sm:$0xf]
      %v8285 = vld [vmem:[%s2 + $0x34] sm:$0xf]
      %v8286 = vld [vmem:[%s2 + $0x38] sm:$0xf]
      %v8287 = vld [vmem:[%s2 + $0x3c] sm:$0xf]
      %v8320 = vunpack.c.l.b16 %v8240
      %v8321 = vunpack.c.l.b16 %v8241
      %v8322 = vunpack.c.l.b16 %v8242
      %v8323 = vunpack.c.l.b16 %v8243
      %v8324 = vunpack.c.l.b16 %v8244
      %v8325 = vunpack.c.l.b16 %v8245
      %v8326 = vunpack.c.l.b16 %v8246
      %v8327 = vunpack.c.l.b16 %v8247
      %v8328 = vunpack.c.l.b16 %v8248
      %v8329 = vunpack.c.l.b16 %v8249
      %v8330 = vunpack.c.l.b16 %v8250
      %v8331 = vunpack.c.l.b16 %v8251
      %v8332 = vunpack.c.l.b16 %v8252
      %v8333 = vunpack.c.l.b16 %v8253
      %v8334 = vunpack.c.l.b16 %v8254
      %v8335 = vunpack.c.l.b16 %v8255
      %v8336 = vunpack.c.l.b16 %v8256
      %v8337 = vunpack.c.l.b16 %v8257
      %v8338 = vunpack.c.l.b16 %v8258
      %v8339 = vunpack.c.l.b16 %v8259
      %v8340 = vunpack.c.l.b16 %v8260
      %v8341 = vunpack.c.l.b16 %v8261
      %v8342 = vunpack.c.l.b16 %v8262
      %v8343 = vunpack.c.l.b16 %v8263
      %v8344 = vunpack.c.l.b16 %v8264
      %v8345 = vunpack.c.l.b16 %v8265
      %v8346 = vunpack.c.l.b16 %v8266
      %v8347 = vunpack.c.l.b16 %v8267
      %v8348 = vunpack.c.l.b16 %v8268
      %v8349 = vunpack.c.l.b16 %v8269
      %v8350 = vunpack.c.l.b16 %v8270
      %v8351 = vunpack.c.l.b16 %v8271
      %v8352 = vpack.c.b16 %v8321, %v8320
      %v8353 = vpack.c.b16 %v8323, %v8322
      %v8354 = vpack.c.b16 %v8325, %v8324
      %v8355 = vpack.c.b16 %v8327, %v8326
      %v8356 = vpack.c.b16 %v8329, %v8328
      %v8357 = vpack.c.b16 %v8331, %v8330
      %v8358 = vpack.c.b16 %v8333, %v8332
      %v8359 = vpack.c.b16 %v8335, %v8334
      %v8360 = vpack.c.b16 %v8337, %v8336
      %v8361 = vpack.c.b16 %v8339, %v8338
      %v8362 = vpack.c.b16 %v8341, %v8340
      %v8363 = vpack.c.b16 %v8343, %v8342
      %v8364 = vpack.c.b16 %v8345, %v8344
      %v8365 = vpack.c.b16 %v8347, %v8346
      %v8366 = vpack.c.b16 %v8349, %v8348
      %v8367 = vpack.c.b16 %v8351, %v8350
      %v8400 = vunpack.c.l.b16 %v8272
      %v8401 = vunpack.c.l.b16 %v8273
      %v8402 = vunpack.c.l.b16 %v8274
      %v8403 = vunpack.c.l.b16 %v8275
      %v8404 = vunpack.c.l.b16 %v8276
      %v8405 = vunpack.c.l.b16 %v8277
      %v8406 = vunpack.c.l.b16 %v8278
      %v8407 = vunpack.c.l.b16 %v8279
      %v8408 = vunpack.c.l.b16 %v8280
      %v8409 = vunpack.c.l.b16 %v8281
      %v8410 = vunpack.c.l.b16 %v8282
      %v8411 = vunpack.c.l.b16 %v8283
      %v8412 = vunpack.c.l.b16 %v8284
      %v8413 = vunpack.c.l.b16 %v8285
      %v8414 = vunpack.c.l.b16 %v8286
      %v8415 = vunpack.c.l.b16 %v8287
      %v8416 = vpack.c.b16 %v8401, %v8400
      %v8417 = vpack.c.b16 %v8403, %v8402
      %v8418 = vpack.c.b16 %v8405, %v8404
      %v8419 = vpack.c.b16 %v8407, %v8406
      %v8420 = vpack.c.b16 %v8409, %v8408
      %v8421 = vpack.c.b16 %v8411, %v8410
      %v8422 = vpack.c.b16 %v8413, %v8412
      %v8423 = vpack.c.b16 %v8415, %v8414
      %8432 = vmatpush.bf16.msra.mxu0 %v8423
      %8433 = vmatpush.bf16.msra.mxu0 %v8422
      %8434 = vmatpush.bf16.msra.mxu0 %v8421
      %8435 = vmatpush.bf16.msra.mxu0 %v8420
      %8436 = vmatpush.bf16.msra.mxu0 %v8419
      %8437 = vmatpush.bf16.msra.mxu0 %v8418
      %8438 = vmatpush.bf16.msra.mxu0 %v8417
      %8439 = vmatpush.bf16.msra.mxu0 %v8416
      %8440 = vmatmul.bf16.gmra.mxu0 %v8352
      %v8441 = vpop.f32.mrf.mxu0
      %v8442 = vadd.f32 0.0, %v8441
      %v8443 = vpop.f32.mrf.mxu0
      %v8444 = vadd.f32 0.0, %v8443
      %8445 = vmatmul.bf16.gmra.mxu0 %v8353
      %v8446 = vpop.f32.mrf.mxu0
      %v8447 = vadd.f32 0.0, %v8446
      %v8448 = vpop.f32.mrf.mxu0
      %v8449 = vadd.f32 0.0, %v8448
      %8450 = vmatmul.bf16.gmra.mxu0 %v8354
      %v8451 = vpop.f32.mrf.mxu0
      %v8452 = vadd.f32 0.0, %v8451
      %v8453 = vpop.f32.mrf.mxu0
      %v8454 = vadd.f32 0.0, %v8453
      %8455 = vmatmul.bf16.gmra.mxu0 %v8355
      %v8456 = vpop.f32.mrf.mxu0
      %v8457 = vadd.f32 0.0, %v8456
      %v8458 = vpop.f32.mrf.mxu0
      %v8459 = vadd.f32 0.0, %v8458
      %8460 = vmatmul.bf16.gmra.mxu0 %v8356
      %v8461 = vpop.f32.mrf.mxu0
      %v8462 = vadd.f32 0.0, %v8461
      %v8463 = vpop.f32.mrf.mxu0
      %v8464 = vadd.f32 0.0, %v8463
      %8465 = vmatmul.bf16.gmra.mxu0 %v8357
      %v8466 = vpop.f32.mrf.mxu0
      %v8467 = vadd.f32 0.0, %v8466
      %v8468 = vpop.f32.mrf.mxu0
      %v8469 = vadd.f32 0.0, %v8468
      %8470 = vmatmul.bf16.gmra.mxu0 %v8358
      %v8471 = vpop.f32.mrf.mxu0
      %v8472 = vadd.f32 0.0, %v8471
      %v8473 = vpop.f32.mrf.mxu0
      %v8474 = vadd.f32 0.0, %v8473
      %8475 = vmatmul.bf16.gmra.mxu0 %v8359
      %v8476 = vpop.f32.mrf.mxu0
      %v8477 = vadd.f32 0.0, %v8476
      %v8478 = vpop.f32.mrf.mxu0
      %v8479 = vadd.f32 0.0, %v8478
      %8480 = vmatmul.bf16.gmra.mxu0 %v8360
      %v8481 = vpop.f32.mrf.mxu0
      %v8482 = vadd.f32 0.0, %v8481
      %v8483 = vpop.f32.mrf.mxu0
      %v8484 = vadd.f32 0.0, %v8483
      %8485 = vmatmul.bf16.gmra.mxu0 %v8361
      %v8486 = vpop.f32.mrf.mxu0
      %v8487 = vadd.f32 0.0, %v8486
      %v8488 = vpop.f32.mrf.mxu0
      %v8489 = vadd.f32 0.0, %v8488
      %8490 = vmatmul.bf16.gmra.mxu0 %v8362
      %v8491 = vpop.f32.mrf.mxu0
      %v8492 = vadd.f32 0.0, %v8491
      %v8493 = vpop.f32.mrf.mxu0
      %v8494 = vadd.f32 0.0, %v8493
      %8495 = vmatmul.bf16.gmra.mxu0 %v8363
      %v8496 = vpop.f32.mrf.mxu0
      %v8497 = vadd.f32 0.0, %v8496
      %v8498 = vpop.f32.mrf.mxu0
      %v8499 = vadd.f32 0.0, %v8498
      %8500 = vmatmul.bf16.gmra.mxu0 %v8364
      %v8501 = vpop.f32.mrf.mxu0
      %v8502 = vadd.f32 0.0, %v8501
      %v8503 = vpop.f32.mrf.mxu0
      %v8504 = vadd.f32 0.0, %v8503
      %8505 = vmatmul.bf16.gmra.mxu0 %v8365
      %v8506 = vpop.f32.mrf.mxu0
      %v8507 = vadd.f32 0.0, %v8506
      %v8508 = vpop.f32.mrf.mxu0
      %v8509 = vadd.f32 0.0, %v8508
      %8510 = vmatmul.bf16.gmra.mxu0 %v8366
      %v8511 = vpop.f32.mrf.mxu0
      %v8512 = vadd.f32 0.0, %v8511
      %v8513 = vpop.f32.mrf.mxu0
      %v8514 = vadd.f32 0.0, %v8513
      %8515 = vmatmul.bf16.gmra.mxu0 %v8367
      %v8516 = vpop.f32.mrf.mxu0
      %v8517 = vadd.f32 0.0, %v8516
      %v8518 = vpop.f32.mrf.mxu0
      %v8519 = vadd.f32 0.0, %v8518
      %8520 = vdwg.mxu0
      %8521 = vst [vmem:[#allocation4] sm:$0xff] %v8442
      %8522 = vst [vmem:[#allocation4 + $0x8] sm:$0xff] %v8444
      %8523 = vst [vmem:[#allocation4 + $0x10] sm:$0xff] %v8447
      %8524 = vst [vmem:[#allocation4 + $0x18] sm:$0xff] %v8449
      %8525 = vst [vmem:[#allocation4 + $0x20] sm:$0xff] %v8452
      %8526 = vst [vmem:[#allocation4 + $0x28] sm:$0xff] %v8454
      %8527 = vst [vmem:[#allocation4 + $0x30] sm:$0xff] %v8457
      %8528 = vst [vmem:[#allocation4 + $0x38] sm:$0xff] %v8459
      %8529 = vst [vmem:[#allocation4 + $0x40] sm:$0xff] %v8462
      %8530 = vst [vmem:[#allocation4 + $0x48] sm:$0xff] %v8464
      %8531 = vst [vmem:[#allocation4 + $0x50] sm:$0xff] %v8467
      %8532 = vst [vmem:[#allocation4 + $0x58] sm:$0xff] %v8469
      %8533 = vst [vmem:[#allocation4 + $0x60] sm:$0xff] %v8472
      %8534 = vst [vmem:[#allocation4 + $0x68] sm:$0xff] %v8474
      %8535 = vst [vmem:[#allocation4 + $0x70] sm:$0xff] %v8477
      %8536 = vst [vmem:[#allocation4 + $0x78] sm:$0xff] %v8479
      %8537 = vst [vmem:[#allocation4 + $0x80] sm:$0xff] %v8482
      %8538 = vst [vmem:[#allocation4 + $0x88] sm:$0xff] %v8484
      %8539 = vst [vmem:[#allocation4 + $0x90] sm:$0xff] %v8487
      %8540 = vst [vmem:[#allocation4 + $0x98] sm:$0xff] %v8489
      %8541 = vst [vmem:[#allocation4 + $0xa0] sm:$0xff] %v8492
      %8542 = vst [vmem:[#allocation4 + $0xa8] sm:$0xff] %v8494
      %8543 = vst [vmem:[#allocation4 + $0xb0] sm:$0xff] %v8497
      %8544 = vst [vmem:[#allocation4 + $0xb8] sm:$0xff] %v8499
      %8545 = vst [vmem:[#allocation4 + $0xc0] sm:$0xff] %v8502
      %8546 = vst [vmem:[#allocation4 + $0xc8] sm:$0xff] %v8504
      %8547 = vst [vmem:[#allocation4 + $0xd0] sm:$0xff] %v8507
      %8548 = vst [vmem:[#allocation4 + $0xd8] sm:$0xff] %v8509
      %8549 = vst [vmem:[#allocation4 + $0xe0] sm:$0xff] %v8512
      %8550 = vst [vmem:[#allocation4 + $0xe8] sm:$0xff] %v8514
      %8551 = vst [vmem:[#allocation4 + $0xf0] sm:$0xff] %v8517
      %8552 = vst [vmem:[#allocation4 + $0xf8] sm:$0xff] %v8519
      %v8553 = vld [vmem:[%s273] sm:$0xff]
      %v8554 = vld [vmem:[%s273 + $0x8] sm:$0xff]
      %v8555 = vld [vmem:[%s273 + $0x10] sm:$0xff]
      %v8556 = vld [vmem:[%s273 + $0x18] sm:$0xff]
      %v8557 = vld [vmem:[%s273 + $0x20] sm:$0xff]
      %v8558 = vld [vmem:[%s273 + $0x28] sm:$0xff]
      %v8559 = vld [vmem:[%s273 + $0x30] sm:$0xff]
      %v8560 = vld [vmem:[%s273 + $0x38] sm:$0xff]
      %v8561 = vld [vmem:[%s273 + $0x40] sm:$0xff]
      %v8562 = vld [vmem:[%s273 + $0x48] sm:$0xff]
      %v8563 = vld [vmem:[%s273 + $0x50] sm:$0xff]
      %v8564 = vld [vmem:[%s273 + $0x58] sm:$0xff]
      %v8565 = vld [vmem:[%s273 + $0x60] sm:$0xff]
      %v8566 = vld [vmem:[%s273 + $0x68] sm:$0xff]
      %v8567 = vld [vmem:[%s273 + $0x70] sm:$0xff]
      %v8568 = vld [vmem:[%s273 + $0x78] sm:$0xff]
      %v8569 = vld [vmem:[%s273 + $0x80] sm:$0xff]
      %v8570 = vld [vmem:[%s273 + $0x88] sm:$0xff]
      %v8571 = vld [vmem:[%s273 + $0x90] sm:$0xff]
      %v8572 = vld [vmem:[%s273 + $0x98] sm:$0xff]
      %v8573 = vld [vmem:[%s273 + $0xa0] sm:$0xff]
      %v8574 = vld [vmem:[%s273 + $0xa8] sm:$0xff]
      %v8575 = vld [vmem:[%s273 + $0xb0] sm:$0xff]
      %v8576 = vld [vmem:[%s273 + $0xb8] sm:$0xff]
      %v8577 = vld [vmem:[%s273 + $0xc0] sm:$0xff]
      %v8578 = vld [vmem:[%s273 + $0xc8] sm:$0xff]
      %v8579 = vld [vmem:[%s273 + $0xd0] sm:$0xff]
      %v8580 = vld [vmem:[%s273 + $0xd8] sm:$0xff]
      %v8581 = vld [vmem:[%s273 + $0xe0] sm:$0xff]
      %v8582 = vld [vmem:[%s273 + $0xe8] sm:$0xff]
      %v8583 = vld [vmem:[%s273 + $0xf0] sm:$0xff]
      %v8584 = vld [vmem:[%s273 + $0xf8] sm:$0xff]
      %v8585 = vld [vmem:[#allocation4] sm:$0xff]
      %v8586 = vld [vmem:[#allocation4 + $0x8] sm:$0xff]
      %v8587 = vld [vmem:[#allocation4 + $0x10] sm:$0xff]
      %v8588 = vld [vmem:[#allocation4 + $0x18] sm:$0xff]
      %v8589 = vld [vmem:[#allocation4 + $0x20] sm:$0xff]
      %v8590 = vld [vmem:[#allocation4 + $0x28] sm:$0xff]
      %v8591 = vld [vmem:[#allocation4 + $0x30] sm:$0xff]
      %v8592 = vld [vmem:[#allocation4 + $0x38] sm:$0xff]
      %v8593 = vld [vmem:[#allocation4 + $0x40] sm:$0xff]
      %v8594 = vld [vmem:[#allocation4 + $0x48] sm:$0xff]
      %v8595 = vld [vmem:[#allocation4 + $0x50] sm:$0xff]
      %v8596 = vld [vmem:[#allocation4 + $0x58] sm:$0xff]
      %v8597 = vld [vmem:[#allocation4 + $0x60] sm:$0xff]
      %v8598 = vld [vmem:[#allocation4 + $0x68] sm:$0xff]
      %v8599 = vld [vmem:[#allocation4 + $0x70] sm:$0xff]
      %v8600 = vld [vmem:[#allocation4 + $0x78] sm:$0xff]
      %v8601 = vld [vmem:[#allocation4 + $0x80] sm:$0xff]
      %v8602 = vld [vmem:[#allocation4 + $0x88] sm:$0xff]
      %v8603 = vld [vmem:[#allocation4 + $0x90] sm:$0xff]
      %v8604 = vld [vmem:[#allocation4 + $0x98] sm:$0xff]
      %v8605 = vld [vmem:[#allocation4 + $0xa0] sm:$0xff]
      %v8606 = vld [vmem:[#allocation4 + $0xa8] sm:$0xff]
      %v8607 = vld [vmem:[#allocation4 + $0xb0] sm:$0xff]
      %v8608 = vld [vmem:[#allocation4 + $0xb8] sm:$0xff]
      %v8609 = vld [vmem:[#allocation4 + $0xc0] sm:$0xff]
      %v8610 = vld [vmem:[#allocation4 + $0xc8] sm:$0xff]
      %v8611 = vld [vmem:[#allocation4 + $0xd0] sm:$0xff]
      %v8612 = vld [vmem:[#allocation4 + $0xd8] sm:$0xff]
      %v8613 = vld [vmem:[#allocation4 + $0xe0] sm:$0xff]
      %v8614 = vld [vmem:[#allocation4 + $0xe8] sm:$0xff]
      %v8615 = vld [vmem:[#allocation4 + $0xf0] sm:$0xff]
      %v8616 = vld [vmem:[#allocation4 + $0xf8] sm:$0xff]
      %v8617 = vadd.f32 %v8585, %v8553
      %v8618 = vadd.f32 %v8586, %v8554
      %v8619 = vadd.f32 %v8587, %v8555
      %v8620 = vadd.f32 %v8588, %v8556
      %v8621 = vadd.f32 %v8589, %v8557
      %v8622 = vadd.f32 %v8590, %v8558
      %v8623 = vadd.f32 %v8591, %v8559
      %v8624 = vadd.f32 %v8592, %v8560
      %v8625 = vadd.f32 %v8593, %v8561
      %v8626 = vadd.f32 %v8594, %v8562
      %v8627 = vadd.f32 %v8595, %v8563
      %v8628 = vadd.f32 %v8596, %v8564
      %v8629 = vadd.f32 %v8597, %v8565
      %v8630 = vadd.f32 %v8598, %v8566
      %v8631 = vadd.f32 %v8599, %v8567
      %v8632 = vadd.f32 %v8600, %v8568
      %v8633 = vadd.f32 %v8601, %v8569
      %v8634 = vadd.f32 %v8602, %v8570
      %v8635 = vadd.f32 %v8603, %v8571
      %v8636 = vadd.f32 %v8604, %v8572
      %v8637 = vadd.f32 %v8605, %v8573
      %v8638 = vadd.f32 %v8606, %v8574
      %v8639 = vadd.f32 %v8607, %v8575
      %v8640 = vadd.f32 %v8608, %v8576
      %v8641 = vadd.f32 %v8609, %v8577
      %v8642 = vadd.f32 %v8610, %v8578
      %v8643 = vadd.f32 %v8611, %v8579
      %v8644 = vadd.f32 %v8612, %v8580
      %v8645 = vadd.f32 %v8613, %v8581
      %v8646 = vadd.f32 %v8614, %v8582
      %v8647 = vadd.f32 %v8615, %v8583
      %v8648 = vadd.f32 %v8616, %v8584
      %vm8649 = vcmask 64512
      %8650 = vst.msk [vmem:[%s278] sm:$0xff] %vm8649, %v8617
      %8651 = vst.msk [vmem:[%s278 + $0x8] sm:$0xff] %vm8649, %v8618
      %8652 = vst.msk [vmem:[%s278 + $0x10] sm:$0xff] %vm8649, %v8619
      %8653 = vst.msk [vmem:[%s278 + $0x18] sm:$0xff] %vm8649, %v8620
      %8654 = vst.msk [vmem:[%s278 + $0x20] sm:$0xff] %vm8649, %v8621
      %8655 = vst.msk [vmem:[%s278 + $0x28] sm:$0xff] %vm8649, %v8622
      %8656 = vst.msk [vmem:[%s278 + $0x30] sm:$0xff] %vm8649, %v8623
      %8657 = vst.msk [vmem:[%s278 + $0x38] sm:$0xff] %vm8649, %v8624
      %8658 = vst.msk [vmem:[%s278 + $0x40] sm:$0xff] %vm8649, %v8625
      %8659 = vst.msk [vmem:[%s278 + $0x48] sm:$0xff] %vm8649, %v8626
      %8660 = vst.msk [vmem:[%s278 + $0x50] sm:$0xff] %vm8649, %v8627
      %8661 = vst.msk [vmem:[%s278 + $0x58] sm:$0xff] %vm8649, %v8628
      %8662 = vst.msk [vmem:[%s278 + $0x60] sm:$0xff] %vm8649, %v8629
      %8663 = vst.msk [vmem:[%s278 + $0x68] sm:$0xff] %vm8649, %v8630
      %8664 = vst.msk [vmem:[%s278 + $0x70] sm:$0xff] %vm8649, %v8631
      %8665 = vst.msk [vmem:[%s278 + $0x78] sm:$0xff] %vm8649, %v8632
      %8666 = vst.msk [vmem:[%s278 + $0x80] sm:$0xff] %vm8649, %v8633
      %8667 = vst.msk [vmem:[%s278 + $0x88] sm:$0xff] %vm8649, %v8634
      %8668 = vst.msk [vmem:[%s278 + $0x90] sm:$0xff] %vm8649, %v8635
      %8669 = vst.msk [vmem:[%s278 + $0x98] sm:$0xff] %vm8649, %v8636
      %8670 = vst.msk [vmem:[%s278 + $0xa0] sm:$0xff] %vm8649, %v8637
      %8671 = vst.msk [vmem:[%s278 + $0xa8] sm:$0xff] %vm8649, %v8638
      %8672 = vst.msk [vmem:[%s278 + $0xb0] sm:$0xff] %vm8649, %v8639
      %8673 = vst.msk [vmem:[%s278 + $0xb8] sm:$0xff] %vm8649, %v8640
      %8674 = vst.msk [vmem:[%s278 + $0xc0] sm:$0xff] %vm8649, %v8641
      %8675 = vst.msk [vmem:[%s278 + $0xc8] sm:$0xff] %vm8649, %v8642
      %8676 = vst.msk [vmem:[%s278 + $0xd0] sm:$0xff] %vm8649, %v8643
      %8677 = vst.msk [vmem:[%s278 + $0xd8] sm:$0xff] %vm8649, %v8644
      %8678 = vst.msk [vmem:[%s278 + $0xe0] sm:$0xff] %vm8649, %v8645
      %8679 = vst.msk [vmem:[%s278 + $0xe8] sm:$0xff] %vm8649, %v8646
      %8680 = vst.msk [vmem:[%s278 + $0xf0] sm:$0xff] %vm8649, %v8647
      %8681 = vst.msk [vmem:[%s278 + $0xf8] sm:$0xff] %vm8649, %v8648
      %p8682 = scmp.lt.s32.totalorder %s18, 1
      %s8683 = scalar_select %p8682, %s18, 1
      %s8684 = smul.addr %s8683, 32
      %s8685 = smul.addr %s8684, 8
      %s8686 = scalar_lea.vmem %s7, %s8685
      // Predicated region
      $region49: #{tpu_custom_call.1} parent=47 // pred_check
        %p8687 = pneg %p188
      $region50: #{tpu_custom_call.1} parent=47 // pred_check_branch
        %8689 = sbr.rel (%p8687) target = $region52
      $region51: #{tpu_custom_call.1} parent=47 // pred_region
        _
      $region52: #{tpu_custom_call.1} parent=47 // pred_fallthru
        _
    $region48: #{tpu_custom_call.1} parent=5 // pred_fallthru
      _
    %p8690 = scmp.le.s32.totalorder 2, %s13
    // Predicated region
    $region53: #{tpu_custom_call.1} parent=5 // pred_check
      %p8691 = pneg %p8690
    $region54: #{tpu_custom_call.1} parent=5 // pred_check_branch
      %8693 = sbr.rel (%p8691) target = $region56
    $region55: #{tpu_custom_call.1} parent=5 // pred_region
      %s8694 = ssub.s32 %s13, 2
      // Predicated region
      $region57: #{tpu_custom_call.1} parent=55 // pred_check
        %p8695 = pneg %p194
      $region58: #{tpu_custom_call.1} parent=55 // pred_check_branch
        %8697 = sbr.rel (%p8695) target = $region60
      $region59: #{tpu_custom_call.1} parent=55 // pred_region
        %p8698 = scmp.lt.s32.totalorder %s19, 1
        %s8699 = scalar_select %p8698, %s19, 1
        %s8700 = smul.addr %s8699, 32
        %s8701 = smul.addr %s8700, 8
        %s8702 = scalar_lea.vmem %s7, %s8701
      $region60: #{tpu_custom_call.1} parent=55 // pred_fallthru
        _
    $region56: #{tpu_custom_call.1} parent=5 // pred_fallthru
      _
  $region6: #{tpu_custom_call.1} parent=0 // loop_footer
    %s17 = sadd.s32 1, %s13
  $region7: #{tpu_custom_call.1} parent=0 // loop_footer_branch
    %12 = sbr.rel target = $region3
  $region8: #{tpu_custom_call.1} parent=0 // loop_exit
    _

</llo_original>
